<compile_context>
chip_gen: v6e
topology: v6e:2x2x1
jax: 0.10.0
libtpu: 0.0.40
codegen_flags: <defaults>
</compile_context>

<pallas_src>
import functools

import numpy as np
import jax
import jax.numpy as jnp
from jax import lax
from jax.experimental import pallas as pl
from jax.experimental.pallas import tpu as pltpu


# ----------------------------------------------------------------------------
# Fused kernel: dual 1x1 -> (1,7) conv -> (7,1) conv -> concat+1x1+BN head
# ----------------------------------------------------------------------------
def _fused_block_kernel(x_ref, w1_ref, b1_ref, w2_ref, b2_ref,
                        wc2_ref, bc2_ref, wc3_ref, bc3_ref,
                        wa_ref, wb_ref, b3_ref, g_ref, bt_ref,
                        o_ref, pad_ref,
                        *, n, h, w, k2, k3, scale, eps):
    m = n * h * w
    f32 = jnp.float32
    bf16 = jnp.bfloat16

    # ---- p1_conv1 (1088->192) and p2_conv1 (1088->128): 1x1 convs + ReLU ----
    xb = x_ref[...]                                            # (M, Cin) bf16
    x1 = jnp.maximum(
        jnp.dot(xb, w1_ref[...], preferred_element_type=f32) + b1_ref[...], 0.0)
    x2 = jnp.maximum(
        jnp.dot(xb, w2_ref[...], preferred_element_type=f32) + b2_ref[...], 0.0)

    # ---- p2_conv2: (1,7) conv along W (W is the sublane axis) ----
    c2in = x2.shape[-1]
    c2out = wc2_ref.shape[-1]
    # Zero-padded activation in VMEM scratch; interior store is sublane-aligned
    # (offset 8, width w, f32 sublane tile = 8).
    pad_ref[...] = jnp.zeros(pad_ref.shape, pad_ref.dtype)
    pad_ref[:, :, 8:8 + w, :] = x2.reshape(n, h, w, c2in)
    acc = jnp.zeros((m, c2out), f32)
    for t in range(k2):                                        # static unroll
        s = 8 - (k2 // 2) + t
        xs = pad_ref[:, :, s:s + w, :].reshape(m, c2in).astype(bf16)
        acc = acc + jnp.dot(xs, wc2_ref[t], preferred_element_type=f32)
    x2 = jnp.maximum(acc + bc2_ref[...], 0.0)                  # (M, 160) f32

    # ---- p2_conv3: (7,1) conv along H (H is an outer axis: cheap slices) ----
    c3in = x2.shape[-1]
    c3out = wc3_ref.shape[-1]
    ph = k3 // 2
    x2_4d = x2.reshape(n, h, w, c3in)
    zpad = jnp.zeros((n, ph, w, c3in), f32)
    xp = jnp.concatenate([zpad, x2_4d, zpad], axis=1)          # (n, h+2*ph, w, c)
    acc = jnp.zeros((m, c3out), f32)
    for t in range(k3):                                        # static unroll
        xs = xp[:, t:t + h, :, :].reshape(m, c3in).astype(bf16)
        acc = acc + jnp.dot(xs, wc3_ref[t], preferred_element_type=f32)
    x2 = jnp.maximum(acc + bc3_ref[...], 0.0)                  # (M, 192) f32

    # ---- head: cat folded into matmul + ReLU + *scale + BN(batch) + ReLU ----
    z = jnp.dot(x1.astype(bf16), wa_ref[...], preferred_element_type=f32)
    z = z + jnp.dot(x2.astype(bf16), wb_ref[...], preferred_element_type=f32)
    z = jnp.maximum(z + b3_ref[...], 0.0) * scale
    inv_m = 1.0 / m
    mean = jnp.sum(z, axis=0, keepdims=True) * inv_m           # one-pass stats
    ex2 = jnp.sum(z * z, axis=0, keepdims=True) * inv_m
    var = ex2 - mean * mean
    y = (z - mean) * lax.rsqrt(var + eps) * g_ref[...] + bt_ref[...]
    o_ref[...] = jnp.maximum(y, 0.0)


# ----------------------------------------------------------------------------
# Wrapper: NCHW in -> NCHW out (PyTorch parity); one pallas_call total.
# ----------------------------------------------------------------------------
def inception_resnet_v2_b(x_nchw, p, scale=True, eps=1e-5):
    n, cin, h, w = x_nchw.shape
    m = n * h * w
    assert w % 8 == 0, "W must be a multiple of 8 (sublane-aligned pixel rows)"

    c1 = p["p1_conv1_w"].shape[0]     # 192
    c2 = p["p2_conv1_w"].shape[0]     # 128
    c3 = p["p2_conv2_w"].shape[0]     # 160
    c4 = p["p2_conv3_w"].shape[0]     # 192
    co = p["p3_conv_w"].shape[0]      # 1088
    k2 = p["p2_conv2_w"].shape[3]     # 7  (1x7 over W)
    k3 = p["p2_conv3_w"].shape[2]     # 7  (7x1 over H)
    assert k2 % 2 == 1 and k3 % 2 == 1 and k2 // 2 <= 8 and k3 // 2 <= h

    bf = jnp.bfloat16
    # Pixel matrix in (n, h, w) row order; bf16 cast fuses into the transpose.
    x2d = jnp.transpose(x_nchw, (0, 2, 3, 1)).reshape(m, cin).astype(bf)
    w1 = jnp.transpose(p["p1_conv1_w"].reshape(c1, cin)).astype(bf)
    w2 = jnp.transpose(p["p2_conv1_w"].reshape(c2, cin)).astype(bf)
    wc2 = jnp.transpose(p["p2_conv2_w"].reshape(c3, c2, k2), (2, 1, 0)).astype(bf)
    wc3 = jnp.transpose(p["p2_conv3_w"].reshape(c4, c3, k3), (2, 1, 0)).astype(bf)
    w3 = jnp.transpose(p["p3_conv_w"].reshape(co, c1 + c4)).astype(bf)   # (384, co)
    wa, wb = w3[:c1], w3[c1:]        # cat([X1, X2]) @ W == X1 @ Wa + X2 @ Wb

    kern = functools.partial(_fused_block_kernel, n=n, h=h, w=w, k2=k2, k3=k3,
                             scale=(0.1 if scale else 1.0), eps=eps)
    full2 = lambda i: (0, 0)
    full3 = lambda i: (0, 0, 0)

    out2d = pl.pallas_call(
        kern,
        out_shape=jax.ShapeDtypeStruct((m, co), jnp.float32),
        grid=(1,),
        in_specs=[
            pl.BlockSpec((m, cin), full2),                       # x
            pl.BlockSpec((cin, c1), full2), pl.BlockSpec((1, c1), full2),
            pl.BlockSpec((cin, c2), full2), pl.BlockSpec((1, c2), full2),
            pl.BlockSpec((k2, c2, c3), full3), pl.BlockSpec((1, c3), full2),
            pl.BlockSpec((k3, c3, c4), full3), pl.BlockSpec((1, c4), full2),
            pl.BlockSpec((c1, co), full2), pl.BlockSpec((c4, co), full2),
            pl.BlockSpec((1, co), full2),
            pl.BlockSpec((1, co), full2), pl.BlockSpec((1, co), full2),
        ],
        out_specs=pl.BlockSpec((m, co), full2),
        scratch_shapes=[pltpu.VMEM((n, h, w + 16, c2), jnp.float32)],
        compiler_params=pltpu.CompilerParams(
            dimension_semantics=("arbitrary",)),
    )(x2d, w1, p["p1_conv1_b"].reshape(1, c1),
      w2, p["p2_conv1_b"].reshape(1, c2),
      wc2, p["p2_conv2_b"].reshape(1, c3),
      wc3, p["p2_conv3_b"].reshape(1, c4),
      wa, wb, p["p3_conv_b"].reshape(1, co),
      p["bn_gamma"].reshape(1, co), p["bn_beta"].reshape(1, co))

    out = out2d.reshape(n, h, w, co)
    return jnp.transpose(out, (0, 3, 1, 2))   # NCHW, PyTorch parity


# ----------------------------------------------------------------------------
# Pure-JAX reference (mirrors the PyTorch forward, training-mode BatchNorm)
# ----------------------------------------------------------------------------
def reference_forward(x, p, scale=True, eps=1e-5):
    def conv(v, wgt, b, ph, pw):
        y = lax.conv_general_dilated(
            v, wgt, (1, 1), [(ph, ph), (pw, pw)],
            dimension_numbers=("NCHW", "OIHW", "NCHW"),
            precision=lax.Precision.HIGHEST)
        return y + b[None, :, None, None]

    relu = lambda v: jnp.maximum(v, 0.0)
    x1 = relu(conv(x, p["p1_conv1_w"], p["p1_conv1_b"], 0, 0))
    x2 = relu(conv(x, p["p2_conv1_w"], p["p2_conv1_b"], 0, 0))
    x2 = relu(conv(x2, p["p2_conv2_w"], p["p2_conv2_b"], 0, 3))
    x2 = relu(conv(x2, p["p2_conv3_w"], p["p2_conv3_b"], 3, 0))
    xc = jnp.concatenate([x1, x2], axis=1)
    y = relu(conv(xc, p["p3_conv_w"], p["p3_conv_b"], 0, 0))
    if scale:
        y = y * 0.1
    mean = jnp.mean(y, axis=(0, 2, 3), keepdims=True)
    var = jnp.mean((y - mean) ** 2, axis=(0, 2, 3), keepdims=True)
    y = (y - mean) / jnp.sqrt(var + eps)
    y = y * p["bn_gamma"][None, :, None, None] + p["bn_beta"][None, :, None, None]
    return relu(y)


# ----------------------------------------------------------------------------
# Deterministic params (PyTorch Conv2d default-style uniform init)
# ----------------------------------------------------------------------------
def _init_conv(key, cout, cin, kh, kw):
    k1, k2 = jax.random.split(key)
    bound = 1.0 / np.sqrt(cin * kh * kw)
    wgt = jax.random.uniform(k1, (cout, cin, kh, kw), jnp.float32, -bound, bound)
    b = jax.random.uniform(k2, (cout,), jnp.float32, -bound, bound)
    return wgt, b


def make_params(key):
    keys = jax.random.split(key, 5)
    p = {}
    p["p1_conv1_w"], p["p1_conv1_b"] = _init_conv(keys[0], 192, 1088, 1, 1)
    p["p2_conv1_w"], p["p2_conv1_b"] = _init_conv(keys[1], 128, 1088, 1, 1)
    p["p2_conv2_w"], p["p2_conv2_b"] = _init_conv(keys[2], 160, 128, 1, 7)
    p["p2_conv3_w"], p["p2_conv3_b"] = _init_conv(keys[3], 192, 160, 7, 1)
    p["p3_conv_w"], p["p3_conv_b"] = _init_conv(keys[4], 1088, 384, 1, 1)
    p["bn_gamma"] = jnp.ones((1088,), jnp.float32)    # PyTorch BN affine defaults
    p["bn_beta"] = jnp.zeros((1088,), jnp.float32)
    return p


if __name__ == "__main__":
    root = jax.random.PRNGKey(0)
    kx, kp = jax.random.split(root)

    # Channel count (1088) is fixed by the module; keep batch/spatial small.
    x = jax.random.normal(kx, (2, 1088, 8, 8), jnp.float32)   # NCHW, like PyTorch
    params = make_params(kp)

    fwd = jax.jit(functools.partial(inception_resnet_v2_b, scale=True))
    out = jax.block_until_ready(fwd(x, params))
    assert out.shape == (2, 1088, 8, 8)

    ref = jax.block_until_ready(
        jax.jit(functools.partial(reference_forward, scale=True))(x, params))

    out_np = np.asarray(out, dtype=np.float64)
    ref_np = np.asarray(ref, dtype=np.float64)
    # bf16 MXU inputs vs. an f32 HIGHEST reference through 1088/896/1120/384-deep
    # contractions and a batch-stats BN: compare with norm-based bounds that are
    # loose to bf16 rounding but tight against any structural/padding bug.
    rel = np.linalg.norm(out_np - ref_np) / max(np.linalg.norm(ref_np), 1e-12)
    max_abs = float(np.max(np.abs(out_np - ref_np)))
    assert rel < 2e-2, f"relative Frobenius error too large: {rel}"
    assert max_abs < 0.25, f"max abs error too large: {max_abs}"

    print("KERNEL_OK")
</pallas_src>

<mosaic_0001>
module attributes {stable_mosaic.version = 11 : i64} {
  func.func @_fused_block_kernel(%arg0: i32, %arg1: memref<128x1088xbf16, #tpu.memory_space<vmem>>, %arg2: memref<1088x192xbf16, #tpu.memory_space<vmem>>, %arg3: memref<1x192xf32, #tpu.memory_space<vmem>>, %arg4: memref<1088x128xbf16, #tpu.memory_space<vmem>>, %arg5: memref<1x128xf32, #tpu.memory_space<vmem>>, %arg6: memref<7x128x160xbf16, #tpu.memory_space<vmem>>, %arg7: memref<1x160xf32, #tpu.memory_space<vmem>>, %arg8: memref<7x160x192xbf16, #tpu.memory_space<vmem>>, %arg9: memref<1x192xf32, #tpu.memory_space<vmem>>, %arg10: memref<192x1088xbf16, #tpu.memory_space<vmem>>, %arg11: memref<192x1088xbf16, #tpu.memory_space<vmem>>, %arg12: memref<1x1088xf32, #tpu.memory_space<vmem>>, %arg13: memref<1x1088xf32, #tpu.memory_space<vmem>>, %arg14: memref<1x1088xf32, #tpu.memory_space<vmem>>, %arg15: memref<128x1088xf32, #tpu.memory_space<vmem>>, %arg16: memref<2x8x24x128xf32, #tpu.memory_space<vmem>>) attributes {dimension_semantics = [#tpu.dimension_semantics<arbitrary>], iteration_bounds = array<i64: 1>, scalar_prefetch = 0 : i64, scratch_operands = 1 : i64, tpu.core_type = #tpu.core_type<tc>, window_params = [{pipeline_mode = #tpu.pipeline_mode<synchronous>, transform_indices = @transform_0, window_bounds = array<i64: 128, 1088>}, {pipeline_mode = #tpu.pipeline_mode<synchronous>, transform_indices = @transform_1, window_bounds = array<i64: 1088, 192>}, {pipeline_mode = #tpu.pipeline_mode<synchronous>, transform_indices = @transform_2, window_bounds = array<i64: 1, 192>}, {pipeline_mode = #tpu.pipeline_mode<synchronous>, transform_indices = @transform_3, window_bounds = array<i64: 1088, 128>}, {pipeline_mode = #tpu.pipeline_mode<synchronous>, transform_indices = @transform_4, window_bounds = array<i64: 1, 128>}, {pipeline_mode = #tpu.pipeline_mode<synchronous>, transform_indices = @transform_5, window_bounds = array<i64: 7, 128, 160>}, {pipeline_mode = #tpu.pipeline_mode<synchronous>, transform_indices = @transform_6, window_bounds = array<i64: 1, 160>}, {pipeline_mode = #tpu.pipeline_mode<synchronous>, transform_indices = @transform_7, window_bounds = array<i64: 7, 160, 192>}, {pipeline_mode = #tpu.pipeline_mode<synchronous>, transform_indices = @transform_8, window_bounds = array<i64: 1, 192>}, {pipeline_mode = #tpu.pipeline_mode<synchronous>, transform_indices = @transform_9, window_bounds = array<i64: 192, 1088>}, {pipeline_mode = #tpu.pipeline_mode<synchronous>, transform_indices = @transform_10, window_bounds = array<i64: 192, 1088>}, {pipeline_mode = #tpu.pipeline_mode<synchronous>, transform_indices = @transform_11, window_bounds = array<i64: 1, 1088>}, {pipeline_mode = #tpu.pipeline_mode<synchronous>, transform_indices = @transform_12, window_bounds = array<i64: 1, 1088>}, {pipeline_mode = #tpu.pipeline_mode<synchronous>, transform_indices = @transform_13, window_bounds = array<i64: 1, 1088>}, {pipeline_mode = #tpu.pipeline_mode<synchronous>, transform_indices = @transform_14, window_bounds = array<i64: 128, 1088>}]} {
    %c0 = arith.constant 0 : index
    %c0_0 = arith.constant 0 : index
    %0 = vector.load %arg1[%c0, %c0_0] : memref<128x1088xbf16, #tpu.memory_space<vmem>>, vector<128x1088xbf16>
    %c0_1 = arith.constant 0 : index
    %c0_2 = arith.constant 0 : index
    %1 = vector.load %arg2[%c0_1, %c0_2] : memref<1088x192xbf16, #tpu.memory_space<vmem>>, vector<1088x192xbf16>
    %cst = arith.constant dense<0.000000e+00> : vector<128x192xf32>
    %2 = tpu.matmul %0, %1, %cst {dimension_numbers = #tpu.dot_dimension_numbers<[1], [0], [0], [1], [0, 0, 1, 1], [], []>} : vector<128x1088xbf16>, vector<1088x192xbf16>, vector<128x192xf32> -> vector<128x192xf32>
    %c0_3 = arith.constant 0 : index
    %c0_4 = arith.constant 0 : index
    %3 = vector.load %arg3[%c0_3, %c0_4] : memref<1x192xf32, #tpu.memory_space<vmem>>, vector<1x192xf32>
    %4 = vector.broadcast %3 : vector<1x192xf32> to vector<128x192xf32>
    %5 = arith.addf %2, %4 : vector<128x192xf32>
    %cst_5 = arith.constant 0.000000e+00 : f32
    %6 = vector.broadcast %cst_5 : f32 to vector<128x192xf32>
    %7 = arith.maximumf %5, %6 : vector<128x192xf32>
    %c0_6 = arith.constant 0 : index
    %c0_7 = arith.constant 0 : index
    %8 = vector.load %arg4[%c0_6, %c0_7] : memref<1088x128xbf16, #tpu.memory_space<vmem>>, vector<1088x128xbf16>
    %cst_8 = arith.constant dense<0.000000e+00> : vector<128x128xf32>
    %9 = tpu.matmul %0, %8, %cst_8 {dimension_numbers = #tpu.dot_dimension_numbers<[1], [0], [0], [1], [0, 0, 1, 1], [], []>} : vector<128x1088xbf16>, vector<1088x128xbf16>, vector<128x128xf32> -> vector<128x128xf32>
    %c0_9 = arith.constant 0 : index
    %c0_10 = arith.constant 0 : index
    %10 = vector.load %arg5[%c0_9, %c0_10] : memref<1x128xf32, #tpu.memory_space<vmem>>, vector<1x128xf32>
    %11 = vector.broadcast %10 : vector<1x128xf32> to vector<128x128xf32>
    %12 = arith.addf %9, %11 : vector<128x128xf32>
    %cst_11 = arith.constant 0.000000e+00 : f32
    %13 = vector.broadcast %cst_11 : f32 to vector<128x128xf32>
    %14 = arith.maximumf %12, %13 : vector<128x128xf32>
    %cst_12 = arith.constant 0.000000e+00 : f32
    %15 = vector.broadcast %cst_12 : f32 to vector<2x8x24x128xf32>
    %c0_13 = arith.constant 0 : index
    %c0_14 = arith.constant 0 : index
    %c0_15 = arith.constant 0 : index
    %c0_16 = arith.constant 0 : index
    %16 = vector.load %arg16[%c0_13, %c0_14, %c0_15, %c0_16] : memref<2x8x24x128xf32, #tpu.memory_space<vmem>>, vector<2x8x24x128xf32>
    tpu.vector_store %arg16[%c0_13, %c0_14, %c0_15, %c0_16], %15 {strides = array<i32>} : memref<2x8x24x128xf32, #tpu.memory_space<vmem>>, vector<2x8x24x128xf32>,
    %17 = vector.shape_cast %14 : vector<128x128xf32> to vector<2x8x8x128xf32>
    %c0_17 = arith.constant 0 : index
    %c0_18 = arith.constant 0 : index
    %c8 = arith.constant 8 : index
    %c0_19 = arith.constant 0 : index
    %18 = vector.load %arg16[%c0_17, %c0_18, %c8, %c0_19] : memref<2x8x24x128xf32, #tpu.memory_space<vmem>>, vector<2x8x8x128xf32>
    tpu.vector_store %arg16[%c0_17, %c0_18, %c8, %c0_19], %17 {strides = array<i32>} : memref<2x8x24x128xf32, #tpu.memory_space<vmem>>, vector<2x8x8x128xf32>,
    %cst_20 = arith.constant 0.000000e+00 : f32
    %19 = vector.broadcast %cst_20 : f32 to vector<128x160xf32>
    %c0_21 = arith.constant 0 : index
    %c0_22 = arith.constant 0 : index
    %c5 = arith.constant 5 : index
    %c0_23 = arith.constant 0 : index
    %20 = vector.load %arg16[%c0_21, %c0_22, %c5, %c0_23] : memref<2x8x24x128xf32, #tpu.memory_space<vmem>>, vector<2x8x8x128xf32>
    %21 = vector.shape_cast %20 : vector<2x8x8x128xf32> to vector<128x128xf32>
    %22 = arith.truncf %21 : vector<128x128xf32> to vector<128x128xbf16>
    %c0_24 = arith.constant 0 : index
    %c0_25 = arith.constant 0 : index
    %c0_26 = arith.constant 0 : index
    %23 = vector.load %arg6[%c0_24, %c0_25, %c0_26] : memref<7x128x160xbf16, #tpu.memory_space<vmem>>, vector<1x128x160xbf16>
    %24 = vector.shape_cast %23 : vector<1x128x160xbf16> to vector<128x160xbf16>
    %cst_27 = arith.constant dense<0.000000e+00> : vector<128x160xf32>
    %25 = tpu.matmul %22, %24, %cst_27 {dimension_numbers = #tpu.dot_dimension_numbers<[1], [0], [0], [1], [0, 0, 1, 1], [], []>} : vector<128x128xbf16>, vector<128x160xbf16>, vector<128x160xf32> -> vector<128x160xf32>
    %26 = arith.addf %19, %25 : vector<128x160xf32>
    %c0_28 = arith.constant 0 : index
    %c0_29 = arith.constant 0 : index
    %c6 = arith.constant 6 : index
    %c0_30 = arith.constant 0 : index
    %27 = vector.load %arg16[%c0_28, %c0_29, %c6, %c0_30] : memref<2x8x24x128xf32, #tpu.memory_space<vmem>>, vector<2x8x8x128xf32>
    %28 = vector.shape_cast %27 : vector<2x8x8x128xf32> to vector<128x128xf32>
    %29 = arith.truncf %28 : vector<128x128xf32> to vector<128x128xbf16>
    %c1 = arith.constant 1 : index
    %c0_31 = arith.constant 0 : index
    %c0_32 = arith.constant 0 : index
    %30 = vector.load %arg6[%c1, %c0_31, %c0_32] : memref<7x128x160xbf16, #tpu.memory_space<vmem>>, vector<1x128x160xbf16>
    %31 = vector.shape_cast %30 : vector<1x128x160xbf16> to vector<128x160xbf16>
    %cst_33 = arith.constant dense<0.000000e+00> : vector<128x160xf32>
    %32 = tpu.matmul %29, %31, %cst_33 {dimension_numbers = #tpu.dot_dimension_numbers<[1], [0], [0], [1], [0, 0, 1, 1], [], []>} : vector<128x128xbf16>, vector<128x160xbf16>, vector<128x160xf32> -> vector<128x160xf32>
    %33 = arith.addf %26, %32 : vector<128x160xf32>
    %c0_34 = arith.constant 0 : index
    %c0_35 = arith.constant 0 : index
    %c7 = arith.constant 7 : index
    %c0_36 = arith.constant 0 : index
    %34 = vector.load %arg16[%c0_34, %c0_35, %c7, %c0_36] : memref<2x8x24x128xf32, #tpu.memory_space<vmem>>, vector<2x8x8x128xf32>
    %35 = vector.shape_cast %34 : vector<2x8x8x128xf32> to vector<128x128xf32>
    %36 = arith.truncf %35 : vector<128x128xf32> to vector<128x128xbf16>
    %c2 = arith.constant 2 : index
    %c0_37 = arith.constant 0 : index
    %c0_38 = arith.constant 0 : index
    %37 = vector.load %arg6[%c2, %c0_37, %c0_38] : memref<7x128x160xbf16, #tpu.memory_space<vmem>>, vector<1x128x160xbf16>
    %38 = vector.shape_cast %37 : vector<1x128x160xbf16> to vector<128x160xbf16>
    %cst_39 = arith.constant dense<0.000000e+00> : vector<128x160xf32>
    %39 = tpu.matmul %36, %38, %cst_39 {dimension_numbers = #tpu.dot_dimension_numbers<[1], [0], [0], [1], [0, 0, 1, 1], [], []>} : vector<128x128xbf16>, vector<128x160xbf16>, vector<128x160xf32> -> vector<128x160xf32>
    %40 = arith.addf %33, %39 : vector<128x160xf32>
    %c0_40 = arith.constant 0 : index
    %c0_41 = arith.constant 0 : index
    %c8_42 = arith.constant 8 : index
    %c0_43 = arith.constant 0 : index
    %41 = vector.load %arg16[%c0_40, %c0_41, %c8_42, %c0_43] : memref<2x8x24x128xf32, #tpu.memory_space<vmem>>, vector<2x8x8x128xf32>
    %42 = vector.shape_cast %41 : vector<2x8x8x128xf32> to vector<128x128xf32>
    %43 = arith.truncf %42 : vector<128x128xf32> to vector<128x128xbf16>
    %c3 = arith.constant 3 : index
    %c0_44 = arith.constant 0 : index
    %c0_45 = arith.constant 0 : index
    %44 = vector.load %arg6[%c3, %c0_44, %c0_45] : memref<7x128x160xbf16, #tpu.memory_space<vmem>>, vector<1x128x160xbf16>
    %45 = vector.shape_cast %44 : vector<1x128x160xbf16> to vector<128x160xbf16>
    %cst_46 = arith.constant dense<0.000000e+00> : vector<128x160xf32>
    %46 = tpu.matmul %43, %45, %cst_46 {dimension_numbers = #tpu.dot_dimension_numbers<[1], [0], [0], [1], [0, 0, 1, 1], [], []>} : vector<128x128xbf16>, vector<128x160xbf16>, vector<128x160xf32> -> vector<128x160xf32>
    %47 = arith.addf %40, %46 : vector<128x160xf32>
    %c0_47 = arith.constant 0 : index
    %c0_48 = arith.constant 0 : index
    %c9 = arith.constant 9 : index
    %c0_49 = arith.constant 0 : index
    %48 = vector.load %arg16[%c0_47, %c0_48, %c9, %c0_49] : memref<2x8x24x128xf32, #tpu.memory_space<vmem>>, vector<2x8x8x128xf32>
    %49 = vector.shape_cast %48 : vector<2x8x8x128xf32> to vector<128x128xf32>
    %50 = arith.truncf %49 : vector<128x128xf32> to vector<128x128xbf16>
    %c4 = arith.constant 4 : index
    %c0_50 = arith.constant 0 : index
    %c0_51 = arith.constant 0 : index
    %51 = vector.load %arg6[%c4, %c0_50, %c0_51] : memref<7x128x160xbf16, #tpu.memory_space<vmem>>, vector<1x128x160xbf16>
    %52 = vector.shape_cast %51 : vector<1x128x160xbf16> to vector<128x160xbf16>
    %cst_52 = arith.constant dense<0.000000e+00> : vector<128x160xf32>
    %53 = tpu.matmul %50, %52, %cst_52 {dimension_numbers = #tpu.dot_dimension_numbers<[1], [0], [0], [1], [0, 0, 1, 1], [], []>} : vector<128x128xbf16>, vector<128x160xbf16>, vector<128x160xf32> -> vector<128x160xf32>
    %54 = arith.addf %47, %53 : vector<128x160xf32>
    %c0_53 = arith.constant 0 : index
    %c0_54 = arith.constant 0 : index
    %c10 = arith.constant 10 : index
    %c0_55 = arith.constant 0 : index
    %55 = vector.load %arg16[%c0_53, %c0_54, %c10, %c0_55] : memref<2x8x24x128xf32, #tpu.memory_space<vmem>>, vector<2x8x8x128xf32>
    %56 = vector.shape_cast %55 : vector<2x8x8x128xf32> to vector<128x128xf32>
    %57 = arith.truncf %56 : vector<128x128xf32> to vector<128x128xbf16>
    %c5_56 = arith.constant 5 : index
    %c0_57 = arith.constant 0 : index
    %c0_58 = arith.constant 0 : index
    %58 = vector.load %arg6[%c5_56, %c0_57, %c0_58] : memref<7x128x160xbf16, #tpu.memory_space<vmem>>, vector<1x128x160xbf16>
    %59 = vector.shape_cast %58 : vector<1x128x160xbf16> to vector<128x160xbf16>
    %cst_59 = arith.constant dense<0.000000e+00> : vector<128x160xf32>
    %60 = tpu.matmul %57, %59, %cst_59 {dimension_numbers = #tpu.dot_dimension_numbers<[1], [0], [0], [1], [0, 0, 1, 1], [], []>} : vector<128x128xbf16>, vector<128x160xbf16>, vector<128x160xf32> -> vector<128x160xf32>
    %61 = arith.addf %54, %60 : vector<128x160xf32>
    %c0_60 = arith.constant 0 : index
    %c0_61 = arith.constant 0 : index
    %c11 = arith.constant 11 : index
    %c0_62 = arith.constant 0 : index
    %62 = vector.load %arg16[%c0_60, %c0_61, %c11, %c0_62] : memref<2x8x24x128xf32, #tpu.memory_space<vmem>>, vector<2x8x8x128xf32>
    %63 = vector.shape_cast %62 : vector<2x8x8x128xf32> to vector<128x128xf32>
    %64 = arith.truncf %63 : vector<128x128xf32> to vector<128x128xbf16>
    %c6_63 = arith.constant 6 : index
    %c0_64 = arith.constant 0 : index
    %c0_65 = arith.constant 0 : index
    %65 = vector.load %arg6[%c6_63, %c0_64, %c0_65] : memref<7x128x160xbf16, #tpu.memory_space<vmem>>, vector<1x128x160xbf16>
    %66 = vector.shape_cast %65 : vector<1x128x160xbf16> to vector<128x160xbf16>
    %cst_66 = arith.constant dense<0.000000e+00> : vector<128x160xf32>
    %67 = tpu.matmul %64, %66, %cst_66 {dimension_numbers = #tpu.dot_dimension_numbers<[1], [0], [0], [1], [0, 0, 1, 1], [], []>} : vector<128x128xbf16>, vector<128x160xbf16>, vector<128x160xf32> -> vector<128x160xf32>
    %68 = arith.addf %61, %67 : vector<128x160xf32>
    %c0_67 = arith.constant 0 : index
    %c0_68 = arith.constant 0 : index
    %69 = vector.load %arg7[%c0_67, %c0_68] : memref<1x160xf32, #tpu.memory_space<vmem>>, vector<1x160xf32>
    %70 = vector.broadcast %69 : vector<1x160xf32> to vector<128x160xf32>
    %71 = arith.addf %68, %70 : vector<128x160xf32>
    %cst_69 = arith.constant 0.000000e+00 : f32
    %72 = vector.broadcast %cst_69 : f32 to vector<128x160xf32>
    %73 = arith.maximumf %71, %72 : vector<128x160xf32>
    %74 = vector.shape_cast %73 : vector<128x160xf32> to vector<2x8x8x160xf32>
    %cst_70 = arith.constant 0.000000e+00 : f32
    %75 = vector.broadcast %cst_70 : f32 to vector<2x3x8x160xf32>
    %76 = tpu.concatenate %75, %74, %75 in 1 : vector<2x3x8x160xf32>, vector<2x8x8x160xf32>, vector<2x3x8x160xf32> -> vector<2x14x8x160xf32>
    %cst_71 = arith.constant 0.000000e+00 : f32
    %77 = vector.broadcast %cst_71 : f32 to vector<128x192xf32>
    %78 = vector.extract_strided_slice %76 {offsets = [0, 0, 0, 0], sizes = [2, 8, 8, 160], strides = [1, 1, 1, 1]} : vector<2x14x8x160xf32> to vector<2x8x8x160xf32>
    %79 = vector.shape_cast %78 : vector<2x8x8x160xf32> to vector<128x160xf32>
    %80 = arith.truncf %79 : vector<128x160xf32> to vector<128x160xbf16>
    %c0_72 = arith.constant 0 : index
    %c0_73 = arith.constant 0 : index
    %c0_74 = arith.constant 0 : index
    %81 = vector.load %arg8[%c0_72, %c0_73, %c0_74] : memref<7x160x192xbf16, #tpu.memory_space<vmem>>, vector<1x160x192xbf16>
    %82 = vector.shape_cast %81 : vector<1x160x192xbf16> to vector<160x192xbf16>
    %cst_75 = arith.constant dense<0.000000e+00> : vector<128x192xf32>
    %83 = tpu.matmul %80, %82, %cst_75 {dimension_numbers = #tpu.dot_dimension_numbers<[1], [0], [0], [1], [0, 0, 1, 1], [], []>} : vector<128x160xbf16>, vector<160x192xbf16>, vector<128x192xf32> -> vector<128x192xf32>
    %84 = arith.addf %77, %83 : vector<128x192xf32>
    %85 = vector.extract_strided_slice %76 {offsets = [0, 1, 0, 0], sizes = [2, 8, 8, 160], strides = [1, 1, 1, 1]} : vector<2x14x8x160xf32> to vector<2x8x8x160xf32>
    %86 = vector.shape_cast %85 : vector<2x8x8x160xf32> to vector<128x160xf32>
    %87 = arith.truncf %86 : vector<128x160xf32> to vector<128x160xbf16>
    %c1_76 = arith.constant 1 : index
    %c0_77 = arith.constant 0 : index
    %c0_78 = arith.constant 0 : index
    %88 = vector.load %arg8[%c1_76, %c0_77, %c0_78] : memref<7x160x192xbf16, #tpu.memory_space<vmem>>, vector<1x160x192xbf16>
    %89 = vector.shape_cast %88 : vector<1x160x192xbf16> to vector<160x192xbf16>
    %cst_79 = arith.constant dense<0.000000e+00> : vector<128x192xf32>
    %90 = tpu.matmul %87, %89, %cst_79 {dimension_numbers = #tpu.dot_dimension_numbers<[1], [0], [0], [1], [0, 0, 1, 1], [], []>} : vector<128x160xbf16>, vector<160x192xbf16>, vector<128x192xf32> -> vector<128x192xf32>
    %91 = arith.addf %84, %90 : vector<128x192xf32>
    %92 = vector.extract_strided_slice %76 {offsets = [0, 2, 0, 0], sizes = [2, 8, 8, 160], strides = [1, 1, 1, 1]} : vector<2x14x8x160xf32> to vector<2x8x8x160xf32>
    %93 = vector.shape_cast %92 : vector<2x8x8x160xf32> to vector<128x160xf32>
    %94 = arith.truncf %93 : vector<128x160xf32> to vector<128x160xbf16>
    %c2_80 = arith.constant 2 : index
    %c0_81 = arith.constant 0 : index
    %c0_82 = arith.constant 0 : index
    %95 = vector.load %arg8[%c2_80, %c0_81, %c0_82] : memref<7x160x192xbf16, #tpu.memory_space<vmem>>, vector<1x160x192xbf16>
    %96 = vector.shape_cast %95 : vector<1x160x192xbf16> to vector<160x192xbf16>
    %cst_83 = arith.constant dense<0.000000e+00> : vector<128x192xf32>
    %97 = tpu.matmul %94, %96, %cst_83 {dimension_numbers = #tpu.dot_dimension_numbers<[1], [0], [0], [1], [0, 0, 1, 1], [], []>} : vector<128x160xbf16>, vector<160x192xbf16>, vector<128x192xf32> -> vector<128x192xf32>
    %98 = arith.addf %91, %97 : vector<128x192xf32>
    %99 = vector.extract_strided_slice %76 {offsets = [0, 3, 0, 0], sizes = [2, 8, 8, 160], strides = [1, 1, 1, 1]} : vector<2x14x8x160xf32> to vector<2x8x8x160xf32>
    %100 = vector.shape_cast %99 : vector<2x8x8x160xf32> to vector<128x160xf32>
    %101 = arith.truncf %100 : vector<128x160xf32> to vector<128x160xbf16>
    %c3_84 = arith.constant 3 : index
    %c0_85 = arith.constant 0 : index
    %c0_86 = arith.constant 0 : index
    %102 = vector.load %arg8[%c3_84, %c0_85, %c0_86] : memref<7x160x192xbf16, #tpu.memory_space<vmem>>, vector<1x160x192xbf16>
    %103 = vector.shape_cast %102 : vector<1x160x192xbf16> to vector<160x192xbf16>
    %cst_87 = arith.constant dense<0.000000e+00> : vector<128x192xf32>
    %104 = tpu.matmul %101, %103, %cst_87 {dimension_numbers = #tpu.dot_dimension_numbers<[1], [0], [0], [1], [0, 0, 1, 1], [], []>} : vector<128x160xbf16>, vector<160x192xbf16>, vector<128x192xf32> -> vector<128x192xf32>
    %105 = arith.addf %98, %104 : vector<128x192xf32>
    %106 = vector.extract_strided_slice %76 {offsets = [0, 4, 0, 0], sizes = [2, 8, 8, 160], strides = [1, 1, 1, 1]} : vector<2x14x8x160xf32> to vector<2x8x8x160xf32>
    %107 = vector.shape_cast %106 : vector<2x8x8x160xf32> to vector<128x160xf32>
    %108 = arith.truncf %107 : vector<128x160xf32> to vector<128x160xbf16>
    %c4_88 = arith.constant 4 : index
    %c0_89 = arith.constant 0 : index
    %c0_90 = arith.constant 0 : index
    %109 = vector.load %arg8[%c4_88, %c0_89, %c0_90] : memref<7x160x192xbf16, #tpu.memory_space<vmem>>, vector<1x160x192xbf16>
    %110 = vector.shape_cast %109 : vector<1x160x192xbf16> to vector<160x192xbf16>
    %cst_91 = arith.constant dense<0.000000e+00> : vector<128x192xf32>
    %111 = tpu.matmul %108, %110, %cst_91 {dimension_numbers = #tpu.dot_dimension_numbers<[1], [0], [0], [1], [0, 0, 1, 1], [], []>} : vector<128x160xbf16>, vector<160x192xbf16>, vector<128x192xf32> -> vector<128x192xf32>
    %112 = arith.addf %105, %111 : vector<128x192xf32>
    %113 = vector.extract_strided_slice %76 {offsets = [0, 5, 0, 0], sizes = [2, 8, 8, 160], strides = [1, 1, 1, 1]} : vector<2x14x8x160xf32> to vector<2x8x8x160xf32>
    %114 = vector.shape_cast %113 : vector<2x8x8x160xf32> to vector<128x160xf32>
    %115 = arith.truncf %114 : vector<128x160xf32> to vector<128x160xbf16>
    %c5_92 = arith.constant 5 : index
    %c0_93 = arith.constant 0 : index
    %c0_94 = arith.constant 0 : index
    %116 = vector.load %arg8[%c5_92, %c0_93, %c0_94] : memref<7x160x192xbf16, #tpu.memory_space<vmem>>, vector<1x160x192xbf16>
    %117 = vector.shape_cast %116 : vector<1x160x192xbf16> to vector<160x192xbf16>
    %cst_95 = arith.constant dense<0.000000e+00> : vector<128x192xf32>
    %118 = tpu.matmul %115, %117, %cst_95 {dimension_numbers = #tpu.dot_dimension_numbers<[1], [0], [0], [1], [0, 0, 1, 1], [], []>} : vector<128x160xbf16>, vector<160x192xbf16>, vector<128x192xf32> -> vector<128x192xf32>
    %119 = arith.addf %112, %118 : vector<128x192xf32>
    %120 = vector.extract_strided_slice %76 {offsets = [0, 6, 0, 0], sizes = [2, 8, 8, 160], strides = [1, 1, 1, 1]} : vector<2x14x8x160xf32> to vector<2x8x8x160xf32>
    %121 = vector.shape_cast %120 : vector<2x8x8x160xf32> to vector<128x160xf32>
    %122 = arith.truncf %121 : vector<128x160xf32> to vector<128x160xbf16>
    %c6_96 = arith.constant 6 : index
    %c0_97 = arith.constant 0 : index
    %c0_98 = arith.constant 0 : index
    %123 = vector.load %arg8[%c6_96, %c0_97, %c0_98] : memref<7x160x192xbf16, #tpu.memory_space<vmem>>, vector<1x160x192xbf16>
    %124 = vector.shape_cast %123 : vector<1x160x192xbf16> to vector<160x192xbf16>
    %cst_99 = arith.constant dense<0.000000e+00> : vector<128x192xf32>
    %125 = tpu.matmul %122, %124, %cst_99 {dimension_numbers = #tpu.dot_dimension_numbers<[1], [0], [0], [1], [0, 0, 1, 1], [], []>} : vector<128x160xbf16>, vector<160x192xbf16>, vector<128x192xf32> -> vector<128x192xf32>
    %126 = arith.addf %119, %125 : vector<128x192xf32>
    %c0_100 = arith.constant 0 : index
    %c0_101 = arith.constant 0 : index
    %127 = vector.load %arg9[%c0_100, %c0_101] : memref<1x192xf32, #tpu.memory_space<vmem>>, vector<1x192xf32>
    %128 = vector.broadcast %127 : vector<1x192xf32> to vector<128x192xf32>
    %129 = arith.addf %126, %128 : vector<128x192xf32>
    %cst_102 = arith.constant 0.000000e+00 : f32
    %130 = vector.broadcast %cst_102 : f32 to vector<128x192xf32>
    %131 = arith.maximumf %129, %130 : vector<128x192xf32>
    %132 = arith.truncf %7 : vector<128x192xf32> to vector<128x192xbf16>
    %c0_103 = arith.constant 0 : index
    %c0_104 = arith.constant 0 : index
    %133 = vector.load %arg10[%c0_103, %c0_104] : memref<192x1088xbf16, #tpu.memory_space<vmem>>, vector<192x1088xbf16>
    %cst_105 = arith.constant dense<0.000000e+00> : vector<128x1088xf32>
    %134 = tpu.matmul %132, %133, %cst_105 {dimension_numbers = #tpu.dot_dimension_numbers<[1], [0], [0], [1], [0, 0, 1, 1], [], []>} : vector<128x192xbf16>, vector<192x1088xbf16>, vector<128x1088xf32> -> vector<128x1088xf32>
    %135 = arith.truncf %131 : vector<128x192xf32> to vector<128x192xbf16>
    %c0_106 = arith.constant 0 : index
    %c0_107 = arith.constant 0 : index
    %136 = vector.load %arg11[%c0_106, %c0_107] : memref<192x1088xbf16, #tpu.memory_space<vmem>>, vector<192x1088xbf16>
    %cst_108 = arith.constant dense<0.000000e+00> : vector<128x1088xf32>
    %137 = tpu.matmul %135, %136, %cst_108 {dimension_numbers = #tpu.dot_dimension_numbers<[1], [0], [0], [1], [0, 0, 1, 1], [], []>} : vector<128x192xbf16>, vector<192x1088xbf16>, vector<128x1088xf32> -> vector<128x1088xf32>
    %138 = arith.addf %134, %137 : vector<128x1088xf32>
    %c0_109 = arith.constant 0 : index
    %c0_110 = arith.constant 0 : index
    %139 = vector.load %arg12[%c0_109, %c0_110] : memref<1x1088xf32, #tpu.memory_space<vmem>>, vector<1x1088xf32>
    %140 = vector.broadcast %139 : vector<1x1088xf32> to vector<128x1088xf32>
    %141 = arith.addf %138, %140 : vector<128x1088xf32>
    %cst_111 = arith.constant 0.000000e+00 : f32
    %142 = vector.broadcast %cst_111 : f32 to vector<128x1088xf32>
    %143 = arith.maximumf %141, %142 : vector<128x1088xf32>
    %cst_112 = arith.constant 1.000000e-01 : f32
    %144 = vector.broadcast %cst_112 : f32 to vector<128x1088xf32>
    %145 = arith.mulf %143, %144 : vector<128x1088xf32>
    %cst_113 = arith.constant dense<0.000000e+00> : vector<1088xf32>
    %146 = vector.multi_reduction <add>, %145, %cst_113 [0] : vector<128x1088xf32> to vector<1088xf32>
    %147 = vector.shape_cast %146 : vector<1088xf32> to vector<1x1088xf32>
    %cst_114 = arith.constant 7.812500e-03 : f32
    %148 = vector.broadcast %cst_114 : f32 to vector<1x1088xf32>
    %149 = arith.mulf %147, %148 : vector<1x1088xf32>
    %150 = arith.mulf %145, %145 : vector<128x1088xf32>
    %cst_115 = arith.constant dense<0.000000e+00> : vector<1088xf32>
    %151 = vector.multi_reduction <add>, %150, %cst_115 [0] : vector<128x1088xf32> to vector<1088xf32>
    %152 = vector.shape_cast %151 : vector<1088xf32> to vector<1x1088xf32>
    %cst_116 = arith.constant 7.812500e-03 : f32
    %153 = vector.broadcast %cst_116 : f32 to vector<1x1088xf32>
    %154 = arith.mulf %152, %153 : vector<1x1088xf32>
    %155 = arith.mulf %149, %149 : vector<1x1088xf32>
    %156 = arith.subf %154, %155 : vector<1x1088xf32>
    %157 = vector.broadcast %149 : vector<1x1088xf32> to vector<128x1088xf32>
    %158 = arith.subf %145, %157 : vector<128x1088xf32>
    %cst_117 = arith.constant 9.99999974E-6 : f32
    %159 = vector.broadcast %cst_117 : f32 to vector<1x1088xf32>
    %160 = arith.addf %156, %159 : vector<1x1088xf32>
    %161 = math.rsqrt %160 : vector<1x1088xf32>
    %162 = vector.broadcast %161 : vector<1x1088xf32> to vector<128x1088xf32>
    %163 = arith.mulf %158, %162 : vector<128x1088xf32>
    %c0_118 = arith.constant 0 : index
    %c0_119 = arith.constant 0 : index
    %164 = vector.load %arg13[%c0_118, %c0_119] : memref<1x1088xf32, #tpu.memory_space<vmem>>, vector<1x1088xf32>
    %165 = vector.broadcast %164 : vector<1x1088xf32> to vector<128x1088xf32>
    %166 = arith.mulf %163, %165 : vector<128x1088xf32>
    %c0_120 = arith.constant 0 : index
    %c0_121 = arith.constant 0 : index
    %167 = vector.load %arg14[%c0_120, %c0_121] : memref<1x1088xf32, #tpu.memory_space<vmem>>, vector<1x1088xf32>
    %168 = vector.broadcast %167 : vector<1x1088xf32> to vector<128x1088xf32>
    %169 = arith.addf %166, %168 : vector<128x1088xf32>
    %cst_122 = arith.constant 0.000000e+00 : f32
    %170 = vector.broadcast %cst_122 : f32 to vector<128x1088xf32>
    %171 = arith.maximumf %169, %170 : vector<128x1088xf32>
    %c0_123 = arith.constant 0 : index
    %c0_124 = arith.constant 0 : index
    %172 = vector.load %arg15[%c0_123, %c0_124] : memref<128x1088xf32, #tpu.memory_space<vmem>>, vector<128x1088xf32>
    tpu.vector_store %arg15[%c0_123, %c0_124], %171 {strides = array<i32>} : memref<128x1088xf32, #tpu.memory_space<vmem>>, vector<128x1088xf32>,
    return
  }
  func.func @transform_0(%arg0: i32) -> (i32, i32) {
    %c0_i32 = arith.constant 0 : i32
    %c0_i32_0 = arith.constant 0 : i32
    %c0_i32_1 = arith.constant 0 : i32
    return %c0_i32, %c0_i32_0 : i32, i32
  }
  func.func @transform_1(%arg0: i32) -> (i32, i32) {
    %c0_i32 = arith.constant 0 : i32
    %c0_i32_0 = arith.constant 0 : i32
    %c0_i32_1 = arith.constant 0 : i32
    return %c0_i32, %c0_i32_0 : i32, i32
  }
  func.func @transform_2(%arg0: i32) -> (i32, i32) {
    %c0_i32 = arith.constant 0 : i32
    %c0_i32_0 = arith.constant 0 : i32
    %c0_i32_1 = arith.constant 0 : i32
    return %c0_i32, %c0_i32_0 : i32, i32
  }
  func.func @transform_3(%arg0: i32) -> (i32, i32) {
    %c0_i32 = arith.constant 0 : i32
    %c0_i32_0 = arith.constant 0 : i32
    %c0_i32_1 = arith.constant 0 : i32
    return %c0_i32, %c0_i32_0 : i32, i32
  }
  func.func @transform_4(%arg0: i32) -> (i32, i32) {
    %c0_i32 = arith.constant 0 : i32
    %c0_i32_0 = arith.constant 0 : i32
    %c0_i32_1 = arith.constant 0 : i32
    return %c0_i32, %c0_i32_0 : i32, i32
  }
  func.func @transform_5(%arg0: i32) -> (i32, i32, i32) {
    %c0_i32 = arith.constant 0 : i32
    %c0_i32_0 = arith.constant 0 : i32
    %c0_i32_1 = arith.constant 0 : i32
    %c0_i32_2 = arith.constant 0 : i32
    return %c0_i32, %c0_i32_0, %c0_i32_1 : i32, i32, i32
  }
  func.func @transform_6(%arg0: i32) -> (i32, i32) {
    %c0_i32 = arith.constant 0 : i32
    %c0_i32_0 = arith.constant 0 : i32
    %c0_i32_1 = arith.constant 0 : i32
    return %c0_i32, %c0_i32_0 : i32, i32
  }
  func.func @transform_7(%arg0: i32) -> (i32, i32, i32) {
    %c0_i32 = arith.constant 0 : i32
    %c0_i32_0 = arith.constant 0 : i32
    %c0_i32_1 = arith.constant 0 : i32
    %c0_i32_2 = arith.constant 0 : i32
    return %c0_i32, %c0_i32_0, %c0_i32_1 : i32, i32, i32
  }
  func.func @transform_8(%arg0: i32) -> (i32, i32) {
    %c0_i32 = arith.constant 0 : i32
    %c0_i32_0 = arith.constant 0 : i32
    %c0_i32_1 = arith.constant 0 : i32
    return %c0_i32, %c0_i32_0 : i32, i32
  }
  func.func @transform_9(%arg0: i32) -> (i32, i32) {
    %c0_i32 = arith.constant 0 : i32
    %c0_i32_0 = arith.constant 0 : i32
    %c0_i32_1 = arith.constant 0 : i32
    return %c0_i32, %c0_i32_0 : i32, i32
  }
  func.func @transform_10(%arg0: i32) -> (i32, i32) {
    %c0_i32 = arith.constant 0 : i32
    %c0_i32_0 = arith.constant 0 : i32
    %c0_i32_1 = arith.constant 0 : i32
    return %c0_i32, %c0_i32_0 : i32, i32
  }
  func.func @transform_11(%arg0: i32) -> (i32, i32) {
    %c0_i32 = arith.constant 0 : i32
    %c0_i32_0 = arith.constant 0 : i32
    %c0_i32_1 = arith.constant 0 : i32
    return %c0_i32, %c0_i32_0 : i32, i32
  }
  func.func @transform_12(%arg0: i32) -> (i32, i32) {
    %c0_i32 = arith.constant 0 : i32
    %c0_i32_0 = arith.constant 0 : i32
    %c0_i32_1 = arith.constant 0 : i32
    return %c0_i32, %c0_i32_0 : i32, i32
  }
  func.func @transform_13(%arg0: i32) -> (i32, i32) {
    %c0_i32 = arith.constant 0 : i32
    %c0_i32_0 = arith.constant 0 : i32
    %c0_i32_1 = arith.constant 0 : i32
    return %c0_i32, %c0_i32_0 : i32, i32
  }
  func.func @transform_14(%arg0: i32) -> (i32, i32) {
    %c0_i32 = arith.constant 0 : i32
    %c0_i32_0 = arith.constant 0 : i32
    %c0_i32_1 = arith.constant 0 : i32
    return %c0_i32, %c0_i32_0 : i32, i32
  }
}

</mosaic_0001>

<llo_original>
// kernel: inception_resnet_v2_b.1
$region0: #{inception_resnet_v2_b.1}
  #allocation0 [shape = 'u32[]', space=smem, size = 0x4, offset = 0x4, fixed_abs, tag = 'smem constant byte address 0x4 - core index']
  #allocation1 [shape = 'u32[144,128]{1,0:T(1,128)}', space=vmem, size = 0x12000, scoped, tag = 'internal scratch']
  #allocation2 [shape = 'f32[2,8,24,128]{3,2,1,0:T(8,128)}', space=vmem, size = 0x30000, scoped, tag = 'scratch operand']
  %s0 = inlined_call_operand.vmem [shape: bf16[128,1088], index: 0, kind: input, shape index: {}]
  %s1 = inlined_call_operand.vmem [shape: bf16[1088,192], index: 1, kind: input, shape index: {}]
  %s2 = inlined_call_operand.vmem [shape: f32[1,192], index: 2, kind: input, shape index: {}]
  %s3 = inlined_call_operand.vmem [shape: bf16[1088,128], index: 3, kind: input, shape index: {}]
  %s4 = inlined_call_operand.vmem [shape: f32[1,128], index: 4, kind: input, shape index: {}]
  %s5 = inlined_call_operand.vmem [shape: bf16[7,128,160], index: 5, kind: input, shape index: {}]
  %s6 = inlined_call_operand.vmem [shape: f32[1,160], index: 6, kind: input, shape index: {}]
  %s7 = inlined_call_operand.vmem [shape: bf16[7,160,192], index: 7, kind: input, shape index: {}]
  %s8 = inlined_call_operand.vmem [shape: f32[1,192], index: 8, kind: input, shape index: {}]
  %s9 = inlined_call_operand.vmem [shape: bf16[192,1088], index: 9, kind: input, shape index: {}]
  %s10 = inlined_call_operand.vmem [shape: bf16[192,1088], index: 10, kind: input, shape index: {}]
  %s11 = inlined_call_operand.vmem [shape: f32[1,1088], index: 11, kind: input, shape index: {}]
  %s12 = inlined_call_operand.vmem [shape: f32[1,1088], index: 12, kind: input, shape index: {}]
  %s13 = inlined_call_operand.vmem [shape: f32[1,1088], index: 13, kind: input, shape index: {}]
  %s14 = inlined_call_operand.hbm [shape: f32[128,1088], index: 14, kind: output, shape index: {}]
  %s15 = sld [smem:[#allocation0]]
  $region66: #{inception_resnet_v2_b.1} parent=0
    _
  %s17 = ssub.s32 1, %s15
  %s18 = scalar_select 0, %s17, %s15
  $region1: #{inception_resnet_v2_b.1} parent=0
    #allocation3 [shape = 'u8[589824]{0}', space=vmem, size = 0x90000, scoped, tag = 'output window, operand 0, single buffered']
    #allocation4 [shape = 's32[1]{0}', space=sflag, size = 0x4, scoped, tag = 'scoped memory for inception_resnet_v2_b.1']
    %19 = vsyncpa [#allocation4], 0
    // Predicated region
    $region2: #{inception_resnet_v2_b.1} parent=1 // pred_check
      _
    $region3: #{inception_resnet_v2_b.1} parent=1 // pred_check_branch
      %21 = sbr.rel (0) target = $region5
    $region4: #{inception_resnet_v2_b.1} parent=1 // pred_region
      _
    $region5: #{inception_resnet_v2_b.1} parent=1 // pred_fallthru
      _
    // Predicated region
    $region6: #{inception_resnet_v2_b.1} parent=1 // pred_check
      _
    $region7: #{inception_resnet_v2_b.1} parent=1 // pred_check_branch
      %23 = sbr.rel (0) target = $region9
    $region8: #{inception_resnet_v2_b.1} parent=1 // pred_region
      _
    $region9: #{inception_resnet_v2_b.1} parent=1 // pred_fallthru
      _
    // Predicated region
    $region10: #{inception_resnet_v2_b.1} parent=1 // pred_check
      _
    $region11: #{inception_resnet_v2_b.1} parent=1 // pred_check_branch
      %25 = sbr.rel (0) target = $region13
    $region12: #{inception_resnet_v2_b.1} parent=1 // pred_region
      _
    $region13: #{inception_resnet_v2_b.1} parent=1 // pred_fallthru
      _
    // Predicated region
    $region14: #{inception_resnet_v2_b.1} parent=1 // pred_check
      _
    $region15: #{inception_resnet_v2_b.1} parent=1 // pred_check_branch
      %27 = sbr.rel (0) target = $region17
    $region16: #{inception_resnet_v2_b.1} parent=1 // pred_region
      _
    $region17: #{inception_resnet_v2_b.1} parent=1 // pred_fallthru
      _
    // Predicated region
    $region18: #{inception_resnet_v2_b.1} parent=1 // pred_check
      _
    $region19: #{inception_resnet_v2_b.1} parent=1 // pred_check_branch
      %29 = sbr.rel (0) target = $region21
    $region20: #{inception_resnet_v2_b.1} parent=1 // pred_region
      _
    $region21: #{inception_resnet_v2_b.1} parent=1 // pred_fallthru
      _
    // Predicated region
    $region22: #{inception_resnet_v2_b.1} parent=1 // pred_check
      _
    $region23: #{inception_resnet_v2_b.1} parent=1 // pred_check_branch
      %31 = sbr.rel (0) target = $region25
    $region24: #{inception_resnet_v2_b.1} parent=1 // pred_region
      _
    $region25: #{inception_resnet_v2_b.1} parent=1 // pred_fallthru
      _
    // Predicated region
    $region26: #{inception_resnet_v2_b.1} parent=1 // pred_check
      _
    $region27: #{inception_resnet_v2_b.1} parent=1 // pred_check_branch
      %33 = sbr.rel (0) target = $region29
    $region28: #{inception_resnet_v2_b.1} parent=1 // pred_region
      _
    $region29: #{inception_resnet_v2_b.1} parent=1 // pred_fallthru
      _
    // Predicated region
    $region30: #{inception_resnet_v2_b.1} parent=1 // pred_check
      _
    $region31: #{inception_resnet_v2_b.1} parent=1 // pred_check_branch
      %35 = sbr.rel (0) target = $region33
    $region32: #{inception_resnet_v2_b.1} parent=1 // pred_region
      _
    $region33: #{inception_resnet_v2_b.1} parent=1 // pred_fallthru
      _
    // Predicated region
    $region34: #{inception_resnet_v2_b.1} parent=1 // pred_check
      _
    $region35: #{inception_resnet_v2_b.1} parent=1 // pred_check_branch
      %37 = sbr.rel (0) target = $region37
    $region36: #{inception_resnet_v2_b.1} parent=1 // pred_region
      _
    $region37: #{inception_resnet_v2_b.1} parent=1 // pred_fallthru
      _
    // Predicated region
    $region38: #{inception_resnet_v2_b.1} parent=1 // pred_check
      _
    $region39: #{inception_resnet_v2_b.1} parent=1 // pred_check_branch
      %39 = sbr.rel (0) target = $region41
    $region40: #{inception_resnet_v2_b.1} parent=1 // pred_region
      _
    $region41: #{inception_resnet_v2_b.1} parent=1 // pred_fallthru
      _
    // Predicated region
    $region42: #{inception_resnet_v2_b.1} parent=1 // pred_check
      _
    $region43: #{inception_resnet_v2_b.1} parent=1 // pred_check_branch
      %41 = sbr.rel (0) target = $region45
    $region44: #{inception_resnet_v2_b.1} parent=1 // pred_region
      _
    $region45: #{inception_resnet_v2_b.1} parent=1 // pred_fallthru
      _
    // Predicated region
    $region46: #{inception_resnet_v2_b.1} parent=1 // pred_check
      _
    $region47: #{inception_resnet_v2_b.1} parent=1 // pred_check_branch
      %43 = sbr.rel (0) target = $region49
    $region48: #{inception_resnet_v2_b.1} parent=1 // pred_region
      _
    $region49: #{inception_resnet_v2_b.1} parent=1 // pred_fallthru
      _
    // Predicated region
    $region50: #{inception_resnet_v2_b.1} parent=1 // pred_check
      _
    $region51: #{inception_resnet_v2_b.1} parent=1 // pred_check_branch
      %45 = sbr.rel (0) target = $region53
    $region52: #{inception_resnet_v2_b.1} parent=1 // pred_region
      _
    $region53: #{inception_resnet_v2_b.1} parent=1 // pred_fallthru
      _
    // Predicated region
    $region54: #{inception_resnet_v2_b.1} parent=1 // pred_check
      _
    $region55: #{inception_resnet_v2_b.1} parent=1 // pred_check_branch
      %47 = sbr.rel (0) target = $region57
    $region56: #{inception_resnet_v2_b.1} parent=1 // pred_region
      _
    $region57: #{inception_resnet_v2_b.1} parent=1 // pred_fallthru
      _
    %v49 = vld [vmem:[%s0] sm:$0xff]
    %v50 = vld [vmem:[%s0 + $0x8] sm:$0xff]
    %v51 = vld [vmem:[%s0 + $0x10] sm:$0xff]
    %v52 = vld [vmem:[%s0 + $0x18] sm:$0xff]
    %v53 = vld [vmem:[%s0 + $0x20] sm:$0xf]
    %v54 = vld [vmem:[%s0 + $0x24] sm:$0xff]
    %v55 = vld [vmem:[%s0 + $0x2c] sm:$0xff]
    %v56 = vld [vmem:[%s0 + $0x34] sm:$0xff]
    %v57 = vld [vmem:[%s0 + $0x3c] sm:$0xff]
    %v58 = vld [vmem:[%s0 + $0x44] sm:$0xf]
    %v59 = vld [vmem:[%s0 + $0x48] sm:$0xff]
    %v60 = vld [vmem:[%s0 + $0x50] sm:$0xff]
    %v61 = vld [vmem:[%s0 + $0x58] sm:$0xff]
    %v62 = vld [vmem:[%s0 + $0x60] sm:$0xff]
    %v63 = vld [vmem:[%s0 + $0x68] sm:$0xf]
    %v64 = vld [vmem:[%s0 + $0x6c] sm:$0xff]
    %v65 = vld [vmem:[%s0 + $0x74] sm:$0xff]
    %v66 = vld [vmem:[%s0 + $0x7c] sm:$0xff]
    %v67 = vld [vmem:[%s0 + $0x84] sm:$0xff]
    %v68 = vld [vmem:[%s0 + $0x8c] sm:$0xf]
    %v69 = vld [vmem:[%s0 + $0x90] sm:$0xff]
    %v70 = vld [vmem:[%s0 + $0x98] sm:$0xff]
    %v71 = vld [vmem:[%s0 + $0xa0] sm:$0xff]
    %v72 = vld [vmem:[%s0 + $0xa8] sm:$0xff]
    %v73 = vld [vmem:[%s0 + $0xb0] sm:$0xf]
    %v74 = vld [vmem:[%s0 + $0xb4] sm:$0xff]
    %v75 = vld [vmem:[%s0 + $0xbc] sm:$0xff]
    %v76 = vld [vmem:[%s0 + $0xc4] sm:$0xff]
    %v77 = vld [vmem:[%s0 + $0xcc] sm:$0xff]
    %v78 = vld [vmem:[%s0 + $0xd4] sm:$0xf]
    %v79 = vld [vmem:[%s0 + $0xd8] sm:$0xff]
    %v80 = vld [vmem:[%s0 + $0xe0] sm:$0xff]
    %v81 = vld [vmem:[%s0 + $0xe8] sm:$0xff]
    %v82 = vld [vmem:[%s0 + $0xf0] sm:$0xff]
    %v83 = vld [vmem:[%s0 + $0xf8] sm:$0xf]
    %v84 = vld [vmem:[%s0 + $0xfc] sm:$0xff]
    %v85 = vld [vmem:[%s0 + $0x104] sm:$0xff]
    %v86 = vld [vmem:[%s0 + $0x10c] sm:$0xff]
    %v87 = vld [vmem:[%s0 + $0x114] sm:$0xff]
    %v88 = vld [vmem:[%s0 + $0x11c] sm:$0xf]
    %v89 = vld [vmem:[%s0 + $0x120] sm:$0xff]
    %v90 = vld [vmem:[%s0 + $0x128] sm:$0xff]
    %v91 = vld [vmem:[%s0 + $0x130] sm:$0xff]
    %v92 = vld [vmem:[%s0 + $0x138] sm:$0xff]
    %v93 = vld [vmem:[%s0 + $0x140] sm:$0xf]
    %v94 = vld [vmem:[%s0 + $0x144] sm:$0xff]
    %v95 = vld [vmem:[%s0 + $0x14c] sm:$0xff]
    %v96 = vld [vmem:[%s0 + $0x154] sm:$0xff]
    %v97 = vld [vmem:[%s0 + $0x15c] sm:$0xff]
    %v98 = vld [vmem:[%s0 + $0x164] sm:$0xf]
    %v99 = vld [vmem:[%s0 + $0x168] sm:$0xff]
    %v100 = vld [vmem:[%s0 + $0x170] sm:$0xff]
    %v101 = vld [vmem:[%s0 + $0x178] sm:$0xff]
    %v102 = vld [vmem:[%s0 + $0x180] sm:$0xff]
    %v103 = vld [vmem:[%s0 + $0x188] sm:$0xf]
    %v104 = vld [vmem:[%s0 + $0x18c] sm:$0xff]
    %v105 = vld [vmem:[%s0 + $0x194] sm:$0xff]
    %v106 = vld [vmem:[%s0 + $0x19c] sm:$0xff]
    %v107 = vld [vmem:[%s0 + $0x1a4] sm:$0xff]
    %v108 = vld [vmem:[%s0 + $0x1ac] sm:$0xf]
    %v109 = vld [vmem:[%s0 + $0x1b0] sm:$0xff]
    %v110 = vld [vmem:[%s0 + $0x1b8] sm:$0xff]
    %v111 = vld [vmem:[%s0 + $0x1c0] sm:$0xff]
    %v112 = vld [vmem:[%s0 + $0x1c8] sm:$0xff]
    %v113 = vld [vmem:[%s0 + $0x1d0] sm:$0xf]
    %v114 = vld [vmem:[%s0 + $0x1d4] sm:$0xff]
    %v115 = vld [vmem:[%s0 + $0x1dc] sm:$0xff]
    %v116 = vld [vmem:[%s0 + $0x1e4] sm:$0xff]
    %v117 = vld [vmem:[%s0 + $0x1ec] sm:$0xff]
    %v118 = vld [vmem:[%s0 + $0x1f4] sm:$0xf]
    %v119 = vld [vmem:[%s0 + $0x1f8] sm:$0xff]
    %v120 = vld [vmem:[%s0 + $0x200] sm:$0xff]
    %v121 = vld [vmem:[%s0 + $0x208] sm:$0xff]
    %v122 = vld [vmem:[%s0 + $0x210] sm:$0xff]
    %v123 = vld [vmem:[%s0 + $0x218] sm:$0xf]
    %v124 = vld [vmem:[%s0 + $0x21c] sm:$0xff]
    %v125 = vld [vmem:[%s0 + $0x224] sm:$0xff]
    %v126 = vld [vmem:[%s0 + $0x22c] sm:$0xff]
    %v127 = vld [vmem:[%s0 + $0x234] sm:$0xff]
    %v128 = vld [vmem:[%s0 + $0x23c] sm:$0xf]
    %v129 = vld [vmem:[%s1] sm:$0xff]
    %v130 = vld [vmem:[%s1 + $0x8] sm:$0xff]
    %v131 = vld [vmem:[%s1 + $0x10] sm:$0xff]
    %v132 = vld [vmem:[%s1 + $0x18] sm:$0xff]
    %v133 = vld [vmem:[%s1 + $0x20] sm:$0xff]
    %v134 = vld [vmem:[%s1 + $0x28] sm:$0xff]
    %v135 = vld [vmem:[%s1 + $0x30] sm:$0xff]
    %v136 = vld [vmem:[%s1 + $0x38] sm:$0xff]
    %v137 = vld [vmem:[%s1 + $0x40] sm:$0xff]
    %v138 = vld [vmem:[%s1 + $0x48] sm:$0xff]
    %v139 = vld [vmem:[%s1 + $0x50] sm:$0xff]
    %v140 = vld [vmem:[%s1 + $0x58] sm:$0xff]
    %v141 = vld [vmem:[%s1 + $0x60] sm:$0xff]
    %v142 = vld [vmem:[%s1 + $0x68] sm:$0xff]
    %v143 = vld [vmem:[%s1 + $0x70] sm:$0xff]
    %v144 = vld [vmem:[%s1 + $0x78] sm:$0xff]
    %v145 = vld [vmem:[%s1 + $0x80] sm:$0xff]
    %v146 = vld [vmem:[%s1 + $0x88] sm:$0xff]
    %v147 = vld [vmem:[%s1 + $0x90] sm:$0xff]
    %v148 = vld [vmem:[%s1 + $0x98] sm:$0xff]
    %v149 = vld [vmem:[%s1 + $0xa0] sm:$0xff]
    %v150 = vld [vmem:[%s1 + $0xa8] sm:$0xff]
    %v151 = vld [vmem:[%s1 + $0xb0] sm:$0xff]
    %v152 = vld [vmem:[%s1 + $0xb8] sm:$0xff]
    %v153 = vld [vmem:[%s1 + $0xc0] sm:$0xff]
    %v154 = vld [vmem:[%s1 + $0xc8] sm:$0xff]
    %v155 = vld [vmem:[%s1 + $0xd0] sm:$0xff]
    %v156 = vld [vmem:[%s1 + $0xd8] sm:$0xff]
    %v157 = vld [vmem:[%s1 + $0xe0] sm:$0xff]
    %v158 = vld [vmem:[%s1 + $0xe8] sm:$0xff]
    %v159 = vld [vmem:[%s1 + $0xf0] sm:$0xff]
    %v160 = vld [vmem:[%s1 + $0xf8] sm:$0xff]
    %v161 = vld [vmem:[%s1 + $0x100] sm:$0xff]
    %v162 = vld [vmem:[%s1 + $0x108] sm:$0xff]
    %v163 = vld [vmem:[%s1 + $0x110] sm:$0xff]
    %v164 = vld [vmem:[%s1 + $0x118] sm:$0xff]
    %v165 = vld [vmem:[%s1 + $0x120] sm:$0xff]
    %v166 = vld [vmem:[%s1 + $0x128] sm:$0xff]
    %v167 = vld [vmem:[%s1 + $0x130] sm:$0xff]
    %v168 = vld [vmem:[%s1 + $0x138] sm:$0xff]
    %v169 = vld [vmem:[%s1 + $0x140] sm:$0xff]
    %v170 = vld [vmem:[%s1 + $0x148] sm:$0xff]
    %v171 = vld [vmem:[%s1 + $0x150] sm:$0xff]
    %v172 = vld [vmem:[%s1 + $0x158] sm:$0xff]
    %v173 = vld [vmem:[%s1 + $0x160] sm:$0xff]
    %v174 = vld [vmem:[%s1 + $0x168] sm:$0xff]
    %v175 = vld [vmem:[%s1 + $0x170] sm:$0xff]
    %v176 = vld [vmem:[%s1 + $0x178] sm:$0xff]
    %v177 = vld [vmem:[%s1 + $0x180] sm:$0xff]
    %v178 = vld [vmem:[%s1 + $0x188] sm:$0xff]
    %v179 = vld [vmem:[%s1 + $0x190] sm:$0xff]
    %v180 = vld [vmem:[%s1 + $0x198] sm:$0xff]
    %v181 = vld [vmem:[%s1 + $0x1a0] sm:$0xff]
    %v182 = vld [vmem:[%s1 + $0x1a8] sm:$0xff]
    %v183 = vld [vmem:[%s1 + $0x1b0] sm:$0xff]
    %v184 = vld [vmem:[%s1 + $0x1b8] sm:$0xff]
    %v185 = vld [vmem:[%s1 + $0x1c0] sm:$0xff]
    %v186 = vld [vmem:[%s1 + $0x1c8] sm:$0xff]
    %v187 = vld [vmem:[%s1 + $0x1d0] sm:$0xff]
    %v188 = vld [vmem:[%s1 + $0x1d8] sm:$0xff]
    %v189 = vld [vmem:[%s1 + $0x1e0] sm:$0xff]
    %v190 = vld [vmem:[%s1 + $0x1e8] sm:$0xff]
    %v191 = vld [vmem:[%s1 + $0x1f0] sm:$0xff]
    %v192 = vld [vmem:[%s1 + $0x1f8] sm:$0xff]
    %v193 = vld [vmem:[%s1 + $0x200] sm:$0xff]
    %v194 = vld [vmem:[%s1 + $0x208] sm:$0xff]
    %v195 = vld [vmem:[%s1 + $0x210] sm:$0xff]
    %v196 = vld [vmem:[%s1 + $0x218] sm:$0xff]
    %v197 = vld [vmem:[%s1 + $0x220] sm:$0xff]
    %v198 = vld [vmem:[%s1 + $0x228] sm:$0xff]
    %v199 = vld [vmem:[%s1 + $0x230] sm:$0xff]
    %v200 = vld [vmem:[%s1 + $0x238] sm:$0xff]
    %v201 = vld [vmem:[%s1 + $0x240] sm:$0xff]
    %v202 = vld [vmem:[%s1 + $0x248] sm:$0xff]
    %v203 = vld [vmem:[%s1 + $0x250] sm:$0xff]
    %v204 = vld [vmem:[%s1 + $0x258] sm:$0xff]
    %v205 = vld [vmem:[%s1 + $0x260] sm:$0xff]
    %v206 = vld [vmem:[%s1 + $0x268] sm:$0xff]
    %v207 = vld [vmem:[%s1 + $0x270] sm:$0xff]
    %v208 = vld [vmem:[%s1 + $0x278] sm:$0xff]
    %v209 = vld [vmem:[%s1 + $0x280] sm:$0xff]
    %v210 = vld [vmem:[%s1 + $0x288] sm:$0xff]
    %v211 = vld [vmem:[%s1 + $0x290] sm:$0xff]
    %v212 = vld [vmem:[%s1 + $0x298] sm:$0xff]
    %v213 = vld [vmem:[%s1 + $0x2a0] sm:$0xff]
    %v214 = vld [vmem:[%s1 + $0x2a8] sm:$0xff]
    %v215 = vld [vmem:[%s1 + $0x2b0] sm:$0xff]
    %v216 = vld [vmem:[%s1 + $0x2b8] sm:$0xff]
    %v217 = vld [vmem:[%s1 + $0x2c0] sm:$0xff]
    %v218 = vld [vmem:[%s1 + $0x2c8] sm:$0xff]
    %v219 = vld [vmem:[%s1 + $0x2d0] sm:$0xff]
    %v220 = vld [vmem:[%s1 + $0x2d8] sm:$0xff]
    %v221 = vld [vmem:[%s1 + $0x2e0] sm:$0xff]
    %v222 = vld [vmem:[%s1 + $0x2e8] sm:$0xff]
    %v223 = vld [vmem:[%s1 + $0x2f0] sm:$0xff]
    %v224 = vld [vmem:[%s1 + $0x2f8] sm:$0xff]
    %v225 = vld [vmem:[%s1 + $0x300] sm:$0xff]
    %v226 = vld [vmem:[%s1 + $0x308] sm:$0xff]
    %v227 = vld [vmem:[%s1 + $0x310] sm:$0xff]
    %v228 = vld [vmem:[%s1 + $0x318] sm:$0xff]
    %v229 = vld [vmem:[%s1 + $0x320] sm:$0xff]
    %v230 = vld [vmem:[%s1 + $0x328] sm:$0xff]
    %v231 = vld [vmem:[%s1 + $0x330] sm:$0xff]
    %v232 = vld [vmem:[%s1 + $0x338] sm:$0xff]
    %v233 = vld [vmem:[%s1 + $0x340] sm:$0xff]
    %v234 = vld [vmem:[%s1 + $0x348] sm:$0xff]
    %v235 = vld [vmem:[%s1 + $0x350] sm:$0xff]
    %v236 = vld [vmem:[%s1 + $0x358] sm:$0xff]
    %v237 = vld [vmem:[%s1 + $0x360] sm:$0xff]
    %v238 = vld [vmem:[%s1 + $0x368] sm:$0xff]
    %v239 = vld [vmem:[%s1 + $0x370] sm:$0xff]
    %v240 = vld [vmem:[%s1 + $0x378] sm:$0xff]
    %v241 = vld [vmem:[%s1 + $0x380] sm:$0xff]
    %v242 = vld [vmem:[%s1 + $0x388] sm:$0xff]
    %v243 = vld [vmem:[%s1 + $0x390] sm:$0xff]
    %v244 = vld [vmem:[%s1 + $0x398] sm:$0xff]
    %v245 = vld [vmem:[%s1 + $0x3a0] sm:$0xff]
    %v246 = vld [vmem:[%s1 + $0x3a8] sm:$0xff]
    %v247 = vld [vmem:[%s1 + $0x3b0] sm:$0xff]
    %v248 = vld [vmem:[%s1 + $0x3b8] sm:$0xff]
    %v249 = vld [vmem:[%s1 + $0x3c0] sm:$0xff]
    %v250 = vld [vmem:[%s1 + $0x3c8] sm:$0xff]
    %v251 = vld [vmem:[%s1 + $0x3d0] sm:$0xff]
    %v252 = vld [vmem:[%s1 + $0x3d8] sm:$0xff]
    %v253 = vld [vmem:[%s1 + $0x3e0] sm:$0xff]
    %v254 = vld [vmem:[%s1 + $0x3e8] sm:$0xff]
    %v255 = vld [vmem:[%s1 + $0x3f0] sm:$0xff]
    %v256 = vld [vmem:[%s1 + $0x3f8] sm:$0xff]
    %v257 = vld [vmem:[%s1 + $0x400] sm:$0xff]
    %v258 = vld [vmem:[%s1 + $0x408] sm:$0xff]
    %v259 = vld [vmem:[%s1 + $0x410] sm:$0xff]
    %v260 = vld [vmem:[%s1 + $0x418] sm:$0xff]
    %v261 = vld [vmem:[%s1 + $0x420] sm:$0xff]
    %v262 = vld [vmem:[%s1 + $0x428] sm:$0xff]
    %v263 = vld [vmem:[%s1 + $0x430] sm:$0xff]
    %v264 = vld [vmem:[%s1 + $0x438] sm:$0xff]
    %v265 = vld [vmem:[%s2] sm:$0x3]
    %v267 = vlaneseq
    %v268 = vshrl.u32 %v267, 7
    %v269 = vsub.s32 0, %v268
    %v270 = vrot.slane %v265, %v269
    %v271 = vlaneseq
    %v272 = vshrl.u32 %v271, 7
    %v273 = vsub.s32 1, %v272
    %v274 = vrot.slane %v265, %v273
    %v357 = vunpack.c.l.b16 %v49
    %v358 = vunpack.c.h.b16 %v49
    %v359 = vunpack.c.l.b16 %v50
    %v360 = vunpack.c.h.b16 %v50
    %v361 = vunpack.c.l.b16 %v51
    %v362 = vunpack.c.h.b16 %v51
    %v363 = vunpack.c.l.b16 %v52
    %v364 = vunpack.c.h.b16 %v52
    %v365 = vunpack.c.l.b16 %v53
    %v366 = vunpack.c.l.b16 %v54
    %v367 = vunpack.c.h.b16 %v54
    %v368 = vunpack.c.l.b16 %v55
    %v369 = vunpack.c.h.b16 %v55
    %v370 = vunpack.c.l.b16 %v56
    %v371 = vunpack.c.h.b16 %v56
    %v372 = vunpack.c.l.b16 %v57
    %v373 = vunpack.c.h.b16 %v57
    %v374 = vunpack.c.l.b16 %v58
    %v375 = vunpack.c.l.b16 %v59
    %v376 = vunpack.c.h.b16 %v59
    %v377 = vunpack.c.l.b16 %v60
    %v378 = vunpack.c.h.b16 %v60
    %v379 = vunpack.c.l.b16 %v61
    %v380 = vunpack.c.h.b16 %v61
    %v381 = vunpack.c.l.b16 %v62
    %v382 = vunpack.c.h.b16 %v62
    %v383 = vunpack.c.l.b16 %v63
    %v384 = vunpack.c.l.b16 %v64
    %v385 = vunpack.c.h.b16 %v64
    %v386 = vunpack.c.l.b16 %v65
    %v387 = vunpack.c.h.b16 %v65
    %v388 = vunpack.c.l.b16 %v66
    %v389 = vunpack.c.h.b16 %v66
    %v390 = vunpack.c.l.b16 %v67
    %v391 = vunpack.c.h.b16 %v67
    %v392 = vunpack.c.l.b16 %v68
    %v393 = vunpack.c.l.b16 %v69
    %v394 = vunpack.c.h.b16 %v69
    %v395 = vunpack.c.l.b16 %v70
    %v396 = vunpack.c.h.b16 %v70
    %v397 = vunpack.c.l.b16 %v71
    %v398 = vunpack.c.h.b16 %v71
    %v399 = vunpack.c.l.b16 %v72
    %v400 = vunpack.c.h.b16 %v72
    %v401 = vunpack.c.l.b16 %v73
    %v402 = vunpack.c.l.b16 %v74
    %v403 = vunpack.c.h.b16 %v74
    %v404 = vunpack.c.l.b16 %v75
    %v405 = vunpack.c.h.b16 %v75
    %v406 = vunpack.c.l.b16 %v76
    %v407 = vunpack.c.h.b16 %v76
    %v408 = vunpack.c.l.b16 %v77
    %v409 = vunpack.c.h.b16 %v77
    %v410 = vunpack.c.l.b16 %v78
    %v411 = vunpack.c.l.b16 %v79
    %v412 = vunpack.c.h.b16 %v79
    %v413 = vunpack.c.l.b16 %v80
    %v414 = vunpack.c.h.b16 %v80
    %v415 = vunpack.c.l.b16 %v81
    %v416 = vunpack.c.h.b16 %v81
    %v417 = vunpack.c.l.b16 %v82
    %v418 = vunpack.c.h.b16 %v82
    %v419 = vunpack.c.l.b16 %v83
    %v420 = vunpack.c.l.b16 %v84
    %v421 = vunpack.c.h.b16 %v84
    %v422 = vunpack.c.l.b16 %v85
    %v423 = vunpack.c.h.b16 %v85
    %v424 = vunpack.c.l.b16 %v86
    %v425 = vunpack.c.h.b16 %v86
    %v426 = vunpack.c.l.b16 %v87
    %v427 = vunpack.c.h.b16 %v87
    %v428 = vunpack.c.l.b16 %v88
    %v429 = vunpack.c.l.b16 %v89
    %v430 = vunpack.c.h.b16 %v89
    %v431 = vunpack.c.l.b16 %v90
    %v432 = vunpack.c.h.b16 %v90
    %v433 = vunpack.c.l.b16 %v91
    %v434 = vunpack.c.h.b16 %v91
    %v435 = vunpack.c.l.b16 %v92
    %v436 = vunpack.c.h.b16 %v92
    %v437 = vunpack.c.l.b16 %v93
    %v438 = vunpack.c.l.b16 %v94
    %v439 = vunpack.c.h.b16 %v94
    %v440 = vunpack.c.l.b16 %v95
    %v441 = vunpack.c.h.b16 %v95
    %v442 = vunpack.c.l.b16 %v96
    %v443 = vunpack.c.h.b16 %v96
    %v444 = vunpack.c.l.b16 %v97
    %v445 = vunpack.c.h.b16 %v97
    %v446 = vunpack.c.l.b16 %v98
    %v447 = vunpack.c.l.b16 %v99
    %v448 = vunpack.c.h.b16 %v99
    %v449 = vunpack.c.l.b16 %v100
    %v450 = vunpack.c.h.b16 %v100
    %v451 = vunpack.c.l.b16 %v101
    %v452 = vunpack.c.h.b16 %v101
    %v453 = vunpack.c.l.b16 %v102
    %v454 = vunpack.c.h.b16 %v102
    %v455 = vunpack.c.l.b16 %v103
    %v456 = vunpack.c.l.b16 %v104
    %v457 = vunpack.c.h.b16 %v104
    %v458 = vunpack.c.l.b16 %v105
    %v459 = vunpack.c.h.b16 %v105
    %v460 = vunpack.c.l.b16 %v106
    %v461 = vunpack.c.h.b16 %v106
    %v462 = vunpack.c.l.b16 %v107
    %v463 = vunpack.c.h.b16 %v107
    %v464 = vunpack.c.l.b16 %v108
    %v465 = vunpack.c.l.b16 %v109
    %v466 = vunpack.c.h.b16 %v109
    %v467 = vunpack.c.l.b16 %v110
    %v468 = vunpack.c.h.b16 %v110
    %v469 = vunpack.c.l.b16 %v111
    %v470 = vunpack.c.h.b16 %v111
    %v471 = vunpack.c.l.b16 %v112
    %v472 = vunpack.c.h.b16 %v112
    %v473 = vunpack.c.l.b16 %v113
    %v474 = vunpack.c.l.b16 %v114
    %v475 = vunpack.c.h.b16 %v114
    %v476 = vunpack.c.l.b16 %v115
    %v477 = vunpack.c.h.b16 %v115
    %v478 = vunpack.c.l.b16 %v116
    %v479 = vunpack.c.h.b16 %v116
    %v480 = vunpack.c.l.b16 %v117
    %v481 = vunpack.c.h.b16 %v117
    %v482 = vunpack.c.l.b16 %v118
    %v483 = vunpack.c.l.b16 %v119
    %v484 = vunpack.c.h.b16 %v119
    %v485 = vunpack.c.l.b16 %v120
    %v486 = vunpack.c.h.b16 %v120
    %v487 = vunpack.c.l.b16 %v121
    %v488 = vunpack.c.h.b16 %v121
    %v489 = vunpack.c.l.b16 %v122
    %v490 = vunpack.c.h.b16 %v122
    %v491 = vunpack.c.l.b16 %v123
    %v492 = vunpack.c.l.b16 %v124
    %v493 = vunpack.c.h.b16 %v124
    %v494 = vunpack.c.l.b16 %v125
    %v495 = vunpack.c.h.b16 %v125
    %v496 = vunpack.c.l.b16 %v126
    %v497 = vunpack.c.h.b16 %v126
    %v498 = vunpack.c.l.b16 %v127
    %v499 = vunpack.c.h.b16 %v127
    %v500 = vunpack.c.l.b16 %v128
    %v501 = vpack.c.b16 %v366, %v357
    %v502 = vpack.c.b16 %v367, %v358
    %v503 = vpack.c.b16 %v368, %v359
    %v504 = vpack.c.b16 %v369, %v360
    %v505 = vpack.c.b16 %v370, %v361
    %v506 = vpack.c.b16 %v371, %v362
    %v507 = vpack.c.b16 %v372, %v363
    %v508 = vpack.c.b16 %v373, %v364
    %v509 = vpack.c.b16 %v374, %v365
    %v510 = vpack.c.b16 %v384, %v375
    %v511 = vpack.c.b16 %v385, %v376
    %v512 = vpack.c.b16 %v386, %v377
    %v513 = vpack.c.b16 %v387, %v378
    %v514 = vpack.c.b16 %v388, %v379
    %v515 = vpack.c.b16 %v389, %v380
    %v516 = vpack.c.b16 %v390, %v381
    %v517 = vpack.c.b16 %v391, %v382
    %v518 = vpack.c.b16 %v392, %v383
    %v519 = vpack.c.b16 %v402, %v393
    %v520 = vpack.c.b16 %v403, %v394
    %v521 = vpack.c.b16 %v404, %v395
    %v522 = vpack.c.b16 %v405, %v396
    %v523 = vpack.c.b16 %v406, %v397
    %v524 = vpack.c.b16 %v407, %v398
    %v525 = vpack.c.b16 %v408, %v399
    %v526 = vpack.c.b16 %v409, %v400
    %v527 = vpack.c.b16 %v410, %v401
    %v528 = vpack.c.b16 %v420, %v411
    %v529 = vpack.c.b16 %v421, %v412
    %v530 = vpack.c.b16 %v422, %v413
    %v531 = vpack.c.b16 %v423, %v414
    %v532 = vpack.c.b16 %v424, %v415
    %v533 = vpack.c.b16 %v425, %v416
    %v534 = vpack.c.b16 %v426, %v417
    %v535 = vpack.c.b16 %v427, %v418
    %v536 = vpack.c.b16 %v428, %v419
    %v537 = vpack.c.b16 %v438, %v429
    %v538 = vpack.c.b16 %v439, %v430
    %v539 = vpack.c.b16 %v440, %v431
    %v540 = vpack.c.b16 %v441, %v432
    %v541 = vpack.c.b16 %v442, %v433
    %v542 = vpack.c.b16 %v443, %v434
    %v543 = vpack.c.b16 %v444, %v435
    %v544 = vpack.c.b16 %v445, %v436
    %v545 = vpack.c.b16 %v446, %v437
    %v546 = vpack.c.b16 %v456, %v447
    %v547 = vpack.c.b16 %v457, %v448
    %v548 = vpack.c.b16 %v458, %v449
    %v549 = vpack.c.b16 %v459, %v450
    %v550 = vpack.c.b16 %v460, %v451
    %v551 = vpack.c.b16 %v461, %v452
    %v552 = vpack.c.b16 %v462, %v453
    %v553 = vpack.c.b16 %v463, %v454
    %v554 = vpack.c.b16 %v464, %v455
    %v555 = vpack.c.b16 %v474, %v465
    %v556 = vpack.c.b16 %v475, %v466
    %v557 = vpack.c.b16 %v476, %v467
    %v558 = vpack.c.b16 %v477, %v468
    %v559 = vpack.c.b16 %v478, %v469
    %v560 = vpack.c.b16 %v479, %v470
    %v561 = vpack.c.b16 %v480, %v471
    %v562 = vpack.c.b16 %v481, %v472
    %v563 = vpack.c.b16 %v482, %v473
    %v564 = vpack.c.b16 %v492, %v483
    %v565 = vpack.c.b16 %v493, %v484
    %v566 = vpack.c.b16 %v494, %v485
    %v567 = vpack.c.b16 %v495, %v486
    %v568 = vpack.c.b16 %v496, %v487
    %v569 = vpack.c.b16 %v497, %v488
    %v570 = vpack.c.b16 %v498, %v489
    %v571 = vpack.c.b16 %v499, %v490
    %v572 = vpack.c.b16 %v500, %v491
    %v773 = vunpack.c.l.b16 %v129
    %v774 = vunpack.c.h.b16 %v129
    %v775 = vunpack.c.l.b16 %v130
    %v776 = vunpack.c.h.b16 %v130
    %v777 = vunpack.c.l.b16 %v131
    %v778 = vunpack.c.h.b16 %v131
    %v779 = vunpack.c.l.b16 %v132
    %v780 = vunpack.c.h.b16 %v132
    %v781 = vunpack.c.l.b16 %v133
    %v782 = vunpack.c.h.b16 %v133
    %v783 = vunpack.c.l.b16 %v134
    %v784 = vunpack.c.h.b16 %v134
    %v785 = vunpack.c.l.b16 %v135
    %v786 = vunpack.c.h.b16 %v135
    %v787 = vunpack.c.l.b16 %v136
    %v788 = vunpack.c.h.b16 %v136
    %v789 = vunpack.c.l.b16 %v137
    %v790 = vunpack.c.h.b16 %v137
    %v791 = vunpack.c.l.b16 %v138
    %v792 = vunpack.c.h.b16 %v138
    %v793 = vunpack.c.l.b16 %v139
    %v794 = vunpack.c.h.b16 %v139
    %v795 = vunpack.c.l.b16 %v140
    %v796 = vunpack.c.h.b16 %v140
    %v797 = vunpack.c.l.b16 %v141
    %v798 = vunpack.c.h.b16 %v141
    %v799 = vunpack.c.l.b16 %v142
    %v800 = vunpack.c.h.b16 %v142
    %v801 = vunpack.c.l.b16 %v143
    %v802 = vunpack.c.h.b16 %v143
    %v803 = vunpack.c.l.b16 %v144
    %v804 = vunpack.c.h.b16 %v144
    %v805 = vunpack.c.l.b16 %v145
    %v806 = vunpack.c.h.b16 %v145
    %v807 = vunpack.c.l.b16 %v146
    %v808 = vunpack.c.h.b16 %v146
    %v809 = vunpack.c.l.b16 %v147
    %v810 = vunpack.c.h.b16 %v147
    %v811 = vunpack.c.l.b16 %v148
    %v812 = vunpack.c.h.b16 %v148
    %v813 = vunpack.c.l.b16 %v149
    %v814 = vunpack.c.h.b16 %v149
    %v815 = vunpack.c.l.b16 %v150
    %v816 = vunpack.c.h.b16 %v150
    %v817 = vunpack.c.l.b16 %v151
    %v818 = vunpack.c.h.b16 %v151
    %v819 = vunpack.c.l.b16 %v152
    %v820 = vunpack.c.h.b16 %v152
    %v821 = vunpack.c.l.b16 %v153
    %v822 = vunpack.c.h.b16 %v153
    %v823 = vunpack.c.l.b16 %v154
    %v824 = vunpack.c.h.b16 %v154
    %v825 = vunpack.c.l.b16 %v155
    %v826 = vunpack.c.h.b16 %v155
    %v827 = vunpack.c.l.b16 %v156
    %v828 = vunpack.c.h.b16 %v156
    %v829 = vunpack.c.l.b16 %v157
    %v830 = vunpack.c.h.b16 %v157
    %v831 = vunpack.c.l.b16 %v158
    %v832 = vunpack.c.h.b16 %v158
    %v833 = vunpack.c.l.b16 %v159
    %v834 = vunpack.c.h.b16 %v159
    %v835 = vunpack.c.l.b16 %v160
    %v836 = vunpack.c.h.b16 %v160
    %v837 = vunpack.c.l.b16 %v161
    %v838 = vunpack.c.h.b16 %v161
    %v839 = vunpack.c.l.b16 %v162
    %v840 = vunpack.c.h.b16 %v162
    %v841 = vunpack.c.l.b16 %v163
    %v842 = vunpack.c.h.b16 %v163
    %v843 = vunpack.c.l.b16 %v164
    %v844 = vunpack.c.h.b16 %v164
    %v845 = vunpack.c.l.b16 %v165
    %v846 = vunpack.c.h.b16 %v165
    %v847 = vunpack.c.l.b16 %v166
    %v848 = vunpack.c.h.b16 %v166
    %v849 = vunpack.c.l.b16 %v167
    %v850 = vunpack.c.h.b16 %v167
    %v851 = vunpack.c.l.b16 %v168
    %v852 = vunpack.c.h.b16 %v168
    %v853 = vunpack.c.l.b16 %v169
    %v854 = vunpack.c.h.b16 %v169
    %v855 = vunpack.c.l.b16 %v170
    %v856 = vunpack.c.h.b16 %v170
    %v857 = vunpack.c.l.b16 %v171
    %v858 = vunpack.c.h.b16 %v171
    %v859 = vunpack.c.l.b16 %v172
    %v860 = vunpack.c.h.b16 %v172
    %v861 = vunpack.c.l.b16 %v173
    %v862 = vunpack.c.h.b16 %v173
    %v863 = vunpack.c.l.b16 %v174
    %v864 = vunpack.c.h.b16 %v174
    %v865 = vunpack.c.l.b16 %v175
    %v866 = vunpack.c.h.b16 %v175
    %v867 = vunpack.c.l.b16 %v176
    %v868 = vunpack.c.h.b16 %v176
    %v869 = vunpack.c.l.b16 %v177
    %v870 = vunpack.c.h.b16 %v177
    %v871 = vunpack.c.l.b16 %v178
    %v872 = vunpack.c.h.b16 %v178
    %v873 = vunpack.c.l.b16 %v179
    %v874 = vunpack.c.h.b16 %v179
    %v875 = vunpack.c.l.b16 %v180
    %v876 = vunpack.c.h.b16 %v180
    %v877 = vunpack.c.l.b16 %v181
    %v878 = vunpack.c.h.b16 %v181
    %v879 = vunpack.c.l.b16 %v182
    %v880 = vunpack.c.h.b16 %v182
    %v881 = vunpack.c.l.b16 %v183
    %v882 = vunpack.c.h.b16 %v183
    %v883 = vunpack.c.l.b16 %v184
    %v884 = vunpack.c.h.b16 %v184
    %v885 = vunpack.c.l.b16 %v185
    %v886 = vunpack.c.h.b16 %v185
    %v887 = vunpack.c.l.b16 %v186
    %v888 = vunpack.c.h.b16 %v186
    %v889 = vunpack.c.l.b16 %v187
    %v890 = vunpack.c.h.b16 %v187
    %v891 = vunpack.c.l.b16 %v188
    %v892 = vunpack.c.h.b16 %v188
    %v893 = vunpack.c.l.b16 %v189
    %v894 = vunpack.c.h.b16 %v189
    %v895 = vunpack.c.l.b16 %v190
    %v896 = vunpack.c.h.b16 %v190
    %v897 = vunpack.c.l.b16 %v191
    %v898 = vunpack.c.h.b16 %v191
    %v899 = vunpack.c.l.b16 %v192
    %v900 = vunpack.c.h.b16 %v192
    %v901 = vunpack.c.l.b16 %v193
    %v902 = vunpack.c.h.b16 %v193
    %v903 = vunpack.c.l.b16 %v194
    %v904 = vunpack.c.h.b16 %v194
    %v905 = vunpack.c.l.b16 %v195
    %v906 = vunpack.c.h.b16 %v195
    %v907 = vunpack.c.l.b16 %v196
    %v908 = vunpack.c.h.b16 %v196
    %v909 = vunpack.c.l.b16 %v197
    %v910 = vunpack.c.h.b16 %v197
    %v911 = vunpack.c.l.b16 %v198
    %v912 = vunpack.c.h.b16 %v198
    %v913 = vunpack.c.l.b16 %v199
    %v914 = vunpack.c.h.b16 %v199
    %v915 = vunpack.c.l.b16 %v200
    %v916 = vunpack.c.h.b16 %v200
    %v917 = vunpack.c.l.b16 %v201
    %v918 = vunpack.c.h.b16 %v201
    %v919 = vunpack.c.l.b16 %v202
    %v920 = vunpack.c.h.b16 %v202
    %v921 = vunpack.c.l.b16 %v203
    %v922 = vunpack.c.h.b16 %v203
    %v923 = vunpack.c.l.b16 %v204
    %v924 = vunpack.c.h.b16 %v204
    %v925 = vunpack.c.l.b16 %v205
    %v926 = vunpack.c.h.b16 %v205
    %v927 = vunpack.c.l.b16 %v206
    %v928 = vunpack.c.h.b16 %v206
    %v929 = vunpack.c.l.b16 %v207
    %v930 = vunpack.c.h.b16 %v207
    %v931 = vunpack.c.l.b16 %v208
    %v932 = vunpack.c.h.b16 %v208
    %v933 = vunpack.c.l.b16 %v209
    %v934 = vunpack.c.h.b16 %v209
    %v935 = vunpack.c.l.b16 %v210
    %v936 = vunpack.c.h.b16 %v210
    %v937 = vunpack.c.l.b16 %v211
    %v938 = vunpack.c.h.b16 %v211
    %v939 = vunpack.c.l.b16 %v212
    %v940 = vunpack.c.h.b16 %v212
    %v941 = vunpack.c.l.b16 %v213
    %v942 = vunpack.c.h.b16 %v213
    %v943 = vunpack.c.l.b16 %v214
    %v944 = vunpack.c.h.b16 %v214
    %v945 = vunpack.c.l.b16 %v215
    %v946 = vunpack.c.h.b16 %v215
    %v947 = vunpack.c.l.b16 %v216
    %v948 = vunpack.c.h.b16 %v216
    %v949 = vunpack.c.l.b16 %v217
    %v950 = vunpack.c.h.b16 %v217
    %v951 = vunpack.c.l.b16 %v218
    %v952 = vunpack.c.h.b16 %v218
    %v953 = vunpack.c.l.b16 %v219
    %v954 = vunpack.c.h.b16 %v219
    %v955 = vunpack.c.l.b16 %v220
    %v956 = vunpack.c.h.b16 %v220
    %v957 = vunpack.c.l.b16 %v221
    %v958 = vunpack.c.h.b16 %v221
    %v959 = vunpack.c.l.b16 %v222
    %v960 = vunpack.c.h.b16 %v222
    %v961 = vunpack.c.l.b16 %v223
    %v962 = vunpack.c.h.b16 %v223
    %v963 = vunpack.c.l.b16 %v224
    %v964 = vunpack.c.h.b16 %v224
    %v965 = vunpack.c.l.b16 %v225
    %v966 = vunpack.c.h.b16 %v225
    %v967 = vunpack.c.l.b16 %v226
    %v968 = vunpack.c.h.b16 %v226
    %v969 = vunpack.c.l.b16 %v227
    %v970 = vunpack.c.h.b16 %v227
    %v971 = vunpack.c.l.b16 %v228
    %v972 = vunpack.c.h.b16 %v228
    %v973 = vunpack.c.l.b16 %v229
    %v974 = vunpack.c.h.b16 %v229
    %v975 = vunpack.c.l.b16 %v230
    %v976 = vunpack.c.h.b16 %v230
    %v977 = vunpack.c.l.b16 %v231
    %v978 = vunpack.c.h.b16 %v231
    %v979 = vunpack.c.l.b16 %v232
    %v980 = vunpack.c.h.b16 %v232
    %v981 = vunpack.c.l.b16 %v233
    %v982 = vunpack.c.h.b16 %v233
    %v983 = vunpack.c.l.b16 %v234
    %v984 = vunpack.c.h.b16 %v234
    %v985 = vunpack.c.l.b16 %v235
    %v986 = vunpack.c.h.b16 %v235
    %v987 = vunpack.c.l.b16 %v236
    %v988 = vunpack.c.h.b16 %v236
    %v989 = vunpack.c.l.b16 %v237
    %v990 = vunpack.c.h.b16 %v237
    %v991 = vunpack.c.l.b16 %v238
    %v992 = vunpack.c.h.b16 %v238
    %v993 = vunpack.c.l.b16 %v239
    %v994 = vunpack.c.h.b16 %v239
    %v995 = vunpack.c.l.b16 %v240
    %v996 = vunpack.c.h.b16 %v240
    %v997 = vunpack.c.l.b16 %v241
    %v998 = vunpack.c.h.b16 %v241
    %v999 = vunpack.c.l.b16 %v242
    %v1000 = vunpack.c.h.b16 %v242
    %v1001 = vunpack.c.l.b16 %v243
    %v1002 = vunpack.c.h.b16 %v243
    %v1003 = vunpack.c.l.b16 %v244
    %v1004 = vunpack.c.h.b16 %v244
    %v1005 = vunpack.c.l.b16 %v245
    %v1006 = vunpack.c.h.b16 %v245
    %v1007 = vunpack.c.l.b16 %v246
    %v1008 = vunpack.c.h.b16 %v246
    %v1009 = vunpack.c.l.b16 %v247
    %v1010 = vunpack.c.h.b16 %v247
    %v1011 = vunpack.c.l.b16 %v248
    %v1012 = vunpack.c.h.b16 %v248
    %v1013 = vunpack.c.l.b16 %v249
    %v1014 = vunpack.c.h.b16 %v249
    %v1015 = vunpack.c.l.b16 %v250
    %v1016 = vunpack.c.h.b16 %v250
    %v1017 = vunpack.c.l.b16 %v251
    %v1018 = vunpack.c.h.b16 %v251
    %v1019 = vunpack.c.l.b16 %v252
    %v1020 = vunpack.c.h.b16 %v252
    %v1021 = vunpack.c.l.b16 %v253
    %v1022 = vunpack.c.h.b16 %v253
    %v1023 = vunpack.c.l.b16 %v254
    %v1024 = vunpack.c.h.b16 %v254
    %v1025 = vunpack.c.l.b16 %v255
    %v1026 = vunpack.c.h.b16 %v255
    %v1027 = vunpack.c.l.b16 %v256
    %v1028 = vunpack.c.h.b16 %v256
    %v1029 = vunpack.c.l.b16 %v257
    %v1030 = vunpack.c.h.b16 %v257
    %v1031 = vunpack.c.l.b16 %v258
    %v1032 = vunpack.c.h.b16 %v258
    %v1033 = vunpack.c.l.b16 %v259
    %v1034 = vunpack.c.h.b16 %v259
    %v1035 = vunpack.c.l.b16 %v260
    %v1036 = vunpack.c.h.b16 %v260
    %v1037 = vunpack.c.l.b16 %v261
    %v1038 = vunpack.c.h.b16 %v261
    %v1039 = vunpack.c.l.b16 %v262
    %v1040 = vunpack.c.h.b16 %v262
    %v1041 = vunpack.c.l.b16 %v263
    %v1042 = vunpack.c.h.b16 %v263
    %v1043 = vunpack.c.l.b16 %v264
    %v1044 = vunpack.c.h.b16 %v264
    %v1045 = vpack.c.b16 %v775, %v773
    %v1046 = vpack.c.b16 %v776, %v774
    %v1047 = vpack.c.b16 %v779, %v777
    %v1048 = vpack.c.b16 %v780, %v778
    %v1049 = vpack.c.b16 %v783, %v781
    %v1050 = vpack.c.b16 %v784, %v782
    %v1051 = vpack.c.b16 %v787, %v785
    %v1052 = vpack.c.b16 %v788, %v786
    %v1053 = vpack.c.b16 %v791, %v789
    %v1054 = vpack.c.b16 %v792, %v790
    %v1055 = vpack.c.b16 %v795, %v793
    %v1056 = vpack.c.b16 %v796, %v794
    %v1057 = vpack.c.b16 %v799, %v797
    %v1058 = vpack.c.b16 %v800, %v798
    %v1059 = vpack.c.b16 %v803, %v801
    %v1060 = vpack.c.b16 %v804, %v802
    %v1061 = vpack.c.b16 %v807, %v805
    %v1062 = vpack.c.b16 %v808, %v806
    %v1063 = vpack.c.b16 %v811, %v809
    %v1064 = vpack.c.b16 %v812, %v810
    %v1065 = vpack.c.b16 %v815, %v813
    %v1066 = vpack.c.b16 %v816, %v814
    %v1067 = vpack.c.b16 %v819, %v817
    %v1068 = vpack.c.b16 %v820, %v818
    %v1069 = vpack.c.b16 %v823, %v821
    %v1070 = vpack.c.b16 %v824, %v822
    %v1071 = vpack.c.b16 %v827, %v825
    %v1072 = vpack.c.b16 %v828, %v826
    %v1073 = vpack.c.b16 %v831, %v829
    %v1074 = vpack.c.b16 %v832, %v830
    %v1075 = vpack.c.b16 %v835, %v833
    %v1076 = vpack.c.b16 %v836, %v834
    %v1077 = vpack.c.b16 %v839, %v837
    %v1078 = vpack.c.b16 %v840, %v838
    %v1079 = vpack.c.b16 %v843, %v841
    %v1080 = vpack.c.b16 %v844, %v842
    %v1081 = vpack.c.b16 %v847, %v845
    %v1082 = vpack.c.b16 %v848, %v846
    %v1083 = vpack.c.b16 %v851, %v849
    %v1084 = vpack.c.b16 %v852, %v850
    %v1085 = vpack.c.b16 %v855, %v853
    %v1086 = vpack.c.b16 %v856, %v854
    %v1087 = vpack.c.b16 %v859, %v857
    %v1088 = vpack.c.b16 %v860, %v858
    %v1089 = vpack.c.b16 %v863, %v861
    %v1090 = vpack.c.b16 %v864, %v862
    %v1091 = vpack.c.b16 %v867, %v865
    %v1092 = vpack.c.b16 %v868, %v866
    %v1093 = vpack.c.b16 %v871, %v869
    %v1094 = vpack.c.b16 %v872, %v870
    %v1095 = vpack.c.b16 %v875, %v873
    %v1096 = vpack.c.b16 %v876, %v874
    %v1097 = vpack.c.b16 %v879, %v877
    %v1098 = vpack.c.b16 %v880, %v878
    %v1099 = vpack.c.b16 %v883, %v881
    %v1100 = vpack.c.b16 %v884, %v882
    %v1101 = vpack.c.b16 %v887, %v885
    %v1102 = vpack.c.b16 %v888, %v886
    %v1103 = vpack.c.b16 %v891, %v889
    %v1104 = vpack.c.b16 %v892, %v890
    %v1105 = vpack.c.b16 %v895, %v893
    %v1106 = vpack.c.b16 %v896, %v894
    %v1107 = vpack.c.b16 %v899, %v897
    %v1108 = vpack.c.b16 %v900, %v898
    %v1109 = vpack.c.b16 %v903, %v901
    %v1110 = vpack.c.b16 %v904, %v902
    %v1111 = vpack.c.b16 %v907, %v905
    %v1112 = vpack.c.b16 %v908, %v906
    %v1113 = vpack.c.b16 %v911, %v909
    %v1114 = vpack.c.b16 %v912, %v910
    %v1115 = vpack.c.b16 %v915, %v913
    %v1116 = vpack.c.b16 %v916, %v914
    %v1117 = vpack.c.b16 %v919, %v917
    %v1118 = vpack.c.b16 %v920, %v918
    %v1119 = vpack.c.b16 %v923, %v921
    %v1120 = vpack.c.b16 %v924, %v922
    %v1121 = vpack.c.b16 %v927, %v925
    %v1122 = vpack.c.b16 %v928, %v926
    %v1123 = vpack.c.b16 %v931, %v929
    %v1124 = vpack.c.b16 %v932, %v930
    %v1125 = vpack.c.b16 %v935, %v933
    %v1126 = vpack.c.b16 %v936, %v934
    %v1127 = vpack.c.b16 %v939, %v937
    %v1128 = vpack.c.b16 %v940, %v938
    %v1129 = vpack.c.b16 %v943, %v941
    %v1130 = vpack.c.b16 %v944, %v942
    %v1131 = vpack.c.b16 %v947, %v945
    %v1132 = vpack.c.b16 %v948, %v946
    %v1133 = vpack.c.b16 %v951, %v949
    %v1134 = vpack.c.b16 %v952, %v950
    %v1135 = vpack.c.b16 %v955, %v953
    %v1136 = vpack.c.b16 %v956, %v954
    %v1137 = vpack.c.b16 %v959, %v957
    %v1138 = vpack.c.b16 %v960, %v958
    %v1139 = vpack.c.b16 %v963, %v961
    %v1140 = vpack.c.b16 %v964, %v962
    %v1141 = vpack.c.b16 %v967, %v965
    %v1142 = vpack.c.b16 %v968, %v966
    %v1143 = vpack.c.b16 %v971, %v969
    %v1144 = vpack.c.b16 %v972, %v970
    %v1145 = vpack.c.b16 %v975, %v973
    %v1146 = vpack.c.b16 %v976, %v974
    %v1147 = vpack.c.b16 %v979, %v977
    %v1148 = vpack.c.b16 %v980, %v978
    %v1149 = vpack.c.b16 %v983, %v981
    %v1150 = vpack.c.b16 %v984, %v982
    %v1151 = vpack.c.b16 %v987, %v985
    %v1152 = vpack.c.b16 %v988, %v986
    %v1153 = vpack.c.b16 %v991, %v989
    %v1154 = vpack.c.b16 %v992, %v990
    %v1155 = vpack.c.b16 %v995, %v993
    %v1156 = vpack.c.b16 %v996, %v994
    %v1157 = vpack.c.b16 %v999, %v997
    %v1158 = vpack.c.b16 %v1000, %v998
    %v1159 = vpack.c.b16 %v1003, %v1001
    %v1160 = vpack.c.b16 %v1004, %v1002
    %v1161 = vpack.c.b16 %v1007, %v1005
    %v1162 = vpack.c.b16 %v1008, %v1006
    %v1163 = vpack.c.b16 %v1011, %v1009
    %v1164 = vpack.c.b16 %v1012, %v1010
    %v1165 = vpack.c.b16 %v1015, %v1013
    %v1166 = vpack.c.b16 %v1016, %v1014
    %v1167 = vpack.c.b16 %v1019, %v1017
    %v1168 = vpack.c.b16 %v1020, %v1018
    %v1169 = vpack.c.b16 %v1023, %v1021
    %v1170 = vpack.c.b16 %v1024, %v1022
    %v1171 = vpack.c.b16 %v1027, %v1025
    %v1172 = vpack.c.b16 %v1028, %v1026
    %v1173 = vpack.c.b16 %v1031, %v1029
    %v1174 = vpack.c.b16 %v1032, %v1030
    %v1175 = vpack.c.b16 %v1035, %v1033
    %v1176 = vpack.c.b16 %v1036, %v1034
    %v1177 = vpack.c.b16 %v1039, %v1037
    %v1178 = vpack.c.b16 %v1040, %v1038
    %v1179 = vpack.c.b16 %v1043, %v1041
    %v1180 = vpack.c.b16 %v1044, %v1042
    %vm1317 = vcmask 523264
    %v1319 = vsel %vm1317, %v509, 0
    %v1322 = vsel %vm1317, %v518, 0
    %v1325 = vsel %vm1317, %v527, 0
    %v1328 = vsel %vm1317, %v536, 0
    %v1331 = vsel %vm1317, %v545, 0
    %v1334 = vsel %vm1317, %v554, 0
    %v1337 = vsel %vm1317, %v563, 0
    %v1340 = vsel %vm1317, %v572, 0
    %1342 = vmatprep.subr.bf16.mxu0 %v1060
    %1343 = vmatpush1.bf16.msra.mxu0 %v1059
    %1344 = vmatprep.subr.bf16.mxu0 %v1058
    %1345 = vmatpush1.bf16.msra.mxu0 %v1057
    %1346 = vmatprep.subr.bf16.mxu0 %v1056
    %1347 = vmatpush1.bf16.msra.mxu0 %v1055
    %1348 = vmatprep.subr.bf16.mxu0 %v1054
    %1349 = vmatpush1.bf16.msra.mxu0 %v1053
    %1350 = vmatprep.subr.bf16.mxu0 %v1052
    %1351 = vmatpush1.bf16.msra.mxu0 %v1051
    %1352 = vmatprep.subr.bf16.mxu0 %v1050
    %1353 = vmatpush1.bf16.msra.mxu0 %v1049
    %1354 = vmatprep.subr.bf16.mxu0 %v1048
    %1355 = vmatpush1.bf16.msra.mxu0 %v1047
    %1356 = vmatprep.subr.bf16.mxu0 %v1046
    %1357 = vmatpush1.bf16.msra.mxu0 %v1045
    %1358 = vmatprep.subr.bf16.mxu0 %v1076
    %1359 = vmatpush2.bf16.msra.mxu0 %v1075
    %1360 = vmatprep.subr.bf16.mxu0 %v1074
    %1361 = vmatpush2.bf16.msra.mxu0 %v1073
    %1362 = vmatprep.subr.bf16.mxu0 %v1072
    %1363 = vmatpush2.bf16.msra.mxu0 %v1071
    %1364 = vmatprep.subr.bf16.mxu0 %v1070
    %1365 = vmatpush2.bf16.msra.mxu0 %v1069
    %1366 = vmatprep.subr.bf16.mxu0 %v1068
    %1367 = vmatpush2.bf16.msra.mxu0 %v1067
    %1368 = vmatprep.subr.bf16.mxu0 %v1066
    %1369 = vmatpush2.bf16.msra.mxu0 %v1065
    %1370 = vmatprep.subr.bf16.mxu0 %v1064
    %1371 = vmatpush2.bf16.msra.mxu0 %v1063
    %1372 = vmatprep.subr.bf16.mxu0 %v1062
    %1373 = vmatpush2.bf16.msra.mxu0 %v1061
    %1374 = vmatprep.mubr.bf16.mxu0 %v502
    %1375 = vmatmul.mubr.bf16.gmra.mxu0 %v501
    %v1376 = vpop.f32.mrf.mxu0
    %v1377 = vadd.f32 %v270, %v1376
    %v1378 = vpop.f32.mrf.mxu0
    %v1379 = vadd.f32 %v274, %v1378
    %v1380 = vpop.f32.mrf.mxu0
    %v1381 = vadd.f32 %v270, %v1380
    %v1382 = vpop.f32.mrf.mxu0
    %v1383 = vadd.f32 %v274, %v1382
    %1384 = vmatprep.mubr.bf16.mxu0 %v511
    %1385 = vmatmul.mubr.bf16.gmra.mxu0 %v510
    %v1386 = vpop.f32.mrf.mxu0
    %v1387 = vadd.f32 %v270, %v1386
    %v1388 = vpop.f32.mrf.mxu0
    %v1389 = vadd.f32 %v274, %v1388
    %v1390 = vpop.f32.mrf.mxu0
    %v1391 = vadd.f32 %v270, %v1390
    %v1392 = vpop.f32.mrf.mxu0
    %v1393 = vadd.f32 %v274, %v1392
    %1394 = vmatprep.mubr.bf16.mxu0 %v520
    %1395 = vmatmul.mubr.bf16.gmra.mxu0 %v519
    %v1396 = vpop.f32.mrf.mxu0
    %v1397 = vadd.f32 %v270, %v1396
    %v1398 = vpop.f32.mrf.mxu0
    %v1399 = vadd.f32 %v274, %v1398
    %v1400 = vpop.f32.mrf.mxu0
    %v1401 = vadd.f32 %v270, %v1400
    %v1402 = vpop.f32.mrf.mxu0
    %v1403 = vadd.f32 %v274, %v1402
    %1404 = vmatprep.mubr.bf16.mxu0 %v529
    %1405 = vmatmul.mubr.bf16.gmra.mxu0 %v528
    %v1406 = vpop.f32.mrf.mxu0
    %v1407 = vadd.f32 %v270, %v1406
    %v1408 = vpop.f32.mrf.mxu0
    %v1409 = vadd.f32 %v274, %v1408
    %v1410 = vpop.f32.mrf.mxu0
    %v1411 = vadd.f32 %v270, %v1410
    %v1412 = vpop.f32.mrf.mxu0
    %v1413 = vadd.f32 %v274, %v1412
    %1414 = vmatprep.mubr.bf16.mxu0 %v538
    %1415 = vmatmul.mubr.bf16.gmra.mxu0 %v537
    %v1416 = vpop.f32.mrf.mxu0
    %v1417 = vadd.f32 %v270, %v1416
    %v1418 = vpop.f32.mrf.mxu0
    %v1419 = vadd.f32 %v274, %v1418
    %v1420 = vpop.f32.mrf.mxu0
    %v1421 = vadd.f32 %v270, %v1420
    %v1422 = vpop.f32.mrf.mxu0
    %v1423 = vadd.f32 %v274, %v1422
    %1424 = vmatprep.mubr.bf16.mxu0 %v547
    %1425 = vmatmul.mubr.bf16.gmra.mxu0 %v546
    %v1426 = vpop.f32.mrf.mxu0
    %v1427 = vadd.f32 %v270, %v1426
    %v1428 = vpop.f32.mrf.mxu0
    %v1429 = vadd.f32 %v274, %v1428
    %v1430 = vpop.f32.mrf.mxu0
    %v1431 = vadd.f32 %v270, %v1430
    %v1432 = vpop.f32.mrf.mxu0
    %v1433 = vadd.f32 %v274, %v1432
    %1434 = vmatprep.mubr.bf16.mxu0 %v556
    %1435 = vmatmul.mubr.bf16.gmra.mxu0 %v555
    %v1436 = vpop.f32.mrf.mxu0
    %v1437 = vadd.f32 %v270, %v1436
    %v1438 = vpop.f32.mrf.mxu0
    %v1439 = vadd.f32 %v274, %v1438
    %v1440 = vpop.f32.mrf.mxu0
    %v1441 = vadd.f32 %v270, %v1440
    %v1442 = vpop.f32.mrf.mxu0
    %v1443 = vadd.f32 %v274, %v1442
    %1444 = vmatprep.mubr.bf16.mxu0 %v565
    %1445 = vmatmul.mubr.bf16.gmra.mxu0 %v564
    %v1446 = vpop.f32.mrf.mxu0
    %v1447 = vadd.f32 %v270, %v1446
    %v1448 = vpop.f32.mrf.mxu0
    %v1449 = vadd.f32 %v274, %v1448
    %v1450 = vpop.f32.mrf.mxu0
    %v1451 = vadd.f32 %v270, %v1450
    %v1452 = vpop.f32.mrf.mxu0
    %v1453 = vadd.f32 %v274, %v1452
    %1454 = vdwg.mxu0
    %1455 = vmatprep.subr.bf16.mxu0 %v1092
    %1456 = vmatpush1.bf16.msra.mxu0 %v1091
    %1457 = vmatprep.subr.bf16.mxu0 %v1090
    %1458 = vmatpush1.bf16.msra.mxu0 %v1089
    %1459 = vmatprep.subr.bf16.mxu0 %v1088
    %1460 = vmatpush1.bf16.msra.mxu0 %v1087
    %1461 = vmatprep.subr.bf16.mxu0 %v1086
    %1462 = vmatpush1.bf16.msra.mxu0 %v1085
    %1463 = vmatprep.subr.bf16.mxu0 %v1084
    %1464 = vmatpush1.bf16.msra.mxu0 %v1083
    %1465 = vmatprep.subr.bf16.mxu0 %v1082
    %1466 = vmatpush1.bf16.msra.mxu0 %v1081
    %1467 = vmatprep.subr.bf16.mxu0 %v1080
    %1468 = vmatpush1.bf16.msra.mxu0 %v1079
    %1469 = vmatprep.subr.bf16.mxu0 %v1078
    %1470 = vmatpush1.bf16.msra.mxu0 %v1077
    %1471 = vmatprep.subr.bf16.mxu0 %v1108
    %1472 = vmatpush2.bf16.msra.mxu0 %v1107
    %1473 = vmatprep.subr.bf16.mxu0 %v1106
    %1474 = vmatpush2.bf16.msra.mxu0 %v1105
    %1475 = vmatprep.subr.bf16.mxu0 %v1104
    %1476 = vmatpush2.bf16.msra.mxu0 %v1103
    %1477 = vmatprep.subr.bf16.mxu0 %v1102
    %1478 = vmatpush2.bf16.msra.mxu0 %v1101
    %1479 = vmatprep.subr.bf16.mxu0 %v1100
    %1480 = vmatpush2.bf16.msra.mxu0 %v1099
    %1481 = vmatprep.subr.bf16.mxu0 %v1098
    %1482 = vmatpush2.bf16.msra.mxu0 %v1097
    %1483 = vmatprep.subr.bf16.mxu0 %v1096
    %1484 = vmatpush2.bf16.msra.mxu0 %v1095
    %1485 = vmatprep.subr.bf16.mxu0 %v1094
    %1486 = vmatpush2.bf16.msra.mxu0 %v1093
    %1487 = vmatprep.mubr.bf16.mxu0 %v504
    %1488 = vmatmul.mubr.bf16.gmra.mxu0 %v503
    %v1489 = vpop.f32.mrf.mxu0
    %v1490 = vadd.f32 %v1377, %v1489
    %v1491 = vpop.f32.mrf.mxu0
    %v1492 = vadd.f32 %v1379, %v1491
    %v1493 = vpop.f32.mrf.mxu0
    %v1494 = vadd.f32 %v1381, %v1493
    %v1495 = vpop.f32.mrf.mxu0
    %v1496 = vadd.f32 %v1383, %v1495
    %1497 = vmatprep.mubr.bf16.mxu0 %v513
    %1498 = vmatmul.mubr.bf16.gmra.mxu0 %v512
    %v1499 = vpop.f32.mrf.mxu0
    %v1500 = vadd.f32 %v1387, %v1499
    %v1501 = vpop.f32.mrf.mxu0
    %v1502 = vadd.f32 %v1389, %v1501
    %v1503 = vpop.f32.mrf.mxu0
    %v1504 = vadd.f32 %v1391, %v1503
    %v1505 = vpop.f32.mrf.mxu0
    %v1506 = vadd.f32 %v1393, %v1505
    %1507 = vmatprep.mubr.bf16.mxu0 %v522
    %1508 = vmatmul.mubr.bf16.gmra.mxu0 %v521
    %v1509 = vpop.f32.mrf.mxu0
    %v1510 = vadd.f32 %v1397, %v1509
    %v1511 = vpop.f32.mrf.mxu0
    %v1512 = vadd.f32 %v1399, %v1511
    %v1513 = vpop.f32.mrf.mxu0
    %v1514 = vadd.f32 %v1401, %v1513
    %v1515 = vpop.f32.mrf.mxu0
    %v1516 = vadd.f32 %v1403, %v1515
    %1517 = vmatprep.mubr.bf16.mxu0 %v531
    %1518 = vmatmul.mubr.bf16.gmra.mxu0 %v530
    %v1519 = vpop.f32.mrf.mxu0
    %v1520 = vadd.f32 %v1407, %v1519
    %v1521 = vpop.f32.mrf.mxu0
    %v1522 = vadd.f32 %v1409, %v1521
    %v1523 = vpop.f32.mrf.mxu0
    %v1524 = vadd.f32 %v1411, %v1523
    %v1525 = vpop.f32.mrf.mxu0
    %v1526 = vadd.f32 %v1413, %v1525
    %1527 = vmatprep.mubr.bf16.mxu0 %v540
    %1528 = vmatmul.mubr.bf16.gmra.mxu0 %v539
    %v1529 = vpop.f32.mrf.mxu0
    %v1530 = vadd.f32 %v1417, %v1529
    %v1531 = vpop.f32.mrf.mxu0
    %v1532 = vadd.f32 %v1419, %v1531
    %v1533 = vpop.f32.mrf.mxu0
    %v1534 = vadd.f32 %v1421, %v1533
    %v1535 = vpop.f32.mrf.mxu0
    %v1536 = vadd.f32 %v1423, %v1535
    %1537 = vmatprep.mubr.bf16.mxu0 %v549
    %1538 = vmatmul.mubr.bf16.gmra.mxu0 %v548
    %v1539 = vpop.f32.mrf.mxu0
    %v1540 = vadd.f32 %v1427, %v1539
    %v1541 = vpop.f32.mrf.mxu0
    %v1542 = vadd.f32 %v1429, %v1541
    %v1543 = vpop.f32.mrf.mxu0
    %v1544 = vadd.f32 %v1431, %v1543
    %v1545 = vpop.f32.mrf.mxu0
    %v1546 = vadd.f32 %v1433, %v1545
    %1547 = vmatprep.mubr.bf16.mxu0 %v558
    %1548 = vmatmul.mubr.bf16.gmra.mxu0 %v557
    %v1549 = vpop.f32.mrf.mxu0
    %v1550 = vadd.f32 %v1437, %v1549
    %v1551 = vpop.f32.mrf.mxu0
    %v1552 = vadd.f32 %v1439, %v1551
    %v1553 = vpop.f32.mrf.mxu0
    %v1554 = vadd.f32 %v1441, %v1553
    %v1555 = vpop.f32.mrf.mxu0
    %v1556 = vadd.f32 %v1443, %v1555
    %1557 = vmatprep.mubr.bf16.mxu0 %v567
    %1558 = vmatmul.mubr.bf16.gmra.mxu0 %v566
    %v1559 = vpop.f32.mrf.mxu0
    %v1560 = vadd.f32 %v1447, %v1559
    %v1561 = vpop.f32.mrf.mxu0
    %v1562 = vadd.f32 %v1449, %v1561
    %v1563 = vpop.f32.mrf.mxu0
    %v1564 = vadd.f32 %v1451, %v1563
    %v1565 = vpop.f32.mrf.mxu0
    %v1566 = vadd.f32 %v1453, %v1565
    %1567 = vdwg.mxu0
    %1568 = vmatprep.subr.bf16.mxu0 %v1124
    %1569 = vmatpush1.bf16.msra.mxu0 %v1123
    %1570 = vmatprep.subr.bf16.mxu0 %v1122
    %1571 = vmatpush1.bf16.msra.mxu0 %v1121
    %1572 = vmatprep.subr.bf16.mxu0 %v1120
    %1573 = vmatpush1.bf16.msra.mxu0 %v1119
    %1574 = vmatprep.subr.bf16.mxu0 %v1118
    %1575 = vmatpush1.bf16.msra.mxu0 %v1117
    %1576 = vmatprep.subr.bf16.mxu0 %v1116
    %1577 = vmatpush1.bf16.msra.mxu0 %v1115
    %1578 = vmatprep.subr.bf16.mxu0 %v1114
    %1579 = vmatpush1.bf16.msra.mxu0 %v1113
    %1580 = vmatprep.subr.bf16.mxu0 %v1112
    %1581 = vmatpush1.bf16.msra.mxu0 %v1111
    %1582 = vmatprep.subr.bf16.mxu0 %v1110
    %1583 = vmatpush1.bf16.msra.mxu0 %v1109
    %1584 = vmatprep.subr.bf16.mxu0 %v1140
    %1585 = vmatpush2.bf16.msra.mxu0 %v1139
    %1586 = vmatprep.subr.bf16.mxu0 %v1138
    %1587 = vmatpush2.bf16.msra.mxu0 %v1137
    %1588 = vmatprep.subr.bf16.mxu0 %v1136
    %1589 = vmatpush2.bf16.msra.mxu0 %v1135
    %1590 = vmatprep.subr.bf16.mxu0 %v1134
    %1591 = vmatpush2.bf16.msra.mxu0 %v1133
    %1592 = vmatprep.subr.bf16.mxu0 %v1132
    %1593 = vmatpush2.bf16.msra.mxu0 %v1131
    %1594 = vmatprep.subr.bf16.mxu0 %v1130
    %1595 = vmatpush2.bf16.msra.mxu0 %v1129
    %1596 = vmatprep.subr.bf16.mxu0 %v1128
    %1597 = vmatpush2.bf16.msra.mxu0 %v1127
    %1598 = vmatprep.subr.bf16.mxu0 %v1126
    %1599 = vmatpush2.bf16.msra.mxu0 %v1125
    %1600 = vmatprep.mubr.bf16.mxu0 %v506
    %1601 = vmatmul.mubr.bf16.gmra.mxu0 %v505
    %v1602 = vpop.f32.mrf.mxu0
    %v1603 = vadd.f32 %v1490, %v1602
    %v1604 = vpop.f32.mrf.mxu0
    %v1605 = vadd.f32 %v1492, %v1604
    %v1606 = vpop.f32.mrf.mxu0
    %v1607 = vadd.f32 %v1494, %v1606
    %v1608 = vpop.f32.mrf.mxu0
    %v1609 = vadd.f32 %v1496, %v1608
    %1610 = vmatprep.mubr.bf16.mxu0 %v515
    %1611 = vmatmul.mubr.bf16.gmra.mxu0 %v514
    %v1612 = vpop.f32.mrf.mxu0
    %v1613 = vadd.f32 %v1500, %v1612
    %v1614 = vpop.f32.mrf.mxu0
    %v1615 = vadd.f32 %v1502, %v1614
    %v1616 = vpop.f32.mrf.mxu0
    %v1617 = vadd.f32 %v1504, %v1616
    %v1618 = vpop.f32.mrf.mxu0
    %v1619 = vadd.f32 %v1506, %v1618
    %1620 = vmatprep.mubr.bf16.mxu0 %v524
    %1621 = vmatmul.mubr.bf16.gmra.mxu0 %v523
    %v1622 = vpop.f32.mrf.mxu0
    %v1623 = vadd.f32 %v1510, %v1622
    %v1624 = vpop.f32.mrf.mxu0
    %v1625 = vadd.f32 %v1512, %v1624
    %v1626 = vpop.f32.mrf.mxu0
    %v1627 = vadd.f32 %v1514, %v1626
    %v1628 = vpop.f32.mrf.mxu0
    %v1629 = vadd.f32 %v1516, %v1628
    %1630 = vmatprep.mubr.bf16.mxu0 %v533
    %1631 = vmatmul.mubr.bf16.gmra.mxu0 %v532
    %v1632 = vpop.f32.mrf.mxu0
    %v1633 = vadd.f32 %v1520, %v1632
    %v1634 = vpop.f32.mrf.mxu0
    %v1635 = vadd.f32 %v1522, %v1634
    %v1636 = vpop.f32.mrf.mxu0
    %v1637 = vadd.f32 %v1524, %v1636
    %v1638 = vpop.f32.mrf.mxu0
    %v1639 = vadd.f32 %v1526, %v1638
    %1640 = vmatprep.mubr.bf16.mxu0 %v542
    %1641 = vmatmul.mubr.bf16.gmra.mxu0 %v541
    %v1642 = vpop.f32.mrf.mxu0
    %v1643 = vadd.f32 %v1530, %v1642
    %v1644 = vpop.f32.mrf.mxu0
    %v1645 = vadd.f32 %v1532, %v1644
    %v1646 = vpop.f32.mrf.mxu0
    %v1647 = vadd.f32 %v1534, %v1646
    %v1648 = vpop.f32.mrf.mxu0
    %v1649 = vadd.f32 %v1536, %v1648
    %1650 = vmatprep.mubr.bf16.mxu0 %v551
    %1651 = vmatmul.mubr.bf16.gmra.mxu0 %v550
    %v1652 = vpop.f32.mrf.mxu0
    %v1653 = vadd.f32 %v1540, %v1652
    %v1654 = vpop.f32.mrf.mxu0
    %v1655 = vadd.f32 %v1542, %v1654
    %v1656 = vpop.f32.mrf.mxu0
    %v1657 = vadd.f32 %v1544, %v1656
    %v1658 = vpop.f32.mrf.mxu0
    %v1659 = vadd.f32 %v1546, %v1658
    %1660 = vmatprep.mubr.bf16.mxu0 %v560
    %1661 = vmatmul.mubr.bf16.gmra.mxu0 %v559
    %v1662 = vpop.f32.mrf.mxu0
    %v1663 = vadd.f32 %v1550, %v1662
    %v1664 = vpop.f32.mrf.mxu0
    %v1665 = vadd.f32 %v1552, %v1664
    %v1666 = vpop.f32.mrf.mxu0
    %v1667 = vadd.f32 %v1554, %v1666
    %v1668 = vpop.f32.mrf.mxu0
    %v1669 = vadd.f32 %v1556, %v1668
    %1670 = vmatprep.mubr.bf16.mxu0 %v569
    %1671 = vmatmul.mubr.bf16.gmra.mxu0 %v568
    %v1672 = vpop.f32.mrf.mxu0
    %v1673 = vadd.f32 %v1560, %v1672
    %v1674 = vpop.f32.mrf.mxu0
    %v1675 = vadd.f32 %v1562, %v1674
    %v1676 = vpop.f32.mrf.mxu0
    %v1677 = vadd.f32 %v1564, %v1676
    %v1678 = vpop.f32.mrf.mxu0
    %v1679 = vadd.f32 %v1566, %v1678
    %1680 = vdwg.mxu0
    %1681 = vmatprep.subr.bf16.mxu0 %v1156
    %1682 = vmatpush1.bf16.msra.mxu0 %v1155
    %1683 = vmatprep.subr.bf16.mxu0 %v1154
    %1684 = vmatpush1.bf16.msra.mxu0 %v1153
    %1685 = vmatprep.subr.bf16.mxu0 %v1152
    %1686 = vmatpush1.bf16.msra.mxu0 %v1151
    %1687 = vmatprep.subr.bf16.mxu0 %v1150
    %1688 = vmatpush1.bf16.msra.mxu0 %v1149
    %1689 = vmatprep.subr.bf16.mxu0 %v1148
    %1690 = vmatpush1.bf16.msra.mxu0 %v1147
    %1691 = vmatprep.subr.bf16.mxu0 %v1146
    %1692 = vmatpush1.bf16.msra.mxu0 %v1145
    %1693 = vmatprep.subr.bf16.mxu0 %v1144
    %1694 = vmatpush1.bf16.msra.mxu0 %v1143
    %1695 = vmatprep.subr.bf16.mxu0 %v1142
    %1696 = vmatpush1.bf16.msra.mxu0 %v1141
    %1697 = vmatprep.subr.bf16.mxu0 %v1172
    %1698 = vmatpush2.bf16.msra.mxu0 %v1171
    %1699 = vmatprep.subr.bf16.mxu0 %v1170
    %1700 = vmatpush2.bf16.msra.mxu0 %v1169
    %1701 = vmatprep.subr.bf16.mxu0 %v1168
    %1702 = vmatpush2.bf16.msra.mxu0 %v1167
    %1703 = vmatprep.subr.bf16.mxu0 %v1166
    %1704 = vmatpush2.bf16.msra.mxu0 %v1165
    %1705 = vmatprep.subr.bf16.mxu0 %v1164
    %1706 = vmatpush2.bf16.msra.mxu0 %v1163
    %1707 = vmatprep.subr.bf16.mxu0 %v1162
    %1708 = vmatpush2.bf16.msra.mxu0 %v1161
    %1709 = vmatprep.subr.bf16.mxu0 %v1160
    %1710 = vmatpush2.bf16.msra.mxu0 %v1159
    %1711 = vmatprep.subr.bf16.mxu0 %v1158
    %1712 = vmatpush2.bf16.msra.mxu0 %v1157
    %1713 = vmatprep.mubr.bf16.mxu0 %v508
    %1714 = vmatmul.mubr.bf16.gmra.mxu0 %v507
    %v1715 = vpop.f32.mrf.mxu0
    %v1716 = vadd.f32 %v1603, %v1715
    %v1717 = vpop.f32.mrf.mxu0
    %v1718 = vadd.f32 %v1605, %v1717
    %v1719 = vpop.f32.mrf.mxu0
    %v1720 = vadd.f32 %v1607, %v1719
    %v1721 = vpop.f32.mrf.mxu0
    %v1722 = vadd.f32 %v1609, %v1721
    %1723 = vmatprep.mubr.bf16.mxu0 %v517
    %1724 = vmatmul.mubr.bf16.gmra.mxu0 %v516
    %v1725 = vpop.f32.mrf.mxu0
    %v1726 = vadd.f32 %v1613, %v1725
    %v1727 = vpop.f32.mrf.mxu0
    %v1728 = vadd.f32 %v1615, %v1727
    %v1729 = vpop.f32.mrf.mxu0
    %v1730 = vadd.f32 %v1617, %v1729
    %v1731 = vpop.f32.mrf.mxu0
    %v1732 = vadd.f32 %v1619, %v1731
    %1733 = vmatprep.mubr.bf16.mxu0 %v526
    %1734 = vmatmul.mubr.bf16.gmra.mxu0 %v525
    %v1735 = vpop.f32.mrf.mxu0
    %v1736 = vadd.f32 %v1623, %v1735
    %v1737 = vpop.f32.mrf.mxu0
    %v1738 = vadd.f32 %v1625, %v1737
    %v1739 = vpop.f32.mrf.mxu0
    %v1740 = vadd.f32 %v1627, %v1739
    %v1741 = vpop.f32.mrf.mxu0
    %v1742 = vadd.f32 %v1629, %v1741
    %1743 = vmatprep.mubr.bf16.mxu0 %v535
    %1744 = vmatmul.mubr.bf16.gmra.mxu0 %v534
    %v1745 = vpop.f32.mrf.mxu0
    %v1746 = vadd.f32 %v1633, %v1745
    %v1747 = vpop.f32.mrf.mxu0
    %v1748 = vadd.f32 %v1635, %v1747
    %v1749 = vpop.f32.mrf.mxu0
    %v1750 = vadd.f32 %v1637, %v1749
    %v1751 = vpop.f32.mrf.mxu0
    %v1752 = vadd.f32 %v1639, %v1751
    %1753 = vmatprep.mubr.bf16.mxu0 %v544
    %1754 = vmatmul.mubr.bf16.gmra.mxu0 %v543
    %v1755 = vpop.f32.mrf.mxu0
    %v1756 = vadd.f32 %v1643, %v1755
    %v1757 = vpop.f32.mrf.mxu0
    %v1758 = vadd.f32 %v1645, %v1757
    %v1759 = vpop.f32.mrf.mxu0
    %v1760 = vadd.f32 %v1647, %v1759
    %v1761 = vpop.f32.mrf.mxu0
    %v1762 = vadd.f32 %v1649, %v1761
    %1763 = vmatprep.mubr.bf16.mxu0 %v553
    %1764 = vmatmul.mubr.bf16.gmra.mxu0 %v552
    %v1765 = vpop.f32.mrf.mxu0
    %v1766 = vadd.f32 %v1653, %v1765
    %v1767 = vpop.f32.mrf.mxu0
    %v1768 = vadd.f32 %v1655, %v1767
    %v1769 = vpop.f32.mrf.mxu0
    %v1770 = vadd.f32 %v1657, %v1769
    %v1771 = vpop.f32.mrf.mxu0
    %v1772 = vadd.f32 %v1659, %v1771
    %1773 = vmatprep.mubr.bf16.mxu0 %v562
    %1774 = vmatmul.mubr.bf16.gmra.mxu0 %v561
    %v1775 = vpop.f32.mrf.mxu0
    %v1776 = vadd.f32 %v1663, %v1775
    %v1777 = vpop.f32.mrf.mxu0
    %v1778 = vadd.f32 %v1665, %v1777
    %v1779 = vpop.f32.mrf.mxu0
    %v1780 = vadd.f32 %v1667, %v1779
    %v1781 = vpop.f32.mrf.mxu0
    %v1782 = vadd.f32 %v1669, %v1781
    %1783 = vmatprep.mubr.bf16.mxu0 %v571
    %1784 = vmatmul.mubr.bf16.gmra.mxu0 %v570
    %v1785 = vpop.f32.mrf.mxu0
    %v1786 = vadd.f32 %v1673, %v1785
    %v1787 = vpop.f32.mrf.mxu0
    %v1788 = vadd.f32 %v1675, %v1787
    %v1789 = vpop.f32.mrf.mxu0
    %v1790 = vadd.f32 %v1677, %v1789
    %v1791 = vpop.f32.mrf.mxu0
    %v1792 = vadd.f32 %v1679, %v1791
    %1793 = vdwg.mxu0
    %1794 = vmatprep.subr.bf16.mxu0 0
    %1795 = vmatpush1.bf16.msra.mxu0 0
    %1796 = vmatprep.subr.bf16.mxu0 0
    %1797 = vmatpush1.bf16.msra.mxu0 0
    %1798 = vmatprep.subr.bf16.mxu0 0
    %1799 = vmatpush1.bf16.msra.mxu0 0
    %1800 = vmatprep.subr.bf16.mxu0 0
    %1801 = vmatpush1.bf16.msra.mxu0 0
    %1802 = vmatprep.subr.bf16.mxu0 %v1180
    %1803 = vmatpush1.bf16.msra.mxu0 %v1179
    %1804 = vmatprep.subr.bf16.mxu0 %v1178
    %1805 = vmatpush1.bf16.msra.mxu0 %v1177
    %1806 = vmatprep.subr.bf16.mxu0 %v1176
    %1807 = vmatpush1.bf16.msra.mxu0 %v1175
    %1808 = vmatprep.subr.bf16.mxu0 %v1174
    %1809 = vmatpush1.bf16.msra.mxu0 %v1173
    %1810 = vmatprep.subr.bf16.mxu0 0
    %1811 = vmatpush2.bf16.msra.mxu0 0
    %1812 = vmatprep.subr.bf16.mxu0 0
    %1813 = vmatpush2.bf16.msra.mxu0 0
    %1814 = vmatprep.subr.bf16.mxu0 0
    %1815 = vmatpush2.bf16.msra.mxu0 0
    %1816 = vmatprep.subr.bf16.mxu0 0
    %1817 = vmatpush2.bf16.msra.mxu0 0
    %1818 = vmatprep.subr.bf16.mxu0 0
    %1819 = vmatpush2.bf16.msra.mxu0 0
    %1820 = vmatprep.subr.bf16.mxu0 0
    %1821 = vmatpush2.bf16.msra.mxu0 0
    %1822 = vmatprep.subr.bf16.mxu0 0
    %1823 = vmatpush2.bf16.msra.mxu0 0
    %1824 = vmatprep.subr.bf16.mxu0 0
    %1825 = vmatpush2.bf16.msra.mxu0 0
    %1826 = vmatprep.mubr.bf16.mxu0 0
    %1827 = vmatmul.mubr.bf16.gmra.mxu0 %v1319
    %v1828 = vpop.f32.mrf.mxu0
    %v1829 = vadd.f32 %v1716, %v1828
    %v1830 = vpop.f32.mrf.mxu0
    %v1831 = vadd.f32 %v1718, %v1830
    %v1832 = vpop.f32.mrf.mxu0
    %v1833 = vadd.f32 %v1720, %v1832
    %v1834 = vpop.f32.mrf.mxu0
    %v1835 = vadd.f32 %v1722, %v1834
    %1836 = vmatprep.mubr.bf16.mxu0 0
    %1837 = vmatmul.mubr.bf16.gmra.mxu0 %v1322
    %v1838 = vpop.f32.mrf.mxu0
    %v1839 = vadd.f32 %v1726, %v1838
    %v1840 = vpop.f32.mrf.mxu0
    %v1841 = vadd.f32 %v1728, %v1840
    %v1842 = vpop.f32.mrf.mxu0
    %v1843 = vadd.f32 %v1730, %v1842
    %v1844 = vpop.f32.mrf.mxu0
    %v1845 = vadd.f32 %v1732, %v1844
    %1846 = vmatprep.mubr.bf16.mxu0 0
    %1847 = vmatmul.mubr.bf16.gmra.mxu0 %v1325
    %v1848 = vpop.f32.mrf.mxu0
    %v1849 = vadd.f32 %v1736, %v1848
    %v1850 = vpop.f32.mrf.mxu0
    %v1851 = vadd.f32 %v1738, %v1850
    %v1852 = vpop.f32.mrf.mxu0
    %v1853 = vadd.f32 %v1740, %v1852
    %v1854 = vpop.f32.mrf.mxu0
    %v1855 = vadd.f32 %v1742, %v1854
    %1856 = vmatprep.mubr.bf16.mxu0 0
    %1857 = vmatmul.mubr.bf16.gmra.mxu0 %v1328
    %v1858 = vpop.f32.mrf.mxu0
    %v1859 = vadd.f32 %v1746, %v1858
    %v1860 = vpop.f32.mrf.mxu0
    %v1861 = vadd.f32 %v1748, %v1860
    %v1862 = vpop.f32.mrf.mxu0
    %v1863 = vadd.f32 %v1750, %v1862
    %v1864 = vpop.f32.mrf.mxu0
    %v1865 = vadd.f32 %v1752, %v1864
    %1866 = vmatprep.mubr.bf16.mxu0 0
    %1867 = vmatmul.mubr.bf16.gmra.mxu0 %v1331
    %v1868 = vpop.f32.mrf.mxu0
    %v1869 = vadd.f32 %v1756, %v1868
    %v1870 = vpop.f32.mrf.mxu0
    %v1871 = vadd.f32 %v1758, %v1870
    %v1872 = vpop.f32.mrf.mxu0
    %v1873 = vadd.f32 %v1760, %v1872
    %v1874 = vpop.f32.mrf.mxu0
    %v1875 = vadd.f32 %v1762, %v1874
    %1876 = vmatprep.mubr.bf16.mxu0 0
    %1877 = vmatmul.mubr.bf16.gmra.mxu0 %v1334
    %v1878 = vpop.f32.mrf.mxu0
    %v1879 = vadd.f32 %v1766, %v1878
    %v1880 = vpop.f32.mrf.mxu0
    %v1881 = vadd.f32 %v1768, %v1880
    %v1882 = vpop.f32.mrf.mxu0
    %v1883 = vadd.f32 %v1770, %v1882
    %v1884 = vpop.f32.mrf.mxu0
    %v1885 = vadd.f32 %v1772, %v1884
    %1886 = vmatprep.mubr.bf16.mxu0 0
    %1887 = vmatmul.mubr.bf16.gmra.mxu0 %v1337
    %v1888 = vpop.f32.mrf.mxu0
    %v1889 = vadd.f32 %v1776, %v1888
    %v1890 = vpop.f32.mrf.mxu0
    %v1891 = vadd.f32 %v1778, %v1890
    %v1892 = vpop.f32.mrf.mxu0
    %v1893 = vadd.f32 %v1780, %v1892
    %v1894 = vpop.f32.mrf.mxu0
    %v1895 = vadd.f32 %v1782, %v1894
    %1896 = vmatprep.mubr.bf16.mxu0 0
    %1897 = vmatmul.mubr.bf16.gmra.mxu0 %v1340
    %v1898 = vpop.f32.mrf.mxu0
    %v1899 = vadd.f32 %v1786, %v1898
    %v1900 = vpop.f32.mrf.mxu0
    %v1901 = vadd.f32 %v1788, %v1900
    %v1902 = vpop.f32.mrf.mxu0
    %v1903 = vadd.f32 %v1790, %v1902
    %v1904 = vpop.f32.mrf.mxu0
    %v1905 = vadd.f32 %v1792, %v1904
    %1906 = vdwg.mxu0
    %v1907 = vmax.f32 %v1829, 0.0
    %v1908 = vmax.f32 %v1831, 0.0
    %v1909 = vmax.f32 %v1833, 0.0
    %v1910 = vmax.f32 %v1835, 0.0
    %v1911 = vmax.f32 %v1839, 0.0
    %v1912 = vmax.f32 %v1841, 0.0
    %v1913 = vmax.f32 %v1843, 0.0
    %v1914 = vmax.f32 %v1845, 0.0
    %v1915 = vmax.f32 %v1849, 0.0
    %v1916 = vmax.f32 %v1851, 0.0
    %v1917 = vmax.f32 %v1853, 0.0
    %v1918 = vmax.f32 %v1855, 0.0
    %v1919 = vmax.f32 %v1859, 0.0
    %v1920 = vmax.f32 %v1861, 0.0
    %v1921 = vmax.f32 %v1863, 0.0
    %v1922 = vmax.f32 %v1865, 0.0
    %v1923 = vmax.f32 %v1869, 0.0
    %v1924 = vmax.f32 %v1871, 0.0
    %v1925 = vmax.f32 %v1873, 0.0
    %v1926 = vmax.f32 %v1875, 0.0
    %v1927 = vmax.f32 %v1879, 0.0
    %v1928 = vmax.f32 %v1881, 0.0
    %v1929 = vmax.f32 %v1883, 0.0
    %v1930 = vmax.f32 %v1885, 0.0
    %v1931 = vmax.f32 %v1889, 0.0
    %v1932 = vmax.f32 %v1891, 0.0
    %v1933 = vmax.f32 %v1893, 0.0
    %v1934 = vmax.f32 %v1895, 0.0
    %v1935 = vmax.f32 %v1899, 0.0
    %v1936 = vmax.f32 %v1901, 0.0
    %v1937 = vmax.f32 %v1903, 0.0
    %v1938 = vmax.f32 %v1905, 0.0
    %v1939 = vld [vmem:[%s3] sm:$0xf]
    %v1940 = vld [vmem:[%s3 + $0x4] sm:$0xf]
    %v1941 = vld [vmem:[%s3 + $0x8] sm:$0xf]
    %v1942 = vld [vmem:[%s3 + $0xc] sm:$0xf]
    %v1943 = vld [vmem:[%s3 + $0x10] sm:$0xf]
    %v1944 = vld [vmem:[%s3 + $0x14] sm:$0xf]
    %v1945 = vld [vmem:[%s3 + $0x18] sm:$0xf]
    %v1946 = vld [vmem:[%s3 + $0x1c] sm:$0xf]
    %v1947 = vld [vmem:[%s3 + $0x20] sm:$0xf]
    %v1948 = vld [vmem:[%s3 + $0x24] sm:$0xf]
    %v1949 = vld [vmem:[%s3 + $0x28] sm:$0xf]
    %v1950 = vld [vmem:[%s3 + $0x2c] sm:$0xf]
    %v1951 = vld [vmem:[%s3 + $0x30] sm:$0xf]
    %v1952 = vld [vmem:[%s3 + $0x34] sm:$0xf]
    %v1953 = vld [vmem:[%s3 + $0x38] sm:$0xf]
    %v1954 = vld [vmem:[%s3 + $0x3c] sm:$0xf]
    %v1955 = vld [vmem:[%s3 + $0x40] sm:$0xf]
    %v1956 = vld [vmem:[%s3 + $0x44] sm:$0xf]
    %v1957 = vld [vmem:[%s3 + $0x48] sm:$0xf]
    %v1958 = vld [vmem:[%s3 + $0x4c] sm:$0xf]
    %v1959 = vld [vmem:[%s3 + $0x50] sm:$0xf]
    %v1960 = vld [vmem:[%s3 + $0x54] sm:$0xf]
    %v1961 = vld [vmem:[%s3 + $0x58] sm:$0xf]
    %v1962 = vld [vmem:[%s3 + $0x5c] sm:$0xf]
    %v1963 = vld [vmem:[%s3 + $0x60] sm:$0xf]
    %v1964 = vld [vmem:[%s3 + $0x64] sm:$0xf]
    %v1965 = vld [vmem:[%s3 + $0x68] sm:$0xf]
    %v1966 = vld [vmem:[%s3 + $0x6c] sm:$0xf]
    %v1967 = vld [vmem:[%s3 + $0x70] sm:$0xf]
    %v1968 = vld [vmem:[%s3 + $0x74] sm:$0xf]
    %v1969 = vld [vmem:[%s3 + $0x78] sm:$0xf]
    %v1970 = vld [vmem:[%s3 + $0x7c] sm:$0xf]
    %v1971 = vld [vmem:[%s3 + $0x80] sm:$0xf]
    %v1972 = vld [vmem:[%s3 + $0x84] sm:$0xf]
    %v1973 = vld [vmem:[%s3 + $0x88] sm:$0xf]
    %v1974 = vld [vmem:[%s3 + $0x8c] sm:$0xf]
    %v1975 = vld [vmem:[%s3 + $0x90] sm:$0xf]
    %v1976 = vld [vmem:[%s3 + $0x94] sm:$0xf]
    %v1977 = vld [vmem:[%s3 + $0x98] sm:$0xf]
    %v1978 = vld [vmem:[%s3 + $0x9c] sm:$0xf]
    %v1979 = vld [vmem:[%s3 + $0xa0] sm:$0xf]
    %v1980 = vld [vmem:[%s3 + $0xa4] sm:$0xf]
    %v1981 = vld [vmem:[%s3 + $0xa8] sm:$0xf]
    %v1982 = vld [vmem:[%s3 + $0xac] sm:$0xf]
    %v1983 = vld [vmem:[%s3 + $0xb0] sm:$0xf]
    %v1984 = vld [vmem:[%s3 + $0xb4] sm:$0xf]
    %v1985 = vld [vmem:[%s3 + $0xb8] sm:$0xf]
    %v1986 = vld [vmem:[%s3 + $0xbc] sm:$0xf]
    %v1987 = vld [vmem:[%s3 + $0xc0] sm:$0xf]
    %v1988 = vld [vmem:[%s3 + $0xc4] sm:$0xf]
    %v1989 = vld [vmem:[%s3 + $0xc8] sm:$0xf]
    %v1990 = vld [vmem:[%s3 + $0xcc] sm:$0xf]
    %v1991 = vld [vmem:[%s3 + $0xd0] sm:$0xf]
    %v1992 = vld [vmem:[%s3 + $0xd4] sm:$0xf]
    %v1993 = vld [vmem:[%s3 + $0xd8] sm:$0xf]
    %v1994 = vld [vmem:[%s3 + $0xdc] sm:$0xf]
    %v1995 = vld [vmem:[%s3 + $0xe0] sm:$0xf]
    %v1996 = vld [vmem:[%s3 + $0xe4] sm:$0xf]
    %v1997 = vld [vmem:[%s3 + $0xe8] sm:$0xf]
    %v1998 = vld [vmem:[%s3 + $0xec] sm:$0xf]
    %v1999 = vld [vmem:[%s3 + $0xf0] sm:$0xf]
    %v2000 = vld [vmem:[%s3 + $0xf4] sm:$0xf]
    %v2001 = vld [vmem:[%s3 + $0xf8] sm:$0xf]
    %v2002 = vld [vmem:[%s3 + $0xfc] sm:$0xf]
    %v2003 = vld [vmem:[%s3 + $0x100] sm:$0xf]
    %v2004 = vld [vmem:[%s3 + $0x104] sm:$0xf]
    %v2005 = vld [vmem:[%s3 + $0x108] sm:$0xf]
    %v2006 = vld [vmem:[%s3 + $0x10c] sm:$0xf]
    %v2007 = vld [vmem:[%s3 + $0x110] sm:$0xf]
    %v2008 = vld [vmem:[%s3 + $0x114] sm:$0xf]
    %v2009 = vld [vmem:[%s3 + $0x118] sm:$0xf]
    %v2010 = vld [vmem:[%s3 + $0x11c] sm:$0xf]
    %v2011 = vld [vmem:[%s3 + $0x120] sm:$0xf]
    %v2012 = vld [vmem:[%s3 + $0x124] sm:$0xf]
    %v2013 = vld [vmem:[%s3 + $0x128] sm:$0xf]
    %v2014 = vld [vmem:[%s3 + $0x12c] sm:$0xf]
    %v2015 = vld [vmem:[%s3 + $0x130] sm:$0xf]
    %v2016 = vld [vmem:[%s3 + $0x134] sm:$0xf]
    %v2017 = vld [vmem:[%s3 + $0x138] sm:$0xf]
    %v2018 = vld [vmem:[%s3 + $0x13c] sm:$0xf]
    %v2019 = vld [vmem:[%s3 + $0x140] sm:$0xf]
    %v2020 = vld [vmem:[%s3 + $0x144] sm:$0xf]
    %v2021 = vld [vmem:[%s3 + $0x148] sm:$0xf]
    %v2022 = vld [vmem:[%s3 + $0x14c] sm:$0xf]
    %v2023 = vld [vmem:[%s3 + $0x150] sm:$0xf]
    %v2024 = vld [vmem:[%s3 + $0x154] sm:$0xf]
    %v2025 = vld [vmem:[%s3 + $0x158] sm:$0xf]
    %v2026 = vld [vmem:[%s3 + $0x15c] sm:$0xf]
    %v2027 = vld [vmem:[%s3 + $0x160] sm:$0xf]
    %v2028 = vld [vmem:[%s3 + $0x164] sm:$0xf]
    %v2029 = vld [vmem:[%s3 + $0x168] sm:$0xf]
    %v2030 = vld [vmem:[%s3 + $0x16c] sm:$0xf]
    %v2031 = vld [vmem:[%s3 + $0x170] sm:$0xf]
    %v2032 = vld [vmem:[%s3 + $0x174] sm:$0xf]
    %v2033 = vld [vmem:[%s3 + $0x178] sm:$0xf]
    %v2034 = vld [vmem:[%s3 + $0x17c] sm:$0xf]
    %v2035 = vld [vmem:[%s3 + $0x180] sm:$0xf]
    %v2036 = vld [vmem:[%s3 + $0x184] sm:$0xf]
    %v2037 = vld [vmem:[%s3 + $0x188] sm:$0xf]
    %v2038 = vld [vmem:[%s3 + $0x18c] sm:$0xf]
    %v2039 = vld [vmem:[%s3 + $0x190] sm:$0xf]
    %v2040 = vld [vmem:[%s3 + $0x194] sm:$0xf]
    %v2041 = vld [vmem:[%s3 + $0x198] sm:$0xf]
    %v2042 = vld [vmem:[%s3 + $0x19c] sm:$0xf]
    %v2043 = vld [vmem:[%s3 + $0x1a0] sm:$0xf]
    %v2044 = vld [vmem:[%s3 + $0x1a4] sm:$0xf]
    %v2045 = vld [vmem:[%s3 + $0x1a8] sm:$0xf]
    %v2046 = vld [vmem:[%s3 + $0x1ac] sm:$0xf]
    %v2047 = vld [vmem:[%s3 + $0x1b0] sm:$0xf]
    %v2048 = vld [vmem:[%s3 + $0x1b4] sm:$0xf]
    %v2049 = vld [vmem:[%s3 + $0x1b8] sm:$0xf]
    %v2050 = vld [vmem:[%s3 + $0x1bc] sm:$0xf]
    %v2051 = vld [vmem:[%s3 + $0x1c0] sm:$0xf]
    %v2052 = vld [vmem:[%s3 + $0x1c4] sm:$0xf]
    %v2053 = vld [vmem:[%s3 + $0x1c8] sm:$0xf]
    %v2054 = vld [vmem:[%s3 + $0x1cc] sm:$0xf]
    %v2055 = vld [vmem:[%s3 + $0x1d0] sm:$0xf]
    %v2056 = vld [vmem:[%s3 + $0x1d4] sm:$0xf]
    %v2057 = vld [vmem:[%s3 + $0x1d8] sm:$0xf]
    %v2058 = vld [vmem:[%s3 + $0x1dc] sm:$0xf]
    %v2059 = vld [vmem:[%s3 + $0x1e0] sm:$0xf]
    %v2060 = vld [vmem:[%s3 + $0x1e4] sm:$0xf]
    %v2061 = vld [vmem:[%s3 + $0x1e8] sm:$0xf]
    %v2062 = vld [vmem:[%s3 + $0x1ec] sm:$0xf]
    %v2063 = vld [vmem:[%s3 + $0x1f0] sm:$0xf]
    %v2064 = vld [vmem:[%s3 + $0x1f4] sm:$0xf]
    %v2065 = vld [vmem:[%s3 + $0x1f8] sm:$0xf]
    %v2066 = vld [vmem:[%s3 + $0x1fc] sm:$0xf]
    %v2067 = vld [vmem:[%s3 + $0x200] sm:$0xf]
    %v2068 = vld [vmem:[%s3 + $0x204] sm:$0xf]
    %v2069 = vld [vmem:[%s3 + $0x208] sm:$0xf]
    %v2070 = vld [vmem:[%s3 + $0x20c] sm:$0xf]
    %v2071 = vld [vmem:[%s3 + $0x210] sm:$0xf]
    %v2072 = vld [vmem:[%s3 + $0x214] sm:$0xf]
    %v2073 = vld [vmem:[%s3 + $0x218] sm:$0xf]
    %v2074 = vld [vmem:[%s3 + $0x21c] sm:$0xf]
    %v2075 = vld [vmem:[%s4] sm:$0x1]
    %v2077 = vlaneseq
    %v2078 = vshrl.u32 %v2077, 7
    %v2079 = vsub.s32 0, %v2078
    %v2080 = vrot.slane %v2075, %v2079
    %v2218 = vunpack.c.l.b16 %v1939
    %v2219 = vunpack.c.l.b16 %v1940
    %v2220 = vunpack.c.l.b16 %v1941
    %v2221 = vunpack.c.l.b16 %v1942
    %v2222 = vunpack.c.l.b16 %v1943
    %v2223 = vunpack.c.l.b16 %v1944
    %v2224 = vunpack.c.l.b16 %v1945
    %v2225 = vunpack.c.l.b16 %v1946
    %v2226 = vunpack.c.l.b16 %v1947
    %v2227 = vunpack.c.l.b16 %v1948
    %v2228 = vunpack.c.l.b16 %v1949
    %v2229 = vunpack.c.l.b16 %v1950
    %v2230 = vunpack.c.l.b16 %v1951
    %v2231 = vunpack.c.l.b16 %v1952
    %v2232 = vunpack.c.l.b16 %v1953
    %v2233 = vunpack.c.l.b16 %v1954
    %v2234 = vunpack.c.l.b16 %v1955
    %v2235 = vunpack.c.l.b16 %v1956
    %v2236 = vunpack.c.l.b16 %v1957
    %v2237 = vunpack.c.l.b16 %v1958
    %v2238 = vunpack.c.l.b16 %v1959
    %v2239 = vunpack.c.l.b16 %v1960
    %v2240 = vunpack.c.l.b16 %v1961
    %v2241 = vunpack.c.l.b16 %v1962
    %v2242 = vunpack.c.l.b16 %v1963
    %v2243 = vunpack.c.l.b16 %v1964
    %v2244 = vunpack.c.l.b16 %v1965
    %v2245 = vunpack.c.l.b16 %v1966
    %v2246 = vunpack.c.l.b16 %v1967
    %v2247 = vunpack.c.l.b16 %v1968
    %v2248 = vunpack.c.l.b16 %v1969
    %v2249 = vunpack.c.l.b16 %v1970
    %v2250 = vunpack.c.l.b16 %v1971
    %v2251 = vunpack.c.l.b16 %v1972
    %v2252 = vunpack.c.l.b16 %v1973
    %v2253 = vunpack.c.l.b16 %v1974
    %v2254 = vunpack.c.l.b16 %v1975
    %v2255 = vunpack.c.l.b16 %v1976
    %v2256 = vunpack.c.l.b16 %v1977
    %v2257 = vunpack.c.l.b16 %v1978
    %v2258 = vunpack.c.l.b16 %v1979
    %v2259 = vunpack.c.l.b16 %v1980
    %v2260 = vunpack.c.l.b16 %v1981
    %v2261 = vunpack.c.l.b16 %v1982
    %v2262 = vunpack.c.l.b16 %v1983
    %v2263 = vunpack.c.l.b16 %v1984
    %v2264 = vunpack.c.l.b16 %v1985
    %v2265 = vunpack.c.l.b16 %v1986
    %v2266 = vunpack.c.l.b16 %v1987
    %v2267 = vunpack.c.l.b16 %v1988
    %v2268 = vunpack.c.l.b16 %v1989
    %v2269 = vunpack.c.l.b16 %v1990
    %v2270 = vunpack.c.l.b16 %v1991
    %v2271 = vunpack.c.l.b16 %v1992
    %v2272 = vunpack.c.l.b16 %v1993
    %v2273 = vunpack.c.l.b16 %v1994
    %v2274 = vunpack.c.l.b16 %v1995
    %v2275 = vunpack.c.l.b16 %v1996
    %v2276 = vunpack.c.l.b16 %v1997
    %v2277 = vunpack.c.l.b16 %v1998
    %v2278 = vunpack.c.l.b16 %v1999
    %v2279 = vunpack.c.l.b16 %v2000
    %v2280 = vunpack.c.l.b16 %v2001
    %v2281 = vunpack.c.l.b16 %v2002
    %v2282 = vunpack.c.l.b16 %v2003
    %v2283 = vunpack.c.l.b16 %v2004
    %v2284 = vunpack.c.l.b16 %v2005
    %v2285 = vunpack.c.l.b16 %v2006
    %v2286 = vunpack.c.l.b16 %v2007
    %v2287 = vunpack.c.l.b16 %v2008
    %v2288 = vunpack.c.l.b16 %v2009
    %v2289 = vunpack.c.l.b16 %v2010
    %v2290 = vunpack.c.l.b16 %v2011
    %v2291 = vunpack.c.l.b16 %v2012
    %v2292 = vunpack.c.l.b16 %v2013
    %v2293 = vunpack.c.l.b16 %v2014
    %v2294 = vunpack.c.l.b16 %v2015
    %v2295 = vunpack.c.l.b16 %v2016
    %v2296 = vunpack.c.l.b16 %v2017
    %v2297 = vunpack.c.l.b16 %v2018
    %v2298 = vunpack.c.l.b16 %v2019
    %v2299 = vunpack.c.l.b16 %v2020
    %v2300 = vunpack.c.l.b16 %v2021
    %v2301 = vunpack.c.l.b16 %v2022
    %v2302 = vunpack.c.l.b16 %v2023
    %v2303 = vunpack.c.l.b16 %v2024
    %v2304 = vunpack.c.l.b16 %v2025
    %v2305 = vunpack.c.l.b16 %v2026
    %v2306 = vunpack.c.l.b16 %v2027
    %v2307 = vunpack.c.l.b16 %v2028
    %v2308 = vunpack.c.l.b16 %v2029
    %v2309 = vunpack.c.l.b16 %v2030
    %v2310 = vunpack.c.l.b16 %v2031
    %v2311 = vunpack.c.l.b16 %v2032
    %v2312 = vunpack.c.l.b16 %v2033
    %v2313 = vunpack.c.l.b16 %v2034
    %v2314 = vunpack.c.l.b16 %v2035
    %v2315 = vunpack.c.l.b16 %v2036
    %v2316 = vunpack.c.l.b16 %v2037
    %v2317 = vunpack.c.l.b16 %v2038
    %v2318 = vunpack.c.l.b16 %v2039
    %v2319 = vunpack.c.l.b16 %v2040
    %v2320 = vunpack.c.l.b16 %v2041
    %v2321 = vunpack.c.l.b16 %v2042
    %v2322 = vunpack.c.l.b16 %v2043
    %v2323 = vunpack.c.l.b16 %v2044
    %v2324 = vunpack.c.l.b16 %v2045
    %v2325 = vunpack.c.l.b16 %v2046
    %v2326 = vunpack.c.l.b16 %v2047
    %v2327 = vunpack.c.l.b16 %v2048
    %v2328 = vunpack.c.l.b16 %v2049
    %v2329 = vunpack.c.l.b16 %v2050
    %v2330 = vunpack.c.l.b16 %v2051
    %v2331 = vunpack.c.l.b16 %v2052
    %v2332 = vunpack.c.l.b16 %v2053
    %v2333 = vunpack.c.l.b16 %v2054
    %v2334 = vunpack.c.l.b16 %v2055
    %v2335 = vunpack.c.l.b16 %v2056
    %v2336 = vunpack.c.l.b16 %v2057
    %v2337 = vunpack.c.l.b16 %v2058
    %v2338 = vunpack.c.l.b16 %v2059
    %v2339 = vunpack.c.l.b16 %v2060
    %v2340 = vunpack.c.l.b16 %v2061
    %v2341 = vunpack.c.l.b16 %v2062
    %v2342 = vunpack.c.l.b16 %v2063
    %v2343 = vunpack.c.l.b16 %v2064
    %v2344 = vunpack.c.l.b16 %v2065
    %v2345 = vunpack.c.l.b16 %v2066
    %v2346 = vunpack.c.l.b16 %v2067
    %v2347 = vunpack.c.l.b16 %v2068
    %v2348 = vunpack.c.l.b16 %v2069
    %v2349 = vunpack.c.l.b16 %v2070
    %v2350 = vunpack.c.l.b16 %v2071
    %v2351 = vunpack.c.l.b16 %v2072
    %v2352 = vunpack.c.l.b16 %v2073
    %v2353 = vunpack.c.l.b16 %v2074
    %v2354 = vpack.c.b16 %v2219, %v2218
    %v2355 = vpack.c.b16 %v2221, %v2220
    %v2356 = vpack.c.b16 %v2223, %v2222
    %v2357 = vpack.c.b16 %v2225, %v2224
    %v2358 = vpack.c.b16 %v2227, %v2226
    %v2359 = vpack.c.b16 %v2229, %v2228
    %v2360 = vpack.c.b16 %v2231, %v2230
    %v2361 = vpack.c.b16 %v2233, %v2232
    %v2362 = vpack.c.b16 %v2235, %v2234
    %v2363 = vpack.c.b16 %v2237, %v2236
    %v2364 = vpack.c.b16 %v2239, %v2238
    %v2365 = vpack.c.b16 %v2241, %v2240
    %v2366 = vpack.c.b16 %v2243, %v2242
    %v2367 = vpack.c.b16 %v2245, %v2244
    %v2368 = vpack.c.b16 %v2247, %v2246
    %v2369 = vpack.c.b16 %v2249, %v2248
    %v2370 = vpack.c.b16 %v2251, %v2250
    %v2371 = vpack.c.b16 %v2253, %v2252
    %v2372 = vpack.c.b16 %v2255, %v2254
    %v2373 = vpack.c.b16 %v2257, %v2256
    %v2374 = vpack.c.b16 %v2259, %v2258
    %v2375 = vpack.c.b16 %v2261, %v2260
    %v2376 = vpack.c.b16 %v2263, %v2262
    %v2377 = vpack.c.b16 %v2265, %v2264
    %v2378 = vpack.c.b16 %v2267, %v2266
    %v2379 = vpack.c.b16 %v2269, %v2268
    %v2380 = vpack.c.b16 %v2271, %v2270
    %v2381 = vpack.c.b16 %v2273, %v2272
    %v2382 = vpack.c.b16 %v2275, %v2274
    %v2383 = vpack.c.b16 %v2277, %v2276
    %v2384 = vpack.c.b16 %v2279, %v2278
    %v2385 = vpack.c.b16 %v2281, %v2280
    %v2386 = vpack.c.b16 %v2283, %v2282
    %v2387 = vpack.c.b16 %v2285, %v2284
    %v2388 = vpack.c.b16 %v2287, %v2286
    %v2389 = vpack.c.b16 %v2289, %v2288
    %v2390 = vpack.c.b16 %v2291, %v2290
    %v2391 = vpack.c.b16 %v2293, %v2292
    %v2392 = vpack.c.b16 %v2295, %v2294
    %v2393 = vpack.c.b16 %v2297, %v2296
    %v2394 = vpack.c.b16 %v2299, %v2298
    %v2395 = vpack.c.b16 %v2301, %v2300
    %v2396 = vpack.c.b16 %v2303, %v2302
    %v2397 = vpack.c.b16 %v2305, %v2304
    %v2398 = vpack.c.b16 %v2307, %v2306
    %v2399 = vpack.c.b16 %v2309, %v2308
    %v2400 = vpack.c.b16 %v2311, %v2310
    %v2401 = vpack.c.b16 %v2313, %v2312
    %v2402 = vpack.c.b16 %v2315, %v2314
    %v2403 = vpack.c.b16 %v2317, %v2316
    %v2404 = vpack.c.b16 %v2319, %v2318
    %v2405 = vpack.c.b16 %v2321, %v2320
    %v2406 = vpack.c.b16 %v2323, %v2322
    %v2407 = vpack.c.b16 %v2325, %v2324
    %v2408 = vpack.c.b16 %v2327, %v2326
    %v2409 = vpack.c.b16 %v2329, %v2328
    %v2410 = vpack.c.b16 %v2331, %v2330
    %v2411 = vpack.c.b16 %v2333, %v2332
    %v2412 = vpack.c.b16 %v2335, %v2334
    %v2413 = vpack.c.b16 %v2337, %v2336
    %v2414 = vpack.c.b16 %v2339, %v2338
    %v2415 = vpack.c.b16 %v2341, %v2340
    %v2416 = vpack.c.b16 %v2343, %v2342
    %v2417 = vpack.c.b16 %v2345, %v2344
    %v2418 = vpack.c.b16 %v2347, %v2346
    %v2419 = vpack.c.b16 %v2349, %v2348
    %v2420 = vpack.c.b16 %v2351, %v2350
    %v2421 = vpack.c.b16 %v2353, %v2352
    %2490 = vmatprep.subr.bf16.mxu0 0
    %2491 = vmatpush1.bf16.msra.mxu0 %v2361
    %2492 = vmatprep.subr.bf16.mxu0 0
    %2493 = vmatpush1.bf16.msra.mxu0 %v2360
    %2494 = vmatprep.subr.bf16.mxu0 0
    %2495 = vmatpush1.bf16.msra.mxu0 %v2359
    %2496 = vmatprep.subr.bf16.mxu0 0
    %2497 = vmatpush1.bf16.msra.mxu0 %v2358
    %2498 = vmatprep.subr.bf16.mxu0 0
    %2499 = vmatpush1.bf16.msra.mxu0 %v2357
    %2500 = vmatprep.subr.bf16.mxu0 0
    %2501 = vmatpush1.bf16.msra.mxu0 %v2356
    %2502 = vmatprep.subr.bf16.mxu0 0
    %2503 = vmatpush1.bf16.msra.mxu0 %v2355
    %2504 = vmatprep.subr.bf16.mxu0 0
    %2505 = vmatpush1.bf16.msra.mxu0 %v2354
    %2506 = vmatprep.subr.bf16.mxu0 0
    %2507 = vmatpush2.bf16.msra.mxu0 %v2369
    %2508 = vmatprep.subr.bf16.mxu0 0
    %2509 = vmatpush2.bf16.msra.mxu0 %v2368
    %2510 = vmatprep.subr.bf16.mxu0 0
    %2511 = vmatpush2.bf16.msra.mxu0 %v2367
    %2512 = vmatprep.subr.bf16.mxu0 0
    %2513 = vmatpush2.bf16.msra.mxu0 %v2366
    %2514 = vmatprep.subr.bf16.mxu0 0
    %2515 = vmatpush2.bf16.msra.mxu0 %v2365
    %2516 = vmatprep.subr.bf16.mxu0 0
    %2517 = vmatpush2.bf16.msra.mxu0 %v2364
    %2518 = vmatprep.subr.bf16.mxu0 0
    %2519 = vmatpush2.bf16.msra.mxu0 %v2363
    %2520 = vmatprep.subr.bf16.mxu0 0
    %2521 = vmatpush2.bf16.msra.mxu0 %v2362
    %2522 = vmatprep.mubr.bf16.mxu0 %v502
    %2523 = vmatmul.mubr.bf16.gmra.mxu0 %v501
    %v2524 = vpop.f32.mrf.mxu0
    %v2525 = vadd.f32 %v2080, %v2524
    %v2526 = vpop.f32.mrf.mxu0
    %v2527 = vpop.f32.mrf.mxu0
    %v2528 = vadd.f32 %v2080, %v2527
    %v2529 = vpop.f32.mrf.mxu0
    %2530 = vmatprep.mubr.bf16.mxu0 %v511
    %2531 = vmatmul.mubr.bf16.gmra.mxu0 %v510
    %v2532 = vpop.f32.mrf.mxu0
    %v2533 = vadd.f32 %v2080, %v2532
    %v2534 = vpop.f32.mrf.mxu0
    %v2535 = vpop.f32.mrf.mxu0
    %v2536 = vadd.f32 %v2080, %v2535
    %v2537 = vpop.f32.mrf.mxu0
    %2538 = vmatprep.mubr.bf16.mxu0 %v520
    %2539 = vmatmul.mubr.bf16.gmra.mxu0 %v519
    %v2540 = vpop.f32.mrf.mxu0
    %v2541 = vadd.f32 %v2080, %v2540
    %v2542 = vpop.f32.mrf.mxu0
    %v2543 = vpop.f32.mrf.mxu0
    %v2544 = vadd.f32 %v2080, %v2543
    %v2545 = vpop.f32.mrf.mxu0
    %2546 = vmatprep.mubr.bf16.mxu0 %v529
    %2547 = vmatmul.mubr.bf16.gmra.mxu0 %v528
    %v2548 = vpop.f32.mrf.mxu0
    %v2549 = vadd.f32 %v2080, %v2548
    %v2550 = vpop.f32.mrf.mxu0
    %v2551 = vpop.f32.mrf.mxu0
    %v2552 = vadd.f32 %v2080, %v2551
    %v2553 = vpop.f32.mrf.mxu0
    %2554 = vmatprep.mubr.bf16.mxu0 %v538
    %2555 = vmatmul.mubr.bf16.gmra.mxu0 %v537
    %v2556 = vpop.f32.mrf.mxu0
    %v2557 = vadd.f32 %v2080, %v2556
    %v2558 = vpop.f32.mrf.mxu0
    %v2559 = vpop.f32.mrf.mxu0
    %v2560 = vadd.f32 %v2080, %v2559
    %v2561 = vpop.f32.mrf.mxu0
    %2562 = vmatprep.mubr.bf16.mxu0 %v547
    %2563 = vmatmul.mubr.bf16.gmra.mxu0 %v546
    %v2564 = vpop.f32.mrf.mxu0
    %v2565 = vadd.f32 %v2080, %v2564
    %v2566 = vpop.f32.mrf.mxu0
    %v2567 = vpop.f32.mrf.mxu0
    %v2568 = vadd.f32 %v2080, %v2567
    %v2569 = vpop.f32.mrf.mxu0
    %2570 = vmatprep.mubr.bf16.mxu0 %v556
    %2571 = vmatmul.mubr.bf16.gmra.mxu0 %v555
    %v2572 = vpop.f32.mrf.mxu0
    %v2573 = vadd.f32 %v2080, %v2572
    %v2574 = vpop.f32.mrf.mxu0
    %v2575 = vpop.f32.mrf.mxu0
    %v2576 = vadd.f32 %v2080, %v2575
    %v2577 = vpop.f32.mrf.mxu0
    %2578 = vmatprep.mubr.bf16.mxu0 %v565
    %2579 = vmatmul.mubr.bf16.gmra.mxu0 %v564
    %v2580 = vpop.f32.mrf.mxu0
    %v2581 = vadd.f32 %v2080, %v2580
    %v2582 = vpop.f32.mrf.mxu0
    %v2583 = vpop.f32.mrf.mxu0
    %v2584 = vadd.f32 %v2080, %v2583
    %v2585 = vpop.f32.mrf.mxu0
    %2586 = vdwg.mxu0
    %2587 = vmatprep.subr.bf16.mxu0 0
    %2588 = vmatpush1.bf16.msra.mxu0 %v2377
    %2589 = vmatprep.subr.bf16.mxu0 0
    %2590 = vmatpush1.bf16.msra.mxu0 %v2376
    %2591 = vmatprep.subr.bf16.mxu0 0
    %2592 = vmatpush1.bf16.msra.mxu0 %v2375
    %2593 = vmatprep.subr.bf16.mxu0 0
    %2594 = vmatpush1.bf16.msra.mxu0 %v2374
    %2595 = vmatprep.subr.bf16.mxu0 0
    %2596 = vmatpush1.bf16.msra.mxu0 %v2373
    %2597 = vmatprep.subr.bf16.mxu0 0
    %2598 = vmatpush1.bf16.msra.mxu0 %v2372
    %2599 = vmatprep.subr.bf16.mxu0 0
    %2600 = vmatpush1.bf16.msra.mxu0 %v2371
    %2601 = vmatprep.subr.bf16.mxu0 0
    %2602 = vmatpush1.bf16.msra.mxu0 %v2370
    %2603 = vmatprep.subr.bf16.mxu0 0
    %2604 = vmatpush2.bf16.msra.mxu0 %v2385
    %2605 = vmatprep.subr.bf16.mxu0 0
    %2606 = vmatpush2.bf16.msra.mxu0 %v2384
    %2607 = vmatprep.subr.bf16.mxu0 0
    %2608 = vmatpush2.bf16.msra.mxu0 %v2383
    %2609 = vmatprep.subr.bf16.mxu0 0
    %2610 = vmatpush2.bf16.msra.mxu0 %v2382
    %2611 = vmatprep.subr.bf16.mxu0 0
    %2612 = vmatpush2.bf16.msra.mxu0 %v2381
    %2613 = vmatprep.subr.bf16.mxu0 0
    %2614 = vmatpush2.bf16.msra.mxu0 %v2380
    %2615 = vmatprep.subr.bf16.mxu0 0
    %2616 = vmatpush2.bf16.msra.mxu0 %v2379
    %2617 = vmatprep.subr.bf16.mxu0 0
    %2618 = vmatpush2.bf16.msra.mxu0 %v2378
    %2619 = vmatprep.mubr.bf16.mxu0 %v504
    %2620 = vmatmul.mubr.bf16.gmra.mxu0 %v503
    %v2621 = vpop.f32.mrf.mxu0
    %v2622 = vadd.f32 %v2525, %v2621
    %v2623 = vpop.f32.mrf.mxu0
    %v2624 = vpop.f32.mrf.mxu0
    %v2625 = vadd.f32 %v2528, %v2624
    %v2626 = vpop.f32.mrf.mxu0
    %2627 = vmatprep.mubr.bf16.mxu0 %v513
    %2628 = vmatmul.mubr.bf16.gmra.mxu0 %v512
    %v2629 = vpop.f32.mrf.mxu0
    %v2630 = vadd.f32 %v2533, %v2629
    %v2631 = vpop.f32.mrf.mxu0
    %v2632 = vpop.f32.mrf.mxu0
    %v2633 = vadd.f32 %v2536, %v2632
    %v2634 = vpop.f32.mrf.mxu0
    %2635 = vmatprep.mubr.bf16.mxu0 %v522
    %2636 = vmatmul.mubr.bf16.gmra.mxu0 %v521
    %v2637 = vpop.f32.mrf.mxu0
    %v2638 = vadd.f32 %v2541, %v2637
    %v2639 = vpop.f32.mrf.mxu0
    %v2640 = vpop.f32.mrf.mxu0
    %v2641 = vadd.f32 %v2544, %v2640
    %v2642 = vpop.f32.mrf.mxu0
    %2643 = vmatprep.mubr.bf16.mxu0 %v531
    %2644 = vmatmul.mubr.bf16.gmra.mxu0 %v530
    %v2645 = vpop.f32.mrf.mxu0
    %v2646 = vadd.f32 %v2549, %v2645
    %v2647 = vpop.f32.mrf.mxu0
    %v2648 = vpop.f32.mrf.mxu0
    %v2649 = vadd.f32 %v2552, %v2648
    %v2650 = vpop.f32.mrf.mxu0
    %2651 = vmatprep.mubr.bf16.mxu0 %v540
    %2652 = vmatmul.mubr.bf16.gmra.mxu0 %v539
    %v2653 = vpop.f32.mrf.mxu0
    %v2654 = vadd.f32 %v2557, %v2653
    %v2655 = vpop.f32.mrf.mxu0
    %v2656 = vpop.f32.mrf.mxu0
    %v2657 = vadd.f32 %v2560, %v2656
    %v2658 = vpop.f32.mrf.mxu0
    %2659 = vmatprep.mubr.bf16.mxu0 %v549
    %2660 = vmatmul.mubr.bf16.gmra.mxu0 %v548
    %v2661 = vpop.f32.mrf.mxu0
    %v2662 = vadd.f32 %v2565, %v2661
    %v2663 = vpop.f32.mrf.mxu0
    %v2664 = vpop.f32.mrf.mxu0
    %v2665 = vadd.f32 %v2568, %v2664
    %v2666 = vpop.f32.mrf.mxu0
    %2667 = vmatprep.mubr.bf16.mxu0 %v558
    %2668 = vmatmul.mubr.bf16.gmra.mxu0 %v557
    %v2669 = vpop.f32.mrf.mxu0
    %v2670 = vadd.f32 %v2573, %v2669
    %v2671 = vpop.f32.mrf.mxu0
    %v2672 = vpop.f32.mrf.mxu0
    %v2673 = vadd.f32 %v2576, %v2672
    %v2674 = vpop.f32.mrf.mxu0
    %2675 = vmatprep.mubr.bf16.mxu0 %v567
    %2676 = vmatmul.mubr.bf16.gmra.mxu0 %v566
    %v2677 = vpop.f32.mrf.mxu0
    %v2678 = vadd.f32 %v2581, %v2677
    %v2679 = vpop.f32.mrf.mxu0
    %v2680 = vpop.f32.mrf.mxu0
    %v2681 = vadd.f32 %v2584, %v2680
    %v2682 = vpop.f32.mrf.mxu0
    %2683 = vdwg.mxu0
    %2684 = vmatprep.subr.bf16.mxu0 0
    %2685 = vmatpush1.bf16.msra.mxu0 %v2393
    %2686 = vmatprep.subr.bf16.mxu0 0
    %2687 = vmatpush1.bf16.msra.mxu0 %v2392
    %2688 = vmatprep.subr.bf16.mxu0 0
    %2689 = vmatpush1.bf16.msra.mxu0 %v2391
    %2690 = vmatprep.subr.bf16.mxu0 0
    %2691 = vmatpush1.bf16.msra.mxu0 %v2390
    %2692 = vmatprep.subr.bf16.mxu0 0
    %2693 = vmatpush1.bf16.msra.mxu0 %v2389
    %2694 = vmatprep.subr.bf16.mxu0 0
    %2695 = vmatpush1.bf16.msra.mxu0 %v2388
    %2696 = vmatprep.subr.bf16.mxu0 0
    %2697 = vmatpush1.bf16.msra.mxu0 %v2387
    %2698 = vmatprep.subr.bf16.mxu0 0
    %2699 = vmatpush1.bf16.msra.mxu0 %v2386
    %2700 = vmatprep.subr.bf16.mxu0 0
    %2701 = vmatpush2.bf16.msra.mxu0 %v2401
    %2702 = vmatprep.subr.bf16.mxu0 0
    %2703 = vmatpush2.bf16.msra.mxu0 %v2400
    %2704 = vmatprep.subr.bf16.mxu0 0
    %2705 = vmatpush2.bf16.msra.mxu0 %v2399
    %2706 = vmatprep.subr.bf16.mxu0 0
    %2707 = vmatpush2.bf16.msra.mxu0 %v2398
    %2708 = vmatprep.subr.bf16.mxu0 0
    %2709 = vmatpush2.bf16.msra.mxu0 %v2397
    %2710 = vmatprep.subr.bf16.mxu0 0
    %2711 = vmatpush2.bf16.msra.mxu0 %v2396
    %2712 = vmatprep.subr.bf16.mxu0 0
    %2713 = vmatpush2.bf16.msra.mxu0 %v2395
    %2714 = vmatprep.subr.bf16.mxu0 0
    %2715 = vmatpush2.bf16.msra.mxu0 %v2394
    %2716 = vmatprep.mubr.bf16.mxu0 %v506
    %2717 = vmatmul.mubr.bf16.gmra.mxu0 %v505
    %v2718 = vpop.f32.mrf.mxu0
    %v2719 = vadd.f32 %v2622, %v2718
    %v2720 = vpop.f32.mrf.mxu0
    %v2721 = vpop.f32.mrf.mxu0
    %v2722 = vadd.f32 %v2625, %v2721
    %v2723 = vpop.f32.mrf.mxu0
    %2724 = vmatprep.mubr.bf16.mxu0 %v515
    %2725 = vmatmul.mubr.bf16.gmra.mxu0 %v514
    %v2726 = vpop.f32.mrf.mxu0
    %v2727 = vadd.f32 %v2630, %v2726
    %v2728 = vpop.f32.mrf.mxu0
    %v2729 = vpop.f32.mrf.mxu0
    %v2730 = vadd.f32 %v2633, %v2729
    %v2731 = vpop.f32.mrf.mxu0
    %2732 = vmatprep.mubr.bf16.mxu0 %v524
    %2733 = vmatmul.mubr.bf16.gmra.mxu0 %v523
    %v2734 = vpop.f32.mrf.mxu0
    %v2735 = vadd.f32 %v2638, %v2734
    %v2736 = vpop.f32.mrf.mxu0
    %v2737 = vpop.f32.mrf.mxu0
    %v2738 = vadd.f32 %v2641, %v2737
    %v2739 = vpop.f32.mrf.mxu0
    %2740 = vmatprep.mubr.bf16.mxu0 %v533
    %2741 = vmatmul.mubr.bf16.gmra.mxu0 %v532
    %v2742 = vpop.f32.mrf.mxu0
    %v2743 = vadd.f32 %v2646, %v2742
    %v2744 = vpop.f32.mrf.mxu0
    %v2745 = vpop.f32.mrf.mxu0
    %v2746 = vadd.f32 %v2649, %v2745
    %v2747 = vpop.f32.mrf.mxu0
    %2748 = vmatprep.mubr.bf16.mxu0 %v542
    %2749 = vmatmul.mubr.bf16.gmra.mxu0 %v541
    %v2750 = vpop.f32.mrf.mxu0
    %v2751 = vadd.f32 %v2654, %v2750
    %v2752 = vpop.f32.mrf.mxu0
    %v2753 = vpop.f32.mrf.mxu0
    %v2754 = vadd.f32 %v2657, %v2753
    %v2755 = vpop.f32.mrf.mxu0
    %2756 = vmatprep.mubr.bf16.mxu0 %v551
    %2757 = vmatmul.mubr.bf16.gmra.mxu0 %v550
    %v2758 = vpop.f32.mrf.mxu0
    %v2759 = vadd.f32 %v2662, %v2758
    %v2760 = vpop.f32.mrf.mxu0
    %v2761 = vpop.f32.mrf.mxu0
    %v2762 = vadd.f32 %v2665, %v2761
    %v2763 = vpop.f32.mrf.mxu0
    %2764 = vmatprep.mubr.bf16.mxu0 %v560
    %2765 = vmatmul.mubr.bf16.gmra.mxu0 %v559
    %v2766 = vpop.f32.mrf.mxu0
    %v2767 = vadd.f32 %v2670, %v2766
    %v2768 = vpop.f32.mrf.mxu0
    %v2769 = vpop.f32.mrf.mxu0
    %v2770 = vadd.f32 %v2673, %v2769
    %v2771 = vpop.f32.mrf.mxu0
    %2772 = vmatprep.mubr.bf16.mxu0 %v569
    %2773 = vmatmul.mubr.bf16.gmra.mxu0 %v568
    %v2774 = vpop.f32.mrf.mxu0
    %v2775 = vadd.f32 %v2678, %v2774
    %v2776 = vpop.f32.mrf.mxu0
    %v2777 = vpop.f32.mrf.mxu0
    %v2778 = vadd.f32 %v2681, %v2777
    %v2779 = vpop.f32.mrf.mxu0
    %2780 = vdwg.mxu0
    %2781 = vmatprep.subr.bf16.mxu0 0
    %2782 = vmatpush1.bf16.msra.mxu0 %v2409
    %2783 = vmatprep.subr.bf16.mxu0 0
    %2784 = vmatpush1.bf16.msra.mxu0 %v2408
    %2785 = vmatprep.subr.bf16.mxu0 0
    %2786 = vmatpush1.bf16.msra.mxu0 %v2407
    %2787 = vmatprep.subr.bf16.mxu0 0
    %2788 = vmatpush1.bf16.msra.mxu0 %v2406
    %2789 = vmatprep.subr.bf16.mxu0 0
    %2790 = vmatpush1.bf16.msra.mxu0 %v2405
    %2791 = vmatprep.subr.bf16.mxu0 0
    %2792 = vmatpush1.bf16.msra.mxu0 %v2404
    %2793 = vmatprep.subr.bf16.mxu0 0
    %2794 = vmatpush1.bf16.msra.mxu0 %v2403
    %2795 = vmatprep.subr.bf16.mxu0 0
    %2796 = vmatpush1.bf16.msra.mxu0 %v2402
    %2797 = vmatprep.subr.bf16.mxu0 0
    %2798 = vmatpush2.bf16.msra.mxu0 %v2417
    %2799 = vmatprep.subr.bf16.mxu0 0
    %2800 = vmatpush2.bf16.msra.mxu0 %v2416
    %2801 = vmatprep.subr.bf16.mxu0 0
    %2802 = vmatpush2.bf16.msra.mxu0 %v2415
    %2803 = vmatprep.subr.bf16.mxu0 0
    %2804 = vmatpush2.bf16.msra.mxu0 %v2414
    %2805 = vmatprep.subr.bf16.mxu0 0
    %2806 = vmatpush2.bf16.msra.mxu0 %v2413
    %2807 = vmatprep.subr.bf16.mxu0 0
    %2808 = vmatpush2.bf16.msra.mxu0 %v2412
    %2809 = vmatprep.subr.bf16.mxu0 0
    %2810 = vmatpush2.bf16.msra.mxu0 %v2411
    %2811 = vmatprep.subr.bf16.mxu0 0
    %2812 = vmatpush2.bf16.msra.mxu0 %v2410
    %2813 = vmatprep.mubr.bf16.mxu0 %v508
    %2814 = vmatmul.mubr.bf16.gmra.mxu0 %v507
    %v2815 = vpop.f32.mrf.mxu0
    %v2816 = vadd.f32 %v2719, %v2815
    %v2817 = vpop.f32.mrf.mxu0
    %v2818 = vpop.f32.mrf.mxu0
    %v2819 = vadd.f32 %v2722, %v2818
    %v2820 = vpop.f32.mrf.mxu0
    %2821 = vmatprep.mubr.bf16.mxu0 %v517
    %2822 = vmatmul.mubr.bf16.gmra.mxu0 %v516
    %v2823 = vpop.f32.mrf.mxu0
    %v2824 = vadd.f32 %v2727, %v2823
    %v2825 = vpop.f32.mrf.mxu0
    %v2826 = vpop.f32.mrf.mxu0
    %v2827 = vadd.f32 %v2730, %v2826
    %v2828 = vpop.f32.mrf.mxu0
    %2829 = vmatprep.mubr.bf16.mxu0 %v526
    %2830 = vmatmul.mubr.bf16.gmra.mxu0 %v525
    %v2831 = vpop.f32.mrf.mxu0
    %v2832 = vadd.f32 %v2735, %v2831
    %v2833 = vpop.f32.mrf.mxu0
    %v2834 = vpop.f32.mrf.mxu0
    %v2835 = vadd.f32 %v2738, %v2834
    %v2836 = vpop.f32.mrf.mxu0
    %2837 = vmatprep.mubr.bf16.mxu0 %v535
    %2838 = vmatmul.mubr.bf16.gmra.mxu0 %v534
    %v2839 = vpop.f32.mrf.mxu0
    %v2840 = vadd.f32 %v2743, %v2839
    %v2841 = vpop.f32.mrf.mxu0
    %v2842 = vpop.f32.mrf.mxu0
    %v2843 = vadd.f32 %v2746, %v2842
    %v2844 = vpop.f32.mrf.mxu0
    %2845 = vmatprep.mubr.bf16.mxu0 %v544
    %2846 = vmatmul.mubr.bf16.gmra.mxu0 %v543
    %v2847 = vpop.f32.mrf.mxu0
    %v2848 = vadd.f32 %v2751, %v2847
    %v2849 = vpop.f32.mrf.mxu0
    %v2850 = vpop.f32.mrf.mxu0
    %v2851 = vadd.f32 %v2754, %v2850
    %v2852 = vpop.f32.mrf.mxu0
    %2853 = vmatprep.mubr.bf16.mxu0 %v553
    %2854 = vmatmul.mubr.bf16.gmra.mxu0 %v552
    %v2855 = vpop.f32.mrf.mxu0
    %v2856 = vadd.f32 %v2759, %v2855
    %v2857 = vpop.f32.mrf.mxu0
    %v2858 = vpop.f32.mrf.mxu0
    %v2859 = vadd.f32 %v2762, %v2858
    %v2860 = vpop.f32.mrf.mxu0
    %2861 = vmatprep.mubr.bf16.mxu0 %v562
    %2862 = vmatmul.mubr.bf16.gmra.mxu0 %v561
    %v2863 = vpop.f32.mrf.mxu0
    %v2864 = vadd.f32 %v2767, %v2863
    %v2865 = vpop.f32.mrf.mxu0
    %v2866 = vpop.f32.mrf.mxu0
    %v2867 = vadd.f32 %v2770, %v2866
    %v2868 = vpop.f32.mrf.mxu0
    %2869 = vmatprep.mubr.bf16.mxu0 %v571
    %2870 = vmatmul.mubr.bf16.gmra.mxu0 %v570
    %v2871 = vpop.f32.mrf.mxu0
    %v2872 = vadd.f32 %v2775, %v2871
    %v2873 = vpop.f32.mrf.mxu0
    %v2874 = vpop.f32.mrf.mxu0
    %v2875 = vadd.f32 %v2778, %v2874
    %v2876 = vpop.f32.mrf.mxu0
    %2877 = vdwg.mxu0
    %2878 = vmatprep.subr.bf16.mxu0 0
    %2879 = vmatpush1.bf16.msra.mxu0 0
    %2880 = vmatprep.subr.bf16.mxu0 0
    %2881 = vmatpush1.bf16.msra.mxu0 0
    %2882 = vmatprep.subr.bf16.mxu0 0
    %2883 = vmatpush1.bf16.msra.mxu0 0
    %2884 = vmatprep.subr.bf16.mxu0 0
    %2885 = vmatpush1.bf16.msra.mxu0 0
    %2886 = vmatprep.subr.bf16.mxu0 0
    %2887 = vmatpush1.bf16.msra.mxu0 %v2421
    %2888 = vmatprep.subr.bf16.mxu0 0
    %2889 = vmatpush1.bf16.msra.mxu0 %v2420
    %2890 = vmatprep.subr.bf16.mxu0 0
    %2891 = vmatpush1.bf16.msra.mxu0 %v2419
    %2892 = vmatprep.subr.bf16.mxu0 0
    %2893 = vmatpush1.bf16.msra.mxu0 %v2418
    %2894 = vmatprep.subr.bf16.mxu0 0
    %2895 = vmatpush2.bf16.msra.mxu0 0
    %2896 = vmatprep.subr.bf16.mxu0 0
    %2897 = vmatpush2.bf16.msra.mxu0 0
    %2898 = vmatprep.subr.bf16.mxu0 0
    %2899 = vmatpush2.bf16.msra.mxu0 0
    %2900 = vmatprep.subr.bf16.mxu0 0
    %2901 = vmatpush2.bf16.msra.mxu0 0
    %2902 = vmatprep.subr.bf16.mxu0 0
    %2903 = vmatpush2.bf16.msra.mxu0 0
    %2904 = vmatprep.subr.bf16.mxu0 0
    %2905 = vmatpush2.bf16.msra.mxu0 0
    %2906 = vmatprep.subr.bf16.mxu0 0
    %2907 = vmatpush2.bf16.msra.mxu0 0
    %2908 = vmatprep.subr.bf16.mxu0 0
    %2909 = vmatpush2.bf16.msra.mxu0 0
    %2910 = vmatprep.mubr.bf16.mxu0 0
    %2911 = vmatmul.mubr.bf16.gmra.mxu0 %v1319
    %v2912 = vpop.f32.mrf.mxu0
    %v2913 = vadd.f32 %v2816, %v2912
    %v2914 = vpop.f32.mrf.mxu0
    %v2915 = vpop.f32.mrf.mxu0
    %v2916 = vadd.f32 %v2819, %v2915
    %v2917 = vpop.f32.mrf.mxu0
    %2918 = vmatprep.mubr.bf16.mxu0 0
    %2919 = vmatmul.mubr.bf16.gmra.mxu0 %v1322
    %v2920 = vpop.f32.mrf.mxu0
    %v2921 = vadd.f32 %v2824, %v2920
    %v2922 = vpop.f32.mrf.mxu0
    %v2923 = vpop.f32.mrf.mxu0
    %v2924 = vadd.f32 %v2827, %v2923
    %v2925 = vpop.f32.mrf.mxu0
    %2926 = vmatprep.mubr.bf16.mxu0 0
    %2927 = vmatmul.mubr.bf16.gmra.mxu0 %v1325
    %v2928 = vpop.f32.mrf.mxu0
    %v2929 = vadd.f32 %v2832, %v2928
    %v2930 = vpop.f32.mrf.mxu0
    %v2931 = vpop.f32.mrf.mxu0
    %v2932 = vadd.f32 %v2835, %v2931
    %v2933 = vpop.f32.mrf.mxu0
    %2934 = vmatprep.mubr.bf16.mxu0 0
    %2935 = vmatmul.mubr.bf16.gmra.mxu0 %v1328
    %v2936 = vpop.f32.mrf.mxu0
    %v2937 = vadd.f32 %v2840, %v2936
    %v2938 = vpop.f32.mrf.mxu0
    %v2939 = vpop.f32.mrf.mxu0
    %v2940 = vadd.f32 %v2843, %v2939
    %v2941 = vpop.f32.mrf.mxu0
    %2942 = vmatprep.mubr.bf16.mxu0 0
    %2943 = vmatmul.mubr.bf16.gmra.mxu0 %v1331
    %v2944 = vpop.f32.mrf.mxu0
    %v2945 = vadd.f32 %v2848, %v2944
    %v2946 = vpop.f32.mrf.mxu0
    %v2947 = vpop.f32.mrf.mxu0
    %v2948 = vadd.f32 %v2851, %v2947
    %v2949 = vpop.f32.mrf.mxu0
    %2950 = vmatprep.mubr.bf16.mxu0 0
    %2951 = vmatmul.mubr.bf16.gmra.mxu0 %v1334
    %v2952 = vpop.f32.mrf.mxu0
    %v2953 = vadd.f32 %v2856, %v2952
    %v2954 = vpop.f32.mrf.mxu0
    %v2955 = vpop.f32.mrf.mxu0
    %v2956 = vadd.f32 %v2859, %v2955
    %v2957 = vpop.f32.mrf.mxu0
    %2958 = vmatprep.mubr.bf16.mxu0 0
    %2959 = vmatmul.mubr.bf16.gmra.mxu0 %v1337
    %v2960 = vpop.f32.mrf.mxu0
    %v2961 = vadd.f32 %v2864, %v2960
    %v2962 = vpop.f32.mrf.mxu0
    %v2963 = vpop.f32.mrf.mxu0
    %v2964 = vadd.f32 %v2867, %v2963
    %v2965 = vpop.f32.mrf.mxu0
    %2966 = vmatprep.mubr.bf16.mxu0 0
    %2967 = vmatmul.mubr.bf16.gmra.mxu0 %v1340
    %v2968 = vpop.f32.mrf.mxu0
    %v2969 = vadd.f32 %v2872, %v2968
    %v2970 = vpop.f32.mrf.mxu0
    %v2971 = vpop.f32.mrf.mxu0
    %v2972 = vadd.f32 %v2875, %v2971
    %v2973 = vpop.f32.mrf.mxu0
    %2974 = vdwg.mxu0
    %v2975 = vmax.f32 %v2913, 0.0
    %v2976 = vmax.f32 %v2916, 0.0
    %v2977 = vmax.f32 %v2921, 0.0
    %v2978 = vmax.f32 %v2924, 0.0
    %v2979 = vmax.f32 %v2929, 0.0
    %v2980 = vmax.f32 %v2932, 0.0
    %v2981 = vmax.f32 %v2937, 0.0
    %v2982 = vmax.f32 %v2940, 0.0
    %v2983 = vmax.f32 %v2945, 0.0
    %v2984 = vmax.f32 %v2948, 0.0
    %v2985 = vmax.f32 %v2953, 0.0
    %v2986 = vmax.f32 %v2956, 0.0
    %v2987 = vmax.f32 %v2961, 0.0
    %v2988 = vmax.f32 %v2964, 0.0
    %v2989 = vmax.f32 %v2969, 0.0
    %v2990 = vmax.f32 %v2972, 0.0
    %2991 = vst [vmem:[#allocation2] sm:$0xff] 0.0
    %2992 = vst [vmem:[#allocation2 + $0x8] sm:$0xff] 0.0
    %2993 = vst [vmem:[#allocation2 + $0x10] sm:$0xff] 0.0
    %2994 = vst [vmem:[#allocation2 + $0x18] sm:$0xff] 0.0
    %2995 = vst [vmem:[#allocation2 + $0x20] sm:$0xff] 0.0
    %2996 = vst [vmem:[#allocation2 + $0x28] sm:$0xff] 0.0
    %2997 = vst [vmem:[#allocation2 + $0x30] sm:$0xff] 0.0
    %2998 = vst [vmem:[#allocation2 + $0x38] sm:$0xff] 0.0
    %2999 = vst [vmem:[#allocation2 + $0x40] sm:$0xff] 0.0
    %3000 = vst [vmem:[#allocation2 + $0x48] sm:$0xff] 0.0
    %3001 = vst [vmem:[#allocation2 + $0x50] sm:$0xff] 0.0
    %3002 = vst [vmem:[#allocation2 + $0x58] sm:$0xff] 0.0
    %3003 = vst [vmem:[#allocation2 + $0x60] sm:$0xff] 0.0
    %3004 = vst [vmem:[#allocation2 + $0x68] sm:$0xff] 0.0
    %3005 = vst [vmem:[#allocation2 + $0x70] sm:$0xff] 0.0
    %3006 = vst [vmem:[#allocation2 + $0x78] sm:$0xff] 0.0
    %3007 = vst [vmem:[#allocation2 + $0x80] sm:$0xff] 0.0
    %3008 = vst [vmem:[#allocation2 + $0x88] sm:$0xff] 0.0
    %3009 = vst [vmem:[#allocation2 + $0x90] sm:$0xff] 0.0
    %3010 = vst [vmem:[#allocation2 + $0x98] sm:$0xff] 0.0
    %3011 = vst [vmem:[#allocation2 + $0xa0] sm:$0xff] 0.0
    %3012 = vst [vmem:[#allocation2 + $0xa8] sm:$0xff] 0.0
    %3013 = vst [vmem:[#allocation2 + $0xb0] sm:$0xff] 0.0
    %3014 = vst [vmem:[#allocation2 + $0xb8] sm:$0xff] 0.0
    %3015 = vst [vmem:[#allocation2 + $0xc0] sm:$0xff] 0.0
    %3016 = vst [vmem:[#allocation2 + $0xc8] sm:$0xff] 0.0
    %3017 = vst [vmem:[#allocation2 + $0xd0] sm:$0xff] 0.0
    %3018 = vst [vmem:[#allocation2 + $0xd8] sm:$0xff] 0.0
    %3019 = vst [vmem:[#allocation2 + $0xe0] sm:$0xff] 0.0
    %3020 = vst [vmem:[#allocation2 + $0xe8] sm:$0xff] 0.0
    %3021 = vst [vmem:[#allocation2 + $0xf0] sm:$0xff] 0.0
    %3022 = vst [vmem:[#allocation2 + $0xf8] sm:$0xff] 0.0
    %3023 = vst [vmem:[#allocation2 + $0x100] sm:$0xff] 0.0
    %3024 = vst [vmem:[#allocation2 + $0x108] sm:$0xff] 0.0
    %3025 = vst [vmem:[#allocation2 + $0x110] sm:$0xff] 0.0
    %3026 = vst [vmem:[#allocation2 + $0x118] sm:$0xff] 0.0
    %3027 = vst [vmem:[#allocation2 + $0x120] sm:$0xff] 0.0
    %3028 = vst [vmem:[#allocation2 + $0x128] sm:$0xff] 0.0
    %3029 = vst [vmem:[#allocation2 + $0x130] sm:$0xff] 0.0
    %3030 = vst [vmem:[#allocation2 + $0x138] sm:$0xff] 0.0
    %3031 = vst [vmem:[#allocation2 + $0x140] sm:$0xff] 0.0
    %3032 = vst [vmem:[#allocation2 + $0x148] sm:$0xff] 0.0
    %3033 = vst [vmem:[#allocation2 + $0x150] sm:$0xff] 0.0
    %3034 = vst [vmem:[#allocation2 + $0x158] sm:$0xff] 0.0
    %3035 = vst [vmem:[#allocation2 + $0x160] sm:$0xff] 0.0
    %3036 = vst [vmem:[#allocation2 + $0x168] sm:$0xff] 0.0
    %3037 = vst [vmem:[#allocation2 + $0x170] sm:$0xff] 0.0
    %3038 = vst [vmem:[#allocation2 + $0x178] sm:$0xff] 0.0
    %3039 = vst [vmem:[#allocation2 + $0x8] sm:$0xff] %v2975
    %3040 = vst [vmem:[#allocation2 + $0x20] sm:$0xff] %v2976
    %3041 = vst [vmem:[#allocation2 + $0x38] sm:$0xff] %v2977
    %3042 = vst [vmem:[#allocation2 + $0x50] sm:$0xff] %v2978
    %3043 = vst [vmem:[#allocation2 + $0x68] sm:$0xff] %v2979
    %3044 = vst [vmem:[#allocation2 + $0x80] sm:$0xff] %v2980
    %3045 = vst [vmem:[#allocation2 + $0x98] sm:$0xff] %v2981
    %3046 = vst [vmem:[#allocation2 + $0xb0] sm:$0xff] %v2982
    %3047 = vst [vmem:[#allocation2 + $0xc8] sm:$0xff] %v2983
    %3048 = vst [vmem:[#allocation2 + $0xe0] sm:$0xff] %v2984
    %3049 = vst [vmem:[#allocation2 + $0xf8] sm:$0xff] %v2985
    %3050 = vst [vmem:[#allocation2 + $0x110] sm:$0xff] %v2986
    %3051 = vst [vmem:[#allocation2 + $0x128] sm:$0xff] %v2987
    %3052 = vst [vmem:[#allocation2 + $0x140] sm:$0xff] %v2988
    %3053 = vst [vmem:[#allocation2 + $0x158] sm:$0xff] %v2989
    %3054 = vst [vmem:[#allocation2 + $0x170] sm:$0xff] %v2990
    %v3055 = vld [vmem:[#allocation2 + $0x5] sm:$0xff]
    %v3056 = vld [vmem:[#allocation2 + $0x1d] sm:$0xff]
    %v3057 = vld [vmem:[#allocation2 + $0x35] sm:$0xff]
    %v3058 = vld [vmem:[#allocation2 + $0x4d] sm:$0xff]
    %v3059 = vld [vmem:[#allocation2 + $0x65] sm:$0xff]
    %v3060 = vld [vmem:[#allocation2 + $0x7d] sm:$0xff]
    %v3061 = vld [vmem:[#allocation2 + $0x95] sm:$0xff]
    %v3062 = vld [vmem:[#allocation2 + $0xad] sm:$0xff]
    %v3063 = vld [vmem:[#allocation2 + $0xc5] sm:$0xff]
    %v3064 = vld [vmem:[#allocation2 + $0xdd] sm:$0xff]
    %v3065 = vld [vmem:[#allocation2 + $0xf5] sm:$0xff]
    %v3066 = vld [vmem:[#allocation2 + $0x10d] sm:$0xff]
    %v3067 = vld [vmem:[#allocation2 + $0x125] sm:$0xff]
    %v3068 = vld [vmem:[#allocation2 + $0x13d] sm:$0xff]
    %v3069 = vld [vmem:[#allocation2 + $0x155] sm:$0xff]
    %v3070 = vld [vmem:[#allocation2 + $0x16d] sm:$0xff]
    %v3071 = vpack.c.bf16 %v3056, %v3055
    %v3072 = vpack.c.bf16 %v3058, %v3057
    %v3073 = vpack.c.bf16 %v3060, %v3059
    %v3074 = vpack.c.bf16 %v3062, %v3061
    %v3075 = vpack.c.bf16 %v3064, %v3063
    %v3076 = vpack.c.bf16 %v3066, %v3065
    %v3077 = vpack.c.bf16 %v3068, %v3067
    %v3078 = vpack.c.bf16 %v3070, %v3069
    %v3079 = vld [vmem:[%s5] sm:$0xff]
    %v3080 = vld [vmem:[%s5 + $0x8] sm:$0xff]
    %v3081 = vld [vmem:[%s5 + $0x10] sm:$0xff]
    %v3082 = vld [vmem:[%s5 + $0x18] sm:$0xff]
    %v3083 = vld [vmem:[%s5 + $0x20] sm:$0xff]
    %v3084 = vld [vmem:[%s5 + $0x28] sm:$0xff]
    %v3085 = vld [vmem:[%s5 + $0x30] sm:$0xff]
    %v3086 = vld [vmem:[%s5 + $0x38] sm:$0xff]
    %v3087 = vld [vmem:[%s5 + $0x40] sm:$0xff]
    %v3088 = vld [vmem:[%s5 + $0x48] sm:$0xff]
    %v3089 = vld [vmem:[%s5 + $0x50] sm:$0xff]
    %v3090 = vld [vmem:[%s5 + $0x58] sm:$0xff]
    %v3091 = vld [vmem:[%s5 + $0x60] sm:$0xff]
    %v3092 = vld [vmem:[%s5 + $0x68] sm:$0xff]
    %v3093 = vld [vmem:[%s5 + $0x70] sm:$0xff]
    %v3094 = vld [vmem:[%s5 + $0x78] sm:$0xff]
    %v3095 = vld [vmem:[#allocation2 + $0x6] sm:$0xff]
    %v3096 = vld [vmem:[#allocation2 + $0x1e] sm:$0xff]
    %v3097 = vld [vmem:[#allocation2 + $0x36] sm:$0xff]
    %v3098 = vld [vmem:[#allocation2 + $0x4e] sm:$0xff]
    %v3099 = vld [vmem:[#allocation2 + $0x66] sm:$0xff]
    %v3100 = vld [vmem:[#allocation2 + $0x7e] sm:$0xff]
    %v3101 = vld [vmem:[#allocation2 + $0x96] sm:$0xff]
    %v3102 = vld [vmem:[#allocation2 + $0xae] sm:$0xff]
    %v3103 = vld [vmem:[#allocation2 + $0xc6] sm:$0xff]
    %v3104 = vld [vmem:[#allocation2 + $0xde] sm:$0xff]
    %v3105 = vld [vmem:[#allocation2 + $0xf6] sm:$0xff]
    %v3106 = vld [vmem:[#allocation2 + $0x10e] sm:$0xff]
    %v3107 = vld [vmem:[#allocation2 + $0x126] sm:$0xff]
    %v3108 = vld [vmem:[#allocation2 + $0x13e] sm:$0xff]
    %v3109 = vld [vmem:[#allocation2 + $0x156] sm:$0xff]
    %v3110 = vld [vmem:[#allocation2 + $0x16e] sm:$0xff]
    %v3111 = vpack.c.bf16 %v3096, %v3095
    %v3112 = vpack.c.bf16 %v3098, %v3097
    %v3113 = vpack.c.bf16 %v3100, %v3099
    %v3114 = vpack.c.bf16 %v3102, %v3101
    %v3115 = vpack.c.bf16 %v3104, %v3103
    %v3116 = vpack.c.bf16 %v3106, %v3105
    %v3117 = vpack.c.bf16 %v3108, %v3107
    %v3118 = vpack.c.bf16 %v3110, %v3109
    %s3119 = scalar_lea.vmem %s5, 128
    %v3120 = vld [vmem:[%s3119] sm:$0xff]
    %v3121 = vld [vmem:[%s3119 + $0x8] sm:$0xff]
    %v3122 = vld [vmem:[%s3119 + $0x10] sm:$0xff]
    %v3123 = vld [vmem:[%s3119 + $0x18] sm:$0xff]
    %v3124 = vld [vmem:[%s3119 + $0x20] sm:$0xff]
    %v3125 = vld [vmem:[%s3119 + $0x28] sm:$0xff]
    %v3126 = vld [vmem:[%s3119 + $0x30] sm:$0xff]
    %v3127 = vld [vmem:[%s3119 + $0x38] sm:$0xff]
    %v3128 = vld [vmem:[%s3119 + $0x40] sm:$0xff]
    %v3129 = vld [vmem:[%s3119 + $0x48] sm:$0xff]
    %v3130 = vld [vmem:[%s3119 + $0x50] sm:$0xff]
    %v3131 = vld [vmem:[%s3119 + $0x58] sm:$0xff]
    %v3132 = vld [vmem:[%s3119 + $0x60] sm:$0xff]
    %v3133 = vld [vmem:[%s3119 + $0x68] sm:$0xff]
    %v3134 = vld [vmem:[%s3119 + $0x70] sm:$0xff]
    %v3135 = vld [vmem:[%s3119 + $0x78] sm:$0xff]
    %v3152 = vunpack.c.l.b16 %v3120
    %v3153 = vunpack.c.h.b16 %v3120
    %v3154 = vunpack.c.l.b16 %v3121
    %v3155 = vunpack.c.h.b16 %v3121
    %v3156 = vunpack.c.l.b16 %v3122
    %v3157 = vunpack.c.h.b16 %v3122
    %v3158 = vunpack.c.l.b16 %v3123
    %v3159 = vunpack.c.h.b16 %v3123
    %v3160 = vunpack.c.l.b16 %v3124
    %v3161 = vunpack.c.h.b16 %v3124
    %v3162 = vunpack.c.l.b16 %v3125
    %v3163 = vunpack.c.h.b16 %v3125
    %v3164 = vunpack.c.l.b16 %v3126
    %v3165 = vunpack.c.h.b16 %v3126
    %v3166 = vunpack.c.l.b16 %v3127
    %v3167 = vunpack.c.h.b16 %v3127
    %v3168 = vunpack.c.l.b16 %v3128
    %v3169 = vunpack.c.h.b16 %v3128
    %v3170 = vunpack.c.l.b16 %v3129
    %v3171 = vunpack.c.h.b16 %v3129
    %v3172 = vunpack.c.l.b16 %v3130
    %v3173 = vunpack.c.h.b16 %v3130
    %v3174 = vunpack.c.l.b16 %v3131
    %v3175 = vunpack.c.h.b16 %v3131
    %v3176 = vunpack.c.l.b16 %v3132
    %v3177 = vunpack.c.h.b16 %v3132
    %v3178 = vunpack.c.l.b16 %v3133
    %v3179 = vunpack.c.h.b16 %v3133
    %v3180 = vunpack.c.l.b16 %v3134
    %v3181 = vunpack.c.h.b16 %v3134
    %v3182 = vunpack.c.l.b16 %v3135
    %v3183 = vunpack.c.h.b16 %v3135
    %v3184 = vpack.c.b16 %v3154, %v3152
    %v3185 = vpack.c.b16 %v3155, %v3153
    %v3186 = vpack.c.b16 %v3158, %v3156
    %v3187 = vpack.c.b16 %v3159, %v3157
    %v3188 = vpack.c.b16 %v3162, %v3160
    %v3189 = vpack.c.b16 %v3163, %v3161
    %v3190 = vpack.c.b16 %v3166, %v3164
    %v3191 = vpack.c.b16 %v3167, %v3165
    %v3192 = vpack.c.b16 %v3170, %v3168
    %v3193 = vpack.c.b16 %v3171, %v3169
    %v3194 = vpack.c.b16 %v3174, %v3172
    %v3195 = vpack.c.b16 %v3175, %v3173
    %v3196 = vpack.c.b16 %v3178, %v3176
    %v3197 = vpack.c.b16 %v3179, %v3177
    %v3198 = vpack.c.b16 %v3182, %v3180
    %v3199 = vpack.c.b16 %v3183, %v3181
    %3216 = vmatprep.subr.bf16.mxu0 %v3199
    %3217 = vmatpush1.bf16.msra.mxu0 %v3198
    %3218 = vmatprep.subr.bf16.mxu0 %v3197
    %3219 = vmatpush1.bf16.msra.mxu0 %v3196
    %3220 = vmatprep.subr.bf16.mxu0 %v3195
    %3221 = vmatpush1.bf16.msra.mxu0 %v3194
    %3222 = vmatprep.subr.bf16.mxu0 %v3193
    %3223 = vmatpush1.bf16.msra.mxu0 %v3192
    %3224 = vmatprep.subr.bf16.mxu0 %v3191
    %3225 = vmatpush1.bf16.msra.mxu0 %v3190
    %3226 = vmatprep.subr.bf16.mxu0 %v3189
    %3227 = vmatpush1.bf16.msra.mxu0 %v3188
    %3228 = vmatprep.subr.bf16.mxu0 %v3187
    %3229 = vmatpush1.bf16.msra.mxu0 %v3186
    %3230 = vmatprep.subr.bf16.mxu0 %v3185
    %3231 = vmatpush1.bf16.msra.mxu0 %v3184
    %3232 = vmatprep.subr.bf16.mxu0 0
    %3233 = vmatpush2.bf16.msra.mxu0 0
    %3234 = vmatprep.subr.bf16.mxu0 0
    %3235 = vmatpush2.bf16.msra.mxu0 0
    %3236 = vmatprep.subr.bf16.mxu0 0
    %3237 = vmatpush2.bf16.msra.mxu0 0
    %3238 = vmatprep.subr.bf16.mxu0 0
    %3239 = vmatpush2.bf16.msra.mxu0 0
    %3240 = vmatprep.subr.bf16.mxu0 0
    %3241 = vmatpush2.bf16.msra.mxu0 0
    %3242 = vmatprep.subr.bf16.mxu0 0
    %3243 = vmatpush2.bf16.msra.mxu0 0
    %3244 = vmatprep.subr.bf16.mxu0 0
    %3245 = vmatpush2.bf16.msra.mxu0 0
    %3246 = vmatprep.subr.bf16.mxu0 0
    %3247 = vmatpush2.bf16.msra.mxu0 0
    %3248 = vmatprep.mubr.bf16.mxu0 0
    %3249 = vmatmul.mubr.bf16.gmra.mxu0 %v3111
    %v3250 = vpop.f32.mrf.mxu0
    %v3251 = vadd.f32 0.0, %v3250
    %v3252 = vpop.f32.mrf.mxu0
    %v3253 = vadd.f32 0.0, %v3252
    %v3254 = vpop.f32.mrf.mxu0
    %v3255 = vadd.f32 0.0, %v3254
    %v3256 = vpop.f32.mrf.mxu0
    %v3257 = vadd.f32 0.0, %v3256
    %3258 = vmatprep.mubr.bf16.mxu0 0
    %3259 = vmatmul.mubr.bf16.gmra.mxu0 %v3112
    %v3260 = vpop.f32.mrf.mxu0
    %v3261 = vadd.f32 0.0, %v3260
    %v3262 = vpop.f32.mrf.mxu0
    %v3263 = vadd.f32 0.0, %v3262
    %v3264 = vpop.f32.mrf.mxu0
    %v3265 = vadd.f32 0.0, %v3264
    %v3266 = vpop.f32.mrf.mxu0
    %v3267 = vadd.f32 0.0, %v3266
    %3268 = vmatprep.mubr.bf16.mxu0 0
    %3269 = vmatmul.mubr.bf16.gmra.mxu0 %v3113
    %v3270 = vpop.f32.mrf.mxu0
    %v3271 = vadd.f32 0.0, %v3270
    %v3272 = vpop.f32.mrf.mxu0
    %v3273 = vadd.f32 0.0, %v3272
    %v3274 = vpop.f32.mrf.mxu0
    %v3275 = vadd.f32 0.0, %v3274
    %v3276 = vpop.f32.mrf.mxu0
    %v3277 = vadd.f32 0.0, %v3276
    %3278 = vmatprep.mubr.bf16.mxu0 0
    %3279 = vmatmul.mubr.bf16.gmra.mxu0 %v3114
    %v3280 = vpop.f32.mrf.mxu0
    %v3281 = vadd.f32 0.0, %v3280
    %v3282 = vpop.f32.mrf.mxu0
    %v3283 = vadd.f32 0.0, %v3282
    %v3284 = vpop.f32.mrf.mxu0
    %v3285 = vadd.f32 0.0, %v3284
    %v3286 = vpop.f32.mrf.mxu0
    %v3287 = vadd.f32 0.0, %v3286
    %3288 = vmatprep.mubr.bf16.mxu0 0
    %3289 = vmatmul.mubr.bf16.gmra.mxu0 %v3115
    %v3290 = vpop.f32.mrf.mxu0
    %v3291 = vadd.f32 0.0, %v3290
    %v3292 = vpop.f32.mrf.mxu0
    %v3293 = vadd.f32 0.0, %v3292
    %v3294 = vpop.f32.mrf.mxu0
    %v3295 = vadd.f32 0.0, %v3294
    %v3296 = vpop.f32.mrf.mxu0
    %v3297 = vadd.f32 0.0, %v3296
    %3298 = vmatprep.mubr.bf16.mxu0 0
    %3299 = vmatmul.mubr.bf16.gmra.mxu0 %v3116
    %v3300 = vpop.f32.mrf.mxu0
    %v3301 = vadd.f32 0.0, %v3300
    %v3302 = vpop.f32.mrf.mxu0
    %v3303 = vadd.f32 0.0, %v3302
    %v3304 = vpop.f32.mrf.mxu0
    %v3305 = vadd.f32 0.0, %v3304
    %v3306 = vpop.f32.mrf.mxu0
    %v3307 = vadd.f32 0.0, %v3306
    %3308 = vmatprep.mubr.bf16.mxu0 0
    %3309 = vmatmul.mubr.bf16.gmra.mxu0 %v3117
    %v3310 = vpop.f32.mrf.mxu0
    %v3311 = vadd.f32 0.0, %v3310
    %v3312 = vpop.f32.mrf.mxu0
    %v3313 = vadd.f32 0.0, %v3312
    %v3314 = vpop.f32.mrf.mxu0
    %v3315 = vadd.f32 0.0, %v3314
    %v3316 = vpop.f32.mrf.mxu0
    %v3317 = vadd.f32 0.0, %v3316
    %3318 = vmatprep.mubr.bf16.mxu0 0
    %3319 = vmatmul.mubr.bf16.gmra.mxu0 %v3118
    %v3320 = vpop.f32.mrf.mxu0
    %v3321 = vadd.f32 0.0, %v3320
    %v3322 = vpop.f32.mrf.mxu0
    %v3323 = vadd.f32 0.0, %v3322
    %v3324 = vpop.f32.mrf.mxu0
    %v3325 = vadd.f32 0.0, %v3324
    %v3326 = vpop.f32.mrf.mxu0
    %v3327 = vadd.f32 0.0, %v3326
    %3328 = vdwg.mxu0
    %v3345 = vunpack.c.l.b16 %v3079
    %v3346 = vunpack.c.h.b16 %v3079
    %v3347 = vunpack.c.l.b16 %v3080
    %v3348 = vunpack.c.h.b16 %v3080
    %v3349 = vunpack.c.l.b16 %v3081
    %v3350 = vunpack.c.h.b16 %v3081
    %v3351 = vunpack.c.l.b16 %v3082
    %v3352 = vunpack.c.h.b16 %v3082
    %v3353 = vunpack.c.l.b16 %v3083
    %v3354 = vunpack.c.h.b16 %v3083
    %v3355 = vunpack.c.l.b16 %v3084
    %v3356 = vunpack.c.h.b16 %v3084
    %v3357 = vunpack.c.l.b16 %v3085
    %v3358 = vunpack.c.h.b16 %v3085
    %v3359 = vunpack.c.l.b16 %v3086
    %v3360 = vunpack.c.h.b16 %v3086
    %v3361 = vunpack.c.l.b16 %v3087
    %v3362 = vunpack.c.h.b16 %v3087
    %v3363 = vunpack.c.l.b16 %v3088
    %v3364 = vunpack.c.h.b16 %v3088
    %v3365 = vunpack.c.l.b16 %v3089
    %v3366 = vunpack.c.h.b16 %v3089
    %v3367 = vunpack.c.l.b16 %v3090
    %v3368 = vunpack.c.h.b16 %v3090
    %v3369 = vunpack.c.l.b16 %v3091
    %v3370 = vunpack.c.h.b16 %v3091
    %v3371 = vunpack.c.l.b16 %v3092
    %v3372 = vunpack.c.h.b16 %v3092
    %v3373 = vunpack.c.l.b16 %v3093
    %v3374 = vunpack.c.h.b16 %v3093
    %v3375 = vunpack.c.l.b16 %v3094
    %v3376 = vunpack.c.h.b16 %v3094
    %v3377 = vpack.c.b16 %v3347, %v3345
    %v3378 = vpack.c.b16 %v3348, %v3346
    %v3379 = vpack.c.b16 %v3351, %v3349
    %v3380 = vpack.c.b16 %v3352, %v3350
    %v3381 = vpack.c.b16 %v3355, %v3353
    %v3382 = vpack.c.b16 %v3356, %v3354
    %v3383 = vpack.c.b16 %v3359, %v3357
    %v3384 = vpack.c.b16 %v3360, %v3358
    %v3385 = vpack.c.b16 %v3363, %v3361
    %v3386 = vpack.c.b16 %v3364, %v3362
    %v3387 = vpack.c.b16 %v3367, %v3365
    %v3388 = vpack.c.b16 %v3368, %v3366
    %v3389 = vpack.c.b16 %v3371, %v3369
    %v3390 = vpack.c.b16 %v3372, %v3370
    %v3391 = vpack.c.b16 %v3375, %v3373
    %v3392 = vpack.c.b16 %v3376, %v3374
    %3409 = vmatprep.subr.bf16.mxu0 %v3392
    %3410 = vmatpush1.bf16.msra.mxu0 %v3391
    %3411 = vmatprep.subr.bf16.mxu0 %v3390
    %3412 = vmatpush1.bf16.msra.mxu0 %v3389
    %3413 = vmatprep.subr.bf16.mxu0 %v3388
    %3414 = vmatpush1.bf16.msra.mxu0 %v3387
    %3415 = vmatprep.subr.bf16.mxu0 %v3386
    %3416 = vmatpush1.bf16.msra.mxu0 %v3385
    %3417 = vmatprep.subr.bf16.mxu0 %v3384
    %3418 = vmatpush1.bf16.msra.mxu0 %v3383
    %3419 = vmatprep.subr.bf16.mxu0 %v3382
    %3420 = vmatpush1.bf16.msra.mxu0 %v3381
    %3421 = vmatprep.subr.bf16.mxu0 %v3380
    %3422 = vmatpush1.bf16.msra.mxu0 %v3379
    %3423 = vmatprep.subr.bf16.mxu0 %v3378
    %3424 = vmatpush1.bf16.msra.mxu0 %v3377
    %3425 = vmatprep.subr.bf16.mxu0 0
    %3426 = vmatpush2.bf16.msra.mxu0 0
    %3427 = vmatprep.subr.bf16.mxu0 0
    %3428 = vmatpush2.bf16.msra.mxu0 0
    %3429 = vmatprep.subr.bf16.mxu0 0
    %3430 = vmatpush2.bf16.msra.mxu0 0
    %3431 = vmatprep.subr.bf16.mxu0 0
    %3432 = vmatpush2.bf16.msra.mxu0 0
    %3433 = vmatprep.subr.bf16.mxu0 0
    %3434 = vmatpush2.bf16.msra.mxu0 0
    %3435 = vmatprep.subr.bf16.mxu0 0
    %3436 = vmatpush2.bf16.msra.mxu0 0
    %3437 = vmatprep.subr.bf16.mxu0 0
    %3438 = vmatpush2.bf16.msra.mxu0 0
    %3439 = vmatprep.subr.bf16.mxu0 0
    %3440 = vmatpush2.bf16.msra.mxu0 0
    %3441 = vmatprep.mubr.bf16.mxu0 0
    %3442 = vmatmul.mubr.bf16.gmra.mxu0 %v3071
    %v3443 = vpop.f32.mrf.mxu0
    %v3444 = vadd.f32 %v3251, %v3443
    %v3445 = vpop.f32.mrf.mxu0
    %v3446 = vadd.f32 %v3253, %v3445
    %v3447 = vpop.f32.mrf.mxu0
    %v3448 = vadd.f32 %v3255, %v3447
    %v3449 = vpop.f32.mrf.mxu0
    %v3450 = vadd.f32 %v3257, %v3449
    %3451 = vmatprep.mubr.bf16.mxu0 0
    %3452 = vmatmul.mubr.bf16.gmra.mxu0 %v3072
    %v3453 = vpop.f32.mrf.mxu0
    %v3454 = vadd.f32 %v3261, %v3453
    %v3455 = vpop.f32.mrf.mxu0
    %v3456 = vadd.f32 %v3263, %v3455
    %v3457 = vpop.f32.mrf.mxu0
    %v3458 = vadd.f32 %v3265, %v3457
    %v3459 = vpop.f32.mrf.mxu0
    %v3460 = vadd.f32 %v3267, %v3459
    %3461 = vmatprep.mubr.bf16.mxu0 0
    %3462 = vmatmul.mubr.bf16.gmra.mxu0 %v3073
    %v3463 = vpop.f32.mrf.mxu0
    %v3464 = vadd.f32 %v3271, %v3463
    %v3465 = vpop.f32.mrf.mxu0
    %v3466 = vadd.f32 %v3273, %v3465
    %v3467 = vpop.f32.mrf.mxu0
    %v3468 = vadd.f32 %v3275, %v3467
    %v3469 = vpop.f32.mrf.mxu0
    %v3470 = vadd.f32 %v3277, %v3469
    %3471 = vmatprep.mubr.bf16.mxu0 0
    %3472 = vmatmul.mubr.bf16.gmra.mxu0 %v3074
    %v3473 = vpop.f32.mrf.mxu0
    %v3474 = vadd.f32 %v3281, %v3473
    %v3475 = vpop.f32.mrf.mxu0
    %v3476 = vadd.f32 %v3283, %v3475
    %v3477 = vpop.f32.mrf.mxu0
    %v3478 = vadd.f32 %v3285, %v3477
    %v3479 = vpop.f32.mrf.mxu0
    %v3480 = vadd.f32 %v3287, %v3479
    %3481 = vmatprep.mubr.bf16.mxu0 0
    %3482 = vmatmul.mubr.bf16.gmra.mxu0 %v3075
    %v3483 = vpop.f32.mrf.mxu0
    %v3484 = vadd.f32 %v3291, %v3483
    %v3485 = vpop.f32.mrf.mxu0
    %v3486 = vadd.f32 %v3293, %v3485
    %v3487 = vpop.f32.mrf.mxu0
    %v3488 = vadd.f32 %v3295, %v3487
    %v3489 = vpop.f32.mrf.mxu0
    %v3490 = vadd.f32 %v3297, %v3489
    %3491 = vmatprep.mubr.bf16.mxu0 0
    %3492 = vmatmul.mubr.bf16.gmra.mxu0 %v3076
    %v3493 = vpop.f32.mrf.mxu0
    %v3494 = vadd.f32 %v3301, %v3493
    %v3495 = vpop.f32.mrf.mxu0
    %v3496 = vadd.f32 %v3303, %v3495
    %v3497 = vpop.f32.mrf.mxu0
    %v3498 = vadd.f32 %v3305, %v3497
    %v3499 = vpop.f32.mrf.mxu0
    %v3500 = vadd.f32 %v3307, %v3499
    %3501 = vmatprep.mubr.bf16.mxu0 0
    %3502 = vmatmul.mubr.bf16.gmra.mxu0 %v3077
    %v3503 = vpop.f32.mrf.mxu0
    %v3504 = vadd.f32 %v3311, %v3503
    %v3505 = vpop.f32.mrf.mxu0
    %v3506 = vadd.f32 %v3313, %v3505
    %v3507 = vpop.f32.mrf.mxu0
    %v3508 = vadd.f32 %v3315, %v3507
    %v3509 = vpop.f32.mrf.mxu0
    %v3510 = vadd.f32 %v3317, %v3509
    %3511 = vmatprep.mubr.bf16.mxu0 0
    %3512 = vmatmul.mubr.bf16.gmra.mxu0 %v3078
    %v3513 = vpop.f32.mrf.mxu0
    %v3514 = vadd.f32 %v3321, %v3513
    %v3515 = vpop.f32.mrf.mxu0
    %v3516 = vadd.f32 %v3323, %v3515
    %v3517 = vpop.f32.mrf.mxu0
    %v3518 = vadd.f32 %v3325, %v3517
    %v3519 = vpop.f32.mrf.mxu0
    %v3520 = vadd.f32 %v3327, %v3519
    %3521 = vdwg.mxu0
    %v3522 = vld [vmem:[#allocation2 + $0x7] sm:$0xff]
    %v3523 = vld [vmem:[#allocation2 + $0x1f] sm:$0xff]
    %v3524 = vld [vmem:[#allocation2 + $0x37] sm:$0xff]
    %v3525 = vld [vmem:[#allocation2 + $0x4f] sm:$0xff]
    %v3526 = vld [vmem:[#allocation2 + $0x67] sm:$0xff]
    %v3527 = vld [vmem:[#allocation2 + $0x7f] sm:$0xff]
    %v3528 = vld [vmem:[#allocation2 + $0x97] sm:$0xff]
    %v3529 = vld [vmem:[#allocation2 + $0xaf] sm:$0xff]
    %v3530 = vld [vmem:[#allocation2 + $0xc7] sm:$0xff]
    %v3531 = vld [vmem:[#allocation2 + $0xdf] sm:$0xff]
    %v3532 = vld [vmem:[#allocation2 + $0xf7] sm:$0xff]
    %v3533 = vld [vmem:[#allocation2 + $0x10f] sm:$0xff]
    %v3534 = vld [vmem:[#allocation2 + $0x127] sm:$0xff]
    %v3535 = vld [vmem:[#allocation2 + $0x13f] sm:$0xff]
    %v3536 = vld [vmem:[#allocation2 + $0x157] sm:$0xff]
    %v3537 = vld [vmem:[#allocation2 + $0x16f] sm:$0xff]
    %v3538 = vpack.c.bf16 %v3523, %v3522
    %v3539 = vpack.c.bf16 %v3525, %v3524
    %v3540 = vpack.c.bf16 %v3527, %v3526
    %v3541 = vpack.c.bf16 %v3529, %v3528
    %v3542 = vpack.c.bf16 %v3531, %v3530
    %v3543 = vpack.c.bf16 %v3533, %v3532
    %v3544 = vpack.c.bf16 %v3535, %v3534
    %v3545 = vpack.c.bf16 %v3537, %v3536
    %s3546 = scalar_lea.vmem %s5, 256
    %v3547 = vld [vmem:[%s3546] sm:$0xff]
    %v3548 = vld [vmem:[%s3546 + $0x8] sm:$0xff]
    %v3549 = vld [vmem:[%s3546 + $0x10] sm:$0xff]
    %v3550 = vld [vmem:[%s3546 + $0x18] sm:$0xff]
    %v3551 = vld [vmem:[%s3546 + $0x20] sm:$0xff]
    %v3552 = vld [vmem:[%s3546 + $0x28] sm:$0xff]
    %v3553 = vld [vmem:[%s3546 + $0x30] sm:$0xff]
    %v3554 = vld [vmem:[%s3546 + $0x38] sm:$0xff]
    %v3555 = vld [vmem:[%s3546 + $0x40] sm:$0xff]
    %v3556 = vld [vmem:[%s3546 + $0x48] sm:$0xff]
    %v3557 = vld [vmem:[%s3546 + $0x50] sm:$0xff]
    %v3558 = vld [vmem:[%s3546 + $0x58] sm:$0xff]
    %v3559 = vld [vmem:[%s3546 + $0x60] sm:$0xff]
    %v3560 = vld [vmem:[%s3546 + $0x68] sm:$0xff]
    %v3561 = vld [vmem:[%s3546 + $0x70] sm:$0xff]
    %v3562 = vld [vmem:[%s3546 + $0x78] sm:$0xff]
    %v3579 = vunpack.c.l.b16 %v3547
    %v3580 = vunpack.c.h.b16 %v3547
    %v3581 = vunpack.c.l.b16 %v3548
    %v3582 = vunpack.c.h.b16 %v3548
    %v3583 = vunpack.c.l.b16 %v3549
    %v3584 = vunpack.c.h.b16 %v3549
    %v3585 = vunpack.c.l.b16 %v3550
    %v3586 = vunpack.c.h.b16 %v3550
    %v3587 = vunpack.c.l.b16 %v3551
    %v3588 = vunpack.c.h.b16 %v3551
    %v3589 = vunpack.c.l.b16 %v3552
    %v3590 = vunpack.c.h.b16 %v3552
    %v3591 = vunpack.c.l.b16 %v3553
    %v3592 = vunpack.c.h.b16 %v3553
    %v3593 = vunpack.c.l.b16 %v3554
    %v3594 = vunpack.c.h.b16 %v3554
    %v3595 = vunpack.c.l.b16 %v3555
    %v3596 = vunpack.c.h.b16 %v3555
    %v3597 = vunpack.c.l.b16 %v3556
    %v3598 = vunpack.c.h.b16 %v3556
    %v3599 = vunpack.c.l.b16 %v3557
    %v3600 = vunpack.c.h.b16 %v3557
    %v3601 = vunpack.c.l.b16 %v3558
    %v3602 = vunpack.c.h.b16 %v3558
    %v3603 = vunpack.c.l.b16 %v3559
    %v3604 = vunpack.c.h.b16 %v3559
    %v3605 = vunpack.c.l.b16 %v3560
    %v3606 = vunpack.c.h.b16 %v3560
    %v3607 = vunpack.c.l.b16 %v3561
    %v3608 = vunpack.c.h.b16 %v3561
    %v3609 = vunpack.c.l.b16 %v3562
    %v3610 = vunpack.c.h.b16 %v3562
    %v3611 = vpack.c.b16 %v3581, %v3579
    %v3612 = vpack.c.b16 %v3582, %v3580
    %v3613 = vpack.c.b16 %v3585, %v3583
    %v3614 = vpack.c.b16 %v3586, %v3584
    %v3615 = vpack.c.b16 %v3589, %v3587
    %v3616 = vpack.c.b16 %v3590, %v3588
    %v3617 = vpack.c.b16 %v3593, %v3591
    %v3618 = vpack.c.b16 %v3594, %v3592
    %v3619 = vpack.c.b16 %v3597, %v3595
    %v3620 = vpack.c.b16 %v3598, %v3596
    %v3621 = vpack.c.b16 %v3601, %v3599
    %v3622 = vpack.c.b16 %v3602, %v3600
    %v3623 = vpack.c.b16 %v3605, %v3603
    %v3624 = vpack.c.b16 %v3606, %v3604
    %v3625 = vpack.c.b16 %v3609, %v3607
    %v3626 = vpack.c.b16 %v3610, %v3608
    %3643 = vmatprep.subr.bf16.mxu0 %v3626
    %3644 = vmatpush1.bf16.msra.mxu0 %v3625
    %3645 = vmatprep.subr.bf16.mxu0 %v3624
    %3646 = vmatpush1.bf16.msra.mxu0 %v3623
    %3647 = vmatprep.subr.bf16.mxu0 %v3622
    %3648 = vmatpush1.bf16.msra.mxu0 %v3621
    %3649 = vmatprep.subr.bf16.mxu0 %v3620
    %3650 = vmatpush1.bf16.msra.mxu0 %v3619
    %3651 = vmatprep.subr.bf16.mxu0 %v3618
    %3652 = vmatpush1.bf16.msra.mxu0 %v3617
    %3653 = vmatprep.subr.bf16.mxu0 %v3616
    %3654 = vmatpush1.bf16.msra.mxu0 %v3615
    %3655 = vmatprep.subr.bf16.mxu0 %v3614
    %3656 = vmatpush1.bf16.msra.mxu0 %v3613
    %3657 = vmatprep.subr.bf16.mxu0 %v3612
    %3658 = vmatpush1.bf16.msra.mxu0 %v3611
    %3659 = vmatprep.subr.bf16.mxu0 0
    %3660 = vmatpush2.bf16.msra.mxu0 0
    %3661 = vmatprep.subr.bf16.mxu0 0
    %3662 = vmatpush2.bf16.msra.mxu0 0
    %3663 = vmatprep.subr.bf16.mxu0 0
    %3664 = vmatpush2.bf16.msra.mxu0 0
    %3665 = vmatprep.subr.bf16.mxu0 0
    %3666 = vmatpush2.bf16.msra.mxu0 0
    %3667 = vmatprep.subr.bf16.mxu0 0
    %3668 = vmatpush2.bf16.msra.mxu0 0
    %3669 = vmatprep.subr.bf16.mxu0 0
    %3670 = vmatpush2.bf16.msra.mxu0 0
    %3671 = vmatprep.subr.bf16.mxu0 0
    %3672 = vmatpush2.bf16.msra.mxu0 0
    %3673 = vmatprep.subr.bf16.mxu0 0
    %3674 = vmatpush2.bf16.msra.mxu0 0
    %3675 = vmatprep.mubr.bf16.mxu0 0
    %3676 = vmatmul.mubr.bf16.gmra.mxu0 %v3538
    %v3677 = vpop.f32.mrf.mxu0
    %v3678 = vadd.f32 0.0, %v3677
    %v3679 = vpop.f32.mrf.mxu0
    %v3680 = vadd.f32 0.0, %v3679
    %v3681 = vpop.f32.mrf.mxu0
    %v3682 = vadd.f32 0.0, %v3681
    %v3683 = vpop.f32.mrf.mxu0
    %v3684 = vadd.f32 0.0, %v3683
    %3685 = vmatprep.mubr.bf16.mxu0 0
    %3686 = vmatmul.mubr.bf16.gmra.mxu0 %v3539
    %v3687 = vpop.f32.mrf.mxu0
    %v3688 = vadd.f32 0.0, %v3687
    %v3689 = vpop.f32.mrf.mxu0
    %v3690 = vadd.f32 0.0, %v3689
    %v3691 = vpop.f32.mrf.mxu0
    %v3692 = vadd.f32 0.0, %v3691
    %v3693 = vpop.f32.mrf.mxu0
    %v3694 = vadd.f32 0.0, %v3693
    %3695 = vmatprep.mubr.bf16.mxu0 0
    %3696 = vmatmul.mubr.bf16.gmra.mxu0 %v3540
    %v3697 = vpop.f32.mrf.mxu0
    %v3698 = vadd.f32 0.0, %v3697
    %v3699 = vpop.f32.mrf.mxu0
    %v3700 = vadd.f32 0.0, %v3699
    %v3701 = vpop.f32.mrf.mxu0
    %v3702 = vadd.f32 0.0, %v3701
    %v3703 = vpop.f32.mrf.mxu0
    %v3704 = vadd.f32 0.0, %v3703
    %3705 = vmatprep.mubr.bf16.mxu0 0
    %3706 = vmatmul.mubr.bf16.gmra.mxu0 %v3541
    %v3707 = vpop.f32.mrf.mxu0
    %v3708 = vadd.f32 0.0, %v3707
    %v3709 = vpop.f32.mrf.mxu0
    %v3710 = vadd.f32 0.0, %v3709
    %v3711 = vpop.f32.mrf.mxu0
    %v3712 = vadd.f32 0.0, %v3711
    %v3713 = vpop.f32.mrf.mxu0
    %v3714 = vadd.f32 0.0, %v3713
    %3715 = vmatprep.mubr.bf16.mxu0 0
    %3716 = vmatmul.mubr.bf16.gmra.mxu0 %v3542
    %v3717 = vpop.f32.mrf.mxu0
    %v3718 = vadd.f32 0.0, %v3717
    %v3719 = vpop.f32.mrf.mxu0
    %v3720 = vadd.f32 0.0, %v3719
    %v3721 = vpop.f32.mrf.mxu0
    %v3722 = vadd.f32 0.0, %v3721
    %v3723 = vpop.f32.mrf.mxu0
    %v3724 = vadd.f32 0.0, %v3723
    %3725 = vmatprep.mubr.bf16.mxu0 0
    %3726 = vmatmul.mubr.bf16.gmra.mxu0 %v3543
    %v3727 = vpop.f32.mrf.mxu0
    %v3728 = vadd.f32 0.0, %v3727
    %v3729 = vpop.f32.mrf.mxu0
    %v3730 = vadd.f32 0.0, %v3729
    %v3731 = vpop.f32.mrf.mxu0
    %v3732 = vadd.f32 0.0, %v3731
    %v3733 = vpop.f32.mrf.mxu0
    %v3734 = vadd.f32 0.0, %v3733
    %3735 = vmatprep.mubr.bf16.mxu0 0
    %3736 = vmatmul.mubr.bf16.gmra.mxu0 %v3544
    %v3737 = vpop.f32.mrf.mxu0
    %v3738 = vadd.f32 0.0, %v3737
    %v3739 = vpop.f32.mrf.mxu0
    %v3740 = vadd.f32 0.0, %v3739
    %v3741 = vpop.f32.mrf.mxu0
    %v3742 = vadd.f32 0.0, %v3741
    %v3743 = vpop.f32.mrf.mxu0
    %v3744 = vadd.f32 0.0, %v3743
    %3745 = vmatprep.mubr.bf16.mxu0 0
    %3746 = vmatmul.mubr.bf16.gmra.mxu0 %v3545
    %v3747 = vpop.f32.mrf.mxu0
    %v3748 = vadd.f32 0.0, %v3747
    %v3749 = vpop.f32.mrf.mxu0
    %v3750 = vadd.f32 0.0, %v3749
    %v3751 = vpop.f32.mrf.mxu0
    %v3752 = vadd.f32 0.0, %v3751
    %v3753 = vpop.f32.mrf.mxu0
    %v3754 = vadd.f32 0.0, %v3753
    %3755 = vdwg.mxu0
    %v3756 = vadd.f32 %v3444, %v3678
    %v3757 = vadd.f32 %v3446, %v3680
    %v3758 = vadd.f32 %v3448, %v3682
    %v3759 = vadd.f32 %v3450, %v3684
    %v3760 = vadd.f32 %v3454, %v3688
    %v3761 = vadd.f32 %v3456, %v3690
    %v3762 = vadd.f32 %v3458, %v3692
    %v3763 = vadd.f32 %v3460, %v3694
    %v3764 = vadd.f32 %v3464, %v3698
    %v3765 = vadd.f32 %v3466, %v3700
    %v3766 = vadd.f32 %v3468, %v3702
    %v3767 = vadd.f32 %v3470, %v3704
    %v3768 = vadd.f32 %v3474, %v3708
    %v3769 = vadd.f32 %v3476, %v3710
    %v3770 = vadd.f32 %v3478, %v3712
    %v3771 = vadd.f32 %v3480, %v3714
    %v3772 = vadd.f32 %v3484, %v3718
    %v3773 = vadd.f32 %v3486, %v3720
    %v3774 = vadd.f32 %v3488, %v3722
    %v3775 = vadd.f32 %v3490, %v3724
    %v3776 = vadd.f32 %v3494, %v3728
    %v3777 = vadd.f32 %v3496, %v3730
    %v3778 = vadd.f32 %v3498, %v3732
    %v3779 = vadd.f32 %v3500, %v3734
    %v3780 = vadd.f32 %v3504, %v3738
    %v3781 = vadd.f32 %v3506, %v3740
    %v3782 = vadd.f32 %v3508, %v3742
    %v3783 = vadd.f32 %v3510, %v3744
    %v3784 = vadd.f32 %v3514, %v3748
    %v3785 = vadd.f32 %v3516, %v3750
    %v3786 = vadd.f32 %v3518, %v3752
    %v3787 = vadd.f32 %v3520, %v3754
    %v3788 = vld [vmem:[#allocation2 + $0x8] sm:$0xff]
    %v3789 = vld [vmem:[#allocation2 + $0x20] sm:$0xff]
    %v3790 = vld [vmem:[#allocation2 + $0x38] sm:$0xff]
    %v3791 = vld [vmem:[#allocation2 + $0x50] sm:$0xff]
    %v3792 = vld [vmem:[#allocation2 + $0x68] sm:$0xff]
    %v3793 = vld [vmem:[#allocation2 + $0x80] sm:$0xff]
    %v3794 = vld [vmem:[#allocation2 + $0x98] sm:$0xff]
    %v3795 = vld [vmem:[#allocation2 + $0xb0] sm:$0xff]
    %v3796 = vld [vmem:[#allocation2 + $0xc8] sm:$0xff]
    %v3797 = vld [vmem:[#allocation2 + $0xe0] sm:$0xff]
    %v3798 = vld [vmem:[#allocation2 + $0xf8] sm:$0xff]
    %v3799 = vld [vmem:[#allocation2 + $0x110] sm:$0xff]
    %v3800 = vld [vmem:[#allocation2 + $0x128] sm:$0xff]
    %v3801 = vld [vmem:[#allocation2 + $0x140] sm:$0xff]
    %v3802 = vld [vmem:[#allocation2 + $0x158] sm:$0xff]
    %v3803 = vld [vmem:[#allocation2 + $0x170] sm:$0xff]
    %v3804 = vpack.c.bf16 %v3789, %v3788
    %v3805 = vpack.c.bf16 %v3791, %v3790
    %v3806 = vpack.c.bf16 %v3793, %v3792
    %v3807 = vpack.c.bf16 %v3795, %v3794
    %v3808 = vpack.c.bf16 %v3797, %v3796
    %v3809 = vpack.c.bf16 %v3799, %v3798
    %v3810 = vpack.c.bf16 %v3801, %v3800
    %v3811 = vpack.c.bf16 %v3803, %v3802
    %s3812 = scalar_lea.vmem %s5, 384
    %v3813 = vld [vmem:[%s3812] sm:$0xff]
    %v3814 = vld [vmem:[%s3812 + $0x8] sm:$0xff]
    %v3815 = vld [vmem:[%s3812 + $0x10] sm:$0xff]
    %v3816 = vld [vmem:[%s3812 + $0x18] sm:$0xff]
    %v3817 = vld [vmem:[%s3812 + $0x20] sm:$0xff]
    %v3818 = vld [vmem:[%s3812 + $0x28] sm:$0xff]
    %v3819 = vld [vmem:[%s3812 + $0x30] sm:$0xff]
    %v3820 = vld [vmem:[%s3812 + $0x38] sm:$0xff]
    %v3821 = vld [vmem:[%s3812 + $0x40] sm:$0xff]
    %v3822 = vld [vmem:[%s3812 + $0x48] sm:$0xff]
    %v3823 = vld [vmem:[%s3812 + $0x50] sm:$0xff]
    %v3824 = vld [vmem:[%s3812 + $0x58] sm:$0xff]
    %v3825 = vld [vmem:[%s3812 + $0x60] sm:$0xff]
    %v3826 = vld [vmem:[%s3812 + $0x68] sm:$0xff]
    %v3827 = vld [vmem:[%s3812 + $0x70] sm:$0xff]
    %v3828 = vld [vmem:[%s3812 + $0x78] sm:$0xff]
    %v3845 = vunpack.c.l.b16 %v3813
    %v3846 = vunpack.c.h.b16 %v3813
    %v3847 = vunpack.c.l.b16 %v3814
    %v3848 = vunpack.c.h.b16 %v3814
    %v3849 = vunpack.c.l.b16 %v3815
    %v3850 = vunpack.c.h.b16 %v3815
    %v3851 = vunpack.c.l.b16 %v3816
    %v3852 = vunpack.c.h.b16 %v3816
    %v3853 = vunpack.c.l.b16 %v3817
    %v3854 = vunpack.c.h.b16 %v3817
    %v3855 = vunpack.c.l.b16 %v3818
    %v3856 = vunpack.c.h.b16 %v3818
    %v3857 = vunpack.c.l.b16 %v3819
    %v3858 = vunpack.c.h.b16 %v3819
    %v3859 = vunpack.c.l.b16 %v3820
    %v3860 = vunpack.c.h.b16 %v3820
    %v3861 = vunpack.c.l.b16 %v3821
    %v3862 = vunpack.c.h.b16 %v3821
    %v3863 = vunpack.c.l.b16 %v3822
    %v3864 = vunpack.c.h.b16 %v3822
    %v3865 = vunpack.c.l.b16 %v3823
    %v3866 = vunpack.c.h.b16 %v3823
    %v3867 = vunpack.c.l.b16 %v3824
    %v3868 = vunpack.c.h.b16 %v3824
    %v3869 = vunpack.c.l.b16 %v3825
    %v3870 = vunpack.c.h.b16 %v3825
    %v3871 = vunpack.c.l.b16 %v3826
    %v3872 = vunpack.c.h.b16 %v3826
    %v3873 = vunpack.c.l.b16 %v3827
    %v3874 = vunpack.c.h.b16 %v3827
    %v3875 = vunpack.c.l.b16 %v3828
    %v3876 = vunpack.c.h.b16 %v3828
    %v3877 = vpack.c.b16 %v3847, %v3845
    %v3878 = vpack.c.b16 %v3848, %v3846
    %v3879 = vpack.c.b16 %v3851, %v3849
    %v3880 = vpack.c.b16 %v3852, %v3850
    %v3881 = vpack.c.b16 %v3855, %v3853
    %v3882 = vpack.c.b16 %v3856, %v3854
    %v3883 = vpack.c.b16 %v3859, %v3857
    %v3884 = vpack.c.b16 %v3860, %v3858
    %v3885 = vpack.c.b16 %v3863, %v3861
    %v3886 = vpack.c.b16 %v3864, %v3862
    %v3887 = vpack.c.b16 %v3867, %v3865
    %v3888 = vpack.c.b16 %v3868, %v3866
    %v3889 = vpack.c.b16 %v3871, %v3869
    %v3890 = vpack.c.b16 %v3872, %v3870
    %v3891 = vpack.c.b16 %v3875, %v3873
    %v3892 = vpack.c.b16 %v3876, %v3874
    %3909 = vmatprep.subr.bf16.mxu0 %v3892
    %3910 = vmatpush1.bf16.msra.mxu0 %v3891
    %3911 = vmatprep.subr.bf16.mxu0 %v3890
    %3912 = vmatpush1.bf16.msra.mxu0 %v3889
    %3913 = vmatprep.subr.bf16.mxu0 %v3888
    %3914 = vmatpush1.bf16.msra.mxu0 %v3887
    %3915 = vmatprep.subr.bf16.mxu0 %v3886
    %3916 = vmatpush1.bf16.msra.mxu0 %v3885
    %3917 = vmatprep.subr.bf16.mxu0 %v3884
    %3918 = vmatpush1.bf16.msra.mxu0 %v3883
    %3919 = vmatprep.subr.bf16.mxu0 %v3882
    %3920 = vmatpush1.bf16.msra.mxu0 %v3881
    %3921 = vmatprep.subr.bf16.mxu0 %v3880
    %3922 = vmatpush1.bf16.msra.mxu0 %v3879
    %3923 = vmatprep.subr.bf16.mxu0 %v3878
    %3924 = vmatpush1.bf16.msra.mxu0 %v3877
    %3925 = vmatprep.subr.bf16.mxu0 0
    %3926 = vmatpush2.bf16.msra.mxu0 0
    %3927 = vmatprep.subr.bf16.mxu0 0
    %3928 = vmatpush2.bf16.msra.mxu0 0
    %3929 = vmatprep.subr.bf16.mxu0 0
    %3930 = vmatpush2.bf16.msra.mxu0 0
    %3931 = vmatprep.subr.bf16.mxu0 0
    %3932 = vmatpush2.bf16.msra.mxu0 0
    %3933 = vmatprep.subr.bf16.mxu0 0
    %3934 = vmatpush2.bf16.msra.mxu0 0
    %3935 = vmatprep.subr.bf16.mxu0 0
    %3936 = vmatpush2.bf16.msra.mxu0 0
    %3937 = vmatprep.subr.bf16.mxu0 0
    %3938 = vmatpush2.bf16.msra.mxu0 0
    %3939 = vmatprep.subr.bf16.mxu0 0
    %3940 = vmatpush2.bf16.msra.mxu0 0
    %3941 = vmatprep.mubr.bf16.mxu0 0
    %3942 = vmatmul.mubr.bf16.gmra.mxu0 %v3804
    %v3943 = vpop.f32.mrf.mxu0
    %v3944 = vadd.f32 0.0, %v3943
    %v3945 = vpop.f32.mrf.mxu0
    %v3946 = vadd.f32 0.0, %v3945
    %v3947 = vpop.f32.mrf.mxu0
    %v3948 = vadd.f32 0.0, %v3947
    %v3949 = vpop.f32.mrf.mxu0
    %v3950 = vadd.f32 0.0, %v3949
    %3951 = vmatprep.mubr.bf16.mxu0 0
    %3952 = vmatmul.mubr.bf16.gmra.mxu0 %v3805
    %v3953 = vpop.f32.mrf.mxu0
    %v3954 = vadd.f32 0.0, %v3953
    %v3955 = vpop.f32.mrf.mxu0
    %v3956 = vadd.f32 0.0, %v3955
    %v3957 = vpop.f32.mrf.mxu0
    %v3958 = vadd.f32 0.0, %v3957
    %v3959 = vpop.f32.mrf.mxu0
    %v3960 = vadd.f32 0.0, %v3959
    %3961 = vmatprep.mubr.bf16.mxu0 0
    %3962 = vmatmul.mubr.bf16.gmra.mxu0 %v3806
    %v3963 = vpop.f32.mrf.mxu0
    %v3964 = vadd.f32 0.0, %v3963
    %v3965 = vpop.f32.mrf.mxu0
    %v3966 = vadd.f32 0.0, %v3965
    %v3967 = vpop.f32.mrf.mxu0
    %v3968 = vadd.f32 0.0, %v3967
    %v3969 = vpop.f32.mrf.mxu0
    %v3970 = vadd.f32 0.0, %v3969
    %3971 = vmatprep.mubr.bf16.mxu0 0
    %3972 = vmatmul.mubr.bf16.gmra.mxu0 %v3807
    %v3973 = vpop.f32.mrf.mxu0
    %v3974 = vadd.f32 0.0, %v3973
    %v3975 = vpop.f32.mrf.mxu0
    %v3976 = vadd.f32 0.0, %v3975
    %v3977 = vpop.f32.mrf.mxu0
    %v3978 = vadd.f32 0.0, %v3977
    %v3979 = vpop.f32.mrf.mxu0
    %v3980 = vadd.f32 0.0, %v3979
    %3981 = vmatprep.mubr.bf16.mxu0 0
    %3982 = vmatmul.mubr.bf16.gmra.mxu0 %v3808
    %v3983 = vpop.f32.mrf.mxu0
    %v3984 = vadd.f32 0.0, %v3983
    %v3985 = vpop.f32.mrf.mxu0
    %v3986 = vadd.f32 0.0, %v3985
    %v3987 = vpop.f32.mrf.mxu0
    %v3988 = vadd.f32 0.0, %v3987
    %v3989 = vpop.f32.mrf.mxu0
    %v3990 = vadd.f32 0.0, %v3989
    %3991 = vmatprep.mubr.bf16.mxu0 0
    %3992 = vmatmul.mubr.bf16.gmra.mxu0 %v3809
    %v3993 = vpop.f32.mrf.mxu0
    %v3994 = vadd.f32 0.0, %v3993
    %v3995 = vpop.f32.mrf.mxu0
    %v3996 = vadd.f32 0.0, %v3995
    %v3997 = vpop.f32.mrf.mxu0
    %v3998 = vadd.f32 0.0, %v3997
    %v3999 = vpop.f32.mrf.mxu0
    %v4000 = vadd.f32 0.0, %v3999
    %4001 = vmatprep.mubr.bf16.mxu0 0
    %4002 = vmatmul.mubr.bf16.gmra.mxu0 %v3810
    %v4003 = vpop.f32.mrf.mxu0
    %v4004 = vadd.f32 0.0, %v4003
    %v4005 = vpop.f32.mrf.mxu0
    %v4006 = vadd.f32 0.0, %v4005
    %v4007 = vpop.f32.mrf.mxu0
    %v4008 = vadd.f32 0.0, %v4007
    %v4009 = vpop.f32.mrf.mxu0
    %v4010 = vadd.f32 0.0, %v4009
    %4011 = vmatprep.mubr.bf16.mxu0 0
    %4012 = vmatmul.mubr.bf16.gmra.mxu0 %v3811
    %v4013 = vpop.f32.mrf.mxu0
    %v4014 = vadd.f32 0.0, %v4013
    %v4015 = vpop.f32.mrf.mxu0
    %v4016 = vadd.f32 0.0, %v4015
    %v4017 = vpop.f32.mrf.mxu0
    %v4018 = vadd.f32 0.0, %v4017
    %v4019 = vpop.f32.mrf.mxu0
    %v4020 = vadd.f32 0.0, %v4019
    %4021 = vdwg.mxu0
    %v4022 = vadd.f32 %v3756, %v3944
    %v4023 = vadd.f32 %v3757, %v3946
    %v4024 = vadd.f32 %v3758, %v3948
    %v4025 = vadd.f32 %v3759, %v3950
    %v4026 = vadd.f32 %v3760, %v3954
    %v4027 = vadd.f32 %v3761, %v3956
    %v4028 = vadd.f32 %v3762, %v3958
    %v4029 = vadd.f32 %v3763, %v3960
    %v4030 = vadd.f32 %v3764, %v3964
    %v4031 = vadd.f32 %v3765, %v3966
    %v4032 = vadd.f32 %v3766, %v3968
    %v4033 = vadd.f32 %v3767, %v3970
    %v4034 = vadd.f32 %v3768, %v3974
    %v4035 = vadd.f32 %v3769, %v3976
    %v4036 = vadd.f32 %v3770, %v3978
    %v4037 = vadd.f32 %v3771, %v3980
    %v4038 = vadd.f32 %v3772, %v3984
    %v4039 = vadd.f32 %v3773, %v3986
    %v4040 = vadd.f32 %v3774, %v3988
    %v4041 = vadd.f32 %v3775, %v3990
    %v4042 = vadd.f32 %v3776, %v3994
    %v4043 = vadd.f32 %v3777, %v3996
    %v4044 = vadd.f32 %v3778, %v3998
    %v4045 = vadd.f32 %v3779, %v4000
    %v4046 = vadd.f32 %v3780, %v4004
    %v4047 = vadd.f32 %v3781, %v4006
    %v4048 = vadd.f32 %v3782, %v4008
    %v4049 = vadd.f32 %v3783, %v4010
    %v4050 = vadd.f32 %v3784, %v4014
    %v4051 = vadd.f32 %v3785, %v4016
    %v4052 = vadd.f32 %v3786, %v4018
    %v4053 = vadd.f32 %v3787, %v4020
    %v4054 = vld [vmem:[#allocation2 + $0x9] sm:$0xff]
    %v4055 = vld [vmem:[#allocation2 + $0x21] sm:$0xff]
    %v4056 = vld [vmem:[#allocation2 + $0x39] sm:$0xff]
    %v4057 = vld [vmem:[#allocation2 + $0x51] sm:$0xff]
    %v4058 = vld [vmem:[#allocation2 + $0x69] sm:$0xff]
    %v4059 = vld [vmem:[#allocation2 + $0x81] sm:$0xff]
    %v4060 = vld [vmem:[#allocation2 + $0x99] sm:$0xff]
    %v4061 = vld [vmem:[#allocation2 + $0xb1] sm:$0xff]
    %v4062 = vld [vmem:[#allocation2 + $0xc9] sm:$0xff]
    %v4063 = vld [vmem:[#allocation2 + $0xe1] sm:$0xff]
    %v4064 = vld [vmem:[#allocation2 + $0xf9] sm:$0xff]
    %v4065 = vld [vmem:[#allocation2 + $0x111] sm:$0xff]
    %v4066 = vld [vmem:[#allocation2 + $0x129] sm:$0xff]
    %v4067 = vld [vmem:[#allocation2 + $0x141] sm:$0xff]
    %v4068 = vld [vmem:[#allocation2 + $0x159] sm:$0xff]
    %v4069 = vld [vmem:[#allocation2 + $0x171] sm:$0xff]
    %v4070 = vpack.c.bf16 %v4055, %v4054
    %v4071 = vpack.c.bf16 %v4057, %v4056
    %v4072 = vpack.c.bf16 %v4059, %v4058
    %v4073 = vpack.c.bf16 %v4061, %v4060
    %v4074 = vpack.c.bf16 %v4063, %v4062
    %v4075 = vpack.c.bf16 %v4065, %v4064
    %v4076 = vpack.c.bf16 %v4067, %v4066
    %v4077 = vpack.c.bf16 %v4069, %v4068
    %s4078 = scalar_lea.vmem %s5, 512
    %v4079 = vld [vmem:[%s4078] sm:$0xff]
    %v4080 = vld [vmem:[%s4078 + $0x8] sm:$0xff]
    %v4081 = vld [vmem:[%s4078 + $0x10] sm:$0xff]
    %v4082 = vld [vmem:[%s4078 + $0x18] sm:$0xff]
    %v4083 = vld [vmem:[%s4078 + $0x20] sm:$0xff]
    %v4084 = vld [vmem:[%s4078 + $0x28] sm:$0xff]
    %v4085 = vld [vmem:[%s4078 + $0x30] sm:$0xff]
    %v4086 = vld [vmem:[%s4078 + $0x38] sm:$0xff]
    %v4087 = vld [vmem:[%s4078 + $0x40] sm:$0xff]
    %v4088 = vld [vmem:[%s4078 + $0x48] sm:$0xff]
    %v4089 = vld [vmem:[%s4078 + $0x50] sm:$0xff]
    %v4090 = vld [vmem:[%s4078 + $0x58] sm:$0xff]
    %v4091 = vld [vmem:[%s4078 + $0x60] sm:$0xff]
    %v4092 = vld [vmem:[%s4078 + $0x68] sm:$0xff]
    %v4093 = vld [vmem:[%s4078 + $0x70] sm:$0xff]
    %v4094 = vld [vmem:[%s4078 + $0x78] sm:$0xff]
    %v4111 = vunpack.c.l.b16 %v4079
    %v4112 = vunpack.c.h.b16 %v4079
    %v4113 = vunpack.c.l.b16 %v4080
    %v4114 = vunpack.c.h.b16 %v4080
    %v4115 = vunpack.c.l.b16 %v4081
    %v4116 = vunpack.c.h.b16 %v4081
    %v4117 = vunpack.c.l.b16 %v4082
    %v4118 = vunpack.c.h.b16 %v4082
    %v4119 = vunpack.c.l.b16 %v4083
    %v4120 = vunpack.c.h.b16 %v4083
    %v4121 = vunpack.c.l.b16 %v4084
    %v4122 = vunpack.c.h.b16 %v4084
    %v4123 = vunpack.c.l.b16 %v4085
    %v4124 = vunpack.c.h.b16 %v4085
    %v4125 = vunpack.c.l.b16 %v4086
    %v4126 = vunpack.c.h.b16 %v4086
    %v4127 = vunpack.c.l.b16 %v4087
    %v4128 = vunpack.c.h.b16 %v4087
    %v4129 = vunpack.c.l.b16 %v4088
    %v4130 = vunpack.c.h.b16 %v4088
    %v4131 = vunpack.c.l.b16 %v4089
    %v4132 = vunpack.c.h.b16 %v4089
    %v4133 = vunpack.c.l.b16 %v4090
    %v4134 = vunpack.c.h.b16 %v4090
    %v4135 = vunpack.c.l.b16 %v4091
    %v4136 = vunpack.c.h.b16 %v4091
    %v4137 = vunpack.c.l.b16 %v4092
    %v4138 = vunpack.c.h.b16 %v4092
    %v4139 = vunpack.c.l.b16 %v4093
    %v4140 = vunpack.c.h.b16 %v4093
    %v4141 = vunpack.c.l.b16 %v4094
    %v4142 = vunpack.c.h.b16 %v4094
    %v4143 = vpack.c.b16 %v4113, %v4111
    %v4144 = vpack.c.b16 %v4114, %v4112
    %v4145 = vpack.c.b16 %v4117, %v4115
    %v4146 = vpack.c.b16 %v4118, %v4116
    %v4147 = vpack.c.b16 %v4121, %v4119
    %v4148 = vpack.c.b16 %v4122, %v4120
    %v4149 = vpack.c.b16 %v4125, %v4123
    %v4150 = vpack.c.b16 %v4126, %v4124
    %v4151 = vpack.c.b16 %v4129, %v4127
    %v4152 = vpack.c.b16 %v4130, %v4128
    %v4153 = vpack.c.b16 %v4133, %v4131
    %v4154 = vpack.c.b16 %v4134, %v4132
    %v4155 = vpack.c.b16 %v4137, %v4135
    %v4156 = vpack.c.b16 %v4138, %v4136
    %v4157 = vpack.c.b16 %v4141, %v4139
    %v4158 = vpack.c.b16 %v4142, %v4140
    %4175 = vmatprep.subr.bf16.mxu0 %v4158
    %4176 = vmatpush1.bf16.msra.mxu0 %v4157
    %4177 = vmatprep.subr.bf16.mxu0 %v4156
    %4178 = vmatpush1.bf16.msra.mxu0 %v4155
    %4179 = vmatprep.subr.bf16.mxu0 %v4154
    %4180 = vmatpush1.bf16.msra.mxu0 %v4153
    %4181 = vmatprep.subr.bf16.mxu0 %v4152
    %4182 = vmatpush1.bf16.msra.mxu0 %v4151
    %4183 = vmatprep.subr.bf16.mxu0 %v4150
    %4184 = vmatpush1.bf16.msra.mxu0 %v4149
    %4185 = vmatprep.subr.bf16.mxu0 %v4148
    %4186 = vmatpush1.bf16.msra.mxu0 %v4147
    %4187 = vmatprep.subr.bf16.mxu0 %v4146
    %4188 = vmatpush1.bf16.msra.mxu0 %v4145
    %4189 = vmatprep.subr.bf16.mxu0 %v4144
    %4190 = vmatpush1.bf16.msra.mxu0 %v4143
    %4191 = vmatprep.subr.bf16.mxu0 0
    %4192 = vmatpush2.bf16.msra.mxu0 0
    %4193 = vmatprep.subr.bf16.mxu0 0
    %4194 = vmatpush2.bf16.msra.mxu0 0
    %4195 = vmatprep.subr.bf16.mxu0 0
    %4196 = vmatpush2.bf16.msra.mxu0 0
    %4197 = vmatprep.subr.bf16.mxu0 0
    %4198 = vmatpush2.bf16.msra.mxu0 0
    %4199 = vmatprep.subr.bf16.mxu0 0
    %4200 = vmatpush2.bf16.msra.mxu0 0
    %4201 = vmatprep.subr.bf16.mxu0 0
    %4202 = vmatpush2.bf16.msra.mxu0 0
    %4203 = vmatprep.subr.bf16.mxu0 0
    %4204 = vmatpush2.bf16.msra.mxu0 0
    %4205 = vmatprep.subr.bf16.mxu0 0
    %4206 = vmatpush2.bf16.msra.mxu0 0
    %4207 = vmatprep.mubr.bf16.mxu0 0
    %4208 = vmatmul.mubr.bf16.gmra.mxu0 %v4070
    %v4209 = vpop.f32.mrf.mxu0
    %v4210 = vadd.f32 0.0, %v4209
    %v4211 = vpop.f32.mrf.mxu0
    %v4212 = vadd.f32 0.0, %v4211
    %v4213 = vpop.f32.mrf.mxu0
    %v4214 = vadd.f32 0.0, %v4213
    %v4215 = vpop.f32.mrf.mxu0
    %v4216 = vadd.f32 0.0, %v4215
    %4217 = vmatprep.mubr.bf16.mxu0 0
    %4218 = vmatmul.mubr.bf16.gmra.mxu0 %v4071
    %v4219 = vpop.f32.mrf.mxu0
    %v4220 = vadd.f32 0.0, %v4219
    %v4221 = vpop.f32.mrf.mxu0
    %v4222 = vadd.f32 0.0, %v4221
    %v4223 = vpop.f32.mrf.mxu0
    %v4224 = vadd.f32 0.0, %v4223
    %v4225 = vpop.f32.mrf.mxu0
    %v4226 = vadd.f32 0.0, %v4225
    %4227 = vmatprep.mubr.bf16.mxu0 0
    %4228 = vmatmul.mubr.bf16.gmra.mxu0 %v4072
    %v4229 = vpop.f32.mrf.mxu0
    %v4230 = vadd.f32 0.0, %v4229
    %v4231 = vpop.f32.mrf.mxu0
    %v4232 = vadd.f32 0.0, %v4231
    %v4233 = vpop.f32.mrf.mxu0
    %v4234 = vadd.f32 0.0, %v4233
    %v4235 = vpop.f32.mrf.mxu0
    %v4236 = vadd.f32 0.0, %v4235
    %4237 = vmatprep.mubr.bf16.mxu0 0
    %4238 = vmatmul.mubr.bf16.gmra.mxu0 %v4073
    %v4239 = vpop.f32.mrf.mxu0
    %v4240 = vadd.f32 0.0, %v4239
    %v4241 = vpop.f32.mrf.mxu0
    %v4242 = vadd.f32 0.0, %v4241
    %v4243 = vpop.f32.mrf.mxu0
    %v4244 = vadd.f32 0.0, %v4243
    %v4245 = vpop.f32.mrf.mxu0
    %v4246 = vadd.f32 0.0, %v4245
    %4247 = vmatprep.mubr.bf16.mxu0 0
    %4248 = vmatmul.mubr.bf16.gmra.mxu0 %v4074
    %v4249 = vpop.f32.mrf.mxu0
    %v4250 = vadd.f32 0.0, %v4249
    %v4251 = vpop.f32.mrf.mxu0
    %v4252 = vadd.f32 0.0, %v4251
    %v4253 = vpop.f32.mrf.mxu0
    %v4254 = vadd.f32 0.0, %v4253
    %v4255 = vpop.f32.mrf.mxu0
    %v4256 = vadd.f32 0.0, %v4255
    %4257 = vmatprep.mubr.bf16.mxu0 0
    %4258 = vmatmul.mubr.bf16.gmra.mxu0 %v4075
    %v4259 = vpop.f32.mrf.mxu0
    %v4260 = vadd.f32 0.0, %v4259
    %v4261 = vpop.f32.mrf.mxu0
    %v4262 = vadd.f32 0.0, %v4261
    %v4263 = vpop.f32.mrf.mxu0
    %v4264 = vadd.f32 0.0, %v4263
    %v4265 = vpop.f32.mrf.mxu0
    %v4266 = vadd.f32 0.0, %v4265
    %4267 = vmatprep.mubr.bf16.mxu0 0
    %4268 = vmatmul.mubr.bf16.gmra.mxu0 %v4076
    %v4269 = vpop.f32.mrf.mxu0
    %v4270 = vadd.f32 0.0, %v4269
    %v4271 = vpop.f32.mrf.mxu0
    %v4272 = vadd.f32 0.0, %v4271
    %v4273 = vpop.f32.mrf.mxu0
    %v4274 = vadd.f32 0.0, %v4273
    %v4275 = vpop.f32.mrf.mxu0
    %v4276 = vadd.f32 0.0, %v4275
    %4277 = vmatprep.mubr.bf16.mxu0 0
    %4278 = vmatmul.mubr.bf16.gmra.mxu0 %v4077
    %v4279 = vpop.f32.mrf.mxu0
    %v4280 = vadd.f32 0.0, %v4279
    %v4281 = vpop.f32.mrf.mxu0
    %v4282 = vadd.f32 0.0, %v4281
    %v4283 = vpop.f32.mrf.mxu0
    %v4284 = vadd.f32 0.0, %v4283
    %v4285 = vpop.f32.mrf.mxu0
    %v4286 = vadd.f32 0.0, %v4285
    %4287 = vdwg.mxu0
    %v4288 = vadd.f32 %v4022, %v4210
    %v4289 = vadd.f32 %v4023, %v4212
    %v4290 = vadd.f32 %v4024, %v4214
    %v4291 = vadd.f32 %v4025, %v4216
    %v4292 = vadd.f32 %v4026, %v4220
    %v4293 = vadd.f32 %v4027, %v4222
    %v4294 = vadd.f32 %v4028, %v4224
    %v4295 = vadd.f32 %v4029, %v4226
    %v4296 = vadd.f32 %v4030, %v4230
    %v4297 = vadd.f32 %v4031, %v4232
    %v4298 = vadd.f32 %v4032, %v4234
    %v4299 = vadd.f32 %v4033, %v4236
    %v4300 = vadd.f32 %v4034, %v4240
    %v4301 = vadd.f32 %v4035, %v4242
    %v4302 = vadd.f32 %v4036, %v4244
    %v4303 = vadd.f32 %v4037, %v4246
    %v4304 = vadd.f32 %v4038, %v4250
    %v4305 = vadd.f32 %v4039, %v4252
    %v4306 = vadd.f32 %v4040, %v4254
    %v4307 = vadd.f32 %v4041, %v4256
    %v4308 = vadd.f32 %v4042, %v4260
    %v4309 = vadd.f32 %v4043, %v4262
    %v4310 = vadd.f32 %v4044, %v4264
    %v4311 = vadd.f32 %v4045, %v4266
    %v4312 = vadd.f32 %v4046, %v4270
    %v4313 = vadd.f32 %v4047, %v4272
    %v4314 = vadd.f32 %v4048, %v4274
    %v4315 = vadd.f32 %v4049, %v4276
    %v4316 = vadd.f32 %v4050, %v4280
    %v4317 = vadd.f32 %v4051, %v4282
    %v4318 = vadd.f32 %v4052, %v4284
    %v4319 = vadd.f32 %v4053, %v4286
    %v4320 = vld [vmem:[#allocation2 + $0xa] sm:$0xff]
    %v4321 = vld [vmem:[#allocation2 + $0x22] sm:$0xff]
    %v4322 = vld [vmem:[#allocation2 + $0x3a] sm:$0xff]
    %v4323 = vld [vmem:[#allocation2 + $0x52] sm:$0xff]
    %v4324 = vld [vmem:[#allocation2 + $0x6a] sm:$0xff]
    %v4325 = vld [vmem:[#allocation2 + $0x82] sm:$0xff]
    %v4326 = vld [vmem:[#allocation2 + $0x9a] sm:$0xff]
    %v4327 = vld [vmem:[#allocation2 + $0xb2] sm:$0xff]
    %v4328 = vld [vmem:[#allocation2 + $0xca] sm:$0xff]
    %v4329 = vld [vmem:[#allocation2 + $0xe2] sm:$0xff]
    %v4330 = vld [vmem:[#allocation2 + $0xfa] sm:$0xff]
    %v4331 = vld [vmem:[#allocation2 + $0x112] sm:$0xff]
    %v4332 = vld [vmem:[#allocation2 + $0x12a] sm:$0xff]
    %v4333 = vld [vmem:[#allocation2 + $0x142] sm:$0xff]
    %v4334 = vld [vmem:[#allocation2 + $0x15a] sm:$0xff]
    %v4335 = vld [vmem:[#allocation2 + $0x172] sm:$0xff]
    %v4336 = vpack.c.bf16 %v4321, %v4320
    %v4337 = vpack.c.bf16 %v4323, %v4322
    %v4338 = vpack.c.bf16 %v4325, %v4324
    %v4339 = vpack.c.bf16 %v4327, %v4326
    %v4340 = vpack.c.bf16 %v4329, %v4328
    %v4341 = vpack.c.bf16 %v4331, %v4330
    %v4342 = vpack.c.bf16 %v4333, %v4332
    %v4343 = vpack.c.bf16 %v4335, %v4334
    %s4344 = scalar_lea.vmem %s5, 640
    %v4345 = vld [vmem:[%s4344] sm:$0xff]
    %v4346 = vld [vmem:[%s4344 + $0x8] sm:$0xff]
    %v4347 = vld [vmem:[%s4344 + $0x10] sm:$0xff]
    %v4348 = vld [vmem:[%s4344 + $0x18] sm:$0xff]
    %v4349 = vld [vmem:[%s4344 + $0x20] sm:$0xff]
    %v4350 = vld [vmem:[%s4344 + $0x28] sm:$0xff]
    %v4351 = vld [vmem:[%s4344 + $0x30] sm:$0xff]
    %v4352 = vld [vmem:[%s4344 + $0x38] sm:$0xff]
    %v4353 = vld [vmem:[%s4344 + $0x40] sm:$0xff]
    %v4354 = vld [vmem:[%s4344 + $0x48] sm:$0xff]
    %v4355 = vld [vmem:[%s4344 + $0x50] sm:$0xff]
    %v4356 = vld [vmem:[%s4344 + $0x58] sm:$0xff]
    %v4357 = vld [vmem:[%s4344 + $0x60] sm:$0xff]
    %v4358 = vld [vmem:[%s4344 + $0x68] sm:$0xff]
    %v4359 = vld [vmem:[%s4344 + $0x70] sm:$0xff]
    %v4360 = vld [vmem:[%s4344 + $0x78] sm:$0xff]
    %v4377 = vunpack.c.l.b16 %v4345
    %v4378 = vunpack.c.h.b16 %v4345
    %v4379 = vunpack.c.l.b16 %v4346
    %v4380 = vunpack.c.h.b16 %v4346
    %v4381 = vunpack.c.l.b16 %v4347
    %v4382 = vunpack.c.h.b16 %v4347
    %v4383 = vunpack.c.l.b16 %v4348
    %v4384 = vunpack.c.h.b16 %v4348
    %v4385 = vunpack.c.l.b16 %v4349
    %v4386 = vunpack.c.h.b16 %v4349
    %v4387 = vunpack.c.l.b16 %v4350
    %v4388 = vunpack.c.h.b16 %v4350
    %v4389 = vunpack.c.l.b16 %v4351
    %v4390 = vunpack.c.h.b16 %v4351
    %v4391 = vunpack.c.l.b16 %v4352
    %v4392 = vunpack.c.h.b16 %v4352
    %v4393 = vunpack.c.l.b16 %v4353
    %v4394 = vunpack.c.h.b16 %v4353
    %v4395 = vunpack.c.l.b16 %v4354
    %v4396 = vunpack.c.h.b16 %v4354
    %v4397 = vunpack.c.l.b16 %v4355
    %v4398 = vunpack.c.h.b16 %v4355
    %v4399 = vunpack.c.l.b16 %v4356
    %v4400 = vunpack.c.h.b16 %v4356
    %v4401 = vunpack.c.l.b16 %v4357
    %v4402 = vunpack.c.h.b16 %v4357
    %v4403 = vunpack.c.l.b16 %v4358
    %v4404 = vunpack.c.h.b16 %v4358
    %v4405 = vunpack.c.l.b16 %v4359
    %v4406 = vunpack.c.h.b16 %v4359
    %v4407 = vunpack.c.l.b16 %v4360
    %v4408 = vunpack.c.h.b16 %v4360
    %v4409 = vpack.c.b16 %v4379, %v4377
    %v4410 = vpack.c.b16 %v4380, %v4378
    %v4411 = vpack.c.b16 %v4383, %v4381
    %v4412 = vpack.c.b16 %v4384, %v4382
    %v4413 = vpack.c.b16 %v4387, %v4385
    %v4414 = vpack.c.b16 %v4388, %v4386
    %v4415 = vpack.c.b16 %v4391, %v4389
    %v4416 = vpack.c.b16 %v4392, %v4390
    %v4417 = vpack.c.b16 %v4395, %v4393
    %v4418 = vpack.c.b16 %v4396, %v4394
    %v4419 = vpack.c.b16 %v4399, %v4397
    %v4420 = vpack.c.b16 %v4400, %v4398
    %v4421 = vpack.c.b16 %v4403, %v4401
    %v4422 = vpack.c.b16 %v4404, %v4402
    %v4423 = vpack.c.b16 %v4407, %v4405
    %v4424 = vpack.c.b16 %v4408, %v4406
    %4441 = vmatprep.subr.bf16.mxu0 %v4424
    %4442 = vmatpush1.bf16.msra.mxu0 %v4423
    %4443 = vmatprep.subr.bf16.mxu0 %v4422
    %4444 = vmatpush1.bf16.msra.mxu0 %v4421
    %4445 = vmatprep.subr.bf16.mxu0 %v4420
    %4446 = vmatpush1.bf16.msra.mxu0 %v4419
    %4447 = vmatprep.subr.bf16.mxu0 %v4418
    %4448 = vmatpush1.bf16.msra.mxu0 %v4417
    %4449 = vmatprep.subr.bf16.mxu0 %v4416
    %4450 = vmatpush1.bf16.msra.mxu0 %v4415
    %4451 = vmatprep.subr.bf16.mxu0 %v4414
    %4452 = vmatpush1.bf16.msra.mxu0 %v4413
    %4453 = vmatprep.subr.bf16.mxu0 %v4412
    %4454 = vmatpush1.bf16.msra.mxu0 %v4411
    %4455 = vmatprep.subr.bf16.mxu0 %v4410
    %4456 = vmatpush1.bf16.msra.mxu0 %v4409
    %4457 = vmatprep.subr.bf16.mxu0 0
    %4458 = vmatpush2.bf16.msra.mxu0 0
    %4459 = vmatprep.subr.bf16.mxu0 0
    %4460 = vmatpush2.bf16.msra.mxu0 0
    %4461 = vmatprep.subr.bf16.mxu0 0
    %4462 = vmatpush2.bf16.msra.mxu0 0
    %4463 = vmatprep.subr.bf16.mxu0 0
    %4464 = vmatpush2.bf16.msra.mxu0 0
    %4465 = vmatprep.subr.bf16.mxu0 0
    %4466 = vmatpush2.bf16.msra.mxu0 0
    %4467 = vmatprep.subr.bf16.mxu0 0
    %4468 = vmatpush2.bf16.msra.mxu0 0
    %4469 = vmatprep.subr.bf16.mxu0 0
    %4470 = vmatpush2.bf16.msra.mxu0 0
    %4471 = vmatprep.subr.bf16.mxu0 0
    %4472 = vmatpush2.bf16.msra.mxu0 0
    %4473 = vmatprep.mubr.bf16.mxu0 0
    %4474 = vmatmul.mubr.bf16.gmra.mxu0 %v4336
    %v4475 = vpop.f32.mrf.mxu0
    %v4476 = vadd.f32 0.0, %v4475
    %v4477 = vpop.f32.mrf.mxu0
    %v4478 = vadd.f32 0.0, %v4477
    %v4479 = vpop.f32.mrf.mxu0
    %v4480 = vadd.f32 0.0, %v4479
    %v4481 = vpop.f32.mrf.mxu0
    %v4482 = vadd.f32 0.0, %v4481
    %4483 = vmatprep.mubr.bf16.mxu0 0
    %4484 = vmatmul.mubr.bf16.gmra.mxu0 %v4337
    %v4485 = vpop.f32.mrf.mxu0
    %v4486 = vadd.f32 0.0, %v4485
    %v4487 = vpop.f32.mrf.mxu0
    %v4488 = vadd.f32 0.0, %v4487
    %v4489 = vpop.f32.mrf.mxu0
    %v4490 = vadd.f32 0.0, %v4489
    %v4491 = vpop.f32.mrf.mxu0
    %v4492 = vadd.f32 0.0, %v4491
    %4493 = vmatprep.mubr.bf16.mxu0 0
    %4494 = vmatmul.mubr.bf16.gmra.mxu0 %v4338
    %v4495 = vpop.f32.mrf.mxu0
    %v4496 = vadd.f32 0.0, %v4495
    %v4497 = vpop.f32.mrf.mxu0
    %v4498 = vadd.f32 0.0, %v4497
    %v4499 = vpop.f32.mrf.mxu0
    %v4500 = vadd.f32 0.0, %v4499
    %v4501 = vpop.f32.mrf.mxu0
    %v4502 = vadd.f32 0.0, %v4501
    %4503 = vmatprep.mubr.bf16.mxu0 0
    %4504 = vmatmul.mubr.bf16.gmra.mxu0 %v4339
    %v4505 = vpop.f32.mrf.mxu0
    %v4506 = vadd.f32 0.0, %v4505
    %v4507 = vpop.f32.mrf.mxu0
    %v4508 = vadd.f32 0.0, %v4507
    %v4509 = vpop.f32.mrf.mxu0
    %v4510 = vadd.f32 0.0, %v4509
    %v4511 = vpop.f32.mrf.mxu0
    %v4512 = vadd.f32 0.0, %v4511
    %4513 = vmatprep.mubr.bf16.mxu0 0
    %4514 = vmatmul.mubr.bf16.gmra.mxu0 %v4340
    %v4515 = vpop.f32.mrf.mxu0
    %v4516 = vadd.f32 0.0, %v4515
    %v4517 = vpop.f32.mrf.mxu0
    %v4518 = vadd.f32 0.0, %v4517
    %v4519 = vpop.f32.mrf.mxu0
    %v4520 = vadd.f32 0.0, %v4519
    %v4521 = vpop.f32.mrf.mxu0
    %v4522 = vadd.f32 0.0, %v4521
    %4523 = vmatprep.mubr.bf16.mxu0 0
    %4524 = vmatmul.mubr.bf16.gmra.mxu0 %v4341
    %v4525 = vpop.f32.mrf.mxu0
    %v4526 = vadd.f32 0.0, %v4525
    %v4527 = vpop.f32.mrf.mxu0
    %v4528 = vadd.f32 0.0, %v4527
    %v4529 = vpop.f32.mrf.mxu0
    %v4530 = vadd.f32 0.0, %v4529
    %v4531 = vpop.f32.mrf.mxu0
    %v4532 = vadd.f32 0.0, %v4531
    %4533 = vmatprep.mubr.bf16.mxu0 0
    %4534 = vmatmul.mubr.bf16.gmra.mxu0 %v4342
    %v4535 = vpop.f32.mrf.mxu0
    %v4536 = vadd.f32 0.0, %v4535
    %v4537 = vpop.f32.mrf.mxu0
    %v4538 = vadd.f32 0.0, %v4537
    %v4539 = vpop.f32.mrf.mxu0
    %v4540 = vadd.f32 0.0, %v4539
    %v4541 = vpop.f32.mrf.mxu0
    %v4542 = vadd.f32 0.0, %v4541
    %4543 = vmatprep.mubr.bf16.mxu0 0
    %4544 = vmatmul.mubr.bf16.gmra.mxu0 %v4343
    %v4545 = vpop.f32.mrf.mxu0
    %v4546 = vadd.f32 0.0, %v4545
    %v4547 = vpop.f32.mrf.mxu0
    %v4548 = vadd.f32 0.0, %v4547
    %v4549 = vpop.f32.mrf.mxu0
    %v4550 = vadd.f32 0.0, %v4549
    %v4551 = vpop.f32.mrf.mxu0
    %v4552 = vadd.f32 0.0, %v4551
    %4553 = vdwg.mxu0
    %v4554 = vadd.f32 %v4288, %v4476
    %v4555 = vadd.f32 %v4289, %v4478
    %v4556 = vadd.f32 %v4290, %v4480
    %v4557 = vadd.f32 %v4291, %v4482
    %v4558 = vadd.f32 %v4292, %v4486
    %v4559 = vadd.f32 %v4293, %v4488
    %v4560 = vadd.f32 %v4294, %v4490
    %v4561 = vadd.f32 %v4295, %v4492
    %v4562 = vadd.f32 %v4296, %v4496
    %v4563 = vadd.f32 %v4297, %v4498
    %v4564 = vadd.f32 %v4298, %v4500
    %v4565 = vadd.f32 %v4299, %v4502
    %v4566 = vadd.f32 %v4300, %v4506
    %v4567 = vadd.f32 %v4301, %v4508
    %v4568 = vadd.f32 %v4302, %v4510
    %v4569 = vadd.f32 %v4303, %v4512
    %v4570 = vadd.f32 %v4304, %v4516
    %v4571 = vadd.f32 %v4305, %v4518
    %v4572 = vadd.f32 %v4306, %v4520
    %v4573 = vadd.f32 %v4307, %v4522
    %v4574 = vadd.f32 %v4308, %v4526
    %v4575 = vadd.f32 %v4309, %v4528
    %v4576 = vadd.f32 %v4310, %v4530
    %v4577 = vadd.f32 %v4311, %v4532
    %v4578 = vadd.f32 %v4312, %v4536
    %v4579 = vadd.f32 %v4313, %v4538
    %v4580 = vadd.f32 %v4314, %v4540
    %v4581 = vadd.f32 %v4315, %v4542
    %v4582 = vadd.f32 %v4316, %v4546
    %v4583 = vadd.f32 %v4317, %v4548
    %v4584 = vadd.f32 %v4318, %v4550
    %v4585 = vadd.f32 %v4319, %v4552
    %v4586 = vld [vmem:[#allocation2 + $0xb] sm:$0xff]
    %v4587 = vld [vmem:[#allocation2 + $0x23] sm:$0xff]
    %v4588 = vld [vmem:[#allocation2 + $0x3b] sm:$0xff]
    %v4589 = vld [vmem:[#allocation2 + $0x53] sm:$0xff]
    %v4590 = vld [vmem:[#allocation2 + $0x6b] sm:$0xff]
    %v4591 = vld [vmem:[#allocation2 + $0x83] sm:$0xff]
    %v4592 = vld [vmem:[#allocation2 + $0x9b] sm:$0xff]
    %v4593 = vld [vmem:[#allocation2 + $0xb3] sm:$0xff]
    %v4594 = vld [vmem:[#allocation2 + $0xcb] sm:$0xff]
    %v4595 = vld [vmem:[#allocation2 + $0xe3] sm:$0xff]
    %v4596 = vld [vmem:[#allocation2 + $0xfb] sm:$0xff]
    %v4597 = vld [vmem:[#allocation2 + $0x113] sm:$0xff]
    %v4598 = vld [vmem:[#allocation2 + $0x12b] sm:$0xff]
    %v4599 = vld [vmem:[#allocation2 + $0x143] sm:$0xff]
    %v4600 = vld [vmem:[#allocation2 + $0x15b] sm:$0xff]
    %v4601 = vld [vmem:[#allocation2 + $0x173] sm:$0xff]
    %v4602 = vpack.c.bf16 %v4587, %v4586
    %v4603 = vpack.c.bf16 %v4589, %v4588
    %v4604 = vpack.c.bf16 %v4591, %v4590
    %v4605 = vpack.c.bf16 %v4593, %v4592
    %v4606 = vpack.c.bf16 %v4595, %v4594
    %v4607 = vpack.c.bf16 %v4597, %v4596
    %v4608 = vpack.c.bf16 %v4599, %v4598
    %v4609 = vpack.c.bf16 %v4601, %v4600
    %s4610 = scalar_lea.vmem %s5, 768
    %v4611 = vld [vmem:[%s4610] sm:$0xff]
    %v4612 = vld [vmem:[%s4610 + $0x8] sm:$0xff]
    %v4613 = vld [vmem:[%s4610 + $0x10] sm:$0xff]
    %v4614 = vld [vmem:[%s4610 + $0x18] sm:$0xff]
    %v4615 = vld [vmem:[%s4610 + $0x20] sm:$0xff]
    %v4616 = vld [vmem:[%s4610 + $0x28] sm:$0xff]
    %v4617 = vld [vmem:[%s4610 + $0x30] sm:$0xff]
    %v4618 = vld [vmem:[%s4610 + $0x38] sm:$0xff]
    %v4619 = vld [vmem:[%s4610 + $0x40] sm:$0xff]
    %v4620 = vld [vmem:[%s4610 + $0x48] sm:$0xff]
    %v4621 = vld [vmem:[%s4610 + $0x50] sm:$0xff]
    %v4622 = vld [vmem:[%s4610 + $0x58] sm:$0xff]
    %v4623 = vld [vmem:[%s4610 + $0x60] sm:$0xff]
    %v4624 = vld [vmem:[%s4610 + $0x68] sm:$0xff]
    %v4625 = vld [vmem:[%s4610 + $0x70] sm:$0xff]
    %v4626 = vld [vmem:[%s4610 + $0x78] sm:$0xff]
    %v4643 = vunpack.c.l.b16 %v4611
    %v4644 = vunpack.c.h.b16 %v4611
    %v4645 = vunpack.c.l.b16 %v4612
    %v4646 = vunpack.c.h.b16 %v4612
    %v4647 = vunpack.c.l.b16 %v4613
    %v4648 = vunpack.c.h.b16 %v4613
    %v4649 = vunpack.c.l.b16 %v4614
    %v4650 = vunpack.c.h.b16 %v4614
    %v4651 = vunpack.c.l.b16 %v4615
    %v4652 = vunpack.c.h.b16 %v4615
    %v4653 = vunpack.c.l.b16 %v4616
    %v4654 = vunpack.c.h.b16 %v4616
    %v4655 = vunpack.c.l.b16 %v4617
    %v4656 = vunpack.c.h.b16 %v4617
    %v4657 = vunpack.c.l.b16 %v4618
    %v4658 = vunpack.c.h.b16 %v4618
    %v4659 = vunpack.c.l.b16 %v4619
    %v4660 = vunpack.c.h.b16 %v4619
    %v4661 = vunpack.c.l.b16 %v4620
    %v4662 = vunpack.c.h.b16 %v4620
    %v4663 = vunpack.c.l.b16 %v4621
    %v4664 = vunpack.c.h.b16 %v4621
    %v4665 = vunpack.c.l.b16 %v4622
    %v4666 = vunpack.c.h.b16 %v4622
    %v4667 = vunpack.c.l.b16 %v4623
    %v4668 = vunpack.c.h.b16 %v4623
    %v4669 = vunpack.c.l.b16 %v4624
    %v4670 = vunpack.c.h.b16 %v4624
    %v4671 = vunpack.c.l.b16 %v4625
    %v4672 = vunpack.c.h.b16 %v4625
    %v4673 = vunpack.c.l.b16 %v4626
    %v4674 = vunpack.c.h.b16 %v4626
    %v4675 = vpack.c.b16 %v4645, %v4643
    %v4676 = vpack.c.b16 %v4646, %v4644
    %v4677 = vpack.c.b16 %v4649, %v4647
    %v4678 = vpack.c.b16 %v4650, %v4648
    %v4679 = vpack.c.b16 %v4653, %v4651
    %v4680 = vpack.c.b16 %v4654, %v4652
    %v4681 = vpack.c.b16 %v4657, %v4655
    %v4682 = vpack.c.b16 %v4658, %v4656
    %v4683 = vpack.c.b16 %v4661, %v4659
    %v4684 = vpack.c.b16 %v4662, %v4660
    %v4685 = vpack.c.b16 %v4665, %v4663
    %v4686 = vpack.c.b16 %v4666, %v4664
    %v4687 = vpack.c.b16 %v4669, %v4667
    %v4688 = vpack.c.b16 %v4670, %v4668
    %v4689 = vpack.c.b16 %v4673, %v4671
    %v4690 = vpack.c.b16 %v4674, %v4672
    %4707 = vmatprep.subr.bf16.mxu0 %v4690
    %4708 = vmatpush1.bf16.msra.mxu0 %v4689
    %4709 = vmatprep.subr.bf16.mxu0 %v4688
    %4710 = vmatpush1.bf16.msra.mxu0 %v4687
    %4711 = vmatprep.subr.bf16.mxu0 %v4686
    %4712 = vmatpush1.bf16.msra.mxu0 %v4685
    %4713 = vmatprep.subr.bf16.mxu0 %v4684
    %4714 = vmatpush1.bf16.msra.mxu0 %v4683
    %4715 = vmatprep.subr.bf16.mxu0 %v4682
    %4716 = vmatpush1.bf16.msra.mxu0 %v4681
    %4717 = vmatprep.subr.bf16.mxu0 %v4680
    %4718 = vmatpush1.bf16.msra.mxu0 %v4679
    %4719 = vmatprep.subr.bf16.mxu0 %v4678
    %4720 = vmatpush1.bf16.msra.mxu0 %v4677
    %4721 = vmatprep.subr.bf16.mxu0 %v4676
    %4722 = vmatpush1.bf16.msra.mxu0 %v4675
    %4723 = vmatprep.subr.bf16.mxu0 0
    %4724 = vmatpush2.bf16.msra.mxu0 0
    %4725 = vmatprep.subr.bf16.mxu0 0
    %4726 = vmatpush2.bf16.msra.mxu0 0
    %4727 = vmatprep.subr.bf16.mxu0 0
    %4728 = vmatpush2.bf16.msra.mxu0 0
    %4729 = vmatprep.subr.bf16.mxu0 0
    %4730 = vmatpush2.bf16.msra.mxu0 0
    %4731 = vmatprep.subr.bf16.mxu0 0
    %4732 = vmatpush2.bf16.msra.mxu0 0
    %4733 = vmatprep.subr.bf16.mxu0 0
    %4734 = vmatpush2.bf16.msra.mxu0 0
    %4735 = vmatprep.subr.bf16.mxu0 0
    %4736 = vmatpush2.bf16.msra.mxu0 0
    %4737 = vmatprep.subr.bf16.mxu0 0
    %4738 = vmatpush2.bf16.msra.mxu0 0
    %4739 = vmatprep.mubr.bf16.mxu0 0
    %4740 = vmatmul.mubr.bf16.gmra.mxu0 %v4602
    %v4741 = vpop.f32.mrf.mxu0
    %v4742 = vadd.f32 0.0, %v4741
    %v4743 = vpop.f32.mrf.mxu0
    %v4744 = vadd.f32 0.0, %v4743
    %v4745 = vpop.f32.mrf.mxu0
    %v4746 = vadd.f32 0.0, %v4745
    %v4747 = vpop.f32.mrf.mxu0
    %v4748 = vadd.f32 0.0, %v4747
    %4749 = vmatprep.mubr.bf16.mxu0 0
    %4750 = vmatmul.mubr.bf16.gmra.mxu0 %v4603
    %v4751 = vpop.f32.mrf.mxu0
    %v4752 = vadd.f32 0.0, %v4751
    %v4753 = vpop.f32.mrf.mxu0
    %v4754 = vadd.f32 0.0, %v4753
    %v4755 = vpop.f32.mrf.mxu0
    %v4756 = vadd.f32 0.0, %v4755
    %v4757 = vpop.f32.mrf.mxu0
    %v4758 = vadd.f32 0.0, %v4757
    %4759 = vmatprep.mubr.bf16.mxu0 0
    %4760 = vmatmul.mubr.bf16.gmra.mxu0 %v4604
    %v4761 = vpop.f32.mrf.mxu0
    %v4762 = vadd.f32 0.0, %v4761
    %v4763 = vpop.f32.mrf.mxu0
    %v4764 = vadd.f32 0.0, %v4763
    %v4765 = vpop.f32.mrf.mxu0
    %v4766 = vadd.f32 0.0, %v4765
    %v4767 = vpop.f32.mrf.mxu0
    %v4768 = vadd.f32 0.0, %v4767
    %4769 = vmatprep.mubr.bf16.mxu0 0
    %4770 = vmatmul.mubr.bf16.gmra.mxu0 %v4605
    %v4771 = vpop.f32.mrf.mxu0
    %v4772 = vadd.f32 0.0, %v4771
    %v4773 = vpop.f32.mrf.mxu0
    %v4774 = vadd.f32 0.0, %v4773
    %v4775 = vpop.f32.mrf.mxu0
    %v4776 = vadd.f32 0.0, %v4775
    %v4777 = vpop.f32.mrf.mxu0
    %v4778 = vadd.f32 0.0, %v4777
    %4779 = vmatprep.mubr.bf16.mxu0 0
    %4780 = vmatmul.mubr.bf16.gmra.mxu0 %v4606
    %v4781 = vpop.f32.mrf.mxu0
    %v4782 = vadd.f32 0.0, %v4781
    %v4783 = vpop.f32.mrf.mxu0
    %v4784 = vadd.f32 0.0, %v4783
    %v4785 = vpop.f32.mrf.mxu0
    %v4786 = vadd.f32 0.0, %v4785
    %v4787 = vpop.f32.mrf.mxu0
    %v4788 = vadd.f32 0.0, %v4787
    %4789 = vmatprep.mubr.bf16.mxu0 0
    %4790 = vmatmul.mubr.bf16.gmra.mxu0 %v4607
    %v4791 = vpop.f32.mrf.mxu0
    %v4792 = vadd.f32 0.0, %v4791
    %v4793 = vpop.f32.mrf.mxu0
    %v4794 = vadd.f32 0.0, %v4793
    %v4795 = vpop.f32.mrf.mxu0
    %v4796 = vadd.f32 0.0, %v4795
    %v4797 = vpop.f32.mrf.mxu0
    %v4798 = vadd.f32 0.0, %v4797
    %4799 = vmatprep.mubr.bf16.mxu0 0
    %4800 = vmatmul.mubr.bf16.gmra.mxu0 %v4608
    %v4801 = vpop.f32.mrf.mxu0
    %v4802 = vadd.f32 0.0, %v4801
    %v4803 = vpop.f32.mrf.mxu0
    %v4804 = vadd.f32 0.0, %v4803
    %v4805 = vpop.f32.mrf.mxu0
    %v4806 = vadd.f32 0.0, %v4805
    %v4807 = vpop.f32.mrf.mxu0
    %v4808 = vadd.f32 0.0, %v4807
    %4809 = vmatprep.mubr.bf16.mxu0 0
    %4810 = vmatmul.mubr.bf16.gmra.mxu0 %v4609
    %v4811 = vpop.f32.mrf.mxu0
    %v4812 = vadd.f32 0.0, %v4811
    %v4813 = vpop.f32.mrf.mxu0
    %v4814 = vadd.f32 0.0, %v4813
    %v4815 = vpop.f32.mrf.mxu0
    %v4816 = vadd.f32 0.0, %v4815
    %v4817 = vpop.f32.mrf.mxu0
    %v4818 = vadd.f32 0.0, %v4817
    %4819 = vdwg.mxu0
    %v4820 = vadd.f32 %v4554, %v4742
    %v4821 = vadd.f32 %v4555, %v4744
    %v4822 = vadd.f32 %v4556, %v4746
    %v4823 = vadd.f32 %v4557, %v4748
    %v4824 = vadd.f32 %v4558, %v4752
    %v4825 = vadd.f32 %v4559, %v4754
    %v4826 = vadd.f32 %v4560, %v4756
    %v4827 = vadd.f32 %v4561, %v4758
    %v4828 = vadd.f32 %v4562, %v4762
    %v4829 = vadd.f32 %v4563, %v4764
    %v4830 = vadd.f32 %v4564, %v4766
    %v4831 = vadd.f32 %v4565, %v4768
    %v4832 = vadd.f32 %v4566, %v4772
    %v4833 = vadd.f32 %v4567, %v4774
    %v4834 = vadd.f32 %v4568, %v4776
    %v4835 = vadd.f32 %v4569, %v4778
    %v4836 = vadd.f32 %v4570, %v4782
    %v4837 = vadd.f32 %v4571, %v4784
    %v4838 = vadd.f32 %v4572, %v4786
    %v4839 = vadd.f32 %v4573, %v4788
    %v4840 = vadd.f32 %v4574, %v4792
    %v4841 = vadd.f32 %v4575, %v4794
    %v4842 = vadd.f32 %v4576, %v4796
    %v4843 = vadd.f32 %v4577, %v4798
    %v4844 = vadd.f32 %v4578, %v4802
    %v4845 = vadd.f32 %v4579, %v4804
    %v4846 = vadd.f32 %v4580, %v4806
    %v4847 = vadd.f32 %v4581, %v4808
    %v4848 = vadd.f32 %v4582, %v4812
    %v4849 = vadd.f32 %v4583, %v4814
    %v4850 = vadd.f32 %v4584, %v4816
    %v4851 = vadd.f32 %v4585, %v4818
    %v4852 = vld [vmem:[%s6] sm:$0x3]
    %v4854 = vlaneseq
    %v4855 = vshrl.u32 %v4854, 7
    %v4856 = vsub.s32 0, %v4855
    %v4857 = vrot.slane %v4852, %v4856
    %v4858 = vlaneseq
    %v4859 = vshrl.u32 %v4858, 7
    %v4860 = vsub.s32 1, %v4859
    %v4861 = vrot.slane %v4852, %v4860
    %v4864 = vadd.f32 %v4820, %v4857
    %v4865 = vadd.f32 %v4821, %v4861
    %v4866 = vadd.f32 %v4822, %v4857
    %v4867 = vadd.f32 %v4823, %v4861
    %v4868 = vadd.f32 %v4824, %v4857
    %v4869 = vadd.f32 %v4825, %v4861
    %v4870 = vadd.f32 %v4826, %v4857
    %v4871 = vadd.f32 %v4827, %v4861
    %v4872 = vadd.f32 %v4828, %v4857
    %v4873 = vadd.f32 %v4829, %v4861
    %v4874 = vadd.f32 %v4830, %v4857
    %v4875 = vadd.f32 %v4831, %v4861
    %v4876 = vadd.f32 %v4832, %v4857
    %v4877 = vadd.f32 %v4833, %v4861
    %v4878 = vadd.f32 %v4834, %v4857
    %v4879 = vadd.f32 %v4835, %v4861
    %v4880 = vadd.f32 %v4836, %v4857
    %v4881 = vadd.f32 %v4837, %v4861
    %v4882 = vadd.f32 %v4838, %v4857
    %v4883 = vadd.f32 %v4839, %v4861
    %v4884 = vadd.f32 %v4840, %v4857
    %v4885 = vadd.f32 %v4841, %v4861
    %v4886 = vadd.f32 %v4842, %v4857
    %v4887 = vadd.f32 %v4843, %v4861
    %v4888 = vadd.f32 %v4844, %v4857
    %v4889 = vadd.f32 %v4845, %v4861
    %v4890 = vadd.f32 %v4846, %v4857
    %v4891 = vadd.f32 %v4847, %v4861
    %v4892 = vadd.f32 %v4848, %v4857
    %v4893 = vadd.f32 %v4849, %v4861
    %v4894 = vadd.f32 %v4850, %v4857
    %v4895 = vadd.f32 %v4851, %v4861
    %v4896 = vmax.f32 %v4864, 0.0
    %v4897 = vmax.f32 %v4865, 0.0
    %v4898 = vmax.f32 %v4866, 0.0
    %v4899 = vmax.f32 %v4867, 0.0
    %v4900 = vmax.f32 %v4868, 0.0
    %v4901 = vmax.f32 %v4869, 0.0
    %v4902 = vmax.f32 %v4870, 0.0
    %v4903 = vmax.f32 %v4871, 0.0
    %v4904 = vmax.f32 %v4872, 0.0
    %v4905 = vmax.f32 %v4873, 0.0
    %v4906 = vmax.f32 %v4874, 0.0
    %v4907 = vmax.f32 %v4875, 0.0
    %v4908 = vmax.f32 %v4876, 0.0
    %v4909 = vmax.f32 %v4877, 0.0
    %v4910 = vmax.f32 %v4878, 0.0
    %v4911 = vmax.f32 %v4879, 0.0
    %v4912 = vmax.f32 %v4880, 0.0
    %v4913 = vmax.f32 %v4881, 0.0
    %v4914 = vmax.f32 %v4882, 0.0
    %v4915 = vmax.f32 %v4883, 0.0
    %v4916 = vmax.f32 %v4884, 0.0
    %v4917 = vmax.f32 %v4885, 0.0
    %v4918 = vmax.f32 %v4886, 0.0
    %v4919 = vmax.f32 %v4887, 0.0
    %v4920 = vmax.f32 %v4888, 0.0
    %v4921 = vmax.f32 %v4889, 0.0
    %v4922 = vmax.f32 %v4890, 0.0
    %v4923 = vmax.f32 %v4891, 0.0
    %v4924 = vmax.f32 %v4892, 0.0
    %v4925 = vmax.f32 %v4893, 0.0
    %v4926 = vmax.f32 %v4894, 0.0
    %v4927 = vmax.f32 %v4895, 0.0
    %v4928 = vpack.c.bf16 0.0, 0.0
    %v4929 = vpack.c.bf16 %v4896, 0.0
    %v4930 = vpack.c.bf16 %v4897, 0.0
    %v4931 = vpack.c.bf16 %v4900, %v4898
    %v4932 = vpack.c.bf16 %v4901, %v4899
    %v4933 = vpack.c.bf16 %v4904, %v4902
    %v4934 = vpack.c.bf16 %v4905, %v4903
    %v4935 = vpack.c.bf16 %v4912, 0.0
    %v4936 = vpack.c.bf16 %v4913, 0.0
    %v4937 = vpack.c.bf16 %v4916, %v4914
    %v4938 = vpack.c.bf16 %v4917, %v4915
    %v4939 = vpack.c.bf16 %v4920, %v4918
    %v4940 = vpack.c.bf16 %v4921, %v4919
    %v4941 = vld [vmem:[%s7] sm:$0xff]
    %v4942 = vld [vmem:[%s7 + $0x8] sm:$0xff]
    %v4943 = vld [vmem:[%s7 + $0x10] sm:$0xff]
    %v4944 = vld [vmem:[%s7 + $0x18] sm:$0xff]
    %v4945 = vld [vmem:[%s7 + $0x20] sm:$0xff]
    %v4946 = vld [vmem:[%s7 + $0x28] sm:$0xff]
    %v4947 = vld [vmem:[%s7 + $0x30] sm:$0xff]
    %v4948 = vld [vmem:[%s7 + $0x38] sm:$0xff]
    %v4949 = vld [vmem:[%s7 + $0x40] sm:$0xff]
    %v4950 = vld [vmem:[%s7 + $0x48] sm:$0xff]
    %v4951 = vld [vmem:[%s7 + $0x50] sm:$0xff]
    %v4952 = vld [vmem:[%s7 + $0x58] sm:$0xff]
    %v4953 = vld [vmem:[%s7 + $0x60] sm:$0xff]
    %v4954 = vld [vmem:[%s7 + $0x68] sm:$0xff]
    %v4955 = vld [vmem:[%s7 + $0x70] sm:$0xff]
    %v4956 = vld [vmem:[%s7 + $0x78] sm:$0xff]
    %v4957 = vld [vmem:[%s7 + $0x80] sm:$0xff]
    %v4958 = vld [vmem:[%s7 + $0x88] sm:$0xff]
    %v4959 = vld [vmem:[%s7 + $0x90] sm:$0xff]
    %v4960 = vld [vmem:[%s7 + $0x98] sm:$0xff]
    %v4961 = vpack.c.bf16 %v4898, %v4896
    %v4962 = vpack.c.bf16 %v4899, %v4897
    %v4963 = vpack.c.bf16 %v4902, %v4900
    %v4964 = vpack.c.bf16 %v4903, %v4901
    %v4965 = vpack.c.bf16 %v4906, %v4904
    %v4966 = vpack.c.bf16 %v4907, %v4905
    %v4967 = vpack.c.bf16 %v4914, %v4912
    %v4968 = vpack.c.bf16 %v4915, %v4913
    %v4969 = vpack.c.bf16 %v4918, %v4916
    %v4970 = vpack.c.bf16 %v4919, %v4917
    %v4971 = vpack.c.bf16 %v4922, %v4920
    %v4972 = vpack.c.bf16 %v4923, %v4921
    %s4973 = scalar_lea.vmem %s7, 160
    %v4974 = vld [vmem:[%s4973] sm:$0xff]
    %v4975 = vld [vmem:[%s4973 + $0x8] sm:$0xff]
    %v4976 = vld [vmem:[%s4973 + $0x10] sm:$0xff]
    %v4977 = vld [vmem:[%s4973 + $0x18] sm:$0xff]
    %v4978 = vld [vmem:[%s4973 + $0x20] sm:$0xff]
    %v4979 = vld [vmem:[%s4973 + $0x28] sm:$0xff]
    %v4980 = vld [vmem:[%s4973 + $0x30] sm:$0xff]
    %v4981 = vld [vmem:[%s4973 + $0x38] sm:$0xff]
    %v4982 = vld [vmem:[%s4973 + $0x40] sm:$0xff]
    %v4983 = vld [vmem:[%s4973 + $0x48] sm:$0xff]
    %v4984 = vld [vmem:[%s4973 + $0x50] sm:$0xff]
    %v4985 = vld [vmem:[%s4973 + $0x58] sm:$0xff]
    %v4986 = vld [vmem:[%s4973 + $0x60] sm:$0xff]
    %v4987 = vld [vmem:[%s4973 + $0x68] sm:$0xff]
    %v4988 = vld [vmem:[%s4973 + $0x70] sm:$0xff]
    %v4989 = vld [vmem:[%s4973 + $0x78] sm:$0xff]
    %v4990 = vld [vmem:[%s4973 + $0x80] sm:$0xff]
    %v4991 = vld [vmem:[%s4973 + $0x88] sm:$0xff]
    %v4992 = vld [vmem:[%s4973 + $0x90] sm:$0xff]
    %v4993 = vld [vmem:[%s4973 + $0x98] sm:$0xff]
    %v5014 = vunpack.c.l.b16 %v4974
    %v5015 = vunpack.c.h.b16 %v4974
    %v5016 = vunpack.c.l.b16 %v4975
    %v5017 = vunpack.c.h.b16 %v4975
    %v5018 = vunpack.c.l.b16 %v4976
    %v5019 = vunpack.c.h.b16 %v4976
    %v5020 = vunpack.c.l.b16 %v4977
    %v5021 = vunpack.c.h.b16 %v4977
    %v5022 = vunpack.c.l.b16 %v4978
    %v5023 = vunpack.c.h.b16 %v4978
    %v5024 = vunpack.c.l.b16 %v4979
    %v5025 = vunpack.c.h.b16 %v4979
    %v5026 = vunpack.c.l.b16 %v4980
    %v5027 = vunpack.c.h.b16 %v4980
    %v5028 = vunpack.c.l.b16 %v4981
    %v5029 = vunpack.c.h.b16 %v4981
    %v5030 = vunpack.c.l.b16 %v4982
    %v5031 = vunpack.c.h.b16 %v4982
    %v5032 = vunpack.c.l.b16 %v4983
    %v5033 = vunpack.c.h.b16 %v4983
    %v5034 = vunpack.c.l.b16 %v4984
    %v5035 = vunpack.c.h.b16 %v4984
    %v5036 = vunpack.c.l.b16 %v4985
    %v5037 = vunpack.c.h.b16 %v4985
    %v5038 = vunpack.c.l.b16 %v4986
    %v5039 = vunpack.c.h.b16 %v4986
    %v5040 = vunpack.c.l.b16 %v4987
    %v5041 = vunpack.c.h.b16 %v4987
    %v5042 = vunpack.c.l.b16 %v4988
    %v5043 = vunpack.c.h.b16 %v4988
    %v5044 = vunpack.c.l.b16 %v4989
    %v5045 = vunpack.c.h.b16 %v4989
    %v5046 = vunpack.c.l.b16 %v4990
    %v5047 = vunpack.c.h.b16 %v4990
    %v5048 = vunpack.c.l.b16 %v4991
    %v5049 = vunpack.c.h.b16 %v4991
    %v5050 = vunpack.c.l.b16 %v4992
    %v5051 = vunpack.c.h.b16 %v4992
    %v5052 = vunpack.c.l.b16 %v4993
    %v5053 = vunpack.c.h.b16 %v4993
    %v5054 = vpack.c.b16 %v5016, %v5014
    %v5055 = vpack.c.b16 %v5017, %v5015
    %v5056 = vpack.c.b16 %v5020, %v5018
    %v5057 = vpack.c.b16 %v5021, %v5019
    %v5058 = vpack.c.b16 %v5024, %v5022
    %v5059 = vpack.c.b16 %v5025, %v5023
    %v5060 = vpack.c.b16 %v5028, %v5026
    %v5061 = vpack.c.b16 %v5029, %v5027
    %v5062 = vpack.c.b16 %v5032, %v5030
    %v5063 = vpack.c.b16 %v5033, %v5031
    %v5064 = vpack.c.b16 %v5036, %v5034
    %v5065 = vpack.c.b16 %v5037, %v5035
    %v5066 = vpack.c.b16 %v5040, %v5038
    %v5067 = vpack.c.b16 %v5041, %v5039
    %v5068 = vpack.c.b16 %v5044, %v5042
    %v5069 = vpack.c.b16 %v5045, %v5043
    %v5070 = vpack.c.b16 %v5048, %v5046
    %v5071 = vpack.c.b16 %v5049, %v5047
    %v5072 = vpack.c.b16 %v5052, %v5050
    %v5073 = vpack.c.b16 %v5053, %v5051
    %vm5094 = vcmask 261120
    %v5096 = vsel %vm5094, %v4928, 0
    %v5099 = vsel %vm5094, %v4962, 0
    %v5102 = vsel %vm5094, %v4964, 0
    %v5105 = vsel %vm5094, %v4966, 0
    %v5108 = vsel %vm5094, %v4968, 0
    %v5111 = vsel %vm5094, %v4970, 0
    %v5114 = vsel %vm5094, %v4972, 0
    %5116 = vmatprep.subr.bf16.mxu0 %v5069
    %5117 = vmatpush1.bf16.msra.mxu0 %v5068
    %5118 = vmatprep.subr.bf16.mxu0 %v5067
    %5119 = vmatpush1.bf16.msra.mxu0 %v5066
    %5120 = vmatprep.subr.bf16.mxu0 %v5065
    %5121 = vmatpush1.bf16.msra.mxu0 %v5064
    %5122 = vmatprep.subr.bf16.mxu0 %v5063
    %5123 = vmatpush1.bf16.msra.mxu0 %v5062
    %5124 = vmatprep.subr.bf16.mxu0 %v5061
    %5125 = vmatpush1.bf16.msra.mxu0 %v5060
    %5126 = vmatprep.subr.bf16.mxu0 %v5059
    %5127 = vmatpush1.bf16.msra.mxu0 %v5058
    %5128 = vmatprep.subr.bf16.mxu0 %v5057
    %5129 = vmatpush1.bf16.msra.mxu0 %v5056
    %5130 = vmatprep.subr.bf16.mxu0 %v5055
    %5131 = vmatpush1.bf16.msra.mxu0 %v5054
    %5132 = vmatprep.subr.bf16.mxu0 0
    %5133 = vmatpush2.bf16.msra.mxu0 0
    %5134 = vmatprep.subr.bf16.mxu0 0
    %5135 = vmatpush2.bf16.msra.mxu0 0
    %5136 = vmatprep.subr.bf16.mxu0 0
    %5137 = vmatpush2.bf16.msra.mxu0 0
    %5138 = vmatprep.subr.bf16.mxu0 0
    %5139 = vmatpush2.bf16.msra.mxu0 0
    %5140 = vmatprep.subr.bf16.mxu0 0
    %5141 = vmatpush2.bf16.msra.mxu0 0
    %5142 = vmatprep.subr.bf16.mxu0 0
    %5143 = vmatpush2.bf16.msra.mxu0 0
    %5144 = vmatprep.subr.bf16.mxu0 %v5073
    %5145 = vmatpush2.bf16.msra.mxu0 %v5072
    %5146 = vmatprep.subr.bf16.mxu0 %v5071
    %5147 = vmatpush2.bf16.msra.mxu0 %v5070
    %5148 = vmatprep.mubr.bf16.mxu0 %v5096
    %5149 = vmatmul.mubr.bf16.gmra.mxu0 %v4928
    %v5150 = vpop.f32.mrf.mxu0
    %v5151 = vadd.f32 0.0, %v5150
    %v5152 = vpop.f32.mrf.mxu0
    %v5153 = vadd.f32 0.0, %v5152
    %v5154 = vpop.f32.mrf.mxu0
    %v5155 = vadd.f32 0.0, %v5154
    %v5156 = vpop.f32.mrf.mxu0
    %v5157 = vadd.f32 0.0, %v5156
    %5158 = vmatprep.mubr.bf16.mxu0 %v5099
    %5159 = vmatmul.mubr.bf16.gmra.mxu0 %v4961
    %v5160 = vpop.f32.mrf.mxu0
    %v5161 = vadd.f32 0.0, %v5160
    %v5162 = vpop.f32.mrf.mxu0
    %v5163 = vadd.f32 0.0, %v5162
    %v5164 = vpop.f32.mrf.mxu0
    %v5165 = vadd.f32 0.0, %v5164
    %v5166 = vpop.f32.mrf.mxu0
    %v5167 = vadd.f32 0.0, %v5166
    %5168 = vmatprep.mubr.bf16.mxu0 %v5102
    %5169 = vmatmul.mubr.bf16.gmra.mxu0 %v4963
    %v5170 = vpop.f32.mrf.mxu0
    %v5171 = vadd.f32 0.0, %v5170
    %v5172 = vpop.f32.mrf.mxu0
    %v5173 = vadd.f32 0.0, %v5172
    %v5174 = vpop.f32.mrf.mxu0
    %v5175 = vadd.f32 0.0, %v5174
    %v5176 = vpop.f32.mrf.mxu0
    %v5177 = vadd.f32 0.0, %v5176
    %5178 = vmatprep.mubr.bf16.mxu0 %v5105
    %5179 = vmatmul.mubr.bf16.gmra.mxu0 %v4965
    %v5180 = vpop.f32.mrf.mxu0
    %v5181 = vadd.f32 0.0, %v5180
    %v5182 = vpop.f32.mrf.mxu0
    %v5183 = vadd.f32 0.0, %v5182
    %v5184 = vpop.f32.mrf.mxu0
    %v5185 = vadd.f32 0.0, %v5184
    %v5186 = vpop.f32.mrf.mxu0
    %v5187 = vadd.f32 0.0, %v5186
    %5188 = vmatprep.mubr.bf16.mxu0 %v5096
    %5189 = vmatmul.mubr.bf16.gmra.mxu0 %v4928
    %v5190 = vpop.f32.mrf.mxu0
    %v5191 = vadd.f32 0.0, %v5190
    %v5192 = vpop.f32.mrf.mxu0
    %v5193 = vadd.f32 0.0, %v5192
    %v5194 = vpop.f32.mrf.mxu0
    %v5195 = vadd.f32 0.0, %v5194
    %v5196 = vpop.f32.mrf.mxu0
    %v5197 = vadd.f32 0.0, %v5196
    %5198 = vmatprep.mubr.bf16.mxu0 %v5108
    %5199 = vmatmul.mubr.bf16.gmra.mxu0 %v4967
    %v5200 = vpop.f32.mrf.mxu0
    %v5201 = vadd.f32 0.0, %v5200
    %v5202 = vpop.f32.mrf.mxu0
    %v5203 = vadd.f32 0.0, %v5202
    %v5204 = vpop.f32.mrf.mxu0
    %v5205 = vadd.f32 0.0, %v5204
    %v5206 = vpop.f32.mrf.mxu0
    %v5207 = vadd.f32 0.0, %v5206
    %5208 = vmatprep.mubr.bf16.mxu0 %v5111
    %5209 = vmatmul.mubr.bf16.gmra.mxu0 %v4969
    %v5210 = vpop.f32.mrf.mxu0
    %v5211 = vadd.f32 0.0, %v5210
    %v5212 = vpop.f32.mrf.mxu0
    %v5213 = vadd.f32 0.0, %v5212
    %v5214 = vpop.f32.mrf.mxu0
    %v5215 = vadd.f32 0.0, %v5214
    %v5216 = vpop.f32.mrf.mxu0
    %v5217 = vadd.f32 0.0, %v5216
    %5218 = vmatprep.mubr.bf16.mxu0 %v5114
    %5219 = vmatmul.mubr.bf16.gmra.mxu0 %v4971
    %v5220 = vpop.f32.mrf.mxu0
    %v5221 = vadd.f32 0.0, %v5220
    %v5222 = vpop.f32.mrf.mxu0
    %v5223 = vadd.f32 0.0, %v5222
    %v5224 = vpop.f32.mrf.mxu0
    %v5225 = vadd.f32 0.0, %v5224
    %v5226 = vpop.f32.mrf.mxu0
    %v5227 = vadd.f32 0.0, %v5226
    %5228 = vdwg.mxu0
    %v5249 = vunpack.c.l.b16 %v4941
    %v5250 = vunpack.c.h.b16 %v4941
    %v5251 = vunpack.c.l.b16 %v4942
    %v5252 = vunpack.c.h.b16 %v4942
    %v5253 = vunpack.c.l.b16 %v4943
    %v5254 = vunpack.c.h.b16 %v4943
    %v5255 = vunpack.c.l.b16 %v4944
    %v5256 = vunpack.c.h.b16 %v4944
    %v5257 = vunpack.c.l.b16 %v4945
    %v5258 = vunpack.c.h.b16 %v4945
    %v5259 = vunpack.c.l.b16 %v4946
    %v5260 = vunpack.c.h.b16 %v4946
    %v5261 = vunpack.c.l.b16 %v4947
    %v5262 = vunpack.c.h.b16 %v4947
    %v5263 = vunpack.c.l.b16 %v4948
    %v5264 = vunpack.c.h.b16 %v4948
    %v5265 = vunpack.c.l.b16 %v4949
    %v5266 = vunpack.c.h.b16 %v4949
    %v5267 = vunpack.c.l.b16 %v4950
    %v5268 = vunpack.c.h.b16 %v4950
    %v5269 = vunpack.c.l.b16 %v4951
    %v5270 = vunpack.c.h.b16 %v4951
    %v5271 = vunpack.c.l.b16 %v4952
    %v5272 = vunpack.c.h.b16 %v4952
    %v5273 = vunpack.c.l.b16 %v4953
    %v5274 = vunpack.c.h.b16 %v4953
    %v5275 = vunpack.c.l.b16 %v4954
    %v5276 = vunpack.c.h.b16 %v4954
    %v5277 = vunpack.c.l.b16 %v4955
    %v5278 = vunpack.c.h.b16 %v4955
    %v5279 = vunpack.c.l.b16 %v4956
    %v5280 = vunpack.c.h.b16 %v4956
    %v5281 = vunpack.c.l.b16 %v4957
    %v5282 = vunpack.c.h.b16 %v4957
    %v5283 = vunpack.c.l.b16 %v4958
    %v5284 = vunpack.c.h.b16 %v4958
    %v5285 = vunpack.c.l.b16 %v4959
    %v5286 = vunpack.c.h.b16 %v4959
    %v5287 = vunpack.c.l.b16 %v4960
    %v5288 = vunpack.c.h.b16 %v4960
    %v5289 = vpack.c.b16 %v5251, %v5249
    %v5290 = vpack.c.b16 %v5252, %v5250
    %v5291 = vpack.c.b16 %v5255, %v5253
    %v5292 = vpack.c.b16 %v5256, %v5254
    %v5293 = vpack.c.b16 %v5259, %v5257
    %v5294 = vpack.c.b16 %v5260, %v5258
    %v5295 = vpack.c.b16 %v5263, %v5261
    %v5296 = vpack.c.b16 %v5264, %v5262
    %v5297 = vpack.c.b16 %v5267, %v5265
    %v5298 = vpack.c.b16 %v5268, %v5266
    %v5299 = vpack.c.b16 %v5271, %v5269
    %v5300 = vpack.c.b16 %v5272, %v5270
    %v5301 = vpack.c.b16 %v5275, %v5273
    %v5302 = vpack.c.b16 %v5276, %v5274
    %v5303 = vpack.c.b16 %v5279, %v5277
    %v5304 = vpack.c.b16 %v5280, %v5278
    %v5305 = vpack.c.b16 %v5283, %v5281
    %v5306 = vpack.c.b16 %v5284, %v5282
    %v5307 = vpack.c.b16 %v5287, %v5285
    %v5308 = vpack.c.b16 %v5288, %v5286
    %v5330 = vsel %vm5094, %v4930, 0
    %v5333 = vsel %vm5094, %v4932, 0
    %v5336 = vsel %vm5094, %v4934, 0
    %v5339 = vsel %vm5094, %v4936, 0
    %v5342 = vsel %vm5094, %v4938, 0
    %v5345 = vsel %vm5094, %v4940, 0
    %5347 = vmatprep.subr.bf16.mxu0 %v5304
    %5348 = vmatpush1.bf16.msra.mxu0 %v5303
    %5349 = vmatprep.subr.bf16.mxu0 %v5302
    %5350 = vmatpush1.bf16.msra.mxu0 %v5301
    %5351 = vmatprep.subr.bf16.mxu0 %v5300
    %5352 = vmatpush1.bf16.msra.mxu0 %v5299
    %5353 = vmatprep.subr.bf16.mxu0 %v5298
    %5354 = vmatpush1.bf16.msra.mxu0 %v5297
    %5355 = vmatprep.subr.bf16.mxu0 %v5296
    %5356 = vmatpush1.bf16.msra.mxu0 %v5295
    %5357 = vmatprep.subr.bf16.mxu0 %v5294
    %5358 = vmatpush1.bf16.msra.mxu0 %v5293
    %5359 = vmatprep.subr.bf16.mxu0 %v5292
    %5360 = vmatpush1.bf16.msra.mxu0 %v5291
    %5361 = vmatprep.subr.bf16.mxu0 %v5290
    %5362 = vmatpush1.bf16.msra.mxu0 %v5289
    %5363 = vmatprep.subr.bf16.mxu0 0
    %5364 = vmatpush2.bf16.msra.mxu0 0
    %5365 = vmatprep.subr.bf16.mxu0 0
    %5366 = vmatpush2.bf16.msra.mxu0 0
    %5367 = vmatprep.subr.bf16.mxu0 0
    %5368 = vmatpush2.bf16.msra.mxu0 0
    %5369 = vmatprep.subr.bf16.mxu0 0
    %5370 = vmatpush2.bf16.msra.mxu0 0
    %5371 = vmatprep.subr.bf16.mxu0 0
    %5372 = vmatpush2.bf16.msra.mxu0 0
    %5373 = vmatprep.subr.bf16.mxu0 0
    %5374 = vmatpush2.bf16.msra.mxu0 0
    %5375 = vmatprep.subr.bf16.mxu0 %v5308
    %5376 = vmatpush2.bf16.msra.mxu0 %v5307
    %5377 = vmatprep.subr.bf16.mxu0 %v5306
    %5378 = vmatpush2.bf16.msra.mxu0 %v5305
    %5379 = vmatprep.mubr.bf16.mxu0 %v5096
    %5380 = vmatmul.mubr.bf16.gmra.mxu0 %v4928
    %v5381 = vpop.f32.mrf.mxu0
    %v5382 = vadd.f32 %v5151, %v5381
    %v5383 = vpop.f32.mrf.mxu0
    %v5384 = vadd.f32 %v5153, %v5383
    %v5385 = vpop.f32.mrf.mxu0
    %v5386 = vadd.f32 %v5155, %v5385
    %v5387 = vpop.f32.mrf.mxu0
    %v5388 = vadd.f32 %v5157, %v5387
    %5389 = vmatprep.mubr.bf16.mxu0 %v5330
    %5390 = vmatmul.mubr.bf16.gmra.mxu0 %v4929
    %v5391 = vpop.f32.mrf.mxu0
    %v5392 = vadd.f32 %v5161, %v5391
    %v5393 = vpop.f32.mrf.mxu0
    %v5394 = vadd.f32 %v5163, %v5393
    %v5395 = vpop.f32.mrf.mxu0
    %v5396 = vadd.f32 %v5165, %v5395
    %v5397 = vpop.f32.mrf.mxu0
    %v5398 = vadd.f32 %v5167, %v5397
    %5399 = vmatprep.mubr.bf16.mxu0 %v5333
    %5400 = vmatmul.mubr.bf16.gmra.mxu0 %v4931
    %v5401 = vpop.f32.mrf.mxu0
    %v5402 = vadd.f32 %v5171, %v5401
    %v5403 = vpop.f32.mrf.mxu0
    %v5404 = vadd.f32 %v5173, %v5403
    %v5405 = vpop.f32.mrf.mxu0
    %v5406 = vadd.f32 %v5175, %v5405
    %v5407 = vpop.f32.mrf.mxu0
    %v5408 = vadd.f32 %v5177, %v5407
    %5409 = vmatprep.mubr.bf16.mxu0 %v5336
    %5410 = vmatmul.mubr.bf16.gmra.mxu0 %v4933
    %v5411 = vpop.f32.mrf.mxu0
    %v5412 = vadd.f32 %v5181, %v5411
    %v5413 = vpop.f32.mrf.mxu0
    %v5414 = vadd.f32 %v5183, %v5413
    %v5415 = vpop.f32.mrf.mxu0
    %v5416 = vadd.f32 %v5185, %v5415
    %v5417 = vpop.f32.mrf.mxu0
    %v5418 = vadd.f32 %v5187, %v5417
    %5419 = vmatprep.mubr.bf16.mxu0 %v5096
    %5420 = vmatmul.mubr.bf16.gmra.mxu0 %v4928
    %v5421 = vpop.f32.mrf.mxu0
    %v5422 = vadd.f32 %v5191, %v5421
    %v5423 = vpop.f32.mrf.mxu0
    %v5424 = vadd.f32 %v5193, %v5423
    %v5425 = vpop.f32.mrf.mxu0
    %v5426 = vadd.f32 %v5195, %v5425
    %v5427 = vpop.f32.mrf.mxu0
    %v5428 = vadd.f32 %v5197, %v5427
    %5429 = vmatprep.mubr.bf16.mxu0 %v5339
    %5430 = vmatmul.mubr.bf16.gmra.mxu0 %v4935
    %v5431 = vpop.f32.mrf.mxu0
    %v5432 = vadd.f32 %v5201, %v5431
    %v5433 = vpop.f32.mrf.mxu0
    %v5434 = vadd.f32 %v5203, %v5433
    %v5435 = vpop.f32.mrf.mxu0
    %v5436 = vadd.f32 %v5205, %v5435
    %v5437 = vpop.f32.mrf.mxu0
    %v5438 = vadd.f32 %v5207, %v5437
    %5439 = vmatprep.mubr.bf16.mxu0 %v5342
    %5440 = vmatmul.mubr.bf16.gmra.mxu0 %v4937
    %v5441 = vpop.f32.mrf.mxu0
    %v5442 = vadd.f32 %v5211, %v5441
    %v5443 = vpop.f32.mrf.mxu0
    %v5444 = vadd.f32 %v5213, %v5443
    %v5445 = vpop.f32.mrf.mxu0
    %v5446 = vadd.f32 %v5215, %v5445
    %v5447 = vpop.f32.mrf.mxu0
    %v5448 = vadd.f32 %v5217, %v5447
    %5449 = vmatprep.mubr.bf16.mxu0 %v5345
    %5450 = vmatmul.mubr.bf16.gmra.mxu0 %v4939
    %v5451 = vpop.f32.mrf.mxu0
    %v5452 = vadd.f32 %v5221, %v5451
    %v5453 = vpop.f32.mrf.mxu0
    %v5454 = vadd.f32 %v5223, %v5453
    %v5455 = vpop.f32.mrf.mxu0
    %v5456 = vadd.f32 %v5225, %v5455
    %v5457 = vpop.f32.mrf.mxu0
    %v5458 = vadd.f32 %v5227, %v5457
    %5459 = vdwg.mxu0
    %v5460 = vpack.c.bf16 %v4908, %v4906
    %v5461 = vpack.c.bf16 %v4909, %v4907
    %v5462 = vpack.c.bf16 %v4924, %v4922
    %v5463 = vpack.c.bf16 %v4925, %v4923
    %s5464 = scalar_lea.vmem %s7, 320
    %v5465 = vld [vmem:[%s5464] sm:$0xff]
    %v5466 = vld [vmem:[%s5464 + $0x8] sm:$0xff]
    %v5467 = vld [vmem:[%s5464 + $0x10] sm:$0xff]
    %v5468 = vld [vmem:[%s5464 + $0x18] sm:$0xff]
    %v5469 = vld [vmem:[%s5464 + $0x20] sm:$0xff]
    %v5470 = vld [vmem:[%s5464 + $0x28] sm:$0xff]
    %v5471 = vld [vmem:[%s5464 + $0x30] sm:$0xff]
    %v5472 = vld [vmem:[%s5464 + $0x38] sm:$0xff]
    %v5473 = vld [vmem:[%s5464 + $0x40] sm:$0xff]
    %v5474 = vld [vmem:[%s5464 + $0x48] sm:$0xff]
    %v5475 = vld [vmem:[%s5464 + $0x50] sm:$0xff]
    %v5476 = vld [vmem:[%s5464 + $0x58] sm:$0xff]
    %v5477 = vld [vmem:[%s5464 + $0x60] sm:$0xff]
    %v5478 = vld [vmem:[%s5464 + $0x68] sm:$0xff]
    %v5479 = vld [vmem:[%s5464 + $0x70] sm:$0xff]
    %v5480 = vld [vmem:[%s5464 + $0x78] sm:$0xff]
    %v5481 = vld [vmem:[%s5464 + $0x80] sm:$0xff]
    %v5482 = vld [vmem:[%s5464 + $0x88] sm:$0xff]
    %v5483 = vld [vmem:[%s5464 + $0x90] sm:$0xff]
    %v5484 = vld [vmem:[%s5464 + $0x98] sm:$0xff]
    %v5505 = vunpack.c.l.b16 %v5465
    %v5506 = vunpack.c.h.b16 %v5465
    %v5507 = vunpack.c.l.b16 %v5466
    %v5508 = vunpack.c.h.b16 %v5466
    %v5509 = vunpack.c.l.b16 %v5467
    %v5510 = vunpack.c.h.b16 %v5467
    %v5511 = vunpack.c.l.b16 %v5468
    %v5512 = vunpack.c.h.b16 %v5468
    %v5513 = vunpack.c.l.b16 %v5469
    %v5514 = vunpack.c.h.b16 %v5469
    %v5515 = vunpack.c.l.b16 %v5470
    %v5516 = vunpack.c.h.b16 %v5470
    %v5517 = vunpack.c.l.b16 %v5471
    %v5518 = vunpack.c.h.b16 %v5471
    %v5519 = vunpack.c.l.b16 %v5472
    %v5520 = vunpack.c.h.b16 %v5472
    %v5521 = vunpack.c.l.b16 %v5473
    %v5522 = vunpack.c.h.b16 %v5473
    %v5523 = vunpack.c.l.b16 %v5474
    %v5524 = vunpack.c.h.b16 %v5474
    %v5525 = vunpack.c.l.b16 %v5475
    %v5526 = vunpack.c.h.b16 %v5475
    %v5527 = vunpack.c.l.b16 %v5476
    %v5528 = vunpack.c.h.b16 %v5476
    %v5529 = vunpack.c.l.b16 %v5477
    %v5530 = vunpack.c.h.b16 %v5477
    %v5531 = vunpack.c.l.b16 %v5478
    %v5532 = vunpack.c.h.b16 %v5478
    %v5533 = vunpack.c.l.b16 %v5479
    %v5534 = vunpack.c.h.b16 %v5479
    %v5535 = vunpack.c.l.b16 %v5480
    %v5536 = vunpack.c.h.b16 %v5480
    %v5537 = vunpack.c.l.b16 %v5481
    %v5538 = vunpack.c.h.b16 %v5481
    %v5539 = vunpack.c.l.b16 %v5482
    %v5540 = vunpack.c.h.b16 %v5482
    %v5541 = vunpack.c.l.b16 %v5483
    %v5542 = vunpack.c.h.b16 %v5483
    %v5543 = vunpack.c.l.b16 %v5484
    %v5544 = vunpack.c.h.b16 %v5484
    %v5545 = vpack.c.b16 %v5507, %v5505
    %v5546 = vpack.c.b16 %v5508, %v5506
    %v5547 = vpack.c.b16 %v5511, %v5509
    %v5548 = vpack.c.b16 %v5512, %v5510
    %v5549 = vpack.c.b16 %v5515, %v5513
    %v5550 = vpack.c.b16 %v5516, %v5514
    %v5551 = vpack.c.b16 %v5519, %v5517
    %v5552 = vpack.c.b16 %v5520, %v5518
    %v5553 = vpack.c.b16 %v5523, %v5521
    %v5554 = vpack.c.b16 %v5524, %v5522
    %v5555 = vpack.c.b16 %v5527, %v5525
    %v5556 = vpack.c.b16 %v5528, %v5526
    %v5557 = vpack.c.b16 %v5531, %v5529
    %v5558 = vpack.c.b16 %v5532, %v5530
    %v5559 = vpack.c.b16 %v5535, %v5533
    %v5560 = vpack.c.b16 %v5536, %v5534
    %v5561 = vpack.c.b16 %v5539, %v5537
    %v5562 = vpack.c.b16 %v5540, %v5538
    %v5563 = vpack.c.b16 %v5543, %v5541
    %v5564 = vpack.c.b16 %v5544, %v5542
    %v5586 = vsel %vm5094, %v5461, 0
    %v5589 = vsel %vm5094, %v5463, 0
    %5591 = vmatprep.subr.bf16.mxu0 %v5560
    %5592 = vmatpush1.bf16.msra.mxu0 %v5559
    %5593 = vmatprep.subr.bf16.mxu0 %v5558
    %5594 = vmatpush1.bf16.msra.mxu0 %v5557
    %5595 = vmatprep.subr.bf16.mxu0 %v5556
    %5596 = vmatpush1.bf16.msra.mxu0 %v5555
    %5597 = vmatprep.subr.bf16.mxu0 %v5554
    %5598 = vmatpush1.bf16.msra.mxu0 %v5553
    %5599 = vmatprep.subr.bf16.mxu0 %v5552
    %5600 = vmatpush1.bf16.msra.mxu0 %v5551
    %5601 = vmatprep.subr.bf16.mxu0 %v5550
    %5602 = vmatpush1.bf16.msra.mxu0 %v5549
    %5603 = vmatprep.subr.bf16.mxu0 %v5548
    %5604 = vmatpush1.bf16.msra.mxu0 %v5547
    %5605 = vmatprep.subr.bf16.mxu0 %v5546
    %5606 = vmatpush1.bf16.msra.mxu0 %v5545
    %5607 = vmatprep.subr.bf16.mxu0 0
    %5608 = vmatpush2.bf16.msra.mxu0 0
    %5609 = vmatprep.subr.bf16.mxu0 0
    %5610 = vmatpush2.bf16.msra.mxu0 0
    %5611 = vmatprep.subr.bf16.mxu0 0
    %5612 = vmatpush2.bf16.msra.mxu0 0
    %5613 = vmatprep.subr.bf16.mxu0 0
    %5614 = vmatpush2.bf16.msra.mxu0 0
    %5615 = vmatprep.subr.bf16.mxu0 0
    %5616 = vmatpush2.bf16.msra.mxu0 0
    %5617 = vmatprep.subr.bf16.mxu0 0
    %5618 = vmatpush2.bf16.msra.mxu0 0
    %5619 = vmatprep.subr.bf16.mxu0 %v5564
    %5620 = vmatpush2.bf16.msra.mxu0 %v5563
    %5621 = vmatprep.subr.bf16.mxu0 %v5562
    %5622 = vmatpush2.bf16.msra.mxu0 %v5561
    %5623 = vmatprep.mubr.bf16.mxu0 %v5330
    %5624 = vmatmul.mubr.bf16.gmra.mxu0 %v4929
    %v5625 = vpop.f32.mrf.mxu0
    %v5626 = vadd.f32 0.0, %v5625
    %v5627 = vpop.f32.mrf.mxu0
    %v5628 = vadd.f32 0.0, %v5627
    %v5629 = vpop.f32.mrf.mxu0
    %v5630 = vadd.f32 0.0, %v5629
    %v5631 = vpop.f32.mrf.mxu0
    %v5632 = vadd.f32 0.0, %v5631
    %5633 = vmatprep.mubr.bf16.mxu0 %v5333
    %5634 = vmatmul.mubr.bf16.gmra.mxu0 %v4931
    %v5635 = vpop.f32.mrf.mxu0
    %v5636 = vadd.f32 0.0, %v5635
    %v5637 = vpop.f32.mrf.mxu0
    %v5638 = vadd.f32 0.0, %v5637
    %v5639 = vpop.f32.mrf.mxu0
    %v5640 = vadd.f32 0.0, %v5639
    %v5641 = vpop.f32.mrf.mxu0
    %v5642 = vadd.f32 0.0, %v5641
    %5643 = vmatprep.mubr.bf16.mxu0 %v5336
    %5644 = vmatmul.mubr.bf16.gmra.mxu0 %v4933
    %v5645 = vpop.f32.mrf.mxu0
    %v5646 = vadd.f32 0.0, %v5645
    %v5647 = vpop.f32.mrf.mxu0
    %v5648 = vadd.f32 0.0, %v5647
    %v5649 = vpop.f32.mrf.mxu0
    %v5650 = vadd.f32 0.0, %v5649
    %v5651 = vpop.f32.mrf.mxu0
    %v5652 = vadd.f32 0.0, %v5651
    %5653 = vmatprep.mubr.bf16.mxu0 %v5586
    %5654 = vmatmul.mubr.bf16.gmra.mxu0 %v5460
    %v5655 = vpop.f32.mrf.mxu0
    %v5656 = vadd.f32 0.0, %v5655
    %v5657 = vpop.f32.mrf.mxu0
    %v5658 = vadd.f32 0.0, %v5657
    %v5659 = vpop.f32.mrf.mxu0
    %v5660 = vadd.f32 0.0, %v5659
    %v5661 = vpop.f32.mrf.mxu0
    %v5662 = vadd.f32 0.0, %v5661
    %5663 = vmatprep.mubr.bf16.mxu0 %v5339
    %5664 = vmatmul.mubr.bf16.gmra.mxu0 %v4935
    %v5665 = vpop.f32.mrf.mxu0
    %v5666 = vadd.f32 0.0, %v5665
    %v5667 = vpop.f32.mrf.mxu0
    %v5668 = vadd.f32 0.0, %v5667
    %v5669 = vpop.f32.mrf.mxu0
    %v5670 = vadd.f32 0.0, %v5669
    %v5671 = vpop.f32.mrf.mxu0
    %v5672 = vadd.f32 0.0, %v5671
    %5673 = vmatprep.mubr.bf16.mxu0 %v5342
    %5674 = vmatmul.mubr.bf16.gmra.mxu0 %v4937
    %v5675 = vpop.f32.mrf.mxu0
    %v5676 = vadd.f32 0.0, %v5675
    %v5677 = vpop.f32.mrf.mxu0
    %v5678 = vadd.f32 0.0, %v5677
    %v5679 = vpop.f32.mrf.mxu0
    %v5680 = vadd.f32 0.0, %v5679
    %v5681 = vpop.f32.mrf.mxu0
    %v5682 = vadd.f32 0.0, %v5681
    %5683 = vmatprep.mubr.bf16.mxu0 %v5345
    %5684 = vmatmul.mubr.bf16.gmra.mxu0 %v4939
    %v5685 = vpop.f32.mrf.mxu0
    %v5686 = vadd.f32 0.0, %v5685
    %v5687 = vpop.f32.mrf.mxu0
    %v5688 = vadd.f32 0.0, %v5687
    %v5689 = vpop.f32.mrf.mxu0
    %v5690 = vadd.f32 0.0, %v5689
    %v5691 = vpop.f32.mrf.mxu0
    %v5692 = vadd.f32 0.0, %v5691
    %5693 = vmatprep.mubr.bf16.mxu0 %v5589
    %5694 = vmatmul.mubr.bf16.gmra.mxu0 %v5462
    %v5695 = vpop.f32.mrf.mxu0
    %v5696 = vadd.f32 0.0, %v5695
    %v5697 = vpop.f32.mrf.mxu0
    %v5698 = vadd.f32 0.0, %v5697
    %v5699 = vpop.f32.mrf.mxu0
    %v5700 = vadd.f32 0.0, %v5699
    %v5701 = vpop.f32.mrf.mxu0
    %v5702 = vadd.f32 0.0, %v5701
    %5703 = vdwg.mxu0
    %v5704 = vadd.f32 %v5382, %v5626
    %v5705 = vadd.f32 %v5384, %v5628
    %v5706 = vadd.f32 %v5386, %v5630
    %v5707 = vadd.f32 %v5388, %v5632
    %v5708 = vadd.f32 %v5392, %v5636
    %v5709 = vadd.f32 %v5394, %v5638
    %v5710 = vadd.f32 %v5396, %v5640
    %v5711 = vadd.f32 %v5398, %v5642
    %v5712 = vadd.f32 %v5402, %v5646
    %v5713 = vadd.f32 %v5404, %v5648
    %v5714 = vadd.f32 %v5406, %v5650
    %v5715 = vadd.f32 %v5408, %v5652
    %v5716 = vadd.f32 %v5412, %v5656
    %v5717 = vadd.f32 %v5414, %v5658
    %v5718 = vadd.f32 %v5416, %v5660
    %v5719 = vadd.f32 %v5418, %v5662
    %v5720 = vadd.f32 %v5422, %v5666
    %v5721 = vadd.f32 %v5424, %v5668
    %v5722 = vadd.f32 %v5426, %v5670
    %v5723 = vadd.f32 %v5428, %v5672
    %v5724 = vadd.f32 %v5432, %v5676
    %v5725 = vadd.f32 %v5434, %v5678
    %v5726 = vadd.f32 %v5436, %v5680
    %v5727 = vadd.f32 %v5438, %v5682
    %v5728 = vadd.f32 %v5442, %v5686
    %v5729 = vadd.f32 %v5444, %v5688
    %v5730 = vadd.f32 %v5446, %v5690
    %v5731 = vadd.f32 %v5448, %v5692
    %v5732 = vadd.f32 %v5452, %v5696
    %v5733 = vadd.f32 %v5454, %v5698
    %v5734 = vadd.f32 %v5456, %v5700
    %v5735 = vadd.f32 %v5458, %v5702
    %v5736 = vpack.c.bf16 %v4910, %v4908
    %v5737 = vpack.c.bf16 %v4911, %v4909
    %v5738 = vpack.c.bf16 %v4926, %v4924
    %v5739 = vpack.c.bf16 %v4927, %v4925
    %s5740 = scalar_lea.vmem %s7, 480
    %v5741 = vld [vmem:[%s5740] sm:$0xff]
    %v5742 = vld [vmem:[%s5740 + $0x8] sm:$0xff]
    %v5743 = vld [vmem:[%s5740 + $0x10] sm:$0xff]
    %v5744 = vld [vmem:[%s5740 + $0x18] sm:$0xff]
    %v5745 = vld [vmem:[%s5740 + $0x20] sm:$0xff]
    %v5746 = vld [vmem:[%s5740 + $0x28] sm:$0xff]
    %v5747 = vld [vmem:[%s5740 + $0x30] sm:$0xff]
    %v5748 = vld [vmem:[%s5740 + $0x38] sm:$0xff]
    %v5749 = vld [vmem:[%s5740 + $0x40] sm:$0xff]
    %v5750 = vld [vmem:[%s5740 + $0x48] sm:$0xff]
    %v5751 = vld [vmem:[%s5740 + $0x50] sm:$0xff]
    %v5752 = vld [vmem:[%s5740 + $0x58] sm:$0xff]
    %v5753 = vld [vmem:[%s5740 + $0x60] sm:$0xff]
    %v5754 = vld [vmem:[%s5740 + $0x68] sm:$0xff]
    %v5755 = vld [vmem:[%s5740 + $0x70] sm:$0xff]
    %v5756 = vld [vmem:[%s5740 + $0x78] sm:$0xff]
    %v5757 = vld [vmem:[%s5740 + $0x80] sm:$0xff]
    %v5758 = vld [vmem:[%s5740 + $0x88] sm:$0xff]
    %v5759 = vld [vmem:[%s5740 + $0x90] sm:$0xff]
    %v5760 = vld [vmem:[%s5740 + $0x98] sm:$0xff]
    %v5781 = vunpack.c.l.b16 %v5741
    %v5782 = vunpack.c.h.b16 %v5741
    %v5783 = vunpack.c.l.b16 %v5742
    %v5784 = vunpack.c.h.b16 %v5742
    %v5785 = vunpack.c.l.b16 %v5743
    %v5786 = vunpack.c.h.b16 %v5743
    %v5787 = vunpack.c.l.b16 %v5744
    %v5788 = vunpack.c.h.b16 %v5744
    %v5789 = vunpack.c.l.b16 %v5745
    %v5790 = vunpack.c.h.b16 %v5745
    %v5791 = vunpack.c.l.b16 %v5746
    %v5792 = vunpack.c.h.b16 %v5746
    %v5793 = vunpack.c.l.b16 %v5747
    %v5794 = vunpack.c.h.b16 %v5747
    %v5795 = vunpack.c.l.b16 %v5748
    %v5796 = vunpack.c.h.b16 %v5748
    %v5797 = vunpack.c.l.b16 %v5749
    %v5798 = vunpack.c.h.b16 %v5749
    %v5799 = vunpack.c.l.b16 %v5750
    %v5800 = vunpack.c.h.b16 %v5750
    %v5801 = vunpack.c.l.b16 %v5751
    %v5802 = vunpack.c.h.b16 %v5751
    %v5803 = vunpack.c.l.b16 %v5752
    %v5804 = vunpack.c.h.b16 %v5752
    %v5805 = vunpack.c.l.b16 %v5753
    %v5806 = vunpack.c.h.b16 %v5753
    %v5807 = vunpack.c.l.b16 %v5754
    %v5808 = vunpack.c.h.b16 %v5754
    %v5809 = vunpack.c.l.b16 %v5755
    %v5810 = vunpack.c.h.b16 %v5755
    %v5811 = vunpack.c.l.b16 %v5756
    %v5812 = vunpack.c.h.b16 %v5756
    %v5813 = vunpack.c.l.b16 %v5757
    %v5814 = vunpack.c.h.b16 %v5757
    %v5815 = vunpack.c.l.b16 %v5758
    %v5816 = vunpack.c.h.b16 %v5758
    %v5817 = vunpack.c.l.b16 %v5759
    %v5818 = vunpack.c.h.b16 %v5759
    %v5819 = vunpack.c.l.b16 %v5760
    %v5820 = vunpack.c.h.b16 %v5760
    %v5821 = vpack.c.b16 %v5783, %v5781
    %v5822 = vpack.c.b16 %v5784, %v5782
    %v5823 = vpack.c.b16 %v5787, %v5785
    %v5824 = vpack.c.b16 %v5788, %v5786
    %v5825 = vpack.c.b16 %v5791, %v5789
    %v5826 = vpack.c.b16 %v5792, %v5790
    %v5827 = vpack.c.b16 %v5795, %v5793
    %v5828 = vpack.c.b16 %v5796, %v5794
    %v5829 = vpack.c.b16 %v5799, %v5797
    %v5830 = vpack.c.b16 %v5800, %v5798
    %v5831 = vpack.c.b16 %v5803, %v5801
    %v5832 = vpack.c.b16 %v5804, %v5802
    %v5833 = vpack.c.b16 %v5807, %v5805
    %v5834 = vpack.c.b16 %v5808, %v5806
    %v5835 = vpack.c.b16 %v5811, %v5809
    %v5836 = vpack.c.b16 %v5812, %v5810
    %v5837 = vpack.c.b16 %v5815, %v5813
    %v5838 = vpack.c.b16 %v5816, %v5814
    %v5839 = vpack.c.b16 %v5819, %v5817
    %v5840 = vpack.c.b16 %v5820, %v5818
    %v5862 = vsel %vm5094, %v5737, 0
    %v5865 = vsel %vm5094, %v5739, 0
    %5867 = vmatprep.subr.bf16.mxu0 %v5836
    %5868 = vmatpush1.bf16.msra.mxu0 %v5835
    %5869 = vmatprep.subr.bf16.mxu0 %v5834
    %5870 = vmatpush1.bf16.msra.mxu0 %v5833
    %5871 = vmatprep.subr.bf16.mxu0 %v5832
    %5872 = vmatpush1.bf16.msra.mxu0 %v5831
    %5873 = vmatprep.subr.bf16.mxu0 %v5830
    %5874 = vmatpush1.bf16.msra.mxu0 %v5829
    %5875 = vmatprep.subr.bf16.mxu0 %v5828
    %5876 = vmatpush1.bf16.msra.mxu0 %v5827
    %5877 = vmatprep.subr.bf16.mxu0 %v5826
    %5878 = vmatpush1.bf16.msra.mxu0 %v5825
    %5879 = vmatprep.subr.bf16.mxu0 %v5824
    %5880 = vmatpush1.bf16.msra.mxu0 %v5823
    %5881 = vmatprep.subr.bf16.mxu0 %v5822
    %5882 = vmatpush1.bf16.msra.mxu0 %v5821
    %5883 = vmatprep.subr.bf16.mxu0 0
    %5884 = vmatpush2.bf16.msra.mxu0 0
    %5885 = vmatprep.subr.bf16.mxu0 0
    %5886 = vmatpush2.bf16.msra.mxu0 0
    %5887 = vmatprep.subr.bf16.mxu0 0
    %5888 = vmatpush2.bf16.msra.mxu0 0
    %5889 = vmatprep.subr.bf16.mxu0 0
    %5890 = vmatpush2.bf16.msra.mxu0 0
    %5891 = vmatprep.subr.bf16.mxu0 0
    %5892 = vmatpush2.bf16.msra.mxu0 0
    %5893 = vmatprep.subr.bf16.mxu0 0
    %5894 = vmatpush2.bf16.msra.mxu0 0
    %5895 = vmatprep.subr.bf16.mxu0 %v5840
    %5896 = vmatpush2.bf16.msra.mxu0 %v5839
    %5897 = vmatprep.subr.bf16.mxu0 %v5838
    %5898 = vmatpush2.bf16.msra.mxu0 %v5837
    %5899 = vmatprep.mubr.bf16.mxu0 %v5099
    %5900 = vmatmul.mubr.bf16.gmra.mxu0 %v4961
    %v5901 = vpop.f32.mrf.mxu0
    %v5902 = vadd.f32 0.0, %v5901
    %v5903 = vpop.f32.mrf.mxu0
    %v5904 = vadd.f32 0.0, %v5903
    %v5905 = vpop.f32.mrf.mxu0
    %v5906 = vadd.f32 0.0, %v5905
    %v5907 = vpop.f32.mrf.mxu0
    %v5908 = vadd.f32 0.0, %v5907
    %5909 = vmatprep.mubr.bf16.mxu0 %v5102
    %5910 = vmatmul.mubr.bf16.gmra.mxu0 %v4963
    %v5911 = vpop.f32.mrf.mxu0
    %v5912 = vadd.f32 0.0, %v5911
    %v5913 = vpop.f32.mrf.mxu0
    %v5914 = vadd.f32 0.0, %v5913
    %v5915 = vpop.f32.mrf.mxu0
    %v5916 = vadd.f32 0.0, %v5915
    %v5917 = vpop.f32.mrf.mxu0
    %v5918 = vadd.f32 0.0, %v5917
    %5919 = vmatprep.mubr.bf16.mxu0 %v5105
    %5920 = vmatmul.mubr.bf16.gmra.mxu0 %v4965
    %v5921 = vpop.f32.mrf.mxu0
    %v5922 = vadd.f32 0.0, %v5921
    %v5923 = vpop.f32.mrf.mxu0
    %v5924 = vadd.f32 0.0, %v5923
    %v5925 = vpop.f32.mrf.mxu0
    %v5926 = vadd.f32 0.0, %v5925
    %v5927 = vpop.f32.mrf.mxu0
    %v5928 = vadd.f32 0.0, %v5927
    %5929 = vmatprep.mubr.bf16.mxu0 %v5862
    %5930 = vmatmul.mubr.bf16.gmra.mxu0 %v5736
    %v5931 = vpop.f32.mrf.mxu0
    %v5932 = vadd.f32 0.0, %v5931
    %v5933 = vpop.f32.mrf.mxu0
    %v5934 = vadd.f32 0.0, %v5933
    %v5935 = vpop.f32.mrf.mxu0
    %v5936 = vadd.f32 0.0, %v5935
    %v5937 = vpop.f32.mrf.mxu0
    %v5938 = vadd.f32 0.0, %v5937
    %5939 = vmatprep.mubr.bf16.mxu0 %v5108
    %5940 = vmatmul.mubr.bf16.gmra.mxu0 %v4967
    %v5941 = vpop.f32.mrf.mxu0
    %v5942 = vadd.f32 0.0, %v5941
    %v5943 = vpop.f32.mrf.mxu0
    %v5944 = vadd.f32 0.0, %v5943
    %v5945 = vpop.f32.mrf.mxu0
    %v5946 = vadd.f32 0.0, %v5945
    %v5947 = vpop.f32.mrf.mxu0
    %v5948 = vadd.f32 0.0, %v5947
    %5949 = vmatprep.mubr.bf16.mxu0 %v5111
    %5950 = vmatmul.mubr.bf16.gmra.mxu0 %v4969
    %v5951 = vpop.f32.mrf.mxu0
    %v5952 = vadd.f32 0.0, %v5951
    %v5953 = vpop.f32.mrf.mxu0
    %v5954 = vadd.f32 0.0, %v5953
    %v5955 = vpop.f32.mrf.mxu0
    %v5956 = vadd.f32 0.0, %v5955
    %v5957 = vpop.f32.mrf.mxu0
    %v5958 = vadd.f32 0.0, %v5957
    %5959 = vmatprep.mubr.bf16.mxu0 %v5114
    %5960 = vmatmul.mubr.bf16.gmra.mxu0 %v4971
    %v5961 = vpop.f32.mrf.mxu0
    %v5962 = vadd.f32 0.0, %v5961
    %v5963 = vpop.f32.mrf.mxu0
    %v5964 = vadd.f32 0.0, %v5963
    %v5965 = vpop.f32.mrf.mxu0
    %v5966 = vadd.f32 0.0, %v5965
    %v5967 = vpop.f32.mrf.mxu0
    %v5968 = vadd.f32 0.0, %v5967
    %5969 = vmatprep.mubr.bf16.mxu0 %v5865
    %5970 = vmatmul.mubr.bf16.gmra.mxu0 %v5738
    %v5971 = vpop.f32.mrf.mxu0
    %v5972 = vadd.f32 0.0, %v5971
    %v5973 = vpop.f32.mrf.mxu0
    %v5974 = vadd.f32 0.0, %v5973
    %v5975 = vpop.f32.mrf.mxu0
    %v5976 = vadd.f32 0.0, %v5975
    %v5977 = vpop.f32.mrf.mxu0
    %v5978 = vadd.f32 0.0, %v5977
    %5979 = vdwg.mxu0
    %v5980 = vadd.f32 %v5704, %v5902
    %v5981 = vadd.f32 %v5705, %v5904
    %v5982 = vadd.f32 %v5706, %v5906
    %v5983 = vadd.f32 %v5707, %v5908
    %v5984 = vadd.f32 %v5708, %v5912
    %v5985 = vadd.f32 %v5709, %v5914
    %v5986 = vadd.f32 %v5710, %v5916
    %v5987 = vadd.f32 %v5711, %v5918
    %v5988 = vadd.f32 %v5712, %v5922
    %v5989 = vadd.f32 %v5713, %v5924
    %v5990 = vadd.f32 %v5714, %v5926
    %v5991 = vadd.f32 %v5715, %v5928
    %v5992 = vadd.f32 %v5716, %v5932
    %v5993 = vadd.f32 %v5717, %v5934
    %v5994 = vadd.f32 %v5718, %v5936
    %v5995 = vadd.f32 %v5719, %v5938
    %v5996 = vadd.f32 %v5720, %v5942
    %v5997 = vadd.f32 %v5721, %v5944
    %v5998 = vadd.f32 %v5722, %v5946
    %v5999 = vadd.f32 %v5723, %v5948
    %v6000 = vadd.f32 %v5724, %v5952
    %v6001 = vadd.f32 %v5725, %v5954
    %v6002 = vadd.f32 %v5726, %v5956
    %v6003 = vadd.f32 %v5727, %v5958
    %v6004 = vadd.f32 %v5728, %v5962
    %v6005 = vadd.f32 %v5729, %v5964
    %v6006 = vadd.f32 %v5730, %v5966
    %v6007 = vadd.f32 %v5731, %v5968
    %v6008 = vadd.f32 %v5732, %v5972
    %v6009 = vadd.f32 %v5733, %v5974
    %v6010 = vadd.f32 %v5734, %v5976
    %v6011 = vadd.f32 %v5735, %v5978
    %v6012 = vpack.c.bf16 0.0, %v4910
    %v6013 = vpack.c.bf16 0.0, %v4911
    %v6014 = vpack.c.bf16 0.0, %v4926
    %v6015 = vpack.c.bf16 0.0, %v4927
    %s6016 = scalar_lea.vmem %s7, 640
    %v6017 = vld [vmem:[%s6016] sm:$0xff]
    %v6018 = vld [vmem:[%s6016 + $0x8] sm:$0xff]
    %v6019 = vld [vmem:[%s6016 + $0x10] sm:$0xff]
    %v6020 = vld [vmem:[%s6016 + $0x18] sm:$0xff]
    %v6021 = vld [vmem:[%s6016 + $0x20] sm:$0xff]
    %v6022 = vld [vmem:[%s6016 + $0x28] sm:$0xff]
    %v6023 = vld [vmem:[%s6016 + $0x30] sm:$0xff]
    %v6024 = vld [vmem:[%s6016 + $0x38] sm:$0xff]
    %v6025 = vld [vmem:[%s6016 + $0x40] sm:$0xff]
    %v6026 = vld [vmem:[%s6016 + $0x48] sm:$0xff]
    %v6027 = vld [vmem:[%s6016 + $0x50] sm:$0xff]
    %v6028 = vld [vmem:[%s6016 + $0x58] sm:$0xff]
    %v6029 = vld [vmem:[%s6016 + $0x60] sm:$0xff]
    %v6030 = vld [vmem:[%s6016 + $0x68] sm:$0xff]
    %v6031 = vld [vmem:[%s6016 + $0x70] sm:$0xff]
    %v6032 = vld [vmem:[%s6016 + $0x78] sm:$0xff]
    %v6033 = vld [vmem:[%s6016 + $0x80] sm:$0xff]
    %v6034 = vld [vmem:[%s6016 + $0x88] sm:$0xff]
    %v6035 = vld [vmem:[%s6016 + $0x90] sm:$0xff]
    %v6036 = vld [vmem:[%s6016 + $0x98] sm:$0xff]
    %v6057 = vunpack.c.l.b16 %v6017
    %v6058 = vunpack.c.h.b16 %v6017
    %v6059 = vunpack.c.l.b16 %v6018
    %v6060 = vunpack.c.h.b16 %v6018
    %v6061 = vunpack.c.l.b16 %v6019
    %v6062 = vunpack.c.h.b16 %v6019
    %v6063 = vunpack.c.l.b16 %v6020
    %v6064 = vunpack.c.h.b16 %v6020
    %v6065 = vunpack.c.l.b16 %v6021
    %v6066 = vunpack.c.h.b16 %v6021
    %v6067 = vunpack.c.l.b16 %v6022
    %v6068 = vunpack.c.h.b16 %v6022
    %v6069 = vunpack.c.l.b16 %v6023
    %v6070 = vunpack.c.h.b16 %v6023
    %v6071 = vunpack.c.l.b16 %v6024
    %v6072 = vunpack.c.h.b16 %v6024
    %v6073 = vunpack.c.l.b16 %v6025
    %v6074 = vunpack.c.h.b16 %v6025
    %v6075 = vunpack.c.l.b16 %v6026
    %v6076 = vunpack.c.h.b16 %v6026
    %v6077 = vunpack.c.l.b16 %v6027
    %v6078 = vunpack.c.h.b16 %v6027
    %v6079 = vunpack.c.l.b16 %v6028
    %v6080 = vunpack.c.h.b16 %v6028
    %v6081 = vunpack.c.l.b16 %v6029
    %v6082 = vunpack.c.h.b16 %v6029
    %v6083 = vunpack.c.l.b16 %v6030
    %v6084 = vunpack.c.h.b16 %v6030
    %v6085 = vunpack.c.l.b16 %v6031
    %v6086 = vunpack.c.h.b16 %v6031
    %v6087 = vunpack.c.l.b16 %v6032
    %v6088 = vunpack.c.h.b16 %v6032
    %v6089 = vunpack.c.l.b16 %v6033
    %v6090 = vunpack.c.h.b16 %v6033
    %v6091 = vunpack.c.l.b16 %v6034
    %v6092 = vunpack.c.h.b16 %v6034
    %v6093 = vunpack.c.l.b16 %v6035
    %v6094 = vunpack.c.h.b16 %v6035
    %v6095 = vunpack.c.l.b16 %v6036
    %v6096 = vunpack.c.h.b16 %v6036
    %v6097 = vpack.c.b16 %v6059, %v6057
    %v6098 = vpack.c.b16 %v6060, %v6058
    %v6099 = vpack.c.b16 %v6063, %v6061
    %v6100 = vpack.c.b16 %v6064, %v6062
    %v6101 = vpack.c.b16 %v6067, %v6065
    %v6102 = vpack.c.b16 %v6068, %v6066
    %v6103 = vpack.c.b16 %v6071, %v6069
    %v6104 = vpack.c.b16 %v6072, %v6070
    %v6105 = vpack.c.b16 %v6075, %v6073
    %v6106 = vpack.c.b16 %v6076, %v6074
    %v6107 = vpack.c.b16 %v6079, %v6077
    %v6108 = vpack.c.b16 %v6080, %v6078
    %v6109 = vpack.c.b16 %v6083, %v6081
    %v6110 = vpack.c.b16 %v6084, %v6082
    %v6111 = vpack.c.b16 %v6087, %v6085
    %v6112 = vpack.c.b16 %v6088, %v6086
    %v6113 = vpack.c.b16 %v6091, %v6089
    %v6114 = vpack.c.b16 %v6092, %v6090
    %v6115 = vpack.c.b16 %v6095, %v6093
    %v6116 = vpack.c.b16 %v6096, %v6094
    %v6138 = vsel %vm5094, %v6013, 0
    %v6141 = vsel %vm5094, %v6015, 0
    %6143 = vmatprep.subr.bf16.mxu0 %v6112
    %6144 = vmatpush1.bf16.msra.mxu0 %v6111
    %6145 = vmatprep.subr.bf16.mxu0 %v6110
    %6146 = vmatpush1.bf16.msra.mxu0 %v6109
    %6147 = vmatprep.subr.bf16.mxu0 %v6108
    %6148 = vmatpush1.bf16.msra.mxu0 %v6107
    %6149 = vmatprep.subr.bf16.mxu0 %v6106
    %6150 = vmatpush1.bf16.msra.mxu0 %v6105
    %6151 = vmatprep.subr.bf16.mxu0 %v6104
    %6152 = vmatpush1.bf16.msra.mxu0 %v6103
    %6153 = vmatprep.subr.bf16.mxu0 %v6102
    %6154 = vmatpush1.bf16.msra.mxu0 %v6101
    %6155 = vmatprep.subr.bf16.mxu0 %v6100
    %6156 = vmatpush1.bf16.msra.mxu0 %v6099
    %6157 = vmatprep.subr.bf16.mxu0 %v6098
    %6158 = vmatpush1.bf16.msra.mxu0 %v6097
    %6159 = vmatprep.subr.bf16.mxu0 0
    %6160 = vmatpush2.bf16.msra.mxu0 0
    %6161 = vmatprep.subr.bf16.mxu0 0
    %6162 = vmatpush2.bf16.msra.mxu0 0
    %6163 = vmatprep.subr.bf16.mxu0 0
    %6164 = vmatpush2.bf16.msra.mxu0 0
    %6165 = vmatprep.subr.bf16.mxu0 0
    %6166 = vmatpush2.bf16.msra.mxu0 0
    %6167 = vmatprep.subr.bf16.mxu0 0
    %6168 = vmatpush2.bf16.msra.mxu0 0
    %6169 = vmatprep.subr.bf16.mxu0 0
    %6170 = vmatpush2.bf16.msra.mxu0 0
    %6171 = vmatprep.subr.bf16.mxu0 %v6116
    %6172 = vmatpush2.bf16.msra.mxu0 %v6115
    %6173 = vmatprep.subr.bf16.mxu0 %v6114
    %6174 = vmatpush2.bf16.msra.mxu0 %v6113
    %6175 = vmatprep.mubr.bf16.mxu0 %v5333
    %6176 = vmatmul.mubr.bf16.gmra.mxu0 %v4931
    %v6177 = vpop.f32.mrf.mxu0
    %v6178 = vadd.f32 0.0, %v6177
    %v6179 = vpop.f32.mrf.mxu0
    %v6180 = vadd.f32 0.0, %v6179
    %v6181 = vpop.f32.mrf.mxu0
    %v6182 = vadd.f32 0.0, %v6181
    %v6183 = vpop.f32.mrf.mxu0
    %v6184 = vadd.f32 0.0, %v6183
    %6185 = vmatprep.mubr.bf16.mxu0 %v5336
    %6186 = vmatmul.mubr.bf16.gmra.mxu0 %v4933
    %v6187 = vpop.f32.mrf.mxu0
    %v6188 = vadd.f32 0.0, %v6187
    %v6189 = vpop.f32.mrf.mxu0
    %v6190 = vadd.f32 0.0, %v6189
    %v6191 = vpop.f32.mrf.mxu0
    %v6192 = vadd.f32 0.0, %v6191
    %v6193 = vpop.f32.mrf.mxu0
    %v6194 = vadd.f32 0.0, %v6193
    %6195 = vmatprep.mubr.bf16.mxu0 %v5586
    %6196 = vmatmul.mubr.bf16.gmra.mxu0 %v5460
    %v6197 = vpop.f32.mrf.mxu0
    %v6198 = vadd.f32 0.0, %v6197
    %v6199 = vpop.f32.mrf.mxu0
    %v6200 = vadd.f32 0.0, %v6199
    %v6201 = vpop.f32.mrf.mxu0
    %v6202 = vadd.f32 0.0, %v6201
    %v6203 = vpop.f32.mrf.mxu0
    %v6204 = vadd.f32 0.0, %v6203
    %6205 = vmatprep.mubr.bf16.mxu0 %v6138
    %6206 = vmatmul.mubr.bf16.gmra.mxu0 %v6012
    %v6207 = vpop.f32.mrf.mxu0
    %v6208 = vadd.f32 0.0, %v6207
    %v6209 = vpop.f32.mrf.mxu0
    %v6210 = vadd.f32 0.0, %v6209
    %v6211 = vpop.f32.mrf.mxu0
    %v6212 = vadd.f32 0.0, %v6211
    %v6213 = vpop.f32.mrf.mxu0
    %v6214 = vadd.f32 0.0, %v6213
    %6215 = vmatprep.mubr.bf16.mxu0 %v5342
    %6216 = vmatmul.mubr.bf16.gmra.mxu0 %v4937
    %v6217 = vpop.f32.mrf.mxu0
    %v6218 = vadd.f32 0.0, %v6217
    %v6219 = vpop.f32.mrf.mxu0
    %v6220 = vadd.f32 0.0, %v6219
    %v6221 = vpop.f32.mrf.mxu0
    %v6222 = vadd.f32 0.0, %v6221
    %v6223 = vpop.f32.mrf.mxu0
    %v6224 = vadd.f32 0.0, %v6223
    %6225 = vmatprep.mubr.bf16.mxu0 %v5345
    %6226 = vmatmul.mubr.bf16.gmra.mxu0 %v4939
    %v6227 = vpop.f32.mrf.mxu0
    %v6228 = vadd.f32 0.0, %v6227
    %v6229 = vpop.f32.mrf.mxu0
    %v6230 = vadd.f32 0.0, %v6229
    %v6231 = vpop.f32.mrf.mxu0
    %v6232 = vadd.f32 0.0, %v6231
    %v6233 = vpop.f32.mrf.mxu0
    %v6234 = vadd.f32 0.0, %v6233
    %6235 = vmatprep.mubr.bf16.mxu0 %v5589
    %6236 = vmatmul.mubr.bf16.gmra.mxu0 %v5462
    %v6237 = vpop.f32.mrf.mxu0
    %v6238 = vadd.f32 0.0, %v6237
    %v6239 = vpop.f32.mrf.mxu0
    %v6240 = vadd.f32 0.0, %v6239
    %v6241 = vpop.f32.mrf.mxu0
    %v6242 = vadd.f32 0.0, %v6241
    %v6243 = vpop.f32.mrf.mxu0
    %v6244 = vadd.f32 0.0, %v6243
    %6245 = vmatprep.mubr.bf16.mxu0 %v6141
    %6246 = vmatmul.mubr.bf16.gmra.mxu0 %v6014
    %v6247 = vpop.f32.mrf.mxu0
    %v6248 = vadd.f32 0.0, %v6247
    %v6249 = vpop.f32.mrf.mxu0
    %v6250 = vadd.f32 0.0, %v6249
    %v6251 = vpop.f32.mrf.mxu0
    %v6252 = vadd.f32 0.0, %v6251
    %v6253 = vpop.f32.mrf.mxu0
    %v6254 = vadd.f32 0.0, %v6253
    %6255 = vdwg.mxu0
    %v6256 = vadd.f32 %v5980, %v6178
    %v6257 = vadd.f32 %v5981, %v6180
    %v6258 = vadd.f32 %v5982, %v6182
    %v6259 = vadd.f32 %v5983, %v6184
    %v6260 = vadd.f32 %v5984, %v6188
    %v6261 = vadd.f32 %v5985, %v6190
    %v6262 = vadd.f32 %v5986, %v6192
    %v6263 = vadd.f32 %v5987, %v6194
    %v6264 = vadd.f32 %v5988, %v6198
    %v6265 = vadd.f32 %v5989, %v6200
    %v6266 = vadd.f32 %v5990, %v6202
    %v6267 = vadd.f32 %v5991, %v6204
    %v6268 = vadd.f32 %v5992, %v6208
    %v6269 = vadd.f32 %v5993, %v6210
    %v6270 = vadd.f32 %v5994, %v6212
    %v6271 = vadd.f32 %v5995, %v6214
    %v6272 = vadd.f32 %v5996, %v6218
    %v6273 = vadd.f32 %v5997, %v6220
    %v6274 = vadd.f32 %v5998, %v6222
    %v6275 = vadd.f32 %v5999, %v6224
    %v6276 = vadd.f32 %v6000, %v6228
    %v6277 = vadd.f32 %v6001, %v6230
    %v6278 = vadd.f32 %v6002, %v6232
    %v6279 = vadd.f32 %v6003, %v6234
    %v6280 = vadd.f32 %v6004, %v6238
    %v6281 = vadd.f32 %v6005, %v6240
    %v6282 = vadd.f32 %v6006, %v6242
    %v6283 = vadd.f32 %v6007, %v6244
    %v6284 = vadd.f32 %v6008, %v6248
    %v6285 = vadd.f32 %v6009, %v6250
    %v6286 = vadd.f32 %v6010, %v6252
    %v6287 = vadd.f32 %v6011, %v6254
    %s6288 = scalar_lea.vmem %s7, 800
    %v6289 = vld [vmem:[%s6288] sm:$0xff]
    %v6290 = vld [vmem:[%s6288 + $0x8] sm:$0xff]
    %v6291 = vld [vmem:[%s6288 + $0x10] sm:$0xff]
    %v6292 = vld [vmem:[%s6288 + $0x18] sm:$0xff]
    %v6293 = vld [vmem:[%s6288 + $0x20] sm:$0xff]
    %v6294 = vld [vmem:[%s6288 + $0x28] sm:$0xff]
    %v6295 = vld [vmem:[%s6288 + $0x30] sm:$0xff]
    %v6296 = vld [vmem:[%s6288 + $0x38] sm:$0xff]
    %v6297 = vld [vmem:[%s6288 + $0x40] sm:$0xff]
    %v6298 = vld [vmem:[%s6288 + $0x48] sm:$0xff]
    %v6299 = vld [vmem:[%s6288 + $0x50] sm:$0xff]
    %v6300 = vld [vmem:[%s6288 + $0x58] sm:$0xff]
    %v6301 = vld [vmem:[%s6288 + $0x60] sm:$0xff]
    %v6302 = vld [vmem:[%s6288 + $0x68] sm:$0xff]
    %v6303 = vld [vmem:[%s6288 + $0x70] sm:$0xff]
    %v6304 = vld [vmem:[%s6288 + $0x78] sm:$0xff]
    %v6305 = vld [vmem:[%s6288 + $0x80] sm:$0xff]
    %v6306 = vld [vmem:[%s6288 + $0x88] sm:$0xff]
    %v6307 = vld [vmem:[%s6288 + $0x90] sm:$0xff]
    %v6308 = vld [vmem:[%s6288 + $0x98] sm:$0xff]
    %v6329 = vunpack.c.l.b16 %v6289
    %v6330 = vunpack.c.h.b16 %v6289
    %v6331 = vunpack.c.l.b16 %v6290
    %v6332 = vunpack.c.h.b16 %v6290
    %v6333 = vunpack.c.l.b16 %v6291
    %v6334 = vunpack.c.h.b16 %v6291
    %v6335 = vunpack.c.l.b16 %v6292
    %v6336 = vunpack.c.h.b16 %v6292
    %v6337 = vunpack.c.l.b16 %v6293
    %v6338 = vunpack.c.h.b16 %v6293
    %v6339 = vunpack.c.l.b16 %v6294
    %v6340 = vunpack.c.h.b16 %v6294
    %v6341 = vunpack.c.l.b16 %v6295
    %v6342 = vunpack.c.h.b16 %v6295
    %v6343 = vunpack.c.l.b16 %v6296
    %v6344 = vunpack.c.h.b16 %v6296
    %v6345 = vunpack.c.l.b16 %v6297
    %v6346 = vunpack.c.h.b16 %v6297
    %v6347 = vunpack.c.l.b16 %v6298
    %v6348 = vunpack.c.h.b16 %v6298
    %v6349 = vunpack.c.l.b16 %v6299
    %v6350 = vunpack.c.h.b16 %v6299
    %v6351 = vunpack.c.l.b16 %v6300
    %v6352 = vunpack.c.h.b16 %v6300
    %v6353 = vunpack.c.l.b16 %v6301
    %v6354 = vunpack.c.h.b16 %v6301
    %v6355 = vunpack.c.l.b16 %v6302
    %v6356 = vunpack.c.h.b16 %v6302
    %v6357 = vunpack.c.l.b16 %v6303
    %v6358 = vunpack.c.h.b16 %v6303
    %v6359 = vunpack.c.l.b16 %v6304
    %v6360 = vunpack.c.h.b16 %v6304
    %v6361 = vunpack.c.l.b16 %v6305
    %v6362 = vunpack.c.h.b16 %v6305
    %v6363 = vunpack.c.l.b16 %v6306
    %v6364 = vunpack.c.h.b16 %v6306
    %v6365 = vunpack.c.l.b16 %v6307
    %v6366 = vunpack.c.h.b16 %v6307
    %v6367 = vunpack.c.l.b16 %v6308
    %v6368 = vunpack.c.h.b16 %v6308
    %v6369 = vpack.c.b16 %v6331, %v6329
    %v6370 = vpack.c.b16 %v6332, %v6330
    %v6371 = vpack.c.b16 %v6335, %v6333
    %v6372 = vpack.c.b16 %v6336, %v6334
    %v6373 = vpack.c.b16 %v6339, %v6337
    %v6374 = vpack.c.b16 %v6340, %v6338
    %v6375 = vpack.c.b16 %v6343, %v6341
    %v6376 = vpack.c.b16 %v6344, %v6342
    %v6377 = vpack.c.b16 %v6347, %v6345
    %v6378 = vpack.c.b16 %v6348, %v6346
    %v6379 = vpack.c.b16 %v6351, %v6349
    %v6380 = vpack.c.b16 %v6352, %v6350
    %v6381 = vpack.c.b16 %v6355, %v6353
    %v6382 = vpack.c.b16 %v6356, %v6354
    %v6383 = vpack.c.b16 %v6359, %v6357
    %v6384 = vpack.c.b16 %v6360, %v6358
    %v6385 = vpack.c.b16 %v6363, %v6361
    %v6386 = vpack.c.b16 %v6364, %v6362
    %v6387 = vpack.c.b16 %v6367, %v6365
    %v6388 = vpack.c.b16 %v6368, %v6366
    %6409 = vmatprep.subr.bf16.mxu0 %v6384
    %6410 = vmatpush1.bf16.msra.mxu0 %v6383
    %6411 = vmatprep.subr.bf16.mxu0 %v6382
    %6412 = vmatpush1.bf16.msra.mxu0 %v6381
    %6413 = vmatprep.subr.bf16.mxu0 %v6380
    %6414 = vmatpush1.bf16.msra.mxu0 %v6379
    %6415 = vmatprep.subr.bf16.mxu0 %v6378
    %6416 = vmatpush1.bf16.msra.mxu0 %v6377
    %6417 = vmatprep.subr.bf16.mxu0 %v6376
    %6418 = vmatpush1.bf16.msra.mxu0 %v6375
    %6419 = vmatprep.subr.bf16.mxu0 %v6374
    %6420 = vmatpush1.bf16.msra.mxu0 %v6373
    %6421 = vmatprep.subr.bf16.mxu0 %v6372
    %6422 = vmatpush1.bf16.msra.mxu0 %v6371
    %6423 = vmatprep.subr.bf16.mxu0 %v6370
    %6424 = vmatpush1.bf16.msra.mxu0 %v6369
    %6425 = vmatprep.subr.bf16.mxu0 0
    %6426 = vmatpush2.bf16.msra.mxu0 0
    %6427 = vmatprep.subr.bf16.mxu0 0
    %6428 = vmatpush2.bf16.msra.mxu0 0
    %6429 = vmatprep.subr.bf16.mxu0 0
    %6430 = vmatpush2.bf16.msra.mxu0 0
    %6431 = vmatprep.subr.bf16.mxu0 0
    %6432 = vmatpush2.bf16.msra.mxu0 0
    %6433 = vmatprep.subr.bf16.mxu0 0
    %6434 = vmatpush2.bf16.msra.mxu0 0
    %6435 = vmatprep.subr.bf16.mxu0 0
    %6436 = vmatpush2.bf16.msra.mxu0 0
    %6437 = vmatprep.subr.bf16.mxu0 %v6388
    %6438 = vmatpush2.bf16.msra.mxu0 %v6387
    %6439 = vmatprep.subr.bf16.mxu0 %v6386
    %6440 = vmatpush2.bf16.msra.mxu0 %v6385
    %6441 = vmatprep.mubr.bf16.mxu0 %v5102
    %6442 = vmatmul.mubr.bf16.gmra.mxu0 %v4963
    %v6443 = vpop.f32.mrf.mxu0
    %v6444 = vadd.f32 0.0, %v6443
    %v6445 = vpop.f32.mrf.mxu0
    %v6446 = vadd.f32 0.0, %v6445
    %v6447 = vpop.f32.mrf.mxu0
    %v6448 = vadd.f32 0.0, %v6447
    %v6449 = vpop.f32.mrf.mxu0
    %v6450 = vadd.f32 0.0, %v6449
    %6451 = vmatprep.mubr.bf16.mxu0 %v5105
    %6452 = vmatmul.mubr.bf16.gmra.mxu0 %v4965
    %v6453 = vpop.f32.mrf.mxu0
    %v6454 = vadd.f32 0.0, %v6453
    %v6455 = vpop.f32.mrf.mxu0
    %v6456 = vadd.f32 0.0, %v6455
    %v6457 = vpop.f32.mrf.mxu0
    %v6458 = vadd.f32 0.0, %v6457
    %v6459 = vpop.f32.mrf.mxu0
    %v6460 = vadd.f32 0.0, %v6459
    %6461 = vmatprep.mubr.bf16.mxu0 %v5862
    %6462 = vmatmul.mubr.bf16.gmra.mxu0 %v5736
    %v6463 = vpop.f32.mrf.mxu0
    %v6464 = vadd.f32 0.0, %v6463
    %v6465 = vpop.f32.mrf.mxu0
    %v6466 = vadd.f32 0.0, %v6465
    %v6467 = vpop.f32.mrf.mxu0
    %v6468 = vadd.f32 0.0, %v6467
    %v6469 = vpop.f32.mrf.mxu0
    %v6470 = vadd.f32 0.0, %v6469
    %6471 = vmatprep.mubr.bf16.mxu0 %v5096
    %6472 = vmatmul.mubr.bf16.gmra.mxu0 %v4928
    %v6473 = vpop.f32.mrf.mxu0
    %v6474 = vadd.f32 0.0, %v6473
    %v6475 = vpop.f32.mrf.mxu0
    %v6476 = vadd.f32 0.0, %v6475
    %v6477 = vpop.f32.mrf.mxu0
    %v6478 = vadd.f32 0.0, %v6477
    %v6479 = vpop.f32.mrf.mxu0
    %v6480 = vadd.f32 0.0, %v6479
    %6481 = vmatprep.mubr.bf16.mxu0 %v5111
    %6482 = vmatmul.mubr.bf16.gmra.mxu0 %v4969
    %v6483 = vpop.f32.mrf.mxu0
    %v6484 = vadd.f32 0.0, %v6483
    %v6485 = vpop.f32.mrf.mxu0
    %v6486 = vadd.f32 0.0, %v6485
    %v6487 = vpop.f32.mrf.mxu0
    %v6488 = vadd.f32 0.0, %v6487
    %v6489 = vpop.f32.mrf.mxu0
    %v6490 = vadd.f32 0.0, %v6489
    %6491 = vmatprep.mubr.bf16.mxu0 %v5114
    %6492 = vmatmul.mubr.bf16.gmra.mxu0 %v4971
    %v6493 = vpop.f32.mrf.mxu0
    %v6494 = vadd.f32 0.0, %v6493
    %v6495 = vpop.f32.mrf.mxu0
    %v6496 = vadd.f32 0.0, %v6495
    %v6497 = vpop.f32.mrf.mxu0
    %v6498 = vadd.f32 0.0, %v6497
    %v6499 = vpop.f32.mrf.mxu0
    %v6500 = vadd.f32 0.0, %v6499
    %6501 = vmatprep.mubr.bf16.mxu0 %v5865
    %6502 = vmatmul.mubr.bf16.gmra.mxu0 %v5738
    %v6503 = vpop.f32.mrf.mxu0
    %v6504 = vadd.f32 0.0, %v6503
    %v6505 = vpop.f32.mrf.mxu0
    %v6506 = vadd.f32 0.0, %v6505
    %v6507 = vpop.f32.mrf.mxu0
    %v6508 = vadd.f32 0.0, %v6507
    %v6509 = vpop.f32.mrf.mxu0
    %v6510 = vadd.f32 0.0, %v6509
    %6511 = vmatprep.mubr.bf16.mxu0 %v5096
    %6512 = vmatmul.mubr.bf16.gmra.mxu0 %v4928
    %v6513 = vpop.f32.mrf.mxu0
    %v6514 = vadd.f32 0.0, %v6513
    %v6515 = vpop.f32.mrf.mxu0
    %v6516 = vadd.f32 0.0, %v6515
    %v6517 = vpop.f32.mrf.mxu0
    %v6518 = vadd.f32 0.0, %v6517
    %v6519 = vpop.f32.mrf.mxu0
    %v6520 = vadd.f32 0.0, %v6519
    %6521 = vdwg.mxu0
    %v6522 = vadd.f32 %v6256, %v6444
    %v6523 = vadd.f32 %v6257, %v6446
    %v6524 = vadd.f32 %v6258, %v6448
    %v6525 = vadd.f32 %v6259, %v6450
    %v6526 = vadd.f32 %v6260, %v6454
    %v6527 = vadd.f32 %v6261, %v6456
    %v6528 = vadd.f32 %v6262, %v6458
    %v6529 = vadd.f32 %v6263, %v6460
    %v6530 = vadd.f32 %v6264, %v6464
    %v6531 = vadd.f32 %v6265, %v6466
    %v6532 = vadd.f32 %v6266, %v6468
    %v6533 = vadd.f32 %v6267, %v6470
    %v6534 = vadd.f32 %v6268, %v6474
    %v6535 = vadd.f32 %v6269, %v6476
    %v6536 = vadd.f32 %v6270, %v6478
    %v6537 = vadd.f32 %v6271, %v6480
    %v6538 = vadd.f32 %v6272, %v6484
    %v6539 = vadd.f32 %v6273, %v6486
    %v6540 = vadd.f32 %v6274, %v6488
    %v6541 = vadd.f32 %v6275, %v6490
    %v6542 = vadd.f32 %v6276, %v6494
    %v6543 = vadd.f32 %v6277, %v6496
    %v6544 = vadd.f32 %v6278, %v6498
    %v6545 = vadd.f32 %v6279, %v6500
    %v6546 = vadd.f32 %v6280, %v6504
    %v6547 = vadd.f32 %v6281, %v6506
    %v6548 = vadd.f32 %v6282, %v6508
    %v6549 = vadd.f32 %v6283, %v6510
    %v6550 = vadd.f32 %v6284, %v6514
    %v6551 = vadd.f32 %v6285, %v6516
    %v6552 = vadd.f32 %v6286, %v6518
    %v6553 = vadd.f32 %v6287, %v6520
    %s6554 = scalar_lea.vmem %s7, 960
    %v6555 = vld [vmem:[%s6554] sm:$0xff]
    %v6556 = vld [vmem:[%s6554 + $0x8] sm:$0xff]
    %v6557 = vld [vmem:[%s6554 + $0x10] sm:$0xff]
    %v6558 = vld [vmem:[%s6554 + $0x18] sm:$0xff]
    %v6559 = vld [vmem:[%s6554 + $0x20] sm:$0xff]
    %v6560 = vld [vmem:[%s6554 + $0x28] sm:$0xff]
    %v6561 = vld [vmem:[%s6554 + $0x30] sm:$0xff]
    %v6562 = vld [vmem:[%s6554 + $0x38] sm:$0xff]
    %v6563 = vld [vmem:[%s6554 + $0x40] sm:$0xff]
    %v6564 = vld [vmem:[%s6554 + $0x48] sm:$0xff]
    %v6565 = vld [vmem:[%s6554 + $0x50] sm:$0xff]
    %v6566 = vld [vmem:[%s6554 + $0x58] sm:$0xff]
    %v6567 = vld [vmem:[%s6554 + $0x60] sm:$0xff]
    %v6568 = vld [vmem:[%s6554 + $0x68] sm:$0xff]
    %v6569 = vld [vmem:[%s6554 + $0x70] sm:$0xff]
    %v6570 = vld [vmem:[%s6554 + $0x78] sm:$0xff]
    %v6571 = vld [vmem:[%s6554 + $0x80] sm:$0xff]
    %v6572 = vld [vmem:[%s6554 + $0x88] sm:$0xff]
    %v6573 = vld [vmem:[%s6554 + $0x90] sm:$0xff]
    %v6574 = vld [vmem:[%s6554 + $0x98] sm:$0xff]
    %v6595 = vunpack.c.l.b16 %v6555
    %v6596 = vunpack.c.h.b16 %v6555
    %v6597 = vunpack.c.l.b16 %v6556
    %v6598 = vunpack.c.h.b16 %v6556
    %v6599 = vunpack.c.l.b16 %v6557
    %v6600 = vunpack.c.h.b16 %v6557
    %v6601 = vunpack.c.l.b16 %v6558
    %v6602 = vunpack.c.h.b16 %v6558
    %v6603 = vunpack.c.l.b16 %v6559
    %v6604 = vunpack.c.h.b16 %v6559
    %v6605 = vunpack.c.l.b16 %v6560
    %v6606 = vunpack.c.h.b16 %v6560
    %v6607 = vunpack.c.l.b16 %v6561
    %v6608 = vunpack.c.h.b16 %v6561
    %v6609 = vunpack.c.l.b16 %v6562
    %v6610 = vunpack.c.h.b16 %v6562
    %v6611 = vunpack.c.l.b16 %v6563
    %v6612 = vunpack.c.h.b16 %v6563
    %v6613 = vunpack.c.l.b16 %v6564
    %v6614 = vunpack.c.h.b16 %v6564
    %v6615 = vunpack.c.l.b16 %v6565
    %v6616 = vunpack.c.h.b16 %v6565
    %v6617 = vunpack.c.l.b16 %v6566
    %v6618 = vunpack.c.h.b16 %v6566
    %v6619 = vunpack.c.l.b16 %v6567
    %v6620 = vunpack.c.h.b16 %v6567
    %v6621 = vunpack.c.l.b16 %v6568
    %v6622 = vunpack.c.h.b16 %v6568
    %v6623 = vunpack.c.l.b16 %v6569
    %v6624 = vunpack.c.h.b16 %v6569
    %v6625 = vunpack.c.l.b16 %v6570
    %v6626 = vunpack.c.h.b16 %v6570
    %v6627 = vunpack.c.l.b16 %v6571
    %v6628 = vunpack.c.h.b16 %v6571
    %v6629 = vunpack.c.l.b16 %v6572
    %v6630 = vunpack.c.h.b16 %v6572
    %v6631 = vunpack.c.l.b16 %v6573
    %v6632 = vunpack.c.h.b16 %v6573
    %v6633 = vunpack.c.l.b16 %v6574
    %v6634 = vunpack.c.h.b16 %v6574
    %v6635 = vpack.c.b16 %v6597, %v6595
    %v6636 = vpack.c.b16 %v6598, %v6596
    %v6637 = vpack.c.b16 %v6601, %v6599
    %v6638 = vpack.c.b16 %v6602, %v6600
    %v6639 = vpack.c.b16 %v6605, %v6603
    %v6640 = vpack.c.b16 %v6606, %v6604
    %v6641 = vpack.c.b16 %v6609, %v6607
    %v6642 = vpack.c.b16 %v6610, %v6608
    %v6643 = vpack.c.b16 %v6613, %v6611
    %v6644 = vpack.c.b16 %v6614, %v6612
    %v6645 = vpack.c.b16 %v6617, %v6615
    %v6646 = vpack.c.b16 %v6618, %v6616
    %v6647 = vpack.c.b16 %v6621, %v6619
    %v6648 = vpack.c.b16 %v6622, %v6620
    %v6649 = vpack.c.b16 %v6625, %v6623
    %v6650 = vpack.c.b16 %v6626, %v6624
    %v6651 = vpack.c.b16 %v6629, %v6627
    %v6652 = vpack.c.b16 %v6630, %v6628
    %v6653 = vpack.c.b16 %v6633, %v6631
    %v6654 = vpack.c.b16 %v6634, %v6632
    %6675 = vmatprep.subr.bf16.mxu0 %v6650
    %6676 = vmatpush1.bf16.msra.mxu0 %v6649
    %6677 = vmatprep.subr.bf16.mxu0 %v6648
    %6678 = vmatpush1.bf16.msra.mxu0 %v6647
    %6679 = vmatprep.subr.bf16.mxu0 %v6646
    %6680 = vmatpush1.bf16.msra.mxu0 %v6645
    %6681 = vmatprep.subr.bf16.mxu0 %v6644
    %6682 = vmatpush1.bf16.msra.mxu0 %v6643
    %6683 = vmatprep.subr.bf16.mxu0 %v6642
    %6684 = vmatpush1.bf16.msra.mxu0 %v6641
    %6685 = vmatprep.subr.bf16.mxu0 %v6640
    %6686 = vmatpush1.bf16.msra.mxu0 %v6639
    %6687 = vmatprep.subr.bf16.mxu0 %v6638
    %6688 = vmatpush1.bf16.msra.mxu0 %v6637
    %6689 = vmatprep.subr.bf16.mxu0 %v6636
    %6690 = vmatpush1.bf16.msra.mxu0 %v6635
    %6691 = vmatprep.subr.bf16.mxu0 0
    %6692 = vmatpush2.bf16.msra.mxu0 0
    %6693 = vmatprep.subr.bf16.mxu0 0
    %6694 = vmatpush2.bf16.msra.mxu0 0
    %6695 = vmatprep.subr.bf16.mxu0 0
    %6696 = vmatpush2.bf16.msra.mxu0 0
    %6697 = vmatprep.subr.bf16.mxu0 0
    %6698 = vmatpush2.bf16.msra.mxu0 0
    %6699 = vmatprep.subr.bf16.mxu0 0
    %6700 = vmatpush2.bf16.msra.mxu0 0
    %6701 = vmatprep.subr.bf16.mxu0 0
    %6702 = vmatpush2.bf16.msra.mxu0 0
    %6703 = vmatprep.subr.bf16.mxu0 %v6654
    %6704 = vmatpush2.bf16.msra.mxu0 %v6653
    %6705 = vmatprep.subr.bf16.mxu0 %v6652
    %6706 = vmatpush2.bf16.msra.mxu0 %v6651
    %6707 = vmatprep.mubr.bf16.mxu0 %v5336
    %6708 = vmatmul.mubr.bf16.gmra.mxu0 %v4933
    %v6709 = vpop.f32.mrf.mxu0
    %v6710 = vadd.f32 0.0, %v6709
    %v6711 = vpop.f32.mrf.mxu0
    %v6712 = vadd.f32 0.0, %v6711
    %v6713 = vpop.f32.mrf.mxu0
    %v6714 = vadd.f32 0.0, %v6713
    %v6715 = vpop.f32.mrf.mxu0
    %v6716 = vadd.f32 0.0, %v6715
    %6717 = vmatprep.mubr.bf16.mxu0 %v5586
    %6718 = vmatmul.mubr.bf16.gmra.mxu0 %v5460
    %v6719 = vpop.f32.mrf.mxu0
    %v6720 = vadd.f32 0.0, %v6719
    %v6721 = vpop.f32.mrf.mxu0
    %v6722 = vadd.f32 0.0, %v6721
    %v6723 = vpop.f32.mrf.mxu0
    %v6724 = vadd.f32 0.0, %v6723
    %v6725 = vpop.f32.mrf.mxu0
    %v6726 = vadd.f32 0.0, %v6725
    %6727 = vmatprep.mubr.bf16.mxu0 %v6138
    %6728 = vmatmul.mubr.bf16.gmra.mxu0 %v6012
    %v6729 = vpop.f32.mrf.mxu0
    %v6730 = vadd.f32 0.0, %v6729
    %v6731 = vpop.f32.mrf.mxu0
    %v6732 = vadd.f32 0.0, %v6731
    %v6733 = vpop.f32.mrf.mxu0
    %v6734 = vadd.f32 0.0, %v6733
    %v6735 = vpop.f32.mrf.mxu0
    %v6736 = vadd.f32 0.0, %v6735
    %6737 = vmatprep.mubr.bf16.mxu0 %v5096
    %6738 = vmatmul.mubr.bf16.gmra.mxu0 %v4928
    %v6739 = vpop.f32.mrf.mxu0
    %v6740 = vadd.f32 0.0, %v6739
    %v6741 = vpop.f32.mrf.mxu0
    %v6742 = vadd.f32 0.0, %v6741
    %v6743 = vpop.f32.mrf.mxu0
    %v6744 = vadd.f32 0.0, %v6743
    %v6745 = vpop.f32.mrf.mxu0
    %v6746 = vadd.f32 0.0, %v6745
    %6747 = vmatprep.mubr.bf16.mxu0 %v5345
    %6748 = vmatmul.mubr.bf16.gmra.mxu0 %v4939
    %v6749 = vpop.f32.mrf.mxu0
    %v6750 = vadd.f32 0.0, %v6749
    %v6751 = vpop.f32.mrf.mxu0
    %v6752 = vadd.f32 0.0, %v6751
    %v6753 = vpop.f32.mrf.mxu0
    %v6754 = vadd.f32 0.0, %v6753
    %v6755 = vpop.f32.mrf.mxu0
    %v6756 = vadd.f32 0.0, %v6755
    %6757 = vmatprep.mubr.bf16.mxu0 %v5589
    %6758 = vmatmul.mubr.bf16.gmra.mxu0 %v5462
    %v6759 = vpop.f32.mrf.mxu0
    %v6760 = vadd.f32 0.0, %v6759
    %v6761 = vpop.f32.mrf.mxu0
    %v6762 = vadd.f32 0.0, %v6761
    %v6763 = vpop.f32.mrf.mxu0
    %v6764 = vadd.f32 0.0, %v6763
    %v6765 = vpop.f32.mrf.mxu0
    %v6766 = vadd.f32 0.0, %v6765
    %6767 = vmatprep.mubr.bf16.mxu0 %v6141
    %6768 = vmatmul.mubr.bf16.gmra.mxu0 %v6014
    %v6769 = vpop.f32.mrf.mxu0
    %v6770 = vadd.f32 0.0, %v6769
    %v6771 = vpop.f32.mrf.mxu0
    %v6772 = vadd.f32 0.0, %v6771
    %v6773 = vpop.f32.mrf.mxu0
    %v6774 = vadd.f32 0.0, %v6773
    %v6775 = vpop.f32.mrf.mxu0
    %v6776 = vadd.f32 0.0, %v6775
    %6777 = vmatprep.mubr.bf16.mxu0 %v5096
    %6778 = vmatmul.mubr.bf16.gmra.mxu0 %v4928
    %v6779 = vpop.f32.mrf.mxu0
    %v6780 = vadd.f32 0.0, %v6779
    %v6781 = vpop.f32.mrf.mxu0
    %v6782 = vadd.f32 0.0, %v6781
    %v6783 = vpop.f32.mrf.mxu0
    %v6784 = vadd.f32 0.0, %v6783
    %v6785 = vpop.f32.mrf.mxu0
    %v6786 = vadd.f32 0.0, %v6785
    %6787 = vdwg.mxu0
    %v6788 = vadd.f32 %v6522, %v6710
    %v6789 = vadd.f32 %v6523, %v6712
    %v6790 = vadd.f32 %v6524, %v6714
    %v6791 = vadd.f32 %v6525, %v6716
    %v6792 = vadd.f32 %v6526, %v6720
    %v6793 = vadd.f32 %v6527, %v6722
    %v6794 = vadd.f32 %v6528, %v6724
    %v6795 = vadd.f32 %v6529, %v6726
    %v6796 = vadd.f32 %v6530, %v6730
    %v6797 = vadd.f32 %v6531, %v6732
    %v6798 = vadd.f32 %v6532, %v6734
    %v6799 = vadd.f32 %v6533, %v6736
    %v6800 = vadd.f32 %v6534, %v6740
    %v6801 = vadd.f32 %v6535, %v6742
    %v6802 = vadd.f32 %v6536, %v6744
    %v6803 = vadd.f32 %v6537, %v6746
    %v6804 = vadd.f32 %v6538, %v6750
    %v6805 = vadd.f32 %v6539, %v6752
    %v6806 = vadd.f32 %v6540, %v6754
    %v6807 = vadd.f32 %v6541, %v6756
    %v6808 = vadd.f32 %v6542, %v6760
    %v6809 = vadd.f32 %v6543, %v6762
    %v6810 = vadd.f32 %v6544, %v6764
    %v6811 = vadd.f32 %v6545, %v6766
    %v6812 = vadd.f32 %v6546, %v6770
    %v6813 = vadd.f32 %v6547, %v6772
    %v6814 = vadd.f32 %v6548, %v6774
    %v6815 = vadd.f32 %v6549, %v6776
    %v6816 = vadd.f32 %v6550, %v6780
    %v6817 = vadd.f32 %v6551, %v6782
    %v6818 = vadd.f32 %v6552, %v6784
    %v6819 = vadd.f32 %v6553, %v6786
    %v6820 = vld [vmem:[%s8] sm:$0x3]
    %v6822 = vlaneseq
    %v6823 = vshrl.u32 %v6822, 7
    %v6824 = vsub.s32 0, %v6823
    %v6825 = vrot.slane %v6820, %v6824
    %v6826 = vlaneseq
    %v6827 = vshrl.u32 %v6826, 7
    %v6828 = vsub.s32 1, %v6827
    %v6829 = vrot.slane %v6820, %v6828
    %v6832 = vadd.f32 %v6788, %v6825
    %v6833 = vadd.f32 %v6789, %v6829
    %v6834 = vadd.f32 %v6790, %v6825
    %v6835 = vadd.f32 %v6791, %v6829
    %v6836 = vadd.f32 %v6792, %v6825
    %v6837 = vadd.f32 %v6793, %v6829
    %v6838 = vadd.f32 %v6794, %v6825
    %v6839 = vadd.f32 %v6795, %v6829
    %v6840 = vadd.f32 %v6796, %v6825
    %v6841 = vadd.f32 %v6797, %v6829
    %v6842 = vadd.f32 %v6798, %v6825
    %v6843 = vadd.f32 %v6799, %v6829
    %v6844 = vadd.f32 %v6800, %v6825
    %v6845 = vadd.f32 %v6801, %v6829
    %v6846 = vadd.f32 %v6802, %v6825
    %v6847 = vadd.f32 %v6803, %v6829
    %v6848 = vadd.f32 %v6804, %v6825
    %v6849 = vadd.f32 %v6805, %v6829
    %v6850 = vadd.f32 %v6806, %v6825
    %v6851 = vadd.f32 %v6807, %v6829
    %v6852 = vadd.f32 %v6808, %v6825
    %v6853 = vadd.f32 %v6809, %v6829
    %v6854 = vadd.f32 %v6810, %v6825
    %v6855 = vadd.f32 %v6811, %v6829
    %v6856 = vadd.f32 %v6812, %v6825
    %v6857 = vadd.f32 %v6813, %v6829
    %v6858 = vadd.f32 %v6814, %v6825
    %v6859 = vadd.f32 %v6815, %v6829
    %v6860 = vadd.f32 %v6816, %v6825
    %v6861 = vadd.f32 %v6817, %v6829
    %v6862 = vadd.f32 %v6818, %v6825
    %v6863 = vadd.f32 %v6819, %v6829
    %v6864 = vmax.f32 %v6832, 0.0
    %v6865 = vmax.f32 %v6833, 0.0
    %v6866 = vmax.f32 %v6834, 0.0
    %v6867 = vmax.f32 %v6835, 0.0
    %v6868 = vmax.f32 %v6836, 0.0
    %v6869 = vmax.f32 %v6837, 0.0
    %v6870 = vmax.f32 %v6838, 0.0
    %v6871 = vmax.f32 %v6839, 0.0
    %v6872 = vmax.f32 %v6840, 0.0
    %v6873 = vmax.f32 %v6841, 0.0
    %v6874 = vmax.f32 %v6842, 0.0
    %v6875 = vmax.f32 %v6843, 0.0
    %v6876 = vmax.f32 %v6844, 0.0
    %v6877 = vmax.f32 %v6845, 0.0
    %v6878 = vmax.f32 %v6846, 0.0
    %v6879 = vmax.f32 %v6847, 0.0
    %v6880 = vmax.f32 %v6848, 0.0
    %v6881 = vmax.f32 %v6849, 0.0
    %v6882 = vmax.f32 %v6850, 0.0
    %v6883 = vmax.f32 %v6851, 0.0
    %v6884 = vmax.f32 %v6852, 0.0
    %v6885 = vmax.f32 %v6853, 0.0
    %v6886 = vmax.f32 %v6854, 0.0
    %v6887 = vmax.f32 %v6855, 0.0
    %v6888 = vmax.f32 %v6856, 0.0
    %v6889 = vmax.f32 %v6857, 0.0
    %v6890 = vmax.f32 %v6858, 0.0
    %v6891 = vmax.f32 %v6859, 0.0
    %v6892 = vmax.f32 %v6860, 0.0
    %v6893 = vmax.f32 %v6861, 0.0
    %v6894 = vmax.f32 %v6862, 0.0
    %v6895 = vmax.f32 %v6863, 0.0
    %v6896 = vpack.c.bf16 %v1909, %v1907
    %v6897 = vpack.c.bf16 %v1910, %v1908
    %v6898 = vpack.c.bf16 %v1913, %v1911
    %v6899 = vpack.c.bf16 %v1914, %v1912
    %v6900 = vpack.c.bf16 %v1917, %v1915
    %v6901 = vpack.c.bf16 %v1918, %v1916
    %v6902 = vpack.c.bf16 %v1921, %v1919
    %v6903 = vpack.c.bf16 %v1922, %v1920
    %v6904 = vpack.c.bf16 %v1925, %v1923
    %v6905 = vpack.c.bf16 %v1926, %v1924
    %v6906 = vpack.c.bf16 %v1929, %v1927
    %v6907 = vpack.c.bf16 %v1930, %v1928
    %v6908 = vpack.c.bf16 %v1933, %v1931
    %v6909 = vpack.c.bf16 %v1934, %v1932
    %v6910 = vpack.c.bf16 %v1937, %v1935
    %v6911 = vpack.c.bf16 %v1938, %v1936
    %v6912 = vld [vmem:[%s9] sm:$0xff]
    %v6913 = vld [vmem:[%s9 + $0x8] sm:$0xff]
    %v6914 = vld [vmem:[%s9 + $0x10] sm:$0xff]
    %v6915 = vld [vmem:[%s9 + $0x18] sm:$0xff]
    %v6916 = vld [vmem:[%s9 + $0x20] sm:$0xf]
    %v6917 = vld [vmem:[%s9 + $0x24] sm:$0xff]
    %v6918 = vld [vmem:[%s9 + $0x2c] sm:$0xff]
    %v6919 = vld [vmem:[%s9 + $0x34] sm:$0xff]
    %v6920 = vld [vmem:[%s9 + $0x3c] sm:$0xff]
    %v6921 = vld [vmem:[%s9 + $0x44] sm:$0xf]
    %v6922 = vld [vmem:[%s9 + $0x48] sm:$0xff]
    %v6923 = vld [vmem:[%s9 + $0x50] sm:$0xff]
    %v6924 = vld [vmem:[%s9 + $0x58] sm:$0xff]
    %v6925 = vld [vmem:[%s9 + $0x60] sm:$0xff]
    %v6926 = vld [vmem:[%s9 + $0x68] sm:$0xf]
    %v6927 = vld [vmem:[%s9 + $0x6c] sm:$0xff]
    %v6928 = vld [vmem:[%s9 + $0x74] sm:$0xff]
    %v6929 = vld [vmem:[%s9 + $0x7c] sm:$0xff]
    %v6930 = vld [vmem:[%s9 + $0x84] sm:$0xff]
    %v6931 = vld [vmem:[%s9 + $0x8c] sm:$0xf]
    %v6932 = vld [vmem:[%s9 + $0x90] sm:$0xff]
    %v6933 = vld [vmem:[%s9 + $0x98] sm:$0xff]
    %v6934 = vld [vmem:[%s9 + $0xa0] sm:$0xff]
    %v6935 = vld [vmem:[%s9 + $0xa8] sm:$0xff]
    %v6936 = vld [vmem:[%s9 + $0xb0] sm:$0xf]
    %v6937 = vld [vmem:[%s9 + $0xb4] sm:$0xff]
    %v6938 = vld [vmem:[%s9 + $0xbc] sm:$0xff]
    %v6939 = vld [vmem:[%s9 + $0xc4] sm:$0xff]
    %v6940 = vld [vmem:[%s9 + $0xcc] sm:$0xff]
    %v6941 = vld [vmem:[%s9 + $0xd4] sm:$0xf]
    %v6942 = vld [vmem:[%s9 + $0xd8] sm:$0xff]
    %v6943 = vld [vmem:[%s9 + $0xe0] sm:$0xff]
    %v6944 = vld [vmem:[%s9 + $0xe8] sm:$0xff]
    %v6945 = vld [vmem:[%s9 + $0xf0] sm:$0xff]
    %v6946 = vld [vmem:[%s9 + $0xf8] sm:$0xf]
    %v6947 = vld [vmem:[%s9 + $0xfc] sm:$0xff]
    %v6948 = vld [vmem:[%s9 + $0x104] sm:$0xff]
    %v6949 = vld [vmem:[%s9 + $0x10c] sm:$0xff]
    %v6950 = vld [vmem:[%s9 + $0x114] sm:$0xff]
    %v6951 = vld [vmem:[%s9 + $0x11c] sm:$0xf]
    %v6952 = vld [vmem:[%s9 + $0x120] sm:$0xff]
    %v6953 = vld [vmem:[%s9 + $0x128] sm:$0xff]
    %v6954 = vld [vmem:[%s9 + $0x130] sm:$0xff]
    %v6955 = vld [vmem:[%s9 + $0x138] sm:$0xff]
    %v6956 = vld [vmem:[%s9 + $0x140] sm:$0xf]
    %v6957 = vld [vmem:[%s9 + $0x144] sm:$0xff]
    %v6958 = vld [vmem:[%s9 + $0x14c] sm:$0xff]
    %v6959 = vld [vmem:[%s9 + $0x154] sm:$0xff]
    %v6960 = vld [vmem:[%s9 + $0x15c] sm:$0xff]
    %v6961 = vld [vmem:[%s9 + $0x164] sm:$0xf]
    %v6962 = vld [vmem:[%s9 + $0x168] sm:$0xff]
    %v6963 = vld [vmem:[%s9 + $0x170] sm:$0xff]
    %v6964 = vld [vmem:[%s9 + $0x178] sm:$0xff]
    %v6965 = vld [vmem:[%s9 + $0x180] sm:$0xff]
    %v6966 = vld [vmem:[%s9 + $0x188] sm:$0xf]
    %v6967 = vld [vmem:[%s9 + $0x18c] sm:$0xff]
    %v6968 = vld [vmem:[%s9 + $0x194] sm:$0xff]
    %v6969 = vld [vmem:[%s9 + $0x19c] sm:$0xff]
    %v6970 = vld [vmem:[%s9 + $0x1a4] sm:$0xff]
    %v6971 = vld [vmem:[%s9 + $0x1ac] sm:$0xf]
    %v6972 = vld [vmem:[%s9 + $0x1b0] sm:$0xff]
    %v6973 = vld [vmem:[%s9 + $0x1b8] sm:$0xff]
    %v6974 = vld [vmem:[%s9 + $0x1c0] sm:$0xff]
    %v6975 = vld [vmem:[%s9 + $0x1c8] sm:$0xff]
    %v6976 = vld [vmem:[%s9 + $0x1d0] sm:$0xf]
    %v6977 = vld [vmem:[%s9 + $0x1d4] sm:$0xff]
    %v6978 = vld [vmem:[%s9 + $0x1dc] sm:$0xff]
    %v6979 = vld [vmem:[%s9 + $0x1e4] sm:$0xff]
    %v6980 = vld [vmem:[%s9 + $0x1ec] sm:$0xff]
    %v6981 = vld [vmem:[%s9 + $0x1f4] sm:$0xf]
    %v6982 = vld [vmem:[%s9 + $0x1f8] sm:$0xff]
    %v6983 = vld [vmem:[%s9 + $0x200] sm:$0xff]
    %v6984 = vld [vmem:[%s9 + $0x208] sm:$0xff]
    %v6985 = vld [vmem:[%s9 + $0x210] sm:$0xff]
    %v6986 = vld [vmem:[%s9 + $0x218] sm:$0xf]
    %v6987 = vld [vmem:[%s9 + $0x21c] sm:$0xff]
    %v6988 = vld [vmem:[%s9 + $0x224] sm:$0xff]
    %v6989 = vld [vmem:[%s9 + $0x22c] sm:$0xff]
    %v6990 = vld [vmem:[%s9 + $0x234] sm:$0xff]
    %v6991 = vld [vmem:[%s9 + $0x23c] sm:$0xf]
    %v6992 = vld [vmem:[%s9 + $0x240] sm:$0xff]
    %v6993 = vld [vmem:[%s9 + $0x248] sm:$0xff]
    %v6994 = vld [vmem:[%s9 + $0x250] sm:$0xff]
    %v6995 = vld [vmem:[%s9 + $0x258] sm:$0xff]
    %v6996 = vld [vmem:[%s9 + $0x260] sm:$0xf]
    %v6997 = vld [vmem:[%s9 + $0x264] sm:$0xff]
    %v6998 = vld [vmem:[%s9 + $0x26c] sm:$0xff]
    %v6999 = vld [vmem:[%s9 + $0x274] sm:$0xff]
    %v7000 = vld [vmem:[%s9 + $0x27c] sm:$0xff]
    %v7001 = vld [vmem:[%s9 + $0x284] sm:$0xf]
    %v7002 = vld [vmem:[%s9 + $0x288] sm:$0xff]
    %v7003 = vld [vmem:[%s9 + $0x290] sm:$0xff]
    %v7004 = vld [vmem:[%s9 + $0x298] sm:$0xff]
    %v7005 = vld [vmem:[%s9 + $0x2a0] sm:$0xff]
    %v7006 = vld [vmem:[%s9 + $0x2a8] sm:$0xf]
    %v7007 = vld [vmem:[%s9 + $0x2ac] sm:$0xff]
    %v7008 = vld [vmem:[%s9 + $0x2b4] sm:$0xff]
    %v7009 = vld [vmem:[%s9 + $0x2bc] sm:$0xff]
    %v7010 = vld [vmem:[%s9 + $0x2c4] sm:$0xff]
    %v7011 = vld [vmem:[%s9 + $0x2cc] sm:$0xf]
    %v7012 = vld [vmem:[%s9 + $0x2d0] sm:$0xff]
    %v7013 = vld [vmem:[%s9 + $0x2d8] sm:$0xff]
    %v7014 = vld [vmem:[%s9 + $0x2e0] sm:$0xff]
    %v7015 = vld [vmem:[%s9 + $0x2e8] sm:$0xff]
    %v7016 = vld [vmem:[%s9 + $0x2f0] sm:$0xf]
    %v7017 = vld [vmem:[%s9 + $0x2f4] sm:$0xff]
    %v7018 = vld [vmem:[%s9 + $0x2fc] sm:$0xff]
    %v7019 = vld [vmem:[%s9 + $0x304] sm:$0xff]
    %v7020 = vld [vmem:[%s9 + $0x30c] sm:$0xff]
    %v7021 = vld [vmem:[%s9 + $0x314] sm:$0xf]
    %v7022 = vld [vmem:[%s9 + $0x318] sm:$0xff]
    %v7023 = vld [vmem:[%s9 + $0x320] sm:$0xff]
    %v7024 = vld [vmem:[%s9 + $0x328] sm:$0xff]
    %v7025 = vld [vmem:[%s9 + $0x330] sm:$0xff]
    %v7026 = vld [vmem:[%s9 + $0x338] sm:$0xf]
    %v7027 = vld [vmem:[%s9 + $0x33c] sm:$0xff]
    %v7028 = vld [vmem:[%s9 + $0x344] sm:$0xff]
    %v7029 = vld [vmem:[%s9 + $0x34c] sm:$0xff]
    %v7030 = vld [vmem:[%s9 + $0x354] sm:$0xff]
    %v7031 = vld [vmem:[%s9 + $0x35c] sm:$0xf]
    %v7032 = vpack.c.bf16 %v6866, %v6864
    %v7033 = vpack.c.bf16 %v6867, %v6865
    %v7034 = vpack.c.bf16 %v6870, %v6868
    %v7035 = vpack.c.bf16 %v6871, %v6869
    %v7036 = vpack.c.bf16 %v6874, %v6872
    %v7037 = vpack.c.bf16 %v6875, %v6873
    %v7038 = vpack.c.bf16 %v6878, %v6876
    %v7039 = vpack.c.bf16 %v6879, %v6877
    %v7040 = vpack.c.bf16 %v6882, %v6880
    %v7041 = vpack.c.bf16 %v6883, %v6881
    %v7042 = vpack.c.bf16 %v6886, %v6884
    %v7043 = vpack.c.bf16 %v6887, %v6885
    %v7044 = vpack.c.bf16 %v6890, %v6888
    %v7045 = vpack.c.bf16 %v6891, %v6889
    %v7046 = vpack.c.bf16 %v6894, %v6892
    %v7047 = vpack.c.bf16 %v6895, %v6893
    %v7048 = vld [vmem:[%s10] sm:$0xff]
    %v7049 = vld [vmem:[%s10 + $0x8] sm:$0xff]
    %v7050 = vld [vmem:[%s10 + $0x10] sm:$0xff]
    %v7051 = vld [vmem:[%s10 + $0x18] sm:$0xff]
    %v7052 = vld [vmem:[%s10 + $0x20] sm:$0xf]
    %v7053 = vld [vmem:[%s10 + $0x24] sm:$0xff]
    %v7054 = vld [vmem:[%s10 + $0x2c] sm:$0xff]
    %v7055 = vld [vmem:[%s10 + $0x34] sm:$0xff]
    %v7056 = vld [vmem:[%s10 + $0x3c] sm:$0xff]
    %v7057 = vld [vmem:[%s10 + $0x44] sm:$0xf]
    %v7058 = vld [vmem:[%s10 + $0x48] sm:$0xff]
    %v7059 = vld [vmem:[%s10 + $0x50] sm:$0xff]
    %v7060 = vld [vmem:[%s10 + $0x58] sm:$0xff]
    %v7061 = vld [vmem:[%s10 + $0x60] sm:$0xff]
    %v7062 = vld [vmem:[%s10 + $0x68] sm:$0xf]
    %v7063 = vld [vmem:[%s10 + $0x6c] sm:$0xff]
    %v7064 = vld [vmem:[%s10 + $0x74] sm:$0xff]
    %v7065 = vld [vmem:[%s10 + $0x7c] sm:$0xff]
    %v7066 = vld [vmem:[%s10 + $0x84] sm:$0xff]
    %v7067 = vld [vmem:[%s10 + $0x8c] sm:$0xf]
    %v7068 = vld [vmem:[%s10 + $0x90] sm:$0xff]
    %v7069 = vld [vmem:[%s10 + $0x98] sm:$0xff]
    %v7070 = vld [vmem:[%s10 + $0xa0] sm:$0xff]
    %v7071 = vld [vmem:[%s10 + $0xa8] sm:$0xff]
    %v7072 = vld [vmem:[%s10 + $0xb0] sm:$0xf]
    %v7073 = vld [vmem:[%s10 + $0xb4] sm:$0xff]
    %v7074 = vld [vmem:[%s10 + $0xbc] sm:$0xff]
    %v7075 = vld [vmem:[%s10 + $0xc4] sm:$0xff]
    %v7076 = vld [vmem:[%s10 + $0xcc] sm:$0xff]
    %v7077 = vld [vmem:[%s10 + $0xd4] sm:$0xf]
    %v7078 = vld [vmem:[%s10 + $0xd8] sm:$0xff]
    %v7079 = vld [vmem:[%s10 + $0xe0] sm:$0xff]
    %v7080 = vld [vmem:[%s10 + $0xe8] sm:$0xff]
    %v7081 = vld [vmem:[%s10 + $0xf0] sm:$0xff]
    %v7082 = vld [vmem:[%s10 + $0xf8] sm:$0xf]
    %v7083 = vld [vmem:[%s10 + $0xfc] sm:$0xff]
    %v7084 = vld [vmem:[%s10 + $0x104] sm:$0xff]
    %v7085 = vld [vmem:[%s10 + $0x10c] sm:$0xff]
    %v7086 = vld [vmem:[%s10 + $0x114] sm:$0xff]
    %v7087 = vld [vmem:[%s10 + $0x11c] sm:$0xf]
    %v7088 = vld [vmem:[%s10 + $0x120] sm:$0xff]
    %v7089 = vld [vmem:[%s10 + $0x128] sm:$0xff]
    %v7090 = vld [vmem:[%s10 + $0x130] sm:$0xff]
    %v7091 = vld [vmem:[%s10 + $0x138] sm:$0xff]
    %v7092 = vld [vmem:[%s10 + $0x140] sm:$0xf]
    %v7093 = vld [vmem:[%s10 + $0x144] sm:$0xff]
    %v7094 = vld [vmem:[%s10 + $0x14c] sm:$0xff]
    %v7095 = vld [vmem:[%s10 + $0x154] sm:$0xff]
    %v7096 = vld [vmem:[%s10 + $0x15c] sm:$0xff]
    %v7097 = vld [vmem:[%s10 + $0x164] sm:$0xf]
    %v7098 = vld [vmem:[%s10 + $0x168] sm:$0xff]
    %v7099 = vld [vmem:[%s10 + $0x170] sm:$0xff]
    %v7100 = vld [vmem:[%s10 + $0x178] sm:$0xff]
    %v7101 = vld [vmem:[%s10 + $0x180] sm:$0xff]
    %v7102 = vld [vmem:[%s10 + $0x188] sm:$0xf]
    %v7103 = vld [vmem:[%s10 + $0x18c] sm:$0xff]
    %v7104 = vld [vmem:[%s10 + $0x194] sm:$0xff]
    %v7105 = vld [vmem:[%s10 + $0x19c] sm:$0xff]
    %v7106 = vld [vmem:[%s10 + $0x1a4] sm:$0xff]
    %v7107 = vld [vmem:[%s10 + $0x1ac] sm:$0xf]
    %v7108 = vld [vmem:[%s10 + $0x1b0] sm:$0xff]
    %v7109 = vld [vmem:[%s10 + $0x1b8] sm:$0xff]
    %v7110 = vld [vmem:[%s10 + $0x1c0] sm:$0xff]
    %v7111 = vld [vmem:[%s10 + $0x1c8] sm:$0xff]
    %v7112 = vld [vmem:[%s10 + $0x1d0] sm:$0xf]
    %v7113 = vld [vmem:[%s10 + $0x1d4] sm:$0xff]
    %v7114 = vld [vmem:[%s10 + $0x1dc] sm:$0xff]
    %v7115 = vld [vmem:[%s10 + $0x1e4] sm:$0xff]
    %v7116 = vld [vmem:[%s10 + $0x1ec] sm:$0xff]
    %v7117 = vld [vmem:[%s10 + $0x1f4] sm:$0xf]
    %v7118 = vld [vmem:[%s10 + $0x1f8] sm:$0xff]
    %v7119 = vld [vmem:[%s10 + $0x200] sm:$0xff]
    %v7120 = vld [vmem:[%s10 + $0x208] sm:$0xff]
    %v7121 = vld [vmem:[%s10 + $0x210] sm:$0xff]
    %v7122 = vld [vmem:[%s10 + $0x218] sm:$0xf]
    %v7123 = vld [vmem:[%s10 + $0x21c] sm:$0xff]
    %v7124 = vld [vmem:[%s10 + $0x224] sm:$0xff]
    %v7125 = vld [vmem:[%s10 + $0x22c] sm:$0xff]
    %v7126 = vld [vmem:[%s10 + $0x234] sm:$0xff]
    %v7127 = vld [vmem:[%s10 + $0x23c] sm:$0xf]
    %v7128 = vld [vmem:[%s10 + $0x240] sm:$0xff]
    %v7129 = vld [vmem:[%s10 + $0x248] sm:$0xff]
    %v7130 = vld [vmem:[%s10 + $0x250] sm:$0xff]
    %v7131 = vld [vmem:[%s10 + $0x258] sm:$0xff]
    %v7132 = vld [vmem:[%s10 + $0x260] sm:$0xf]
    %v7133 = vld [vmem:[%s10 + $0x264] sm:$0xff]
    %v7134 = vld [vmem:[%s10 + $0x26c] sm:$0xff]
    %v7135 = vld [vmem:[%s10 + $0x274] sm:$0xff]
    %v7136 = vld [vmem:[%s10 + $0x27c] sm:$0xff]
    %v7137 = vld [vmem:[%s10 + $0x284] sm:$0xf]
    %v7138 = vld [vmem:[%s10 + $0x288] sm:$0xff]
    %v7139 = vld [vmem:[%s10 + $0x290] sm:$0xff]
    %v7140 = vld [vmem:[%s10 + $0x298] sm:$0xff]
    %v7141 = vld [vmem:[%s10 + $0x2a0] sm:$0xff]
    %v7142 = vld [vmem:[%s10 + $0x2a8] sm:$0xf]
    %v7143 = vld [vmem:[%s10 + $0x2ac] sm:$0xff]
    %v7144 = vld [vmem:[%s10 + $0x2b4] sm:$0xff]
    %v7145 = vld [vmem:[%s10 + $0x2bc] sm:$0xff]
    %v7146 = vld [vmem:[%s10 + $0x2c4] sm:$0xff]
    %v7147 = vld [vmem:[%s10 + $0x2cc] sm:$0xf]
    %v7148 = vld [vmem:[%s10 + $0x2d0] sm:$0xff]
    %v7149 = vld [vmem:[%s10 + $0x2d8] sm:$0xff]
    %v7150 = vld [vmem:[%s10 + $0x2e0] sm:$0xff]
    %v7151 = vld [vmem:[%s10 + $0x2e8] sm:$0xff]
    %v7152 = vld [vmem:[%s10 + $0x2f0] sm:$0xf]
    %v7153 = vld [vmem:[%s10 + $0x2f4] sm:$0xff]
    %v7154 = vld [vmem:[%s10 + $0x2fc] sm:$0xff]
    %v7155 = vld [vmem:[%s10 + $0x304] sm:$0xff]
    %v7156 = vld [vmem:[%s10 + $0x30c] sm:$0xff]
    %v7157 = vld [vmem:[%s10 + $0x314] sm:$0xf]
    %v7158 = vld [vmem:[%s10 + $0x318] sm:$0xff]
    %v7159 = vld [vmem:[%s10 + $0x320] sm:$0xff]
    %v7160 = vld [vmem:[%s10 + $0x328] sm:$0xff]
    %v7161 = vld [vmem:[%s10 + $0x330] sm:$0xff]
    %v7162 = vld [vmem:[%s10 + $0x338] sm:$0xf]
    %v7163 = vld [vmem:[%s10 + $0x33c] sm:$0xff]
    %v7164 = vld [vmem:[%s10 + $0x344] sm:$0xff]
    %v7165 = vld [vmem:[%s10 + $0x34c] sm:$0xff]
    %v7166 = vld [vmem:[%s10 + $0x354] sm:$0xff]
    %v7167 = vld [vmem:[%s10 + $0x35c] sm:$0xf]
    %v7288 = vunpack.c.l.b16 %v7048
    %v7289 = vunpack.c.h.b16 %v7048
    %v7290 = vunpack.c.l.b16 %v7049
    %v7291 = vunpack.c.h.b16 %v7049
    %v7292 = vunpack.c.l.b16 %v7050
    %v7293 = vunpack.c.h.b16 %v7050
    %v7294 = vunpack.c.l.b16 %v7051
    %v7295 = vunpack.c.h.b16 %v7051
    %v7296 = vunpack.c.l.b16 %v7052
    %v7297 = vunpack.c.l.b16 %v7053
    %v7298 = vunpack.c.h.b16 %v7053
    %v7299 = vunpack.c.l.b16 %v7054
    %v7300 = vunpack.c.h.b16 %v7054
    %v7301 = vunpack.c.l.b16 %v7055
    %v7302 = vunpack.c.h.b16 %v7055
    %v7303 = vunpack.c.l.b16 %v7056
    %v7304 = vunpack.c.h.b16 %v7056
    %v7305 = vunpack.c.l.b16 %v7057
    %v7306 = vunpack.c.l.b16 %v7058
    %v7307 = vunpack.c.h.b16 %v7058
    %v7308 = vunpack.c.l.b16 %v7059
    %v7309 = vunpack.c.h.b16 %v7059
    %v7310 = vunpack.c.l.b16 %v7060
    %v7311 = vunpack.c.h.b16 %v7060
    %v7312 = vunpack.c.l.b16 %v7061
    %v7313 = vunpack.c.h.b16 %v7061
    %v7314 = vunpack.c.l.b16 %v7062
    %v7315 = vunpack.c.l.b16 %v7063
    %v7316 = vunpack.c.h.b16 %v7063
    %v7317 = vunpack.c.l.b16 %v7064
    %v7318 = vunpack.c.h.b16 %v7064
    %v7319 = vunpack.c.l.b16 %v7065
    %v7320 = vunpack.c.h.b16 %v7065
    %v7321 = vunpack.c.l.b16 %v7066
    %v7322 = vunpack.c.h.b16 %v7066
    %v7323 = vunpack.c.l.b16 %v7067
    %v7324 = vunpack.c.l.b16 %v7068
    %v7325 = vunpack.c.h.b16 %v7068
    %v7326 = vunpack.c.l.b16 %v7069
    %v7327 = vunpack.c.h.b16 %v7069
    %v7328 = vunpack.c.l.b16 %v7070
    %v7329 = vunpack.c.h.b16 %v7070
    %v7330 = vunpack.c.l.b16 %v7071
    %v7331 = vunpack.c.h.b16 %v7071
    %v7332 = vunpack.c.l.b16 %v7072
    %v7333 = vunpack.c.l.b16 %v7073
    %v7334 = vunpack.c.h.b16 %v7073
    %v7335 = vunpack.c.l.b16 %v7074
    %v7336 = vunpack.c.h.b16 %v7074
    %v7337 = vunpack.c.l.b16 %v7075
    %v7338 = vunpack.c.h.b16 %v7075
    %v7339 = vunpack.c.l.b16 %v7076
    %v7340 = vunpack.c.h.b16 %v7076
    %v7341 = vunpack.c.l.b16 %v7077
    %v7342 = vunpack.c.l.b16 %v7078
    %v7343 = vunpack.c.h.b16 %v7078
    %v7344 = vunpack.c.l.b16 %v7079
    %v7345 = vunpack.c.h.b16 %v7079
    %v7346 = vunpack.c.l.b16 %v7080
    %v7347 = vunpack.c.h.b16 %v7080
    %v7348 = vunpack.c.l.b16 %v7081
    %v7349 = vunpack.c.h.b16 %v7081
    %v7350 = vunpack.c.l.b16 %v7082
    %v7351 = vunpack.c.l.b16 %v7083
    %v7352 = vunpack.c.h.b16 %v7083
    %v7353 = vunpack.c.l.b16 %v7084
    %v7354 = vunpack.c.h.b16 %v7084
    %v7355 = vunpack.c.l.b16 %v7085
    %v7356 = vunpack.c.h.b16 %v7085
    %v7357 = vunpack.c.l.b16 %v7086
    %v7358 = vunpack.c.h.b16 %v7086
    %v7359 = vunpack.c.l.b16 %v7087
    %v7360 = vunpack.c.l.b16 %v7088
    %v7361 = vunpack.c.h.b16 %v7088
    %v7362 = vunpack.c.l.b16 %v7089
    %v7363 = vunpack.c.h.b16 %v7089
    %v7364 = vunpack.c.l.b16 %v7090
    %v7365 = vunpack.c.h.b16 %v7090
    %v7366 = vunpack.c.l.b16 %v7091
    %v7367 = vunpack.c.h.b16 %v7091
    %v7368 = vunpack.c.l.b16 %v7092
    %v7369 = vunpack.c.l.b16 %v7093
    %v7370 = vunpack.c.h.b16 %v7093
    %v7371 = vunpack.c.l.b16 %v7094
    %v7372 = vunpack.c.h.b16 %v7094
    %v7373 = vunpack.c.l.b16 %v7095
    %v7374 = vunpack.c.h.b16 %v7095
    %v7375 = vunpack.c.l.b16 %v7096
    %v7376 = vunpack.c.h.b16 %v7096
    %v7377 = vunpack.c.l.b16 %v7097
    %v7378 = vunpack.c.l.b16 %v7098
    %v7379 = vunpack.c.h.b16 %v7098
    %v7380 = vunpack.c.l.b16 %v7099
    %v7381 = vunpack.c.h.b16 %v7099
    %v7382 = vunpack.c.l.b16 %v7100
    %v7383 = vunpack.c.h.b16 %v7100
    %v7384 = vunpack.c.l.b16 %v7101
    %v7385 = vunpack.c.h.b16 %v7101
    %v7386 = vunpack.c.l.b16 %v7102
    %v7387 = vunpack.c.l.b16 %v7103
    %v7388 = vunpack.c.h.b16 %v7103
    %v7389 = vunpack.c.l.b16 %v7104
    %v7390 = vunpack.c.h.b16 %v7104
    %v7391 = vunpack.c.l.b16 %v7105
    %v7392 = vunpack.c.h.b16 %v7105
    %v7393 = vunpack.c.l.b16 %v7106
    %v7394 = vunpack.c.h.b16 %v7106
    %v7395 = vunpack.c.l.b16 %v7107
    %v7396 = vunpack.c.l.b16 %v7108
    %v7397 = vunpack.c.h.b16 %v7108
    %v7398 = vunpack.c.l.b16 %v7109
    %v7399 = vunpack.c.h.b16 %v7109
    %v7400 = vunpack.c.l.b16 %v7110
    %v7401 = vunpack.c.h.b16 %v7110
    %v7402 = vunpack.c.l.b16 %v7111
    %v7403 = vunpack.c.h.b16 %v7111
    %v7404 = vunpack.c.l.b16 %v7112
    %v7405 = vunpack.c.l.b16 %v7113
    %v7406 = vunpack.c.h.b16 %v7113
    %v7407 = vunpack.c.l.b16 %v7114
    %v7408 = vunpack.c.h.b16 %v7114
    %v7409 = vunpack.c.l.b16 %v7115
    %v7410 = vunpack.c.h.b16 %v7115
    %v7411 = vunpack.c.l.b16 %v7116
    %v7412 = vunpack.c.h.b16 %v7116
    %v7413 = vunpack.c.l.b16 %v7117
    %v7414 = vunpack.c.l.b16 %v7118
    %v7415 = vunpack.c.h.b16 %v7118
    %v7416 = vunpack.c.l.b16 %v7119
    %v7417 = vunpack.c.h.b16 %v7119
    %v7418 = vunpack.c.l.b16 %v7120
    %v7419 = vunpack.c.h.b16 %v7120
    %v7420 = vunpack.c.l.b16 %v7121
    %v7421 = vunpack.c.h.b16 %v7121
    %v7422 = vunpack.c.l.b16 %v7122
    %v7423 = vunpack.c.l.b16 %v7123
    %v7424 = vunpack.c.h.b16 %v7123
    %v7425 = vunpack.c.l.b16 %v7124
    %v7426 = vunpack.c.h.b16 %v7124
    %v7427 = vunpack.c.l.b16 %v7125
    %v7428 = vunpack.c.h.b16 %v7125
    %v7429 = vunpack.c.l.b16 %v7126
    %v7430 = vunpack.c.h.b16 %v7126
    %v7431 = vunpack.c.l.b16 %v7127
    %v7432 = vunpack.c.l.b16 %v7128
    %v7433 = vunpack.c.h.b16 %v7128
    %v7434 = vunpack.c.l.b16 %v7129
    %v7435 = vunpack.c.h.b16 %v7129
    %v7436 = vunpack.c.l.b16 %v7130
    %v7437 = vunpack.c.h.b16 %v7130
    %v7438 = vunpack.c.l.b16 %v7131
    %v7439 = vunpack.c.h.b16 %v7131
    %v7440 = vunpack.c.l.b16 %v7132
    %v7441 = vunpack.c.l.b16 %v7133
    %v7442 = vunpack.c.h.b16 %v7133
    %v7443 = vunpack.c.l.b16 %v7134
    %v7444 = vunpack.c.h.b16 %v7134
    %v7445 = vunpack.c.l.b16 %v7135
    %v7446 = vunpack.c.h.b16 %v7135
    %v7447 = vunpack.c.l.b16 %v7136
    %v7448 = vunpack.c.h.b16 %v7136
    %v7449 = vunpack.c.l.b16 %v7137
    %v7450 = vunpack.c.l.b16 %v7138
    %v7451 = vunpack.c.h.b16 %v7138
    %v7452 = vunpack.c.l.b16 %v7139
    %v7453 = vunpack.c.h.b16 %v7139
    %v7454 = vunpack.c.l.b16 %v7140
    %v7455 = vunpack.c.h.b16 %v7140
    %v7456 = vunpack.c.l.b16 %v7141
    %v7457 = vunpack.c.h.b16 %v7141
    %v7458 = vunpack.c.l.b16 %v7142
    %v7459 = vunpack.c.l.b16 %v7143
    %v7460 = vunpack.c.h.b16 %v7143
    %v7461 = vunpack.c.l.b16 %v7144
    %v7462 = vunpack.c.h.b16 %v7144
    %v7463 = vunpack.c.l.b16 %v7145
    %v7464 = vunpack.c.h.b16 %v7145
    %v7465 = vunpack.c.l.b16 %v7146
    %v7466 = vunpack.c.h.b16 %v7146
    %v7467 = vunpack.c.l.b16 %v7147
    %v7468 = vunpack.c.l.b16 %v7148
    %v7469 = vunpack.c.h.b16 %v7148
    %v7470 = vunpack.c.l.b16 %v7149
    %v7471 = vunpack.c.h.b16 %v7149
    %v7472 = vunpack.c.l.b16 %v7150
    %v7473 = vunpack.c.h.b16 %v7150
    %v7474 = vunpack.c.l.b16 %v7151
    %v7475 = vunpack.c.h.b16 %v7151
    %v7476 = vunpack.c.l.b16 %v7152
    %v7477 = vunpack.c.l.b16 %v7153
    %v7478 = vunpack.c.h.b16 %v7153
    %v7479 = vunpack.c.l.b16 %v7154
    %v7480 = vunpack.c.h.b16 %v7154
    %v7481 = vunpack.c.l.b16 %v7155
    %v7482 = vunpack.c.h.b16 %v7155
    %v7483 = vunpack.c.l.b16 %v7156
    %v7484 = vunpack.c.h.b16 %v7156
    %v7485 = vunpack.c.l.b16 %v7157
    %v7486 = vunpack.c.l.b16 %v7158
    %v7487 = vunpack.c.h.b16 %v7158
    %v7488 = vunpack.c.l.b16 %v7159
    %v7489 = vunpack.c.h.b16 %v7159
    %v7490 = vunpack.c.l.b16 %v7160
    %v7491 = vunpack.c.h.b16 %v7160
    %v7492 = vunpack.c.l.b16 %v7161
    %v7493 = vunpack.c.h.b16 %v7161
    %v7494 = vunpack.c.l.b16 %v7162
    %v7495 = vunpack.c.l.b16 %v7163
    %v7496 = vunpack.c.h.b16 %v7163
    %v7497 = vunpack.c.l.b16 %v7164
    %v7498 = vunpack.c.h.b16 %v7164
    %v7499 = vunpack.c.l.b16 %v7165
    %v7500 = vunpack.c.h.b16 %v7165
    %v7501 = vunpack.c.l.b16 %v7166
    %v7502 = vunpack.c.h.b16 %v7166
    %v7503 = vunpack.c.l.b16 %v7167
    %v7504 = vpack.c.b16 %v7297, %v7288
    %v7505 = vpack.c.b16 %v7298, %v7289
    %v7506 = vpack.c.b16 %v7299, %v7290
    %v7507 = vpack.c.b16 %v7300, %v7291
    %v7508 = vpack.c.b16 %v7301, %v7292
    %v7509 = vpack.c.b16 %v7302, %v7293
    %v7510 = vpack.c.b16 %v7303, %v7294
    %v7511 = vpack.c.b16 %v7304, %v7295
    %v7512 = vpack.c.b16 %v7305, %v7296
    %v7513 = vpack.c.b16 %v7315, %v7306
    %v7514 = vpack.c.b16 %v7316, %v7307
    %v7515 = vpack.c.b16 %v7317, %v7308
    %v7516 = vpack.c.b16 %v7318, %v7309
    %v7517 = vpack.c.b16 %v7319, %v7310
    %v7518 = vpack.c.b16 %v7320, %v7311
    %v7519 = vpack.c.b16 %v7321, %v7312
    %v7520 = vpack.c.b16 %v7322, %v7313
    %v7521 = vpack.c.b16 %v7323, %v7314
    %v7522 = vpack.c.b16 %v7333, %v7324
    %v7523 = vpack.c.b16 %v7334, %v7325
    %v7524 = vpack.c.b16 %v7335, %v7326
    %v7525 = vpack.c.b16 %v7336, %v7327
    %v7526 = vpack.c.b16 %v7337, %v7328
    %v7527 = vpack.c.b16 %v7338, %v7329
    %v7528 = vpack.c.b16 %v7339, %v7330
    %v7529 = vpack.c.b16 %v7340, %v7331
    %v7530 = vpack.c.b16 %v7341, %v7332
    %v7531 = vpack.c.b16 %v7351, %v7342
    %v7532 = vpack.c.b16 %v7352, %v7343
    %v7533 = vpack.c.b16 %v7353, %v7344
    %v7534 = vpack.c.b16 %v7354, %v7345
    %v7535 = vpack.c.b16 %v7355, %v7346
    %v7536 = vpack.c.b16 %v7356, %v7347
    %v7537 = vpack.c.b16 %v7357, %v7348
    %v7538 = vpack.c.b16 %v7358, %v7349
    %v7539 = vpack.c.b16 %v7359, %v7350
    %v7540 = vpack.c.b16 %v7369, %v7360
    %v7541 = vpack.c.b16 %v7370, %v7361
    %v7542 = vpack.c.b16 %v7371, %v7362
    %v7543 = vpack.c.b16 %v7372, %v7363
    %v7544 = vpack.c.b16 %v7373, %v7364
    %v7545 = vpack.c.b16 %v7374, %v7365
    %v7546 = vpack.c.b16 %v7375, %v7366
    %v7547 = vpack.c.b16 %v7376, %v7367
    %v7548 = vpack.c.b16 %v7377, %v7368
    %v7549 = vpack.c.b16 %v7387, %v7378
    %v7550 = vpack.c.b16 %v7388, %v7379
    %v7551 = vpack.c.b16 %v7389, %v7380
    %v7552 = vpack.c.b16 %v7390, %v7381
    %v7553 = vpack.c.b16 %v7391, %v7382
    %v7554 = vpack.c.b16 %v7392, %v7383
    %v7555 = vpack.c.b16 %v7393, %v7384
    %v7556 = vpack.c.b16 %v7394, %v7385
    %v7557 = vpack.c.b16 %v7395, %v7386
    %v7558 = vpack.c.b16 %v7405, %v7396
    %v7559 = vpack.c.b16 %v7406, %v7397
    %v7560 = vpack.c.b16 %v7407, %v7398
    %v7561 = vpack.c.b16 %v7408, %v7399
    %v7562 = vpack.c.b16 %v7409, %v7400
    %v7563 = vpack.c.b16 %v7410, %v7401
    %v7564 = vpack.c.b16 %v7411, %v7402
    %v7565 = vpack.c.b16 %v7412, %v7403
    %v7566 = vpack.c.b16 %v7413, %v7404
    %v7567 = vpack.c.b16 %v7423, %v7414
    %v7568 = vpack.c.b16 %v7424, %v7415
    %v7569 = vpack.c.b16 %v7425, %v7416
    %v7570 = vpack.c.b16 %v7426, %v7417
    %v7571 = vpack.c.b16 %v7427, %v7418
    %v7572 = vpack.c.b16 %v7428, %v7419
    %v7573 = vpack.c.b16 %v7429, %v7420
    %v7574 = vpack.c.b16 %v7430, %v7421
    %v7575 = vpack.c.b16 %v7431, %v7422
    %v7576 = vpack.c.b16 %v7441, %v7432
    %v7577 = vpack.c.b16 %v7442, %v7433
    %v7578 = vpack.c.b16 %v7443, %v7434
    %v7579 = vpack.c.b16 %v7444, %v7435
    %v7580 = vpack.c.b16 %v7445, %v7436
    %v7581 = vpack.c.b16 %v7446, %v7437
    %v7582 = vpack.c.b16 %v7447, %v7438
    %v7583 = vpack.c.b16 %v7448, %v7439
    %v7584 = vpack.c.b16 %v7449, %v7440
    %v7585 = vpack.c.b16 %v7459, %v7450
    %v7586 = vpack.c.b16 %v7460, %v7451
    %v7587 = vpack.c.b16 %v7461, %v7452
    %v7588 = vpack.c.b16 %v7462, %v7453
    %v7589 = vpack.c.b16 %v7463, %v7454
    %v7590 = vpack.c.b16 %v7464, %v7455
    %v7591 = vpack.c.b16 %v7465, %v7456
    %v7592 = vpack.c.b16 %v7466, %v7457
    %v7593 = vpack.c.b16 %v7467, %v7458
    %v7594 = vpack.c.b16 %v7477, %v7468
    %v7595 = vpack.c.b16 %v7478, %v7469
    %v7596 = vpack.c.b16 %v7479, %v7470
    %v7597 = vpack.c.b16 %v7480, %v7471
    %v7598 = vpack.c.b16 %v7481, %v7472
    %v7599 = vpack.c.b16 %v7482, %v7473
    %v7600 = vpack.c.b16 %v7483, %v7474
    %v7601 = vpack.c.b16 %v7484, %v7475
    %v7602 = vpack.c.b16 %v7485, %v7476
    %v7603 = vpack.c.b16 %v7495, %v7486
    %v7604 = vpack.c.b16 %v7496, %v7487
    %v7605 = vpack.c.b16 %v7497, %v7488
    %v7606 = vpack.c.b16 %v7498, %v7489
    %v7607 = vpack.c.b16 %v7499, %v7490
    %v7608 = vpack.c.b16 %v7500, %v7491
    %v7609 = vpack.c.b16 %v7501, %v7492
    %v7610 = vpack.c.b16 %v7502, %v7493
    %v7611 = vpack.c.b16 %v7503, %v7494
    %v7721 = vsel %vm1317, %v7033, 0
    %v7724 = vsel %vm1317, %v7035, 0
    %v7727 = vsel %vm1317, %v7037, 0
    %v7730 = vsel %vm1317, %v7039, 0
    %v7733 = vsel %vm1317, %v7041, 0
    %v7736 = vsel %vm1317, %v7043, 0
    %v7739 = vsel %vm1317, %v7045, 0
    %v7742 = vsel %vm1317, %v7047, 0
    %7744 = vmatprep.subr.bf16.mxu0 %v7568
    %7745 = vmatpush1.bf16.msra.mxu0 %v7567
    %7746 = vmatprep.subr.bf16.mxu0 %v7559
    %7747 = vmatpush1.bf16.msra.mxu0 %v7558
    %7748 = vmatprep.subr.bf16.mxu0 %v7550
    %7749 = vmatpush1.bf16.msra.mxu0 %v7549
    %7750 = vmatprep.subr.bf16.mxu0 %v7541
    %7751 = vmatpush1.bf16.msra.mxu0 %v7540
    %7752 = vmatprep.subr.bf16.mxu0 %v7532
    %7753 = vmatpush1.bf16.msra.mxu0 %v7531
    %7754 = vmatprep.subr.bf16.mxu0 %v7523
    %7755 = vmatpush1.bf16.msra.mxu0 %v7522
    %7756 = vmatprep.subr.bf16.mxu0 %v7514
    %7757 = vmatpush1.bf16.msra.mxu0 %v7513
    %7758 = vmatprep.subr.bf16.mxu0 %v7505
    %7759 = vmatpush1.bf16.msra.mxu0 %v7504
    %7760 = vmatprep.subr.bf16.mxu0 0
    %7761 = vmatpush2.bf16.msra.mxu0 0
    %7762 = vmatprep.subr.bf16.mxu0 0
    %7763 = vmatpush2.bf16.msra.mxu0 0
    %7764 = vmatprep.subr.bf16.mxu0 0
    %7765 = vmatpush2.bf16.msra.mxu0 0
    %7766 = vmatprep.subr.bf16.mxu0 0
    %7767 = vmatpush2.bf16.msra.mxu0 0
    %7768 = vmatprep.subr.bf16.mxu0 %v7604
    %7769 = vmatpush2.bf16.msra.mxu0 %v7603
    %7770 = vmatprep.subr.bf16.mxu0 %v7595
    %7771 = vmatpush2.bf16.msra.mxu0 %v7594
    %7772 = vmatprep.subr.bf16.mxu0 %v7586
    %7773 = vmatpush2.bf16.msra.mxu0 %v7585
    %7774 = vmatprep.subr.bf16.mxu0 %v7577
    %7775 = vmatpush2.bf16.msra.mxu0 %v7576
    %7776 = vmatprep.mubr.bf16.mxu0 %v7721
    %7777 = vmatmul.mubr.bf16.gmra.mxu0 %v7032
    %v7778 = vpop.f32.mrf.mxu0
    %v7779 = vadd.f32 0.0, %v7778
    %v7780 = vpop.f32.mrf.mxu0
    %v7781 = vadd.f32 0.0, %v7780
    %v7782 = vpop.f32.mrf.mxu0
    %v7783 = vadd.f32 0.0, %v7782
    %v7784 = vpop.f32.mrf.mxu0
    %v7785 = vadd.f32 0.0, %v7784
    %7786 = vmatprep.mubr.bf16.mxu0 %v7724
    %7787 = vmatmul.mubr.bf16.gmra.mxu0 %v7034
    %v7788 = vpop.f32.mrf.mxu0
    %v7789 = vadd.f32 0.0, %v7788
    %v7790 = vpop.f32.mrf.mxu0
    %v7791 = vadd.f32 0.0, %v7790
    %v7792 = vpop.f32.mrf.mxu0
    %v7793 = vadd.f32 0.0, %v7792
    %v7794 = vpop.f32.mrf.mxu0
    %v7795 = vadd.f32 0.0, %v7794
    %7796 = vmatprep.mubr.bf16.mxu0 %v7727
    %7797 = vmatmul.mubr.bf16.gmra.mxu0 %v7036
    %v7798 = vpop.f32.mrf.mxu0
    %v7799 = vadd.f32 0.0, %v7798
    %v7800 = vpop.f32.mrf.mxu0
    %v7801 = vadd.f32 0.0, %v7800
    %v7802 = vpop.f32.mrf.mxu0
    %v7803 = vadd.f32 0.0, %v7802
    %v7804 = vpop.f32.mrf.mxu0
    %v7805 = vadd.f32 0.0, %v7804
    %7806 = vmatprep.mubr.bf16.mxu0 %v7730
    %7807 = vmatmul.mubr.bf16.gmra.mxu0 %v7038
    %v7808 = vpop.f32.mrf.mxu0
    %v7809 = vadd.f32 0.0, %v7808
    %v7810 = vpop.f32.mrf.mxu0
    %v7811 = vadd.f32 0.0, %v7810
    %v7812 = vpop.f32.mrf.mxu0
    %v7813 = vadd.f32 0.0, %v7812
    %v7814 = vpop.f32.mrf.mxu0
    %v7815 = vadd.f32 0.0, %v7814
    %7816 = vmatprep.mubr.bf16.mxu0 %v7733
    %7817 = vmatmul.mubr.bf16.gmra.mxu0 %v7040
    %v7818 = vpop.f32.mrf.mxu0
    %v7819 = vadd.f32 0.0, %v7818
    %v7820 = vpop.f32.mrf.mxu0
    %v7821 = vadd.f32 0.0, %v7820
    %v7822 = vpop.f32.mrf.mxu0
    %v7823 = vadd.f32 0.0, %v7822
    %v7824 = vpop.f32.mrf.mxu0
    %v7825 = vadd.f32 0.0, %v7824
    %7826 = vmatprep.mubr.bf16.mxu0 %v7736
    %7827 = vmatmul.mubr.bf16.gmra.mxu0 %v7042
    %v7828 = vpop.f32.mrf.mxu0
    %v7829 = vadd.f32 0.0, %v7828
    %v7830 = vpop.f32.mrf.mxu0
    %v7831 = vadd.f32 0.0, %v7830
    %v7832 = vpop.f32.mrf.mxu0
    %v7833 = vadd.f32 0.0, %v7832
    %v7834 = vpop.f32.mrf.mxu0
    %v7835 = vadd.f32 0.0, %v7834
    %7836 = vmatprep.mubr.bf16.mxu0 %v7739
    %7837 = vmatmul.mubr.bf16.gmra.mxu0 %v7044
    %v7838 = vpop.f32.mrf.mxu0
    %v7839 = vadd.f32 0.0, %v7838
    %v7840 = vpop.f32.mrf.mxu0
    %v7841 = vadd.f32 0.0, %v7840
    %v7842 = vpop.f32.mrf.mxu0
    %v7843 = vadd.f32 0.0, %v7842
    %v7844 = vpop.f32.mrf.mxu0
    %v7845 = vadd.f32 0.0, %v7844
    %7846 = vmatprep.mubr.bf16.mxu0 %v7742
    %7847 = vmatmul.mubr.bf16.gmra.mxu0 %v7046
    %v7848 = vpop.f32.mrf.mxu0
    %v7849 = vadd.f32 0.0, %v7848
    %v7850 = vpop.f32.mrf.mxu0
    %v7851 = vadd.f32 0.0, %v7850
    %v7852 = vpop.f32.mrf.mxu0
    %v7853 = vadd.f32 0.0, %v7852
    %v7854 = vpop.f32.mrf.mxu0
    %v7855 = vadd.f32 0.0, %v7854
    %7856 = vdwg.mxu0
    %7857 = vmatprep.subr.bf16.mxu0 %v7570
    %7858 = vmatpush1.bf16.msra.mxu0 %v7569
    %7859 = vmatprep.subr.bf16.mxu0 %v7561
    %7860 = vmatpush1.bf16.msra.mxu0 %v7560
    %7861 = vmatprep.subr.bf16.mxu0 %v7552
    %7862 = vmatpush1.bf16.msra.mxu0 %v7551
    %7863 = vmatprep.subr.bf16.mxu0 %v7543
    %7864 = vmatpush1.bf16.msra.mxu0 %v7542
    %7865 = vmatprep.subr.bf16.mxu0 %v7534
    %7866 = vmatpush1.bf16.msra.mxu0 %v7533
    %7867 = vmatprep.subr.bf16.mxu0 %v7525
    %7868 = vmatpush1.bf16.msra.mxu0 %v7524
    %7869 = vmatprep.subr.bf16.mxu0 %v7516
    %7870 = vmatpush1.bf16.msra.mxu0 %v7515
    %7871 = vmatprep.subr.bf16.mxu0 %v7507
    %7872 = vmatpush1.bf16.msra.mxu0 %v7506
    %7873 = vmatprep.subr.bf16.mxu0 0
    %7874 = vmatpush2.bf16.msra.mxu0 0
    %7875 = vmatprep.subr.bf16.mxu0 0
    %7876 = vmatpush2.bf16.msra.mxu0 0
    %7877 = vmatprep.subr.bf16.mxu0 0
    %7878 = vmatpush2.bf16.msra.mxu0 0
    %7879 = vmatprep.subr.bf16.mxu0 0
    %7880 = vmatpush2.bf16.msra.mxu0 0
    %7881 = vmatprep.subr.bf16.mxu0 %v7606
    %7882 = vmatpush2.bf16.msra.mxu0 %v7605
    %7883 = vmatprep.subr.bf16.mxu0 %v7597
    %7884 = vmatpush2.bf16.msra.mxu0 %v7596
    %7885 = vmatprep.subr.bf16.mxu0 %v7588
    %7886 = vmatpush2.bf16.msra.mxu0 %v7587
    %7887 = vmatprep.subr.bf16.mxu0 %v7579
    %7888 = vmatpush2.bf16.msra.mxu0 %v7578
    %7889 = vmatprep.mubr.bf16.mxu0 %v7721
    %7890 = vmatmul.mubr.bf16.gmra.mxu0 %v7032
    %v7891 = vpop.f32.mrf.mxu0
    %v7892 = vadd.f32 0.0, %v7891
    %v7893 = vpop.f32.mrf.mxu0
    %v7894 = vadd.f32 0.0, %v7893
    %v7895 = vpop.f32.mrf.mxu0
    %v7896 = vadd.f32 0.0, %v7895
    %v7897 = vpop.f32.mrf.mxu0
    %v7898 = vadd.f32 0.0, %v7897
    %7899 = vmatprep.mubr.bf16.mxu0 %v7724
    %7900 = vmatmul.mubr.bf16.gmra.mxu0 %v7034
    %v7901 = vpop.f32.mrf.mxu0
    %v7902 = vadd.f32 0.0, %v7901
    %v7903 = vpop.f32.mrf.mxu0
    %v7904 = vadd.f32 0.0, %v7903
    %v7905 = vpop.f32.mrf.mxu0
    %v7906 = vadd.f32 0.0, %v7905
    %v7907 = vpop.f32.mrf.mxu0
    %v7908 = vadd.f32 0.0, %v7907
    %7909 = vmatprep.mubr.bf16.mxu0 %v7727
    %7910 = vmatmul.mubr.bf16.gmra.mxu0 %v7036
    %v7911 = vpop.f32.mrf.mxu0
    %v7912 = vadd.f32 0.0, %v7911
    %v7913 = vpop.f32.mrf.mxu0
    %v7914 = vadd.f32 0.0, %v7913
    %v7915 = vpop.f32.mrf.mxu0
    %v7916 = vadd.f32 0.0, %v7915
    %v7917 = vpop.f32.mrf.mxu0
    %v7918 = vadd.f32 0.0, %v7917
    %7919 = vmatprep.mubr.bf16.mxu0 %v7730
    %7920 = vmatmul.mubr.bf16.gmra.mxu0 %v7038
    %v7921 = vpop.f32.mrf.mxu0
    %v7922 = vadd.f32 0.0, %v7921
    %v7923 = vpop.f32.mrf.mxu0
    %v7924 = vadd.f32 0.0, %v7923
    %v7925 = vpop.f32.mrf.mxu0
    %v7926 = vadd.f32 0.0, %v7925
    %v7927 = vpop.f32.mrf.mxu0
    %v7928 = vadd.f32 0.0, %v7927
    %7929 = vmatprep.mubr.bf16.mxu0 %v7733
    %7930 = vmatmul.mubr.bf16.gmra.mxu0 %v7040
    %v7931 = vpop.f32.mrf.mxu0
    %v7932 = vadd.f32 0.0, %v7931
    %v7933 = vpop.f32.mrf.mxu0
    %v7934 = vadd.f32 0.0, %v7933
    %v7935 = vpop.f32.mrf.mxu0
    %v7936 = vadd.f32 0.0, %v7935
    %v7937 = vpop.f32.mrf.mxu0
    %v7938 = vadd.f32 0.0, %v7937
    %7939 = vmatprep.mubr.bf16.mxu0 %v7736
    %7940 = vmatmul.mubr.bf16.gmra.mxu0 %v7042
    %v7941 = vpop.f32.mrf.mxu0
    %v7942 = vadd.f32 0.0, %v7941
    %v7943 = vpop.f32.mrf.mxu0
    %v7944 = vadd.f32 0.0, %v7943
    %v7945 = vpop.f32.mrf.mxu0
    %v7946 = vadd.f32 0.0, %v7945
    %v7947 = vpop.f32.mrf.mxu0
    %v7948 = vadd.f32 0.0, %v7947
    %7949 = vmatprep.mubr.bf16.mxu0 %v7739
    %7950 = vmatmul.mubr.bf16.gmra.mxu0 %v7044
    %v7951 = vpop.f32.mrf.mxu0
    %v7952 = vadd.f32 0.0, %v7951
    %v7953 = vpop.f32.mrf.mxu0
    %v7954 = vadd.f32 0.0, %v7953
    %v7955 = vpop.f32.mrf.mxu0
    %v7956 = vadd.f32 0.0, %v7955
    %v7957 = vpop.f32.mrf.mxu0
    %v7958 = vadd.f32 0.0, %v7957
    %7959 = vmatprep.mubr.bf16.mxu0 %v7742
    %7960 = vmatmul.mubr.bf16.gmra.mxu0 %v7046
    %v7961 = vpop.f32.mrf.mxu0
    %v7962 = vadd.f32 0.0, %v7961
    %v7963 = vpop.f32.mrf.mxu0
    %v7964 = vadd.f32 0.0, %v7963
    %v7965 = vpop.f32.mrf.mxu0
    %v7966 = vadd.f32 0.0, %v7965
    %v7967 = vpop.f32.mrf.mxu0
    %v7968 = vadd.f32 0.0, %v7967
    %7969 = vdwg.mxu0
    %7970 = vmatprep.subr.bf16.mxu0 %v7572
    %7971 = vmatpush1.bf16.msra.mxu0 %v7571
    %7972 = vmatprep.subr.bf16.mxu0 %v7563
    %7973 = vmatpush1.bf16.msra.mxu0 %v7562
    %7974 = vmatprep.subr.bf16.mxu0 %v7554
    %7975 = vmatpush1.bf16.msra.mxu0 %v7553
    %7976 = vmatprep.subr.bf16.mxu0 %v7545
    %7977 = vmatpush1.bf16.msra.mxu0 %v7544
    %7978 = vmatprep.subr.bf16.mxu0 %v7536
    %7979 = vmatpush1.bf16.msra.mxu0 %v7535
    %7980 = vmatprep.subr.bf16.mxu0 %v7527
    %7981 = vmatpush1.bf16.msra.mxu0 %v7526
    %7982 = vmatprep.subr.bf16.mxu0 %v7518
    %7983 = vmatpush1.bf16.msra.mxu0 %v7517
    %7984 = vmatprep.subr.bf16.mxu0 %v7509
    %7985 = vmatpush1.bf16.msra.mxu0 %v7508
    %7986 = vmatprep.subr.bf16.mxu0 0
    %7987 = vmatpush2.bf16.msra.mxu0 0
    %7988 = vmatprep.subr.bf16.mxu0 0
    %7989 = vmatpush2.bf16.msra.mxu0 0
    %7990 = vmatprep.subr.bf16.mxu0 0
    %7991 = vmatpush2.bf16.msra.mxu0 0
    %7992 = vmatprep.subr.bf16.mxu0 0
    %7993 = vmatpush2.bf16.msra.mxu0 0
    %7994 = vmatprep.subr.bf16.mxu0 %v7608
    %7995 = vmatpush2.bf16.msra.mxu0 %v7607
    %7996 = vmatprep.subr.bf16.mxu0 %v7599
    %7997 = vmatpush2.bf16.msra.mxu0 %v7598
    %7998 = vmatprep.subr.bf16.mxu0 %v7590
    %7999 = vmatpush2.bf16.msra.mxu0 %v7589
    %8000 = vmatprep.subr.bf16.mxu0 %v7581
    %8001 = vmatpush2.bf16.msra.mxu0 %v7580
    %8002 = vmatprep.mubr.bf16.mxu0 %v7721
    %8003 = vmatmul.mubr.bf16.gmra.mxu0 %v7032
    %v8004 = vpop.f32.mrf.mxu0
    %v8005 = vadd.f32 0.0, %v8004
    %v8006 = vpop.f32.mrf.mxu0
    %v8007 = vadd.f32 0.0, %v8006
    %v8008 = vpop.f32.mrf.mxu0
    %v8009 = vadd.f32 0.0, %v8008
    %v8010 = vpop.f32.mrf.mxu0
    %v8011 = vadd.f32 0.0, %v8010
    %8012 = vmatprep.mubr.bf16.mxu0 %v7724
    %8013 = vmatmul.mubr.bf16.gmra.mxu0 %v7034
    %v8014 = vpop.f32.mrf.mxu0
    %v8015 = vadd.f32 0.0, %v8014
    %v8016 = vpop.f32.mrf.mxu0
    %v8017 = vadd.f32 0.0, %v8016
    %v8018 = vpop.f32.mrf.mxu0
    %v8019 = vadd.f32 0.0, %v8018
    %v8020 = vpop.f32.mrf.mxu0
    %v8021 = vadd.f32 0.0, %v8020
    %8022 = vmatprep.mubr.bf16.mxu0 %v7727
    %8023 = vmatmul.mubr.bf16.gmra.mxu0 %v7036
    %v8024 = vpop.f32.mrf.mxu0
    %v8025 = vadd.f32 0.0, %v8024
    %v8026 = vpop.f32.mrf.mxu0
    %v8027 = vadd.f32 0.0, %v8026
    %v8028 = vpop.f32.mrf.mxu0
    %v8029 = vadd.f32 0.0, %v8028
    %v8030 = vpop.f32.mrf.mxu0
    %v8031 = vadd.f32 0.0, %v8030
    %8032 = vmatprep.mubr.bf16.mxu0 %v7730
    %8033 = vmatmul.mubr.bf16.gmra.mxu0 %v7038
    %v8034 = vpop.f32.mrf.mxu0
    %v8035 = vadd.f32 0.0, %v8034
    %v8036 = vpop.f32.mrf.mxu0
    %v8037 = vadd.f32 0.0, %v8036
    %v8038 = vpop.f32.mrf.mxu0
    %v8039 = vadd.f32 0.0, %v8038
    %v8040 = vpop.f32.mrf.mxu0
    %v8041 = vadd.f32 0.0, %v8040
    %8042 = vmatprep.mubr.bf16.mxu0 %v7733
    %8043 = vmatmul.mubr.bf16.gmra.mxu0 %v7040
    %v8044 = vpop.f32.mrf.mxu0
    %v8045 = vadd.f32 0.0, %v8044
    %v8046 = vpop.f32.mrf.mxu0
    %v8047 = vadd.f32 0.0, %v8046
    %v8048 = vpop.f32.mrf.mxu0
    %v8049 = vadd.f32 0.0, %v8048
    %v8050 = vpop.f32.mrf.mxu0
    %v8051 = vadd.f32 0.0, %v8050
    %8052 = vmatprep.mubr.bf16.mxu0 %v7736
    %8053 = vmatmul.mubr.bf16.gmra.mxu0 %v7042
    %v8054 = vpop.f32.mrf.mxu0
    %v8055 = vadd.f32 0.0, %v8054
    %v8056 = vpop.f32.mrf.mxu0
    %v8057 = vadd.f32 0.0, %v8056
    %v8058 = vpop.f32.mrf.mxu0
    %v8059 = vadd.f32 0.0, %v8058
    %v8060 = vpop.f32.mrf.mxu0
    %v8061 = vadd.f32 0.0, %v8060
    %8062 = vmatprep.mubr.bf16.mxu0 %v7739
    %8063 = vmatmul.mubr.bf16.gmra.mxu0 %v7044
    %v8064 = vpop.f32.mrf.mxu0
    %v8065 = vadd.f32 0.0, %v8064
    %v8066 = vpop.f32.mrf.mxu0
    %v8067 = vadd.f32 0.0, %v8066
    %v8068 = vpop.f32.mrf.mxu0
    %v8069 = vadd.f32 0.0, %v8068
    %v8070 = vpop.f32.mrf.mxu0
    %v8071 = vadd.f32 0.0, %v8070
    %8072 = vmatprep.mubr.bf16.mxu0 %v7742
    %8073 = vmatmul.mubr.bf16.gmra.mxu0 %v7046
    %v8074 = vpop.f32.mrf.mxu0
    %v8075 = vadd.f32 0.0, %v8074
    %v8076 = vpop.f32.mrf.mxu0
    %v8077 = vadd.f32 0.0, %v8076
    %v8078 = vpop.f32.mrf.mxu0
    %v8079 = vadd.f32 0.0, %v8078
    %v8080 = vpop.f32.mrf.mxu0
    %v8081 = vadd.f32 0.0, %v8080
    %8082 = vdwg.mxu0
    %8083 = vmatprep.subr.bf16.mxu0 %v7574
    %8084 = vmatpush1.bf16.msra.mxu0 %v7573
    %8085 = vmatprep.subr.bf16.mxu0 %v7565
    %8086 = vmatpush1.bf16.msra.mxu0 %v7564
    %8087 = vmatprep.subr.bf16.mxu0 %v7556
    %8088 = vmatpush1.bf16.msra.mxu0 %v7555
    %8089 = vmatprep.subr.bf16.mxu0 %v7547
    %8090 = vmatpush1.bf16.msra.mxu0 %v7546
    %8091 = vmatprep.subr.bf16.mxu0 %v7538
    %8092 = vmatpush1.bf16.msra.mxu0 %v7537
    %8093 = vmatprep.subr.bf16.mxu0 %v7529
    %8094 = vmatpush1.bf16.msra.mxu0 %v7528
    %8095 = vmatprep.subr.bf16.mxu0 %v7520
    %8096 = vmatpush1.bf16.msra.mxu0 %v7519
    %8097 = vmatprep.subr.bf16.mxu0 %v7511
    %8098 = vmatpush1.bf16.msra.mxu0 %v7510
    %8099 = vmatprep.subr.bf16.mxu0 0
    %8100 = vmatpush2.bf16.msra.mxu0 0
    %8101 = vmatprep.subr.bf16.mxu0 0
    %8102 = vmatpush2.bf16.msra.mxu0 0
    %8103 = vmatprep.subr.bf16.mxu0 0
    %8104 = vmatpush2.bf16.msra.mxu0 0
    %8105 = vmatprep.subr.bf16.mxu0 0
    %8106 = vmatpush2.bf16.msra.mxu0 0
    %8107 = vmatprep.subr.bf16.mxu0 %v7610
    %8108 = vmatpush2.bf16.msra.mxu0 %v7609
    %8109 = vmatprep.subr.bf16.mxu0 %v7601
    %8110 = vmatpush2.bf16.msra.mxu0 %v7600
    %8111 = vmatprep.subr.bf16.mxu0 %v7592
    %8112 = vmatpush2.bf16.msra.mxu0 %v7591
    %8113 = vmatprep.subr.bf16.mxu0 %v7583
    %8114 = vmatpush2.bf16.msra.mxu0 %v7582
    %8115 = vmatprep.mubr.bf16.mxu0 %v7721
    %8116 = vmatmul.mubr.bf16.gmra.mxu0 %v7032
    %v8117 = vpop.f32.mrf.mxu0
    %v8118 = vadd.f32 0.0, %v8117
    %v8119 = vpop.f32.mrf.mxu0
    %v8120 = vadd.f32 0.0, %v8119
    %v8121 = vpop.f32.mrf.mxu0
    %v8122 = vadd.f32 0.0, %v8121
    %v8123 = vpop.f32.mrf.mxu0
    %v8124 = vadd.f32 0.0, %v8123
    %8125 = vmatprep.mubr.bf16.mxu0 %v7724
    %8126 = vmatmul.mubr.bf16.gmra.mxu0 %v7034
    %v8127 = vpop.f32.mrf.mxu0
    %v8128 = vadd.f32 0.0, %v8127
    %v8129 = vpop.f32.mrf.mxu0
    %v8130 = vadd.f32 0.0, %v8129
    %v8131 = vpop.f32.mrf.mxu0
    %v8132 = vadd.f32 0.0, %v8131
    %v8133 = vpop.f32.mrf.mxu0
    %v8134 = vadd.f32 0.0, %v8133
    %8135 = vmatprep.mubr.bf16.mxu0 %v7727
    %8136 = vmatmul.mubr.bf16.gmra.mxu0 %v7036
    %v8137 = vpop.f32.mrf.mxu0
    %v8138 = vadd.f32 0.0, %v8137
    %v8139 = vpop.f32.mrf.mxu0
    %v8140 = vadd.f32 0.0, %v8139
    %v8141 = vpop.f32.mrf.mxu0
    %v8142 = vadd.f32 0.0, %v8141
    %v8143 = vpop.f32.mrf.mxu0
    %v8144 = vadd.f32 0.0, %v8143
    %8145 = vmatprep.mubr.bf16.mxu0 %v7730
    %8146 = vmatmul.mubr.bf16.gmra.mxu0 %v7038
    %v8147 = vpop.f32.mrf.mxu0
    %v8148 = vadd.f32 0.0, %v8147
    %v8149 = vpop.f32.mrf.mxu0
    %v8150 = vadd.f32 0.0, %v8149
    %v8151 = vpop.f32.mrf.mxu0
    %v8152 = vadd.f32 0.0, %v8151
    %v8153 = vpop.f32.mrf.mxu0
    %v8154 = vadd.f32 0.0, %v8153
    %8155 = vmatprep.mubr.bf16.mxu0 %v7733
    %8156 = vmatmul.mubr.bf16.gmra.mxu0 %v7040
    %v8157 = vpop.f32.mrf.mxu0
    %v8158 = vadd.f32 0.0, %v8157
    %v8159 = vpop.f32.mrf.mxu0
    %v8160 = vadd.f32 0.0, %v8159
    %v8161 = vpop.f32.mrf.mxu0
    %v8162 = vadd.f32 0.0, %v8161
    %v8163 = vpop.f32.mrf.mxu0
    %v8164 = vadd.f32 0.0, %v8163
    %8165 = vmatprep.mubr.bf16.mxu0 %v7736
    %8166 = vmatmul.mubr.bf16.gmra.mxu0 %v7042
    %v8167 = vpop.f32.mrf.mxu0
    %v8168 = vadd.f32 0.0, %v8167
    %v8169 = vpop.f32.mrf.mxu0
    %v8170 = vadd.f32 0.0, %v8169
    %v8171 = vpop.f32.mrf.mxu0
    %v8172 = vadd.f32 0.0, %v8171
    %v8173 = vpop.f32.mrf.mxu0
    %v8174 = vadd.f32 0.0, %v8173
    %8175 = vmatprep.mubr.bf16.mxu0 %v7739
    %8176 = vmatmul.mubr.bf16.gmra.mxu0 %v7044
    %v8177 = vpop.f32.mrf.mxu0
    %v8178 = vadd.f32 0.0, %v8177
    %v8179 = vpop.f32.mrf.mxu0
    %v8180 = vadd.f32 0.0, %v8179
    %v8181 = vpop.f32.mrf.mxu0
    %v8182 = vadd.f32 0.0, %v8181
    %v8183 = vpop.f32.mrf.mxu0
    %v8184 = vadd.f32 0.0, %v8183
    %8185 = vmatprep.mubr.bf16.mxu0 %v7742
    %8186 = vmatmul.mubr.bf16.gmra.mxu0 %v7046
    %v8187 = vpop.f32.mrf.mxu0
    %v8188 = vadd.f32 0.0, %v8187
    %v8189 = vpop.f32.mrf.mxu0
    %v8190 = vadd.f32 0.0, %v8189
    %v8191 = vpop.f32.mrf.mxu0
    %v8192 = vadd.f32 0.0, %v8191
    %v8193 = vpop.f32.mrf.mxu0
    %v8194 = vadd.f32 0.0, %v8193
    %8195 = vdwg.mxu0
    %8196 = vmatprep.subr.bf16.mxu0 0
    %8197 = vmatpush1.bf16.msra.mxu0 %v7575
    %8198 = vmatprep.subr.bf16.mxu0 0
    %8199 = vmatpush1.bf16.msra.mxu0 %v7566
    %8200 = vmatprep.subr.bf16.mxu0 0
    %8201 = vmatpush1.bf16.msra.mxu0 %v7557
    %8202 = vmatprep.subr.bf16.mxu0 0
    %8203 = vmatpush1.bf16.msra.mxu0 %v7548
    %8204 = vmatprep.subr.bf16.mxu0 0
    %8205 = vmatpush1.bf16.msra.mxu0 %v7539
    %8206 = vmatprep.subr.bf16.mxu0 0
    %8207 = vmatpush1.bf16.msra.mxu0 %v7530
    %8208 = vmatprep.subr.bf16.mxu0 0
    %8209 = vmatpush1.bf16.msra.mxu0 %v7521
    %8210 = vmatprep.subr.bf16.mxu0 0
    %8211 = vmatpush1.bf16.msra.mxu0 %v7512
    %8212 = vmatprep.subr.bf16.mxu0 0
    %8213 = vmatpush2.bf16.msra.mxu0 0
    %8214 = vmatprep.subr.bf16.mxu0 0
    %8215 = vmatpush2.bf16.msra.mxu0 0
    %8216 = vmatprep.subr.bf16.mxu0 0
    %8217 = vmatpush2.bf16.msra.mxu0 0
    %8218 = vmatprep.subr.bf16.mxu0 0
    %8219 = vmatpush2.bf16.msra.mxu0 0
    %8220 = vmatprep.subr.bf16.mxu0 0
    %8221 = vmatpush2.bf16.msra.mxu0 %v7611
    %8222 = vmatprep.subr.bf16.mxu0 0
    %8223 = vmatpush2.bf16.msra.mxu0 %v7602
    %8224 = vmatprep.subr.bf16.mxu0 0
    %8225 = vmatpush2.bf16.msra.mxu0 %v7593
    %8226 = vmatprep.subr.bf16.mxu0 0
    %8227 = vmatpush2.bf16.msra.mxu0 %v7584
    %8228 = vmatprep.mubr.bf16.mxu0 %v7721
    %8229 = vmatmul.mubr.bf16.gmra.mxu0 %v7032
    %v8230 = vpop.f32.mrf.mxu0
    %v8231 = vadd.f32 0.0, %v8230
    %v8232 = vpop.f32.mrf.mxu0
    %v8233 = vpop.f32.mrf.mxu0
    %v8234 = vadd.f32 0.0, %v8233
    %v8235 = vpop.f32.mrf.mxu0
    %8236 = vmatprep.mubr.bf16.mxu0 %v7724
    %8237 = vmatmul.mubr.bf16.gmra.mxu0 %v7034
    %v8238 = vpop.f32.mrf.mxu0
    %v8239 = vadd.f32 0.0, %v8238
    %v8240 = vpop.f32.mrf.mxu0
    %v8241 = vpop.f32.mrf.mxu0
    %v8242 = vadd.f32 0.0, %v8241
    %v8243 = vpop.f32.mrf.mxu0
    %8244 = vmatprep.mubr.bf16.mxu0 %v7727
    %8245 = vmatmul.mubr.bf16.gmra.mxu0 %v7036
    %v8246 = vpop.f32.mrf.mxu0
    %v8247 = vadd.f32 0.0, %v8246
    %v8248 = vpop.f32.mrf.mxu0
    %v8249 = vpop.f32.mrf.mxu0
    %v8250 = vadd.f32 0.0, %v8249
    %v8251 = vpop.f32.mrf.mxu0
    %8252 = vmatprep.mubr.bf16.mxu0 %v7730
    %8253 = vmatmul.mubr.bf16.gmra.mxu0 %v7038
    %v8254 = vpop.f32.mrf.mxu0
    %v8255 = vadd.f32 0.0, %v8254
    %v8256 = vpop.f32.mrf.mxu0
    %v8257 = vpop.f32.mrf.mxu0
    %v8258 = vadd.f32 0.0, %v8257
    %v8259 = vpop.f32.mrf.mxu0
    %8260 = vmatprep.mubr.bf16.mxu0 %v7733
    %8261 = vmatmul.mubr.bf16.gmra.mxu0 %v7040
    %v8262 = vpop.f32.mrf.mxu0
    %v8263 = vadd.f32 0.0, %v8262
    %v8264 = vpop.f32.mrf.mxu0
    %v8265 = vpop.f32.mrf.mxu0
    %v8266 = vadd.f32 0.0, %v8265
    %v8267 = vpop.f32.mrf.mxu0
    %8268 = vmatprep.mubr.bf16.mxu0 %v7736
    %8269 = vmatmul.mubr.bf16.gmra.mxu0 %v7042
    %v8270 = vpop.f32.mrf.mxu0
    %v8271 = vadd.f32 0.0, %v8270
    %v8272 = vpop.f32.mrf.mxu0
    %v8273 = vpop.f32.mrf.mxu0
    %v8274 = vadd.f32 0.0, %v8273
    %v8275 = vpop.f32.mrf.mxu0
    %8276 = vmatprep.mubr.bf16.mxu0 %v7739
    %8277 = vmatmul.mubr.bf16.gmra.mxu0 %v7044
    %v8278 = vpop.f32.mrf.mxu0
    %v8279 = vadd.f32 0.0, %v8278
    %v8280 = vpop.f32.mrf.mxu0
    %v8281 = vpop.f32.mrf.mxu0
    %v8282 = vadd.f32 0.0, %v8281
    %v8283 = vpop.f32.mrf.mxu0
    %8284 = vmatprep.mubr.bf16.mxu0 %v7742
    %8285 = vmatmul.mubr.bf16.gmra.mxu0 %v7046
    %v8286 = vpop.f32.mrf.mxu0
    %v8287 = vadd.f32 0.0, %v8286
    %v8288 = vpop.f32.mrf.mxu0
    %v8289 = vpop.f32.mrf.mxu0
    %v8290 = vadd.f32 0.0, %v8289
    %v8291 = vpop.f32.mrf.mxu0
    %8292 = vdwg.mxu0
    %v8413 = vunpack.c.l.b16 %v6912
    %v8414 = vunpack.c.h.b16 %v6912
    %v8415 = vunpack.c.l.b16 %v6913
    %v8416 = vunpack.c.h.b16 %v6913
    %v8417 = vunpack.c.l.b16 %v6914
    %v8418 = vunpack.c.h.b16 %v6914
    %v8419 = vunpack.c.l.b16 %v6915
    %v8420 = vunpack.c.h.b16 %v6915
    %v8421 = vunpack.c.l.b16 %v6916
    %v8422 = vunpack.c.l.b16 %v6917
    %v8423 = vunpack.c.h.b16 %v6917
    %v8424 = vunpack.c.l.b16 %v6918
    %v8425 = vunpack.c.h.b16 %v6918
    %v8426 = vunpack.c.l.b16 %v6919
    %v8427 = vunpack.c.h.b16 %v6919
    %v8428 = vunpack.c.l.b16 %v6920
    %v8429 = vunpack.c.h.b16 %v6920
    %v8430 = vunpack.c.l.b16 %v6921
    %v8431 = vunpack.c.l.b16 %v6922
    %v8432 = vunpack.c.h.b16 %v6922
    %v8433 = vunpack.c.l.b16 %v6923
    %v8434 = vunpack.c.h.b16 %v6923
    %v8435 = vunpack.c.l.b16 %v6924
    %v8436 = vunpack.c.h.b16 %v6924
    %v8437 = vunpack.c.l.b16 %v6925
    %v8438 = vunpack.c.h.b16 %v6925
    %v8439 = vunpack.c.l.b16 %v6926
    %v8440 = vunpack.c.l.b16 %v6927
    %v8441 = vunpack.c.h.b16 %v6927
    %v8442 = vunpack.c.l.b16 %v6928
    %v8443 = vunpack.c.h.b16 %v6928
    %v8444 = vunpack.c.l.b16 %v6929
    %v8445 = vunpack.c.h.b16 %v6929
    %v8446 = vunpack.c.l.b16 %v6930
    %v8447 = vunpack.c.h.b16 %v6930
    %v8448 = vunpack.c.l.b16 %v6931
    %v8449 = vunpack.c.l.b16 %v6932
    %v8450 = vunpack.c.h.b16 %v6932
    %v8451 = vunpack.c.l.b16 %v6933
    %v8452 = vunpack.c.h.b16 %v6933
    %v8453 = vunpack.c.l.b16 %v6934
    %v8454 = vunpack.c.h.b16 %v6934
    %v8455 = vunpack.c.l.b16 %v6935
    %v8456 = vunpack.c.h.b16 %v6935
    %v8457 = vunpack.c.l.b16 %v6936
    %v8458 = vunpack.c.l.b16 %v6937
    %v8459 = vunpack.c.h.b16 %v6937
    %v8460 = vunpack.c.l.b16 %v6938
    %v8461 = vunpack.c.h.b16 %v6938
    %v8462 = vunpack.c.l.b16 %v6939
    %v8463 = vunpack.c.h.b16 %v6939
    %v8464 = vunpack.c.l.b16 %v6940
    %v8465 = vunpack.c.h.b16 %v6940
    %v8466 = vunpack.c.l.b16 %v6941
    %v8467 = vunpack.c.l.b16 %v6942
    %v8468 = vunpack.c.h.b16 %v6942
    %v8469 = vunpack.c.l.b16 %v6943
    %v8470 = vunpack.c.h.b16 %v6943
    %v8471 = vunpack.c.l.b16 %v6944
    %v8472 = vunpack.c.h.b16 %v6944
    %v8473 = vunpack.c.l.b16 %v6945
    %v8474 = vunpack.c.h.b16 %v6945
    %v8475 = vunpack.c.l.b16 %v6946
    %v8476 = vunpack.c.l.b16 %v6947
    %v8477 = vunpack.c.h.b16 %v6947
    %v8478 = vunpack.c.l.b16 %v6948
    %v8479 = vunpack.c.h.b16 %v6948
    %v8480 = vunpack.c.l.b16 %v6949
    %v8481 = vunpack.c.h.b16 %v6949
    %v8482 = vunpack.c.l.b16 %v6950
    %v8483 = vunpack.c.h.b16 %v6950
    %v8484 = vunpack.c.l.b16 %v6951
    %v8485 = vunpack.c.l.b16 %v6952
    %v8486 = vunpack.c.h.b16 %v6952
    %v8487 = vunpack.c.l.b16 %v6953
    %v8488 = vunpack.c.h.b16 %v6953
    %v8489 = vunpack.c.l.b16 %v6954
    %v8490 = vunpack.c.h.b16 %v6954
    %v8491 = vunpack.c.l.b16 %v6955
    %v8492 = vunpack.c.h.b16 %v6955
    %v8493 = vunpack.c.l.b16 %v6956
    %v8494 = vunpack.c.l.b16 %v6957
    %v8495 = vunpack.c.h.b16 %v6957
    %v8496 = vunpack.c.l.b16 %v6958
    %v8497 = vunpack.c.h.b16 %v6958
    %v8498 = vunpack.c.l.b16 %v6959
    %v8499 = vunpack.c.h.b16 %v6959
    %v8500 = vunpack.c.l.b16 %v6960
    %v8501 = vunpack.c.h.b16 %v6960
    %v8502 = vunpack.c.l.b16 %v6961
    %v8503 = vunpack.c.l.b16 %v6962
    %v8504 = vunpack.c.h.b16 %v6962
    %v8505 = vunpack.c.l.b16 %v6963
    %v8506 = vunpack.c.h.b16 %v6963
    %v8507 = vunpack.c.l.b16 %v6964
    %v8508 = vunpack.c.h.b16 %v6964
    %v8509 = vunpack.c.l.b16 %v6965
    %v8510 = vunpack.c.h.b16 %v6965
    %v8511 = vunpack.c.l.b16 %v6966
    %v8512 = vunpack.c.l.b16 %v6967
    %v8513 = vunpack.c.h.b16 %v6967
    %v8514 = vunpack.c.l.b16 %v6968
    %v8515 = vunpack.c.h.b16 %v6968
    %v8516 = vunpack.c.l.b16 %v6969
    %v8517 = vunpack.c.h.b16 %v6969
    %v8518 = vunpack.c.l.b16 %v6970
    %v8519 = vunpack.c.h.b16 %v6970
    %v8520 = vunpack.c.l.b16 %v6971
    %v8521 = vunpack.c.l.b16 %v6972
    %v8522 = vunpack.c.h.b16 %v6972
    %v8523 = vunpack.c.l.b16 %v6973
    %v8524 = vunpack.c.h.b16 %v6973
    %v8525 = vunpack.c.l.b16 %v6974
    %v8526 = vunpack.c.h.b16 %v6974
    %v8527 = vunpack.c.l.b16 %v6975
    %v8528 = vunpack.c.h.b16 %v6975
    %v8529 = vunpack.c.l.b16 %v6976
    %v8530 = vunpack.c.l.b16 %v6977
    %v8531 = vunpack.c.h.b16 %v6977
    %v8532 = vunpack.c.l.b16 %v6978
    %v8533 = vunpack.c.h.b16 %v6978
    %v8534 = vunpack.c.l.b16 %v6979
    %v8535 = vunpack.c.h.b16 %v6979
    %v8536 = vunpack.c.l.b16 %v6980
    %v8537 = vunpack.c.h.b16 %v6980
    %v8538 = vunpack.c.l.b16 %v6981
    %v8539 = vunpack.c.l.b16 %v6982
    %v8540 = vunpack.c.h.b16 %v6982
    %v8541 = vunpack.c.l.b16 %v6983
    %v8542 = vunpack.c.h.b16 %v6983
    %v8543 = vunpack.c.l.b16 %v6984
    %v8544 = vunpack.c.h.b16 %v6984
    %v8545 = vunpack.c.l.b16 %v6985
    %v8546 = vunpack.c.h.b16 %v6985
    %v8547 = vunpack.c.l.b16 %v6986
    %v8548 = vunpack.c.l.b16 %v6987
    %v8549 = vunpack.c.h.b16 %v6987
    %v8550 = vunpack.c.l.b16 %v6988
    %v8551 = vunpack.c.h.b16 %v6988
    %v8552 = vunpack.c.l.b16 %v6989
    %v8553 = vunpack.c.h.b16 %v6989
    %v8554 = vunpack.c.l.b16 %v6990
    %v8555 = vunpack.c.h.b16 %v6990
    %v8556 = vunpack.c.l.b16 %v6991
    %v8557 = vunpack.c.l.b16 %v6992
    %v8558 = vunpack.c.h.b16 %v6992
    %v8559 = vunpack.c.l.b16 %v6993
    %v8560 = vunpack.c.h.b16 %v6993
    %v8561 = vunpack.c.l.b16 %v6994
    %v8562 = vunpack.c.h.b16 %v6994
    %v8563 = vunpack.c.l.b16 %v6995
    %v8564 = vunpack.c.h.b16 %v6995
    %v8565 = vunpack.c.l.b16 %v6996
    %v8566 = vunpack.c.l.b16 %v6997
    %v8567 = vunpack.c.h.b16 %v6997
    %v8568 = vunpack.c.l.b16 %v6998
    %v8569 = vunpack.c.h.b16 %v6998
    %v8570 = vunpack.c.l.b16 %v6999
    %v8571 = vunpack.c.h.b16 %v6999
    %v8572 = vunpack.c.l.b16 %v7000
    %v8573 = vunpack.c.h.b16 %v7000
    %v8574 = vunpack.c.l.b16 %v7001
    %v8575 = vunpack.c.l.b16 %v7002
    %v8576 = vunpack.c.h.b16 %v7002
    %v8577 = vunpack.c.l.b16 %v7003
    %v8578 = vunpack.c.h.b16 %v7003
    %v8579 = vunpack.c.l.b16 %v7004
    %v8580 = vunpack.c.h.b16 %v7004
    %v8581 = vunpack.c.l.b16 %v7005
    %v8582 = vunpack.c.h.b16 %v7005
    %v8583 = vunpack.c.l.b16 %v7006
    %v8584 = vunpack.c.l.b16 %v7007
    %v8585 = vunpack.c.h.b16 %v7007
    %v8586 = vunpack.c.l.b16 %v7008
    %v8587 = vunpack.c.h.b16 %v7008
    %v8588 = vunpack.c.l.b16 %v7009
    %v8589 = vunpack.c.h.b16 %v7009
    %v8590 = vunpack.c.l.b16 %v7010
    %v8591 = vunpack.c.h.b16 %v7010
    %v8592 = vunpack.c.l.b16 %v7011
    %v8593 = vunpack.c.l.b16 %v7012
    %v8594 = vunpack.c.h.b16 %v7012
    %v8595 = vunpack.c.l.b16 %v7013
    %v8596 = vunpack.c.h.b16 %v7013
    %v8597 = vunpack.c.l.b16 %v7014
    %v8598 = vunpack.c.h.b16 %v7014
    %v8599 = vunpack.c.l.b16 %v7015
    %v8600 = vunpack.c.h.b16 %v7015
    %v8601 = vunpack.c.l.b16 %v7016
    %v8602 = vunpack.c.l.b16 %v7017
    %v8603 = vunpack.c.h.b16 %v7017
    %v8604 = vunpack.c.l.b16 %v7018
    %v8605 = vunpack.c.h.b16 %v7018
    %v8606 = vunpack.c.l.b16 %v7019
    %v8607 = vunpack.c.h.b16 %v7019
    %v8608 = vunpack.c.l.b16 %v7020
    %v8609 = vunpack.c.h.b16 %v7020
    %v8610 = vunpack.c.l.b16 %v7021
    %v8611 = vunpack.c.l.b16 %v7022
    %v8612 = vunpack.c.h.b16 %v7022
    %v8613 = vunpack.c.l.b16 %v7023
    %v8614 = vunpack.c.h.b16 %v7023
    %v8615 = vunpack.c.l.b16 %v7024
    %v8616 = vunpack.c.h.b16 %v7024
    %v8617 = vunpack.c.l.b16 %v7025
    %v8618 = vunpack.c.h.b16 %v7025
    %v8619 = vunpack.c.l.b16 %v7026
    %v8620 = vunpack.c.l.b16 %v7027
    %v8621 = vunpack.c.h.b16 %v7027
    %v8622 = vunpack.c.l.b16 %v7028
    %v8623 = vunpack.c.h.b16 %v7028
    %v8624 = vunpack.c.l.b16 %v7029
    %v8625 = vunpack.c.h.b16 %v7029
    %v8626 = vunpack.c.l.b16 %v7030
    %v8627 = vunpack.c.h.b16 %v7030
    %v8628 = vunpack.c.l.b16 %v7031
    %v8629 = vpack.c.b16 %v8422, %v8413
    %v8630 = vpack.c.b16 %v8423, %v8414
    %v8631 = vpack.c.b16 %v8424, %v8415
    %v8632 = vpack.c.b16 %v8425, %v8416
    %v8633 = vpack.c.b16 %v8426, %v8417
    %v8634 = vpack.c.b16 %v8427, %v8418
    %v8635 = vpack.c.b16 %v8428, %v8419
    %v8636 = vpack.c.b16 %v8429, %v8420
    %v8637 = vpack.c.b16 %v8430, %v8421
    %v8638 = vpack.c.b16 %v8440, %v8431
    %v8639 = vpack.c.b16 %v8441, %v8432
    %v8640 = vpack.c.b16 %v8442, %v8433
    %v8641 = vpack.c.b16 %v8443, %v8434
    %v8642 = vpack.c.b16 %v8444, %v8435
    %v8643 = vpack.c.b16 %v8445, %v8436
    %v8644 = vpack.c.b16 %v8446, %v8437
    %v8645 = vpack.c.b16 %v8447, %v8438
    %v8646 = vpack.c.b16 %v8448, %v8439
    %v8647 = vpack.c.b16 %v8458, %v8449
    %v8648 = vpack.c.b16 %v8459, %v8450
    %v8649 = vpack.c.b16 %v8460, %v8451
    %v8650 = vpack.c.b16 %v8461, %v8452
    %v8651 = vpack.c.b16 %v8462, %v8453
    %v8652 = vpack.c.b16 %v8463, %v8454
    %v8653 = vpack.c.b16 %v8464, %v8455
    %v8654 = vpack.c.b16 %v8465, %v8456
    %v8655 = vpack.c.b16 %v8466, %v8457
    %v8656 = vpack.c.b16 %v8476, %v8467
    %v8657 = vpack.c.b16 %v8477, %v8468
    %v8658 = vpack.c.b16 %v8478, %v8469
    %v8659 = vpack.c.b16 %v8479, %v8470
    %v8660 = vpack.c.b16 %v8480, %v8471
    %v8661 = vpack.c.b16 %v8481, %v8472
    %v8662 = vpack.c.b16 %v8482, %v8473
    %v8663 = vpack.c.b16 %v8483, %v8474
    %v8664 = vpack.c.b16 %v8484, %v8475
    %v8665 = vpack.c.b16 %v8494, %v8485
    %v8666 = vpack.c.b16 %v8495, %v8486
    %v8667 = vpack.c.b16 %v8496, %v8487
    %v8668 = vpack.c.b16 %v8497, %v8488
    %v8669 = vpack.c.b16 %v8498, %v8489
    %v8670 = vpack.c.b16 %v8499, %v8490
    %v8671 = vpack.c.b16 %v8500, %v8491
    %v8672 = vpack.c.b16 %v8501, %v8492
    %v8673 = vpack.c.b16 %v8502, %v8493
    %v8674 = vpack.c.b16 %v8512, %v8503
    %v8675 = vpack.c.b16 %v8513, %v8504
    %v8676 = vpack.c.b16 %v8514, %v8505
    %v8677 = vpack.c.b16 %v8515, %v8506
    %v8678 = vpack.c.b16 %v8516, %v8507
    %v8679 = vpack.c.b16 %v8517, %v8508
    %v8680 = vpack.c.b16 %v8518, %v8509
    %v8681 = vpack.c.b16 %v8519, %v8510
    %v8682 = vpack.c.b16 %v8520, %v8511
    %v8683 = vpack.c.b16 %v8530, %v8521
    %v8684 = vpack.c.b16 %v8531, %v8522
    %v8685 = vpack.c.b16 %v8532, %v8523
    %v8686 = vpack.c.b16 %v8533, %v8524
    %v8687 = vpack.c.b16 %v8534, %v8525
    %v8688 = vpack.c.b16 %v8535, %v8526
    %v8689 = vpack.c.b16 %v8536, %v8527
    %v8690 = vpack.c.b16 %v8537, %v8528
    %v8691 = vpack.c.b16 %v8538, %v8529
    %v8692 = vpack.c.b16 %v8548, %v8539
    %v8693 = vpack.c.b16 %v8549, %v8540
    %v8694 = vpack.c.b16 %v8550, %v8541
    %v8695 = vpack.c.b16 %v8551, %v8542
    %v8696 = vpack.c.b16 %v8552, %v8543
    %v8697 = vpack.c.b16 %v8553, %v8544
    %v8698 = vpack.c.b16 %v8554, %v8545
    %v8699 = vpack.c.b16 %v8555, %v8546
    %v8700 = vpack.c.b16 %v8556, %v8547
    %v8701 = vpack.c.b16 %v8566, %v8557
    %v8702 = vpack.c.b16 %v8567, %v8558
    %v8703 = vpack.c.b16 %v8568, %v8559
    %v8704 = vpack.c.b16 %v8569, %v8560
    %v8705 = vpack.c.b16 %v8570, %v8561
    %v8706 = vpack.c.b16 %v8571, %v8562
    %v8707 = vpack.c.b16 %v8572, %v8563
    %v8708 = vpack.c.b16 %v8573, %v8564
    %v8709 = vpack.c.b16 %v8574, %v8565
    %v8710 = vpack.c.b16 %v8584, %v8575
    %v8711 = vpack.c.b16 %v8585, %v8576
    %v8712 = vpack.c.b16 %v8586, %v8577
    %v8713 = vpack.c.b16 %v8587, %v8578
    %v8714 = vpack.c.b16 %v8588, %v8579
    %v8715 = vpack.c.b16 %v8589, %v8580
    %v8716 = vpack.c.b16 %v8590, %v8581
    %v8717 = vpack.c.b16 %v8591, %v8582
    %v8718 = vpack.c.b16 %v8592, %v8583
    %v8719 = vpack.c.b16 %v8602, %v8593
    %v8720 = vpack.c.b16 %v8603, %v8594
    %v8721 = vpack.c.b16 %v8604, %v8595
    %v8722 = vpack.c.b16 %v8605, %v8596
    %v8723 = vpack.c.b16 %v8606, %v8597
    %v8724 = vpack.c.b16 %v8607, %v8598
    %v8725 = vpack.c.b16 %v8608, %v8599
    %v8726 = vpack.c.b16 %v8609, %v8600
    %v8727 = vpack.c.b16 %v8610, %v8601
    %v8728 = vpack.c.b16 %v8620, %v8611
    %v8729 = vpack.c.b16 %v8621, %v8612
    %v8730 = vpack.c.b16 %v8622, %v8613
    %v8731 = vpack.c.b16 %v8623, %v8614
    %v8732 = vpack.c.b16 %v8624, %v8615
    %v8733 = vpack.c.b16 %v8625, %v8616
    %v8734 = vpack.c.b16 %v8626, %v8617
    %v8735 = vpack.c.b16 %v8627, %v8618
    %v8736 = vpack.c.b16 %v8628, %v8619
    %v8846 = vsel %vm1317, %v6897, 0
    %v8849 = vsel %vm1317, %v6899, 0
    %v8852 = vsel %vm1317, %v6901, 0
    %v8855 = vsel %vm1317, %v6903, 0
    %v8858 = vsel %vm1317, %v6905, 0
    %v8861 = vsel %vm1317, %v6907, 0
    %v8864 = vsel %vm1317, %v6909, 0
    %v8867 = vsel %vm1317, %v6911, 0
    %8869 = vmatprep.subr.bf16.mxu0 %v8693
    %8870 = vmatpush1.bf16.msra.mxu0 %v8692
    %8871 = vmatprep.subr.bf16.mxu0 %v8684
    %8872 = vmatpush1.bf16.msra.mxu0 %v8683
    %8873 = vmatprep.subr.bf16.mxu0 %v8675
    %8874 = vmatpush1.bf16.msra.mxu0 %v8674
    %8875 = vmatprep.subr.bf16.mxu0 %v8666
    %8876 = vmatpush1.bf16.msra.mxu0 %v8665
    %8877 = vmatprep.subr.bf16.mxu0 %v8657
    %8878 = vmatpush1.bf16.msra.mxu0 %v8656
    %8879 = vmatprep.subr.bf16.mxu0 %v8648
    %8880 = vmatpush1.bf16.msra.mxu0 %v8647
    %8881 = vmatprep.subr.bf16.mxu0 %v8639
    %8882 = vmatpush1.bf16.msra.mxu0 %v8638
    %8883 = vmatprep.subr.bf16.mxu0 %v8630
    %8884 = vmatpush1.bf16.msra.mxu0 %v8629
    %8885 = vmatprep.subr.bf16.mxu0 0
    %8886 = vmatpush2.bf16.msra.mxu0 0
    %8887 = vmatprep.subr.bf16.mxu0 0
    %8888 = vmatpush2.bf16.msra.mxu0 0
    %8889 = vmatprep.subr.bf16.mxu0 0
    %8890 = vmatpush2.bf16.msra.mxu0 0
    %8891 = vmatprep.subr.bf16.mxu0 0
    %8892 = vmatpush2.bf16.msra.mxu0 0
    %8893 = vmatprep.subr.bf16.mxu0 %v8729
    %8894 = vmatpush2.bf16.msra.mxu0 %v8728
    %8895 = vmatprep.subr.bf16.mxu0 %v8720
    %8896 = vmatpush2.bf16.msra.mxu0 %v8719
    %8897 = vmatprep.subr.bf16.mxu0 %v8711
    %8898 = vmatpush2.bf16.msra.mxu0 %v8710
    %8899 = vmatprep.subr.bf16.mxu0 %v8702
    %8900 = vmatpush2.bf16.msra.mxu0 %v8701
    %8901 = vmatprep.mubr.bf16.mxu0 %v8846
    %8902 = vmatmul.mubr.bf16.gmra.mxu0 %v6896
    %v8903 = vpop.f32.mrf.mxu0
    %v8904 = vadd.f32 %v7779, %v8903
    %v8905 = vpop.f32.mrf.mxu0
    %v8906 = vadd.f32 %v7781, %v8905
    %v8907 = vpop.f32.mrf.mxu0
    %v8908 = vadd.f32 %v7783, %v8907
    %v8909 = vpop.f32.mrf.mxu0
    %v8910 = vadd.f32 %v7785, %v8909
    %8911 = vmatprep.mubr.bf16.mxu0 %v8849
    %8912 = vmatmul.mubr.bf16.gmra.mxu0 %v6898
    %v8913 = vpop.f32.mrf.mxu0
    %v8914 = vadd.f32 %v7789, %v8913
    %v8915 = vpop.f32.mrf.mxu0
    %v8916 = vadd.f32 %v7791, %v8915
    %v8917 = vpop.f32.mrf.mxu0
    %v8918 = vadd.f32 %v7793, %v8917
    %v8919 = vpop.f32.mrf.mxu0
    %v8920 = vadd.f32 %v7795, %v8919
    %8921 = vmatprep.mubr.bf16.mxu0 %v8852
    %8922 = vmatmul.mubr.bf16.gmra.mxu0 %v6900
    %v8923 = vpop.f32.mrf.mxu0
    %v8924 = vadd.f32 %v7799, %v8923
    %v8925 = vpop.f32.mrf.mxu0
    %v8926 = vadd.f32 %v7801, %v8925
    %v8927 = vpop.f32.mrf.mxu0
    %v8928 = vadd.f32 %v7803, %v8927
    %v8929 = vpop.f32.mrf.mxu0
    %v8930 = vadd.f32 %v7805, %v8929
    %8931 = vmatprep.mubr.bf16.mxu0 %v8855
    %8932 = vmatmul.mubr.bf16.gmra.mxu0 %v6902
    %v8933 = vpop.f32.mrf.mxu0
    %v8934 = vadd.f32 %v7809, %v8933
    %v8935 = vpop.f32.mrf.mxu0
    %v8936 = vadd.f32 %v7811, %v8935
    %v8937 = vpop.f32.mrf.mxu0
    %v8938 = vadd.f32 %v7813, %v8937
    %v8939 = vpop.f32.mrf.mxu0
    %v8940 = vadd.f32 %v7815, %v8939
    %8941 = vmatprep.mubr.bf16.mxu0 %v8858
    %8942 = vmatmul.mubr.bf16.gmra.mxu0 %v6904
    %v8943 = vpop.f32.mrf.mxu0
    %v8944 = vadd.f32 %v7819, %v8943
    %v8945 = vpop.f32.mrf.mxu0
    %v8946 = vadd.f32 %v7821, %v8945
    %v8947 = vpop.f32.mrf.mxu0
    %v8948 = vadd.f32 %v7823, %v8947
    %v8949 = vpop.f32.mrf.mxu0
    %v8950 = vadd.f32 %v7825, %v8949
    %8951 = vmatprep.mubr.bf16.mxu0 %v8861
    %8952 = vmatmul.mubr.bf16.gmra.mxu0 %v6906
    %v8953 = vpop.f32.mrf.mxu0
    %v8954 = vadd.f32 %v7829, %v8953
    %v8955 = vpop.f32.mrf.mxu0
    %v8956 = vadd.f32 %v7831, %v8955
    %v8957 = vpop.f32.mrf.mxu0
    %v8958 = vadd.f32 %v7833, %v8957
    %v8959 = vpop.f32.mrf.mxu0
    %v8960 = vadd.f32 %v7835, %v8959
    %8961 = vmatprep.mubr.bf16.mxu0 %v8864
    %8962 = vmatmul.mubr.bf16.gmra.mxu0 %v6908
    %v8963 = vpop.f32.mrf.mxu0
    %v8964 = vadd.f32 %v7839, %v8963
    %v8965 = vpop.f32.mrf.mxu0
    %v8966 = vadd.f32 %v7841, %v8965
    %v8967 = vpop.f32.mrf.mxu0
    %v8968 = vadd.f32 %v7843, %v8967
    %v8969 = vpop.f32.mrf.mxu0
    %v8970 = vadd.f32 %v7845, %v8969
    %8971 = vmatprep.mubr.bf16.mxu0 %v8867
    %8972 = vmatmul.mubr.bf16.gmra.mxu0 %v6910
    %v8973 = vpop.f32.mrf.mxu0
    %v8974 = vadd.f32 %v7849, %v8973
    %v8975 = vpop.f32.mrf.mxu0
    %v8976 = vadd.f32 %v7851, %v8975
    %v8977 = vpop.f32.mrf.mxu0
    %v8978 = vadd.f32 %v7853, %v8977
    %v8979 = vpop.f32.mrf.mxu0
    %v8980 = vadd.f32 %v7855, %v8979
    %8981 = vdwg.mxu0
    %8982 = vmatprep.subr.bf16.mxu0 %v8695
    %8983 = vmatpush1.bf16.msra.mxu0 %v8694
    %8984 = vmatprep.subr.bf16.mxu0 %v8686
    %8985 = vmatpush1.bf16.msra.mxu0 %v8685
    %8986 = vmatprep.subr.bf16.mxu0 %v8677
    %8987 = vmatpush1.bf16.msra.mxu0 %v8676
    %8988 = vmatprep.subr.bf16.mxu0 %v8668
    %8989 = vmatpush1.bf16.msra.mxu0 %v8667
    %8990 = vmatprep.subr.bf16.mxu0 %v8659
    %8991 = vmatpush1.bf16.msra.mxu0 %v8658
    %8992 = vmatprep.subr.bf16.mxu0 %v8650
    %8993 = vmatpush1.bf16.msra.mxu0 %v8649
    %8994 = vmatprep.subr.bf16.mxu0 %v8641
    %8995 = vmatpush1.bf16.msra.mxu0 %v8640
    %8996 = vmatprep.subr.bf16.mxu0 %v8632
    %8997 = vmatpush1.bf16.msra.mxu0 %v8631
    %8998 = vmatprep.subr.bf16.mxu0 0
    %8999 = vmatpush2.bf16.msra.mxu0 0
    %9000 = vmatprep.subr.bf16.mxu0 0
    %9001 = vmatpush2.bf16.msra.mxu0 0
    %9002 = vmatprep.subr.bf16.mxu0 0
    %9003 = vmatpush2.bf16.msra.mxu0 0
    %9004 = vmatprep.subr.bf16.mxu0 0
    %9005 = vmatpush2.bf16.msra.mxu0 0
    %9006 = vmatprep.subr.bf16.mxu0 %v8731
    %9007 = vmatpush2.bf16.msra.mxu0 %v8730
    %9008 = vmatprep.subr.bf16.mxu0 %v8722
    %9009 = vmatpush2.bf16.msra.mxu0 %v8721
    %9010 = vmatprep.subr.bf16.mxu0 %v8713
    %9011 = vmatpush2.bf16.msra.mxu0 %v8712
    %9012 = vmatprep.subr.bf16.mxu0 %v8704
    %9013 = vmatpush2.bf16.msra.mxu0 %v8703
    %9014 = vmatprep.mubr.bf16.mxu0 %v8846
    %9015 = vmatmul.mubr.bf16.gmra.mxu0 %v6896
    %v9016 = vpop.f32.mrf.mxu0
    %v9017 = vadd.f32 %v7892, %v9016
    %v9018 = vpop.f32.mrf.mxu0
    %v9019 = vadd.f32 %v7894, %v9018
    %v9020 = vpop.f32.mrf.mxu0
    %v9021 = vadd.f32 %v7896, %v9020
    %v9022 = vpop.f32.mrf.mxu0
    %v9023 = vadd.f32 %v7898, %v9022
    %9024 = vmatprep.mubr.bf16.mxu0 %v8849
    %9025 = vmatmul.mubr.bf16.gmra.mxu0 %v6898
    %v9026 = vpop.f32.mrf.mxu0
    %v9027 = vadd.f32 %v7902, %v9026
    %v9028 = vpop.f32.mrf.mxu0
    %v9029 = vadd.f32 %v7904, %v9028
    %v9030 = vpop.f32.mrf.mxu0
    %v9031 = vadd.f32 %v7906, %v9030
    %v9032 = vpop.f32.mrf.mxu0
    %v9033 = vadd.f32 %v7908, %v9032
    %9034 = vmatprep.mubr.bf16.mxu0 %v8852
    %9035 = vmatmul.mubr.bf16.gmra.mxu0 %v6900
    %v9036 = vpop.f32.mrf.mxu0
    %v9037 = vadd.f32 %v7912, %v9036
    %v9038 = vpop.f32.mrf.mxu0
    %v9039 = vadd.f32 %v7914, %v9038
    %v9040 = vpop.f32.mrf.mxu0
    %v9041 = vadd.f32 %v7916, %v9040
    %v9042 = vpop.f32.mrf.mxu0
    %v9043 = vadd.f32 %v7918, %v9042
    %9044 = vmatprep.mubr.bf16.mxu0 %v8855
    %9045 = vmatmul.mubr.bf16.gmra.mxu0 %v6902
    %v9046 = vpop.f32.mrf.mxu0
    %v9047 = vadd.f32 %v7922, %v9046
    %v9048 = vpop.f32.mrf.mxu0
    %v9049 = vadd.f32 %v7924, %v9048
    %v9050 = vpop.f32.mrf.mxu0
    %v9051 = vadd.f32 %v7926, %v9050
    %v9052 = vpop.f32.mrf.mxu0
    %v9053 = vadd.f32 %v7928, %v9052
    %9054 = vmatprep.mubr.bf16.mxu0 %v8858
    %9055 = vmatmul.mubr.bf16.gmra.mxu0 %v6904
    %v9056 = vpop.f32.mrf.mxu0
    %v9057 = vadd.f32 %v7932, %v9056
    %v9058 = vpop.f32.mrf.mxu0
    %v9059 = vadd.f32 %v7934, %v9058
    %v9060 = vpop.f32.mrf.mxu0
    %v9061 = vadd.f32 %v7936, %v9060
    %v9062 = vpop.f32.mrf.mxu0
    %v9063 = vadd.f32 %v7938, %v9062
    %9064 = vmatprep.mubr.bf16.mxu0 %v8861
    %9065 = vmatmul.mubr.bf16.gmra.mxu0 %v6906
    %v9066 = vpop.f32.mrf.mxu0
    %v9067 = vadd.f32 %v7942, %v9066
    %v9068 = vpop.f32.mrf.mxu0
    %v9069 = vadd.f32 %v7944, %v9068
    %v9070 = vpop.f32.mrf.mxu0
    %v9071 = vadd.f32 %v7946, %v9070
    %v9072 = vpop.f32.mrf.mxu0
    %v9073 = vadd.f32 %v7948, %v9072
    %9074 = vmatprep.mubr.bf16.mxu0 %v8864
    %9075 = vmatmul.mubr.bf16.gmra.mxu0 %v6908
    %v9076 = vpop.f32.mrf.mxu0
    %v9077 = vadd.f32 %v7952, %v9076
    %v9078 = vpop.f32.mrf.mxu0
    %v9079 = vadd.f32 %v7954, %v9078
    %v9080 = vpop.f32.mrf.mxu0
    %v9081 = vadd.f32 %v7956, %v9080
    %v9082 = vpop.f32.mrf.mxu0
    %v9083 = vadd.f32 %v7958, %v9082
    %9084 = vmatprep.mubr.bf16.mxu0 %v8867
    %9085 = vmatmul.mubr.bf16.gmra.mxu0 %v6910
    %v9086 = vpop.f32.mrf.mxu0
    %v9087 = vadd.f32 %v7962, %v9086
    %v9088 = vpop.f32.mrf.mxu0
    %v9089 = vadd.f32 %v7964, %v9088
    %v9090 = vpop.f32.mrf.mxu0
    %v9091 = vadd.f32 %v7966, %v9090
    %v9092 = vpop.f32.mrf.mxu0
    %v9093 = vadd.f32 %v7968, %v9092
    %9094 = vdwg.mxu0
    %9095 = vmatprep.subr.bf16.mxu0 %v8697
    %9096 = vmatpush1.bf16.msra.mxu0 %v8696
    %9097 = vmatprep.subr.bf16.mxu0 %v8688
    %9098 = vmatpush1.bf16.msra.mxu0 %v8687
    %9099 = vmatprep.subr.bf16.mxu0 %v8679
    %9100 = vmatpush1.bf16.msra.mxu0 %v8678
    %9101 = vmatprep.subr.bf16.mxu0 %v8670
    %9102 = vmatpush1.bf16.msra.mxu0 %v8669
    %9103 = vmatprep.subr.bf16.mxu0 %v8661
    %9104 = vmatpush1.bf16.msra.mxu0 %v8660
    %9105 = vmatprep.subr.bf16.mxu0 %v8652
    %9106 = vmatpush1.bf16.msra.mxu0 %v8651
    %9107 = vmatprep.subr.bf16.mxu0 %v8643
    %9108 = vmatpush1.bf16.msra.mxu0 %v8642
    %9109 = vmatprep.subr.bf16.mxu0 %v8634
    %9110 = vmatpush1.bf16.msra.mxu0 %v8633
    %9111 = vmatprep.subr.bf16.mxu0 0
    %9112 = vmatpush2.bf16.msra.mxu0 0
    %9113 = vmatprep.subr.bf16.mxu0 0
    %9114 = vmatpush2.bf16.msra.mxu0 0
    %9115 = vmatprep.subr.bf16.mxu0 0
    %9116 = vmatpush2.bf16.msra.mxu0 0
    %9117 = vmatprep.subr.bf16.mxu0 0
    %9118 = vmatpush2.bf16.msra.mxu0 0
    %9119 = vmatprep.subr.bf16.mxu0 %v8733
    %9120 = vmatpush2.bf16.msra.mxu0 %v8732
    %9121 = vmatprep.subr.bf16.mxu0 %v8724
    %9122 = vmatpush2.bf16.msra.mxu0 %v8723
    %9123 = vmatprep.subr.bf16.mxu0 %v8715
    %9124 = vmatpush2.bf16.msra.mxu0 %v8714
    %9125 = vmatprep.subr.bf16.mxu0 %v8706
    %9126 = vmatpush2.bf16.msra.mxu0 %v8705
    %9127 = vmatprep.mubr.bf16.mxu0 %v8846
    %9128 = vmatmul.mubr.bf16.gmra.mxu0 %v6896
    %v9129 = vpop.f32.mrf.mxu0
    %v9130 = vadd.f32 %v8005, %v9129
    %v9131 = vpop.f32.mrf.mxu0
    %v9132 = vadd.f32 %v8007, %v9131
    %v9133 = vpop.f32.mrf.mxu0
    %v9134 = vadd.f32 %v8009, %v9133
    %v9135 = vpop.f32.mrf.mxu0
    %v9136 = vadd.f32 %v8011, %v9135
    %9137 = vmatprep.mubr.bf16.mxu0 %v8849
    %9138 = vmatmul.mubr.bf16.gmra.mxu0 %v6898
    %v9139 = vpop.f32.mrf.mxu0
    %v9140 = vadd.f32 %v8015, %v9139
    %v9141 = vpop.f32.mrf.mxu0
    %v9142 = vadd.f32 %v8017, %v9141
    %v9143 = vpop.f32.mrf.mxu0
    %v9144 = vadd.f32 %v8019, %v9143
    %v9145 = vpop.f32.mrf.mxu0
    %v9146 = vadd.f32 %v8021, %v9145
    %9147 = vmatprep.mubr.bf16.mxu0 %v8852
    %9148 = vmatmul.mubr.bf16.gmra.mxu0 %v6900
    %v9149 = vpop.f32.mrf.mxu0
    %v9150 = vadd.f32 %v8025, %v9149
    %v9151 = vpop.f32.mrf.mxu0
    %v9152 = vadd.f32 %v8027, %v9151
    %v9153 = vpop.f32.mrf.mxu0
    %v9154 = vadd.f32 %v8029, %v9153
    %v9155 = vpop.f32.mrf.mxu0
    %v9156 = vadd.f32 %v8031, %v9155
    %9157 = vmatprep.mubr.bf16.mxu0 %v8855
    %9158 = vmatmul.mubr.bf16.gmra.mxu0 %v6902
    %v9159 = vpop.f32.mrf.mxu0
    %v9160 = vadd.f32 %v8035, %v9159
    %v9161 = vpop.f32.mrf.mxu0
    %v9162 = vadd.f32 %v8037, %v9161
    %v9163 = vpop.f32.mrf.mxu0
    %v9164 = vadd.f32 %v8039, %v9163
    %v9165 = vpop.f32.mrf.mxu0
    %v9166 = vadd.f32 %v8041, %v9165
    %9167 = vmatprep.mubr.bf16.mxu0 %v8858
    %9168 = vmatmul.mubr.bf16.gmra.mxu0 %v6904
    %v9169 = vpop.f32.mrf.mxu0
    %v9170 = vadd.f32 %v8045, %v9169
    %v9171 = vpop.f32.mrf.mxu0
    %v9172 = vadd.f32 %v8047, %v9171
    %v9173 = vpop.f32.mrf.mxu0
    %v9174 = vadd.f32 %v8049, %v9173
    %v9175 = vpop.f32.mrf.mxu0
    %v9176 = vadd.f32 %v8051, %v9175
    %9177 = vmatprep.mubr.bf16.mxu0 %v8861
    %9178 = vmatmul.mubr.bf16.gmra.mxu0 %v6906
    %v9179 = vpop.f32.mrf.mxu0
    %v9180 = vadd.f32 %v8055, %v9179
    %v9181 = vpop.f32.mrf.mxu0
    %v9182 = vadd.f32 %v8057, %v9181
    %v9183 = vpop.f32.mrf.mxu0
    %v9184 = vadd.f32 %v8059, %v9183
    %v9185 = vpop.f32.mrf.mxu0
    %v9186 = vadd.f32 %v8061, %v9185
    %9187 = vmatprep.mubr.bf16.mxu0 %v8864
    %9188 = vmatmul.mubr.bf16.gmra.mxu0 %v6908
    %v9189 = vpop.f32.mrf.mxu0
    %v9190 = vadd.f32 %v8065, %v9189
    %v9191 = vpop.f32.mrf.mxu0
    %v9192 = vadd.f32 %v8067, %v9191
    %v9193 = vpop.f32.mrf.mxu0
    %v9194 = vadd.f32 %v8069, %v9193
    %v9195 = vpop.f32.mrf.mxu0
    %v9196 = vadd.f32 %v8071, %v9195
    %9197 = vmatprep.mubr.bf16.mxu0 %v8867
    %9198 = vmatmul.mubr.bf16.gmra.mxu0 %v6910
    %v9199 = vpop.f32.mrf.mxu0
    %v9200 = vadd.f32 %v8075, %v9199
    %v9201 = vpop.f32.mrf.mxu0
    %v9202 = vadd.f32 %v8077, %v9201
    %v9203 = vpop.f32.mrf.mxu0
    %v9204 = vadd.f32 %v8079, %v9203
    %v9205 = vpop.f32.mrf.mxu0
    %v9206 = vadd.f32 %v8081, %v9205
    %9207 = vdwg.mxu0
    %9208 = vmatprep.subr.bf16.mxu0 %v8699
    %9209 = vmatpush1.bf16.msra.mxu0 %v8698
    %9210 = vmatprep.subr.bf16.mxu0 %v8690
    %9211 = vmatpush1.bf16.msra.mxu0 %v8689
    %9212 = vmatprep.subr.bf16.mxu0 %v8681
    %9213 = vmatpush1.bf16.msra.mxu0 %v8680
    %9214 = vmatprep.subr.bf16.mxu0 %v8672
    %9215 = vmatpush1.bf16.msra.mxu0 %v8671
    %9216 = vmatprep.subr.bf16.mxu0 %v8663
    %9217 = vmatpush1.bf16.msra.mxu0 %v8662
    %9218 = vmatprep.subr.bf16.mxu0 %v8654
    %9219 = vmatpush1.bf16.msra.mxu0 %v8653
    %9220 = vmatprep.subr.bf16.mxu0 %v8645
    %9221 = vmatpush1.bf16.msra.mxu0 %v8644
    %9222 = vmatprep.subr.bf16.mxu0 %v8636
    %9223 = vmatpush1.bf16.msra.mxu0 %v8635
    %9224 = vmatprep.subr.bf16.mxu0 0
    %9225 = vmatpush2.bf16.msra.mxu0 0
    %9226 = vmatprep.subr.bf16.mxu0 0
    %9227 = vmatpush2.bf16.msra.mxu0 0
    %9228 = vmatprep.subr.bf16.mxu0 0
    %9229 = vmatpush2.bf16.msra.mxu0 0
    %9230 = vmatprep.subr.bf16.mxu0 0
    %9231 = vmatpush2.bf16.msra.mxu0 0
    %9232 = vmatprep.subr.bf16.mxu0 %v8735
    %9233 = vmatpush2.bf16.msra.mxu0 %v8734
    %9234 = vmatprep.subr.bf16.mxu0 %v8726
    %9235 = vmatpush2.bf16.msra.mxu0 %v8725
    %9236 = vmatprep.subr.bf16.mxu0 %v8717
    %9237 = vmatpush2.bf16.msra.mxu0 %v8716
    %9238 = vmatprep.subr.bf16.mxu0 %v8708
    %9239 = vmatpush2.bf16.msra.mxu0 %v8707
    %9240 = vmatprep.mubr.bf16.mxu0 %v8846
    %9241 = vmatmul.mubr.bf16.gmra.mxu0 %v6896
    %v9242 = vpop.f32.mrf.mxu0
    %v9243 = vadd.f32 %v8118, %v9242
    %v9244 = vpop.f32.mrf.mxu0
    %v9245 = vadd.f32 %v8120, %v9244
    %v9246 = vpop.f32.mrf.mxu0
    %v9247 = vadd.f32 %v8122, %v9246
    %v9248 = vpop.f32.mrf.mxu0
    %v9249 = vadd.f32 %v8124, %v9248
    %9250 = vmatprep.mubr.bf16.mxu0 %v8849
    %9251 = vmatmul.mubr.bf16.gmra.mxu0 %v6898
    %v9252 = vpop.f32.mrf.mxu0
    %v9253 = vadd.f32 %v8128, %v9252
    %v9254 = vpop.f32.mrf.mxu0
    %v9255 = vadd.f32 %v8130, %v9254
    %v9256 = vpop.f32.mrf.mxu0
    %v9257 = vadd.f32 %v8132, %v9256
    %v9258 = vpop.f32.mrf.mxu0
    %v9259 = vadd.f32 %v8134, %v9258
    %9260 = vmatprep.mubr.bf16.mxu0 %v8852
    %9261 = vmatmul.mubr.bf16.gmra.mxu0 %v6900
    %v9262 = vpop.f32.mrf.mxu0
    %v9263 = vadd.f32 %v8138, %v9262
    %v9264 = vpop.f32.mrf.mxu0
    %v9265 = vadd.f32 %v8140, %v9264
    %v9266 = vpop.f32.mrf.mxu0
    %v9267 = vadd.f32 %v8142, %v9266
    %v9268 = vpop.f32.mrf.mxu0
    %v9269 = vadd.f32 %v8144, %v9268
    %9270 = vmatprep.mubr.bf16.mxu0 %v8855
    %9271 = vmatmul.mubr.bf16.gmra.mxu0 %v6902
    %v9272 = vpop.f32.mrf.mxu0
    %v9273 = vadd.f32 %v8148, %v9272
    %v9274 = vpop.f32.mrf.mxu0
    %v9275 = vadd.f32 %v8150, %v9274
    %v9276 = vpop.f32.mrf.mxu0
    %v9277 = vadd.f32 %v8152, %v9276
    %v9278 = vpop.f32.mrf.mxu0
    %v9279 = vadd.f32 %v8154, %v9278
    %9280 = vmatprep.mubr.bf16.mxu0 %v8858
    %9281 = vmatmul.mubr.bf16.gmra.mxu0 %v6904
    %v9282 = vpop.f32.mrf.mxu0
    %v9283 = vadd.f32 %v8158, %v9282
    %v9284 = vpop.f32.mrf.mxu0
    %v9285 = vadd.f32 %v8160, %v9284
    %v9286 = vpop.f32.mrf.mxu0
    %v9287 = vadd.f32 %v8162, %v9286
    %v9288 = vpop.f32.mrf.mxu0
    %v9289 = vadd.f32 %v8164, %v9288
    %9290 = vmatprep.mubr.bf16.mxu0 %v8861
    %9291 = vmatmul.mubr.bf16.gmra.mxu0 %v6906
    %v9292 = vpop.f32.mrf.mxu0
    %v9293 = vadd.f32 %v8168, %v9292
    %v9294 = vpop.f32.mrf.mxu0
    %v9295 = vadd.f32 %v8170, %v9294
    %v9296 = vpop.f32.mrf.mxu0
    %v9297 = vadd.f32 %v8172, %v9296
    %v9298 = vpop.f32.mrf.mxu0
    %v9299 = vadd.f32 %v8174, %v9298
    %9300 = vmatprep.mubr.bf16.mxu0 %v8864
    %9301 = vmatmul.mubr.bf16.gmra.mxu0 %v6908
    %v9302 = vpop.f32.mrf.mxu0
    %v9303 = vadd.f32 %v8178, %v9302
    %v9304 = vpop.f32.mrf.mxu0
    %v9305 = vadd.f32 %v8180, %v9304
    %v9306 = vpop.f32.mrf.mxu0
    %v9307 = vadd.f32 %v8182, %v9306
    %v9308 = vpop.f32.mrf.mxu0
    %v9309 = vadd.f32 %v8184, %v9308
    %9310 = vmatprep.mubr.bf16.mxu0 %v8867
    %9311 = vmatmul.mubr.bf16.gmra.mxu0 %v6910
    %v9312 = vpop.f32.mrf.mxu0
    %v9313 = vadd.f32 %v8188, %v9312
    %v9314 = vpop.f32.mrf.mxu0
    %v9315 = vadd.f32 %v8190, %v9314
    %v9316 = vpop.f32.mrf.mxu0
    %v9317 = vadd.f32 %v8192, %v9316
    %v9318 = vpop.f32.mrf.mxu0
    %v9319 = vadd.f32 %v8194, %v9318
    %9320 = vdwg.mxu0
    %9321 = vmatprep.subr.bf16.mxu0 0
    %9322 = vmatpush1.bf16.msra.mxu0 %v8700
    %9323 = vmatprep.subr.bf16.mxu0 0
    %9324 = vmatpush1.bf16.msra.mxu0 %v8691
    %9325 = vmatprep.subr.bf16.mxu0 0
    %9326 = vmatpush1.bf16.msra.mxu0 %v8682
    %9327 = vmatprep.subr.bf16.mxu0 0
    %9328 = vmatpush1.bf16.msra.mxu0 %v8673
    %9329 = vmatprep.subr.bf16.mxu0 0
    %9330 = vmatpush1.bf16.msra.mxu0 %v8664
    %9331 = vmatprep.subr.bf16.mxu0 0
    %9332 = vmatpush1.bf16.msra.mxu0 %v8655
    %9333 = vmatprep.subr.bf16.mxu0 0
    %9334 = vmatpush1.bf16.msra.mxu0 %v8646
    %9335 = vmatprep.subr.bf16.mxu0 0
    %9336 = vmatpush1.bf16.msra.mxu0 %v8637
    %9337 = vmatprep.subr.bf16.mxu0 0
    %9338 = vmatpush2.bf16.msra.mxu0 0
    %9339 = vmatprep.subr.bf16.mxu0 0
    %9340 = vmatpush2.bf16.msra.mxu0 0
    %9341 = vmatprep.subr.bf16.mxu0 0
    %9342 = vmatpush2.bf16.msra.mxu0 0
    %9343 = vmatprep.subr.bf16.mxu0 0
    %9344 = vmatpush2.bf16.msra.mxu0 0
    %9345 = vmatprep.subr.bf16.mxu0 0
    %9346 = vmatpush2.bf16.msra.mxu0 %v8736
    %9347 = vmatprep.subr.bf16.mxu0 0
    %9348 = vmatpush2.bf16.msra.mxu0 %v8727
    %9349 = vmatprep.subr.bf16.mxu0 0
    %9350 = vmatpush2.bf16.msra.mxu0 %v8718
    %9351 = vmatprep.subr.bf16.mxu0 0
    %9352 = vmatpush2.bf16.msra.mxu0 %v8709
    %9353 = vmatprep.mubr.bf16.mxu0 %v8846
    %9354 = vmatmul.mubr.bf16.gmra.mxu0 %v6896
    %v9355 = vpop.f32.mrf.mxu0
    %v9356 = vadd.f32 %v8231, %v9355
    %v9357 = vpop.f32.mrf.mxu0
    %v9358 = vpop.f32.mrf.mxu0
    %v9359 = vadd.f32 %v8234, %v9358
    %v9360 = vpop.f32.mrf.mxu0
    %9361 = vmatprep.mubr.bf16.mxu0 %v8849
    %9362 = vmatmul.mubr.bf16.gmra.mxu0 %v6898
    %v9363 = vpop.f32.mrf.mxu0
    %v9364 = vadd.f32 %v8239, %v9363
    %v9365 = vpop.f32.mrf.mxu0
    %v9366 = vpop.f32.mrf.mxu0
    %v9367 = vadd.f32 %v8242, %v9366
    %v9368 = vpop.f32.mrf.mxu0
    %9369 = vmatprep.mubr.bf16.mxu0 %v8852
    %9370 = vmatmul.mubr.bf16.gmra.mxu0 %v6900
    %v9371 = vpop.f32.mrf.mxu0
    %v9372 = vadd.f32 %v8247, %v9371
    %v9373 = vpop.f32.mrf.mxu0
    %v9374 = vpop.f32.mrf.mxu0
    %v9375 = vadd.f32 %v8250, %v9374
    %v9376 = vpop.f32.mrf.mxu0
    %9377 = vmatprep.mubr.bf16.mxu0 %v8855
    %9378 = vmatmul.mubr.bf16.gmra.mxu0 %v6902
    %v9379 = vpop.f32.mrf.mxu0
    %v9380 = vadd.f32 %v8255, %v9379
    %v9381 = vpop.f32.mrf.mxu0
    %v9382 = vpop.f32.mrf.mxu0
    %v9383 = vadd.f32 %v8258, %v9382
    %v9384 = vpop.f32.mrf.mxu0
    %9385 = vmatprep.mubr.bf16.mxu0 %v8858
    %9386 = vmatmul.mubr.bf16.gmra.mxu0 %v6904
    %v9387 = vpop.f32.mrf.mxu0
    %v9388 = vadd.f32 %v8263, %v9387
    %v9389 = vpop.f32.mrf.mxu0
    %v9390 = vpop.f32.mrf.mxu0
    %v9391 = vadd.f32 %v8266, %v9390
    %v9392 = vpop.f32.mrf.mxu0
    %9393 = vmatprep.mubr.bf16.mxu0 %v8861
    %9394 = vmatmul.mubr.bf16.gmra.mxu0 %v6906
    %v9395 = vpop.f32.mrf.mxu0
    %v9396 = vadd.f32 %v8271, %v9395
    %v9397 = vpop.f32.mrf.mxu0
    %v9398 = vpop.f32.mrf.mxu0
    %v9399 = vadd.f32 %v8274, %v9398
    %v9400 = vpop.f32.mrf.mxu0
    %9401 = vmatprep.mubr.bf16.mxu0 %v8864
    %9402 = vmatmul.mubr.bf16.gmra.mxu0 %v6908
    %v9403 = vpop.f32.mrf.mxu0
    %v9404 = vadd.f32 %v8279, %v9403
    %v9405 = vpop.f32.mrf.mxu0
    %v9406 = vpop.f32.mrf.mxu0
    %v9407 = vadd.f32 %v8282, %v9406
    %v9408 = vpop.f32.mrf.mxu0
    %9409 = vmatprep.mubr.bf16.mxu0 %v8867
    %9410 = vmatmul.mubr.bf16.gmra.mxu0 %v6910
    %v9411 = vpop.f32.mrf.mxu0
    %v9412 = vadd.f32 %v8287, %v9411
    %v9413 = vpop.f32.mrf.mxu0
    %v9414 = vpop.f32.mrf.mxu0
    %v9415 = vadd.f32 %v8290, %v9414
    %v9416 = vpop.f32.mrf.mxu0
    %9417 = vdwg.mxu0
    %v9418 = vld [vmem:[%s11] sm:$0xff]
    %v9419 = vld [vmem:[%s11 + $0x8] sm:$0x1]
    %v9422 = vlaneseq
    %v9423 = vshrl.u32 %v9422, 7
    %v9424 = vsub.s32 0, %v9423
    %v9425 = vrot.slane %v9418, %v9424
    %v9426 = vlaneseq
    %v9427 = vshrl.u32 %v9426, 7
    %v9428 = vsub.s32 1, %v9427
    %v9429 = vrot.slane %v9418, %v9428
    %v9430 = vlaneseq
    %v9431 = vshrl.u32 %v9430, 7
    %v9432 = vsub.s32 2, %v9431
    %v9433 = vrot.slane %v9418, %v9432
    %v9434 = vlaneseq
    %v9435 = vshrl.u32 %v9434, 7
    %v9436 = vsub.s32 3, %v9435
    %v9437 = vrot.slane %v9418, %v9436
    %v9438 = vlaneseq
    %v9439 = vshrl.u32 %v9438, 7
    %v9440 = vsub.s32 4, %v9439
    %v9441 = vrot.slane %v9418, %v9440
    %v9442 = vlaneseq
    %v9443 = vshrl.u32 %v9442, 7
    %v9444 = vsub.s32 5, %v9443
    %v9445 = vrot.slane %v9418, %v9444
    %v9446 = vlaneseq
    %v9447 = vshrl.u32 %v9446, 7
    %v9448 = vsub.s32 6, %v9447
    %v9449 = vrot.slane %v9418, %v9448
    %v9450 = vlaneseq
    %v9451 = vshrl.u32 %v9450, 7
    %v9452 = vsub.s32 7, %v9451
    %v9453 = vrot.slane %v9418, %v9452
    %v9454 = vlaneseq
    %v9455 = vshrl.u32 %v9454, 7
    %v9456 = vsub.s32 0, %v9455
    %v9457 = vrot.slane %v9419, %v9456
    %v9467 = vadd.f32 %v8904, %v9425
    %v9468 = vadd.f32 %v8906, %v9429
    %v9469 = vadd.f32 %v9017, %v9433
    %v9470 = vadd.f32 %v9019, %v9437
    %v9471 = vadd.f32 %v9130, %v9441
    %v9472 = vadd.f32 %v9132, %v9445
    %v9473 = vadd.f32 %v9243, %v9449
    %v9474 = vadd.f32 %v9245, %v9453
    %v9475 = vadd.f32 %v9356, %v9457
    %v9476 = vadd.f32 %v8908, %v9425
    %v9477 = vadd.f32 %v8910, %v9429
    %v9478 = vadd.f32 %v9021, %v9433
    %v9479 = vadd.f32 %v9023, %v9437
    %v9480 = vadd.f32 %v9134, %v9441
    %v9481 = vadd.f32 %v9136, %v9445
    %v9482 = vadd.f32 %v9247, %v9449
    %v9483 = vadd.f32 %v9249, %v9453
    %v9484 = vadd.f32 %v9359, %v9457
    %v9485 = vadd.f32 %v8914, %v9425
    %v9486 = vadd.f32 %v8916, %v9429
    %v9487 = vadd.f32 %v9027, %v9433
    %v9488 = vadd.f32 %v9029, %v9437
    %v9489 = vadd.f32 %v9140, %v9441
    %v9490 = vadd.f32 %v9142, %v9445
    %v9491 = vadd.f32 %v9253, %v9449
    %v9492 = vadd.f32 %v9255, %v9453
    %v9493 = vadd.f32 %v9364, %v9457
    %v9494 = vadd.f32 %v8918, %v9425
    %v9495 = vadd.f32 %v8920, %v9429
    %v9496 = vadd.f32 %v9031, %v9433
    %v9497 = vadd.f32 %v9033, %v9437
    %v9498 = vadd.f32 %v9144, %v9441
    %v9499 = vadd.f32 %v9146, %v9445
    %v9500 = vadd.f32 %v9257, %v9449
    %v9501 = vadd.f32 %v9259, %v9453
    %v9502 = vadd.f32 %v9367, %v9457
    %v9503 = vadd.f32 %v8924, %v9425
    %v9504 = vadd.f32 %v8926, %v9429
    %v9505 = vadd.f32 %v9037, %v9433
    %v9506 = vadd.f32 %v9039, %v9437
    %v9507 = vadd.f32 %v9150, %v9441
    %v9508 = vadd.f32 %v9152, %v9445
    %v9509 = vadd.f32 %v9263, %v9449
    %v9510 = vadd.f32 %v9265, %v9453
    %v9511 = vadd.f32 %v9372, %v9457
    %v9512 = vadd.f32 %v8928, %v9425
    %v9513 = vadd.f32 %v8930, %v9429
    %v9514 = vadd.f32 %v9041, %v9433
    %v9515 = vadd.f32 %v9043, %v9437
    %v9516 = vadd.f32 %v9154, %v9441
    %v9517 = vadd.f32 %v9156, %v9445
    %v9518 = vadd.f32 %v9267, %v9449
    %v9519 = vadd.f32 %v9269, %v9453
    %v9520 = vadd.f32 %v9375, %v9457
    %v9521 = vadd.f32 %v8934, %v9425
    %v9522 = vadd.f32 %v8936, %v9429
    %v9523 = vadd.f32 %v9047, %v9433
    %v9524 = vadd.f32 %v9049, %v9437
    %v9525 = vadd.f32 %v9160, %v9441
    %v9526 = vadd.f32 %v9162, %v9445
    %v9527 = vadd.f32 %v9273, %v9449
    %v9528 = vadd.f32 %v9275, %v9453
    %v9529 = vadd.f32 %v9380, %v9457
    %v9530 = vadd.f32 %v8938, %v9425
    %v9531 = vadd.f32 %v8940, %v9429
    %v9532 = vadd.f32 %v9051, %v9433
    %v9533 = vadd.f32 %v9053, %v9437
    %v9534 = vadd.f32 %v9164, %v9441
    %v9535 = vadd.f32 %v9166, %v9445
    %v9536 = vadd.f32 %v9277, %v9449
    %v9537 = vadd.f32 %v9279, %v9453
    %v9538 = vadd.f32 %v9383, %v9457
    %v9539 = vadd.f32 %v8944, %v9425
    %v9540 = vadd.f32 %v8946, %v9429
    %v9541 = vadd.f32 %v9057, %v9433
    %v9542 = vadd.f32 %v9059, %v9437
    %v9543 = vadd.f32 %v9170, %v9441
    %v9544 = vadd.f32 %v9172, %v9445
    %v9545 = vadd.f32 %v9283, %v9449
    %v9546 = vadd.f32 %v9285, %v9453
    %v9547 = vadd.f32 %v9388, %v9457
    %v9548 = vadd.f32 %v8948, %v9425
    %v9549 = vadd.f32 %v8950, %v9429
    %v9550 = vadd.f32 %v9061, %v9433
    %v9551 = vadd.f32 %v9063, %v9437
    %v9552 = vadd.f32 %v9174, %v9441
    %v9553 = vadd.f32 %v9176, %v9445
    %v9554 = vadd.f32 %v9287, %v9449
    %v9555 = vadd.f32 %v9289, %v9453
    %v9556 = vadd.f32 %v9391, %v9457
    %v9557 = vadd.f32 %v8954, %v9425
    %v9558 = vadd.f32 %v8956, %v9429
    %v9559 = vadd.f32 %v9067, %v9433
    %v9560 = vadd.f32 %v9069, %v9437
    %v9561 = vadd.f32 %v9180, %v9441
    %v9562 = vadd.f32 %v9182, %v9445
    %v9563 = vadd.f32 %v9293, %v9449
    %v9564 = vadd.f32 %v9295, %v9453
    %v9565 = vadd.f32 %v9396, %v9457
    %v9566 = vadd.f32 %v8958, %v9425
    %v9567 = vadd.f32 %v8960, %v9429
    %v9568 = vadd.f32 %v9071, %v9433
    %v9569 = vadd.f32 %v9073, %v9437
    %v9570 = vadd.f32 %v9184, %v9441
    %v9571 = vadd.f32 %v9186, %v9445
    %v9572 = vadd.f32 %v9297, %v9449
    %v9573 = vadd.f32 %v9299, %v9453
    %v9574 = vadd.f32 %v9399, %v9457
    %v9575 = vadd.f32 %v8964, %v9425
    %v9576 = vadd.f32 %v8966, %v9429
    %v9577 = vadd.f32 %v9077, %v9433
    %v9578 = vadd.f32 %v9079, %v9437
    %v9579 = vadd.f32 %v9190, %v9441
    %v9580 = vadd.f32 %v9192, %v9445
    %v9581 = vadd.f32 %v9303, %v9449
    %v9582 = vadd.f32 %v9305, %v9453
    %v9583 = vadd.f32 %v9404, %v9457
    %v9584 = vadd.f32 %v8968, %v9425
    %v9585 = vadd.f32 %v8970, %v9429
    %v9586 = vadd.f32 %v9081, %v9433
    %v9587 = vadd.f32 %v9083, %v9437
    %v9588 = vadd.f32 %v9194, %v9441
    %v9589 = vadd.f32 %v9196, %v9445
    %v9590 = vadd.f32 %v9307, %v9449
    %v9591 = vadd.f32 %v9309, %v9453
    %v9592 = vadd.f32 %v9407, %v9457
    %v9593 = vadd.f32 %v8974, %v9425
    %v9594 = vadd.f32 %v8976, %v9429
    %v9595 = vadd.f32 %v9087, %v9433
    %v9596 = vadd.f32 %v9089, %v9437
    %v9597 = vadd.f32 %v9200, %v9441
    %v9598 = vadd.f32 %v9202, %v9445
    %v9599 = vadd.f32 %v9313, %v9449
    %v9600 = vadd.f32 %v9315, %v9453
    %v9601 = vadd.f32 %v9412, %v9457
    %v9602 = vadd.f32 %v8978, %v9425
    %v9603 = vadd.f32 %v8980, %v9429
    %v9604 = vadd.f32 %v9091, %v9433
    %v9605 = vadd.f32 %v9093, %v9437
    %v9606 = vadd.f32 %v9204, %v9441
    %v9607 = vadd.f32 %v9206, %v9445
    %v9608 = vadd.f32 %v9317, %v9449
    %v9609 = vadd.f32 %v9319, %v9453
    %v9610 = vadd.f32 %v9415, %v9457
    %v9611 = vmax.f32 %v9467, 0.0
    %v9612 = vmax.f32 %v9468, 0.0
    %v9613 = vmax.f32 %v9469, 0.0
    %v9614 = vmax.f32 %v9470, 0.0
    %v9615 = vmax.f32 %v9471, 0.0
    %v9616 = vmax.f32 %v9472, 0.0
    %v9617 = vmax.f32 %v9473, 0.0
    %v9618 = vmax.f32 %v9474, 0.0
    %v9619 = vmax.f32 %v9475, 0.0
    %v9620 = vmax.f32 %v9476, 0.0
    %v9621 = vmax.f32 %v9477, 0.0
    %v9622 = vmax.f32 %v9478, 0.0
    %v9623 = vmax.f32 %v9479, 0.0
    %v9624 = vmax.f32 %v9480, 0.0
    %v9625 = vmax.f32 %v9481, 0.0
    %v9626 = vmax.f32 %v9482, 0.0
    %v9627 = vmax.f32 %v9483, 0.0
    %v9628 = vmax.f32 %v9484, 0.0
    %v9629 = vmax.f32 %v9485, 0.0
    %v9630 = vmax.f32 %v9486, 0.0
    %v9631 = vmax.f32 %v9487, 0.0
    %v9632 = vmax.f32 %v9488, 0.0
    %v9633 = vmax.f32 %v9489, 0.0
    %v9634 = vmax.f32 %v9490, 0.0
    %v9635 = vmax.f32 %v9491, 0.0
    %v9636 = vmax.f32 %v9492, 0.0
    %v9637 = vmax.f32 %v9493, 0.0
    %v9638 = vmax.f32 %v9494, 0.0
    %v9639 = vmax.f32 %v9495, 0.0
    %v9640 = vmax.f32 %v9496, 0.0
    %v9641 = vmax.f32 %v9497, 0.0
    %v9642 = vmax.f32 %v9498, 0.0
    %v9643 = vmax.f32 %v9499, 0.0
    %v9644 = vmax.f32 %v9500, 0.0
    %v9645 = vmax.f32 %v9501, 0.0
    %v9646 = vmax.f32 %v9502, 0.0
    %v9647 = vmax.f32 %v9503, 0.0
    %v9648 = vmax.f32 %v9504, 0.0
    %v9649 = vmax.f32 %v9505, 0.0
    %v9650 = vmax.f32 %v9506, 0.0
    %v9651 = vmax.f32 %v9507, 0.0
    %v9652 = vmax.f32 %v9508, 0.0
    %v9653 = vmax.f32 %v9509, 0.0
    %v9654 = vmax.f32 %v9510, 0.0
    %v9655 = vmax.f32 %v9511, 0.0
    %v9656 = vmax.f32 %v9512, 0.0
    %v9657 = vmax.f32 %v9513, 0.0
    %v9658 = vmax.f32 %v9514, 0.0
    %v9659 = vmax.f32 %v9515, 0.0
    %v9660 = vmax.f32 %v9516, 0.0
    %v9661 = vmax.f32 %v9517, 0.0
    %v9662 = vmax.f32 %v9518, 0.0
    %v9663 = vmax.f32 %v9519, 0.0
    %v9664 = vmax.f32 %v9520, 0.0
    %v9665 = vmax.f32 %v9521, 0.0
    %v9666 = vmax.f32 %v9522, 0.0
    %v9667 = vmax.f32 %v9523, 0.0
    %v9668 = vmax.f32 %v9524, 0.0
    %v9669 = vmax.f32 %v9525, 0.0
    %v9670 = vmax.f32 %v9526, 0.0
    %v9671 = vmax.f32 %v9527, 0.0
    %v9672 = vmax.f32 %v9528, 0.0
    %v9673 = vmax.f32 %v9529, 0.0
    %v9674 = vmax.f32 %v9530, 0.0
    %v9675 = vmax.f32 %v9531, 0.0
    %v9676 = vmax.f32 %v9532, 0.0
    %v9677 = vmax.f32 %v9533, 0.0
    %v9678 = vmax.f32 %v9534, 0.0
    %v9679 = vmax.f32 %v9535, 0.0
    %v9680 = vmax.f32 %v9536, 0.0
    %v9681 = vmax.f32 %v9537, 0.0
    %v9682 = vmax.f32 %v9538, 0.0
    %v9683 = vmax.f32 %v9539, 0.0
    %v9684 = vmax.f32 %v9540, 0.0
    %v9685 = vmax.f32 %v9541, 0.0
    %v9686 = vmax.f32 %v9542, 0.0
    %v9687 = vmax.f32 %v9543, 0.0
    %v9688 = vmax.f32 %v9544, 0.0
    %v9689 = vmax.f32 %v9545, 0.0
    %v9690 = vmax.f32 %v9546, 0.0
    %v9691 = vmax.f32 %v9547, 0.0
    %v9692 = vmax.f32 %v9548, 0.0
    %v9693 = vmax.f32 %v9549, 0.0
    %v9694 = vmax.f32 %v9550, 0.0
    %v9695 = vmax.f32 %v9551, 0.0
    %v9696 = vmax.f32 %v9552, 0.0
    %v9697 = vmax.f32 %v9553, 0.0
    %v9698 = vmax.f32 %v9554, 0.0
    %v9699 = vmax.f32 %v9555, 0.0
    %v9700 = vmax.f32 %v9556, 0.0
    %v9701 = vmax.f32 %v9557, 0.0
    %v9702 = vmax.f32 %v9558, 0.0
    %v9703 = vmax.f32 %v9559, 0.0
    %v9704 = vmax.f32 %v9560, 0.0
    %v9705 = vmax.f32 %v9561, 0.0
    %v9706 = vmax.f32 %v9562, 0.0
    %v9707 = vmax.f32 %v9563, 0.0
    %v9708 = vmax.f32 %v9564, 0.0
    %v9709 = vmax.f32 %v9565, 0.0
    %v9710 = vmax.f32 %v9566, 0.0
    %v9711 = vmax.f32 %v9567, 0.0
    %v9712 = vmax.f32 %v9568, 0.0
    %v9713 = vmax.f32 %v9569, 0.0
    %v9714 = vmax.f32 %v9570, 0.0
    %v9715 = vmax.f32 %v9571, 0.0
    %v9716 = vmax.f32 %v9572, 0.0
    %v9717 = vmax.f32 %v9573, 0.0
    %v9718 = vmax.f32 %v9574, 0.0
    %v9719 = vmax.f32 %v9575, 0.0
    %v9720 = vmax.f32 %v9576, 0.0
    %v9721 = vmax.f32 %v9577, 0.0
    %v9722 = vmax.f32 %v9578, 0.0
    %v9723 = vmax.f32 %v9579, 0.0
    %v9724 = vmax.f32 %v9580, 0.0
    %v9725 = vmax.f32 %v9581, 0.0
    %v9726 = vmax.f32 %v9582, 0.0
    %v9727 = vmax.f32 %v9583, 0.0
    %v9728 = vmax.f32 %v9584, 0.0
    %v9729 = vmax.f32 %v9585, 0.0
    %v9730 = vmax.f32 %v9586, 0.0
    %v9731 = vmax.f32 %v9587, 0.0
    %v9732 = vmax.f32 %v9588, 0.0
    %v9733 = vmax.f32 %v9589, 0.0
    %v9734 = vmax.f32 %v9590, 0.0
    %v9735 = vmax.f32 %v9591, 0.0
    %v9736 = vmax.f32 %v9592, 0.0
    %v9737 = vmax.f32 %v9593, 0.0
    %v9738 = vmax.f32 %v9594, 0.0
    %v9739 = vmax.f32 %v9595, 0.0
    %v9740 = vmax.f32 %v9596, 0.0
    %v9741 = vmax.f32 %v9597, 0.0
    %v9742 = vmax.f32 %v9598, 0.0
    %v9743 = vmax.f32 %v9599, 0.0
    %v9744 = vmax.f32 %v9600, 0.0
    %v9745 = vmax.f32 %v9601, 0.0
    %v9746 = vmax.f32 %v9602, 0.0
    %v9747 = vmax.f32 %v9603, 0.0
    %v9748 = vmax.f32 %v9604, 0.0
    %v9749 = vmax.f32 %v9605, 0.0
    %v9750 = vmax.f32 %v9606, 0.0
    %v9751 = vmax.f32 %v9607, 0.0
    %v9752 = vmax.f32 %v9608, 0.0
    %v9753 = vmax.f32 %v9609, 0.0
    %v9754 = vmax.f32 %v9610, 0.0
    %v9755 = vmul.f32 %v9611, 0.1
    %v9756 = vmul.f32 %v9612, 0.1
    %v9757 = vmul.f32 %v9613, 0.1
    %v9758 = vmul.f32 %v9614, 0.1
    %v9759 = vmul.f32 %v9615, 0.1
    %v9760 = vmul.f32 %v9616, 0.1
    %v9761 = vmul.f32 %v9617, 0.1
    %v9762 = vmul.f32 %v9618, 0.1
    %v9763 = vmul.f32 %v9619, 0.1
    %v9764 = vmul.f32 %v9620, 0.1
    %v9765 = vmul.f32 %v9621, 0.1
    %v9766 = vmul.f32 %v9622, 0.1
    %v9767 = vmul.f32 %v9623, 0.1
    %v9768 = vmul.f32 %v9624, 0.1
    %v9769 = vmul.f32 %v9625, 0.1
    %v9770 = vmul.f32 %v9626, 0.1
    %v9771 = vmul.f32 %v9627, 0.1
    %v9772 = vmul.f32 %v9628, 0.1
    %v9773 = vmul.f32 %v9629, 0.1
    %v9774 = vmul.f32 %v9630, 0.1
    %v9775 = vmul.f32 %v9631, 0.1
    %v9776 = vmul.f32 %v9632, 0.1
    %v9777 = vmul.f32 %v9633, 0.1
    %v9778 = vmul.f32 %v9634, 0.1
    %v9779 = vmul.f32 %v9635, 0.1
    %v9780 = vmul.f32 %v9636, 0.1
    %v9781 = vmul.f32 %v9637, 0.1
    %v9782 = vmul.f32 %v9638, 0.1
    %v9783 = vmul.f32 %v9639, 0.1
    %v9784 = vmul.f32 %v9640, 0.1
    %v9785 = vmul.f32 %v9641, 0.1
    %v9786 = vmul.f32 %v9642, 0.1
    %v9787 = vmul.f32 %v9643, 0.1
    %v9788 = vmul.f32 %v9644, 0.1
    %v9789 = vmul.f32 %v9645, 0.1
    %v9790 = vmul.f32 %v9646, 0.1
    %v9791 = vmul.f32 %v9647, 0.1
    %v9792 = vmul.f32 %v9648, 0.1
    %v9793 = vmul.f32 %v9649, 0.1
    %v9794 = vmul.f32 %v9650, 0.1
    %v9795 = vmul.f32 %v9651, 0.1
    %v9796 = vmul.f32 %v9652, 0.1
    %v9797 = vmul.f32 %v9653, 0.1
    %v9798 = vmul.f32 %v9654, 0.1
    %v9799 = vmul.f32 %v9655, 0.1
    %v9800 = vmul.f32 %v9656, 0.1
    %v9801 = vmul.f32 %v9657, 0.1
    %v9802 = vmul.f32 %v9658, 0.1
    %v9803 = vmul.f32 %v9659, 0.1
    %v9804 = vmul.f32 %v9660, 0.1
    %v9805 = vmul.f32 %v9661, 0.1
    %v9806 = vmul.f32 %v9662, 0.1
    %v9807 = vmul.f32 %v9663, 0.1
    %v9808 = vmul.f32 %v9664, 0.1
    %v9809 = vmul.f32 %v9665, 0.1
    %v9810 = vmul.f32 %v9666, 0.1
    %v9811 = vmul.f32 %v9667, 0.1
    %v9812 = vmul.f32 %v9668, 0.1
    %v9813 = vmul.f32 %v9669, 0.1
    %v9814 = vmul.f32 %v9670, 0.1
    %v9815 = vmul.f32 %v9671, 0.1
    %v9816 = vmul.f32 %v9672, 0.1
    %v9817 = vmul.f32 %v9673, 0.1
    %v9818 = vmul.f32 %v9674, 0.1
    %v9819 = vmul.f32 %v9675, 0.1
    %v9820 = vmul.f32 %v9676, 0.1
    %v9821 = vmul.f32 %v9677, 0.1
    %v9822 = vmul.f32 %v9678, 0.1
    %v9823 = vmul.f32 %v9679, 0.1
    %v9824 = vmul.f32 %v9680, 0.1
    %v9825 = vmul.f32 %v9681, 0.1
    %v9826 = vmul.f32 %v9682, 0.1
    %v9827 = vmul.f32 %v9683, 0.1
    %v9828 = vmul.f32 %v9684, 0.1
    %v9829 = vmul.f32 %v9685, 0.1
    %v9830 = vmul.f32 %v9686, 0.1
    %v9831 = vmul.f32 %v9687, 0.1
    %v9832 = vmul.f32 %v9688, 0.1
    %v9833 = vmul.f32 %v9689, 0.1
    %v9834 = vmul.f32 %v9690, 0.1
    %v9835 = vmul.f32 %v9691, 0.1
    %v9836 = vmul.f32 %v9692, 0.1
    %v9837 = vmul.f32 %v9693, 0.1
    %v9838 = vmul.f32 %v9694, 0.1
    %v9839 = vmul.f32 %v9695, 0.1
    %v9840 = vmul.f32 %v9696, 0.1
    %v9841 = vmul.f32 %v9697, 0.1
    %v9842 = vmul.f32 %v9698, 0.1
    %v9843 = vmul.f32 %v9699, 0.1
    %v9844 = vmul.f32 %v9700, 0.1
    %v9845 = vmul.f32 %v9701, 0.1
    %v9846 = vmul.f32 %v9702, 0.1
    %v9847 = vmul.f32 %v9703, 0.1
    %v9848 = vmul.f32 %v9704, 0.1
    %v9849 = vmul.f32 %v9705, 0.1
    %v9850 = vmul.f32 %v9706, 0.1
    %v9851 = vmul.f32 %v9707, 0.1
    %v9852 = vmul.f32 %v9708, 0.1
    %v9853 = vmul.f32 %v9709, 0.1
    %v9854 = vmul.f32 %v9710, 0.1
    %v9855 = vmul.f32 %v9711, 0.1
    %v9856 = vmul.f32 %v9712, 0.1
    %v9857 = vmul.f32 %v9713, 0.1
    %v9858 = vmul.f32 %v9714, 0.1
    %v9859 = vmul.f32 %v9715, 0.1
    %v9860 = vmul.f32 %v9716, 0.1
    %v9861 = vmul.f32 %v9717, 0.1
    %v9862 = vmul.f32 %v9718, 0.1
    %v9863 = vmul.f32 %v9719, 0.1
    %v9864 = vmul.f32 %v9720, 0.1
    %v9865 = vmul.f32 %v9721, 0.1
    %v9866 = vmul.f32 %v9722, 0.1
    %v9867 = vmul.f32 %v9723, 0.1
    %v9868 = vmul.f32 %v9724, 0.1
    %v9869 = vmul.f32 %v9725, 0.1
    %v9870 = vmul.f32 %v9726, 0.1
    %v9871 = vmul.f32 %v9727, 0.1
    %v9872 = vmul.f32 %v9728, 0.1
    %v9873 = vmul.f32 %v9729, 0.1
    %v9874 = vmul.f32 %v9730, 0.1
    %v9875 = vmul.f32 %v9731, 0.1
    %v9876 = vmul.f32 %v9732, 0.1
    %v9877 = vmul.f32 %v9733, 0.1
    %v9878 = vmul.f32 %v9734, 0.1
    %v9879 = vmul.f32 %v9735, 0.1
    %v9880 = vmul.f32 %v9736, 0.1
    %v9881 = vmul.f32 %v9737, 0.1
    %v9882 = vmul.f32 %v9738, 0.1
    %v9883 = vmul.f32 %v9739, 0.1
    %v9884 = vmul.f32 %v9740, 0.1
    %v9885 = vmul.f32 %v9741, 0.1
    %v9886 = vmul.f32 %v9742, 0.1
    %v9887 = vmul.f32 %v9743, 0.1
    %v9888 = vmul.f32 %v9744, 0.1
    %v9889 = vmul.f32 %v9745, 0.1
    %v9890 = vmul.f32 %v9746, 0.1
    %v9891 = vmul.f32 %v9747, 0.1
    %v9892 = vmul.f32 %v9748, 0.1
    %v9893 = vmul.f32 %v9749, 0.1
    %v9894 = vmul.f32 %v9750, 0.1
    %v9895 = vmul.f32 %v9751, 0.1
    %v9896 = vmul.f32 %v9752, 0.1
    %v9897 = vmul.f32 %v9753, 0.1
    %v9898 = vmul.f32 %v9754, 0.1
    %v9899 = vadd.f32 %v9755, %v9764
    %v9900 = vadd.f32 %v9899, %v9773
    %v9901 = vadd.f32 %v9900, %v9782
    %v9902 = vadd.f32 %v9901, %v9791
    %v9903 = vadd.f32 %v9902, %v9800
    %v9904 = vadd.f32 %v9903, %v9809
    %v9905 = vadd.f32 %v9904, %v9818
    %v9906 = vadd.f32 %v9905, %v9827
    %v9907 = vadd.f32 %v9906, %v9836
    %v9908 = vadd.f32 %v9907, %v9845
    %v9909 = vadd.f32 %v9908, %v9854
    %v9910 = vadd.f32 %v9909, %v9863
    %v9911 = vadd.f32 %v9910, %v9872
    %v9912 = vadd.f32 %v9911, %v9881
    %v9913 = vadd.f32 %v9912, %v9890
    %v9914 = vrot.slane %v9913, 4
    %v9915 = vadd.f32 %v9913, %v9914
    %v9916 = vrot.slane %v9915, 2
    %v9917 = vadd.f32 %v9915, %v9916
    %v9918 = vrot.slane %v9917, 1
    %v9919 = vadd.f32 %v9917, %v9918
    %v9920 = vadd.f32 %v9756, %v9765
    %v9921 = vadd.f32 %v9920, %v9774
    %v9922 = vadd.f32 %v9921, %v9783
    %v9923 = vadd.f32 %v9922, %v9792
    %v9924 = vadd.f32 %v9923, %v9801
    %v9925 = vadd.f32 %v9924, %v9810
    %v9926 = vadd.f32 %v9925, %v9819
    %v9927 = vadd.f32 %v9926, %v9828
    %v9928 = vadd.f32 %v9927, %v9837
    %v9929 = vadd.f32 %v9928, %v9846
    %v9930 = vadd.f32 %v9929, %v9855
    %v9931 = vadd.f32 %v9930, %v9864
    %v9932 = vadd.f32 %v9931, %v9873
    %v9933 = vadd.f32 %v9932, %v9882
    %v9934 = vadd.f32 %v9933, %v9891
    %v9935 = vrot.slane %v9934, 4
    %v9936 = vadd.f32 %v9934, %v9935
    %v9937 = vrot.slane %v9936, 2
    %v9938 = vadd.f32 %v9936, %v9937
    %v9939 = vrot.slane %v9938, 1
    %v9940 = vadd.f32 %v9938, %v9939
    %v9941 = vadd.f32 %v9757, %v9766
    %v9942 = vadd.f32 %v9941, %v9775
    %v9943 = vadd.f32 %v9942, %v9784
    %v9944 = vadd.f32 %v9943, %v9793
    %v9945 = vadd.f32 %v9944, %v9802
    %v9946 = vadd.f32 %v9945, %v9811
    %v9947 = vadd.f32 %v9946, %v9820
    %v9948 = vadd.f32 %v9947, %v9829
    %v9949 = vadd.f32 %v9948, %v9838
    %v9950 = vadd.f32 %v9949, %v9847
    %v9951 = vadd.f32 %v9950, %v9856
    %v9952 = vadd.f32 %v9951, %v9865
    %v9953 = vadd.f32 %v9952, %v9874
    %v9954 = vadd.f32 %v9953, %v9883
    %v9955 = vadd.f32 %v9954, %v9892
    %v9956 = vrot.slane %v9955, 4
    %v9957 = vadd.f32 %v9955, %v9956
    %v9958 = vrot.slane %v9957, 2
    %v9959 = vadd.f32 %v9957, %v9958
    %v9960 = vrot.slane %v9959, 1
    %v9961 = vadd.f32 %v9959, %v9960
    %v9962 = vadd.f32 %v9758, %v9767
    %v9963 = vadd.f32 %v9962, %v9776
    %v9964 = vadd.f32 %v9963, %v9785
    %v9965 = vadd.f32 %v9964, %v9794
    %v9966 = vadd.f32 %v9965, %v9803
    %v9967 = vadd.f32 %v9966, %v9812
    %v9968 = vadd.f32 %v9967, %v9821
    %v9969 = vadd.f32 %v9968, %v9830
    %v9970 = vadd.f32 %v9969, %v9839
    %v9971 = vadd.f32 %v9970, %v9848
    %v9972 = vadd.f32 %v9971, %v9857
    %v9973 = vadd.f32 %v9972, %v9866
    %v9974 = vadd.f32 %v9973, %v9875
    %v9975 = vadd.f32 %v9974, %v9884
    %v9976 = vadd.f32 %v9975, %v9893
    %v9977 = vrot.slane %v9976, 4
    %v9978 = vadd.f32 %v9976, %v9977
    %v9979 = vrot.slane %v9978, 2
    %v9980 = vadd.f32 %v9978, %v9979
    %v9981 = vrot.slane %v9980, 1
    %v9982 = vadd.f32 %v9980, %v9981
    %v9983 = vadd.f32 %v9759, %v9768
    %v9984 = vadd.f32 %v9983, %v9777
    %v9985 = vadd.f32 %v9984, %v9786
    %v9986 = vadd.f32 %v9985, %v9795
    %v9987 = vadd.f32 %v9986, %v9804
    %v9988 = vadd.f32 %v9987, %v9813
    %v9989 = vadd.f32 %v9988, %v9822
    %v9990 = vadd.f32 %v9989, %v9831
    %v9991 = vadd.f32 %v9990, %v9840
    %v9992 = vadd.f32 %v9991, %v9849
    %v9993 = vadd.f32 %v9992, %v9858
    %v9994 = vadd.f32 %v9993, %v9867
    %v9995 = vadd.f32 %v9994, %v9876
    %v9996 = vadd.f32 %v9995, %v9885
    %v9997 = vadd.f32 %v9996, %v9894
    %v9998 = vrot.slane %v9997, 4
    %v9999 = vadd.f32 %v9997, %v9998
    %v10000 = vrot.slane %v9999, 2
    %v10001 = vadd.f32 %v9999, %v10000
    %v10002 = vrot.slane %v10001, 1
    %v10003 = vadd.f32 %v10001, %v10002
    %v10004 = vadd.f32 %v9760, %v9769
    %v10005 = vadd.f32 %v10004, %v9778
    %v10006 = vadd.f32 %v10005, %v9787
    %v10007 = vadd.f32 %v10006, %v9796
    %v10008 = vadd.f32 %v10007, %v9805
    %v10009 = vadd.f32 %v10008, %v9814
    %v10010 = vadd.f32 %v10009, %v9823
    %v10011 = vadd.f32 %v10010, %v9832
    %v10012 = vadd.f32 %v10011, %v9841
    %v10013 = vadd.f32 %v10012, %v9850
    %v10014 = vadd.f32 %v10013, %v9859
    %v10015 = vadd.f32 %v10014, %v9868
    %v10016 = vadd.f32 %v10015, %v9877
    %v10017 = vadd.f32 %v10016, %v9886
    %v10018 = vadd.f32 %v10017, %v9895
    %v10019 = vrot.slane %v10018, 4
    %v10020 = vadd.f32 %v10018, %v10019
    %v10021 = vrot.slane %v10020, 2
    %v10022 = vadd.f32 %v10020, %v10021
    %v10023 = vrot.slane %v10022, 1
    %v10024 = vadd.f32 %v10022, %v10023
    %v10025 = vadd.f32 %v9761, %v9770
    %v10026 = vadd.f32 %v10025, %v9779
    %v10027 = vadd.f32 %v10026, %v9788
    %v10028 = vadd.f32 %v10027, %v9797
    %v10029 = vadd.f32 %v10028, %v9806
    %v10030 = vadd.f32 %v10029, %v9815
    %v10031 = vadd.f32 %v10030, %v9824
    %v10032 = vadd.f32 %v10031, %v9833
    %v10033 = vadd.f32 %v10032, %v9842
    %v10034 = vadd.f32 %v10033, %v9851
    %v10035 = vadd.f32 %v10034, %v9860
    %v10036 = vadd.f32 %v10035, %v9869
    %v10037 = vadd.f32 %v10036, %v9878
    %v10038 = vadd.f32 %v10037, %v9887
    %v10039 = vadd.f32 %v10038, %v9896
    %v10040 = vrot.slane %v10039, 4
    %v10041 = vadd.f32 %v10039, %v10040
    %v10042 = vrot.slane %v10041, 2
    %v10043 = vadd.f32 %v10041, %v10042
    %v10044 = vrot.slane %v10043, 1
    %v10045 = vadd.f32 %v10043, %v10044
    %v10046 = vadd.f32 %v9762, %v9771
    %v10047 = vadd.f32 %v10046, %v9780
    %v10048 = vadd.f32 %v10047, %v9789
    %v10049 = vadd.f32 %v10048, %v9798
    %v10050 = vadd.f32 %v10049, %v9807
    %v10051 = vadd.f32 %v10050, %v9816
    %v10052 = vadd.f32 %v10051, %v9825
    %v10053 = vadd.f32 %v10052, %v9834
    %v10054 = vadd.f32 %v10053, %v9843
    %v10055 = vadd.f32 %v10054, %v9852
    %v10056 = vadd.f32 %v10055, %v9861
    %v10057 = vadd.f32 %v10056, %v9870
    %v10058 = vadd.f32 %v10057, %v9879
    %v10059 = vadd.f32 %v10058, %v9888
    %v10060 = vadd.f32 %v10059, %v9897
    %v10061 = vrot.slane %v10060, 4
    %v10062 = vadd.f32 %v10060, %v10061
    %v10063 = vrot.slane %v10062, 2
    %v10064 = vadd.f32 %v10062, %v10063
    %v10065 = vrot.slane %v10064, 1
    %v10066 = vadd.f32 %v10064, %v10065
    %v10067 = vsel %vm1317, %v9763, 0.0
    %v10068 = vsel %vm1317, %v9772, 0.0
    %v10069 = vadd.f32 %v10067, %v10068
    %v10070 = vsel %vm1317, %v9781, 0.0
    %v10071 = vadd.f32 %v10069, %v10070
    %v10072 = vsel %vm1317, %v9790, 0.0
    %v10073 = vadd.f32 %v10071, %v10072
    %v10074 = vsel %vm1317, %v9799, 0.0
    %v10075 = vadd.f32 %v10073, %v10074
    %v10076 = vsel %vm1317, %v9808, 0.0
    %v10077 = vadd.f32 %v10075, %v10076
    %v10078 = vsel %vm1317, %v9817, 0.0
    %v10079 = vadd.f32 %v10077, %v10078
    %v10080 = vsel %vm1317, %v9826, 0.0
    %v10081 = vadd.f32 %v10079, %v10080
    %v10082 = vsel %vm1317, %v9835, 0.0
    %v10083 = vadd.f32 %v10081, %v10082
    %v10084 = vsel %vm1317, %v9844, 0.0
    %v10085 = vadd.f32 %v10083, %v10084
    %v10086 = vsel %vm1317, %v9853, 0.0
    %v10087 = vadd.f32 %v10085, %v10086
    %v10088 = vsel %vm1317, %v9862, 0.0
    %v10089 = vadd.f32 %v10087, %v10088
    %v10090 = vsel %vm1317, %v9871, 0.0
    %v10091 = vadd.f32 %v10089, %v10090
    %v10092 = vsel %vm1317, %v9880, 0.0
    %v10093 = vadd.f32 %v10091, %v10092
    %v10094 = vsel %vm1317, %v9889, 0.0
    %v10095 = vadd.f32 %v10093, %v10094
    %v10096 = vsel %vm1317, %v9898, 0.0
    %v10097 = vadd.f32 %v10095, %v10096
    %v10098 = vrot.slane %v10097, 4
    %v10099 = vadd.f32 %v10097, %v10098
    %v10100 = vrot.slane %v10099, 2
    %v10101 = vadd.f32 %v10099, %v10100
    %v10102 = vrot.slane %v10101, 1
    %v10103 = vadd.f32 %v10101, %v10102
    %v10104 = vmul.f32 %v9919, 0.0078125
    %v10105 = vmul.f32 %v9940, 0.0078125
    %v10106 = vmul.f32 %v9961, 0.0078125
    %v10107 = vmul.f32 %v9982, 0.0078125
    %v10108 = vmul.f32 %v10003, 0.0078125
    %v10109 = vmul.f32 %v10024, 0.0078125
    %v10110 = vmul.f32 %v10045, 0.0078125
    %v10111 = vmul.f32 %v10066, 0.0078125
    %v10112 = vmul.f32 %v10103, 0.0078125
    %v10113 = vmul.f32 %v9755, %v9755
    %v10114 = vmul.f32 %v9756, %v9756
    %v10115 = vmul.f32 %v9757, %v9757
    %v10116 = vmul.f32 %v9758, %v9758
    %v10117 = vmul.f32 %v9759, %v9759
    %v10118 = vmul.f32 %v9760, %v9760
    %v10119 = vmul.f32 %v9761, %v9761
    %v10120 = vmul.f32 %v9762, %v9762
    %v10121 = vmul.f32 %v9763, %v9763
    %v10122 = vmul.f32 %v9764, %v9764
    %v10123 = vmul.f32 %v9765, %v9765
    %v10124 = vmul.f32 %v9766, %v9766
    %v10125 = vmul.f32 %v9767, %v9767
    %v10126 = vmul.f32 %v9768, %v9768
    %v10127 = vmul.f32 %v9769, %v9769
    %v10128 = vmul.f32 %v9770, %v9770
    %v10129 = vmul.f32 %v9771, %v9771
    %v10130 = vmul.f32 %v9772, %v9772
    %v10131 = vmul.f32 %v9773, %v9773
    %v10132 = vmul.f32 %v9774, %v9774
    %v10133 = vmul.f32 %v9775, %v9775
    %v10134 = vmul.f32 %v9776, %v9776
    %v10135 = vmul.f32 %v9777, %v9777
    %v10136 = vmul.f32 %v9778, %v9778
    %v10137 = vmul.f32 %v9779, %v9779
    %v10138 = vmul.f32 %v9780, %v9780
    %v10139 = vmul.f32 %v9781, %v9781
    %v10140 = vmul.f32 %v9782, %v9782
    %v10141 = vmul.f32 %v9783, %v9783
    %v10142 = vmul.f32 %v9784, %v9784
    %v10143 = vmul.f32 %v9785, %v9785
    %v10144 = vmul.f32 %v9786, %v9786
    %v10145 = vmul.f32 %v9787, %v9787
    %v10146 = vmul.f32 %v9788, %v9788
    %v10147 = vmul.f32 %v9789, %v9789
    %v10148 = vmul.f32 %v9790, %v9790
    %v10149 = vmul.f32 %v9791, %v9791
    %v10150 = vmul.f32 %v9792, %v9792
    %v10151 = vmul.f32 %v9793, %v9793
    %v10152 = vmul.f32 %v9794, %v9794
    %v10153 = vmul.f32 %v9795, %v9795
    %v10154 = vmul.f32 %v9796, %v9796
    %v10155 = vmul.f32 %v9797, %v9797
    %v10156 = vmul.f32 %v9798, %v9798
    %v10157 = vmul.f32 %v9799, %v9799
    %v10158 = vmul.f32 %v9800, %v9800
    %v10159 = vmul.f32 %v9801, %v9801
    %v10160 = vmul.f32 %v9802, %v9802
    %v10161 = vmul.f32 %v9803, %v9803
    %v10162 = vmul.f32 %v9804, %v9804
    %v10163 = vmul.f32 %v9805, %v9805
    %v10164 = vmul.f32 %v9806, %v9806
    %v10165 = vmul.f32 %v9807, %v9807
    %v10166 = vmul.f32 %v9808, %v9808
    %v10167 = vmul.f32 %v9809, %v9809
    %v10168 = vmul.f32 %v9810, %v9810
    %v10169 = vmul.f32 %v9811, %v9811
    %v10170 = vmul.f32 %v9812, %v9812
    %v10171 = vmul.f32 %v9813, %v9813
    %v10172 = vmul.f32 %v9814, %v9814
    %v10173 = vmul.f32 %v9815, %v9815
    %v10174 = vmul.f32 %v9816, %v9816
    %v10175 = vmul.f32 %v9817, %v9817
    %v10176 = vmul.f32 %v9818, %v9818
    %v10177 = vmul.f32 %v9819, %v9819
    %v10178 = vmul.f32 %v9820, %v9820
    %v10179 = vmul.f32 %v9821, %v9821
    %v10180 = vmul.f32 %v9822, %v9822
    %v10181 = vmul.f32 %v9823, %v9823
    %v10182 = vmul.f32 %v9824, %v9824
    %v10183 = vmul.f32 %v9825, %v9825
    %v10184 = vmul.f32 %v9826, %v9826
    %v10185 = vmul.f32 %v9827, %v9827
    %v10186 = vmul.f32 %v9828, %v9828
    %v10187 = vmul.f32 %v9829, %v9829
    %v10188 = vmul.f32 %v9830, %v9830
    %v10189 = vmul.f32 %v9831, %v9831
    %v10190 = vmul.f32 %v9832, %v9832
    %v10191 = vmul.f32 %v9833, %v9833
    %v10192 = vmul.f32 %v9834, %v9834
    %v10193 = vmul.f32 %v9835, %v9835
    %v10194 = vmul.f32 %v9836, %v9836
    %v10195 = vmul.f32 %v9837, %v9837
    %v10196 = vmul.f32 %v9838, %v9838
    %v10197 = vmul.f32 %v9839, %v9839
    %v10198 = vmul.f32 %v9840, %v9840
    %v10199 = vmul.f32 %v9841, %v9841
    %v10200 = vmul.f32 %v9842, %v9842
    %v10201 = vmul.f32 %v9843, %v9843
    %v10202 = vmul.f32 %v9844, %v9844
    %v10203 = vmul.f32 %v9845, %v9845
    %v10204 = vmul.f32 %v9846, %v9846
    %v10205 = vmul.f32 %v9847, %v9847
    %v10206 = vmul.f32 %v9848, %v9848
    %v10207 = vmul.f32 %v9849, %v9849
    %v10208 = vmul.f32 %v9850, %v9850
    %v10209 = vmul.f32 %v9851, %v9851
    %v10210 = vmul.f32 %v9852, %v9852
    %v10211 = vmul.f32 %v9853, %v9853
    %v10212 = vmul.f32 %v9854, %v9854
    %v10213 = vmul.f32 %v9855, %v9855
    %v10214 = vmul.f32 %v9856, %v9856
    %v10215 = vmul.f32 %v9857, %v9857
    %v10216 = vmul.f32 %v9858, %v9858
    %v10217 = vmul.f32 %v9859, %v9859
    %v10218 = vmul.f32 %v9860, %v9860
    %v10219 = vmul.f32 %v9861, %v9861
    %v10220 = vmul.f32 %v9862, %v9862
    %v10221 = vmul.f32 %v9863, %v9863
    %v10222 = vmul.f32 %v9864, %v9864
    %v10223 = vmul.f32 %v9865, %v9865
    %v10224 = vmul.f32 %v9866, %v9866
    %v10225 = vmul.f32 %v9867, %v9867
    %v10226 = vmul.f32 %v9868, %v9868
    %v10227 = vmul.f32 %v9869, %v9869
    %v10228 = vmul.f32 %v9870, %v9870
    %v10229 = vmul.f32 %v9871, %v9871
    %v10230 = vmul.f32 %v9872, %v9872
    %v10231 = vmul.f32 %v9873, %v9873
    %v10232 = vmul.f32 %v9874, %v9874
    %v10233 = vmul.f32 %v9875, %v9875
    %v10234 = vmul.f32 %v9876, %v9876
    %v10235 = vmul.f32 %v9877, %v9877
    %v10236 = vmul.f32 %v9878, %v9878
    %v10237 = vmul.f32 %v9879, %v9879
    %v10238 = vmul.f32 %v9880, %v9880
    %v10239 = vmul.f32 %v9881, %v9881
    %v10240 = vmul.f32 %v9882, %v9882
    %v10241 = vmul.f32 %v9883, %v9883
    %v10242 = vmul.f32 %v9884, %v9884
    %v10243 = vmul.f32 %v9885, %v9885
    %v10244 = vmul.f32 %v9886, %v9886
    %v10245 = vmul.f32 %v9887, %v9887
    %v10246 = vmul.f32 %v9888, %v9888
    %v10247 = vmul.f32 %v9889, %v9889
    %v10248 = vmul.f32 %v9890, %v9890
    %v10249 = vmul.f32 %v9891, %v9891
    %v10250 = vmul.f32 %v9892, %v9892
    %v10251 = vmul.f32 %v9893, %v9893
    %v10252 = vmul.f32 %v9894, %v9894
    %v10253 = vmul.f32 %v9895, %v9895
    %v10254 = vmul.f32 %v9896, %v9896
    %v10255 = vmul.f32 %v9897, %v9897
    %v10256 = vmul.f32 %v9898, %v9898
    %v10257 = vadd.f32 %v10113, %v10122
    %v10258 = vadd.f32 %v10257, %v10131
    %v10259 = vadd.f32 %v10258, %v10140
    %v10260 = vadd.f32 %v10259, %v10149
    %v10261 = vadd.f32 %v10260, %v10158
    %v10262 = vadd.f32 %v10261, %v10167
    %v10263 = vadd.f32 %v10262, %v10176
    %v10264 = vadd.f32 %v10263, %v10185
    %v10265 = vadd.f32 %v10264, %v10194
    %v10266 = vadd.f32 %v10265, %v10203
    %v10267 = vadd.f32 %v10266, %v10212
    %v10268 = vadd.f32 %v10267, %v10221
    %v10269 = vadd.f32 %v10268, %v10230
    %v10270 = vadd.f32 %v10269, %v10239
    %v10271 = vadd.f32 %v10270, %v10248
    %v10272 = vrot.slane %v10271, 4
    %v10273 = vadd.f32 %v10271, %v10272
    %v10274 = vrot.slane %v10273, 2
    %v10275 = vadd.f32 %v10273, %v10274
    %v10276 = vrot.slane %v10275, 1
    %v10277 = vadd.f32 %v10275, %v10276
    %v10278 = vadd.f32 %v10114, %v10123
    %v10279 = vadd.f32 %v10278, %v10132
    %v10280 = vadd.f32 %v10279, %v10141
    %v10281 = vadd.f32 %v10280, %v10150
    %v10282 = vadd.f32 %v10281, %v10159
    %v10283 = vadd.f32 %v10282, %v10168
    %v10284 = vadd.f32 %v10283, %v10177
    %v10285 = vadd.f32 %v10284, %v10186
    %v10286 = vadd.f32 %v10285, %v10195
    %v10287 = vadd.f32 %v10286, %v10204
    %v10288 = vadd.f32 %v10287, %v10213
    %v10289 = vadd.f32 %v10288, %v10222
    %v10290 = vadd.f32 %v10289, %v10231
    %v10291 = vadd.f32 %v10290, %v10240
    %v10292 = vadd.f32 %v10291, %v10249
    %v10293 = vrot.slane %v10292, 4
    %v10294 = vadd.f32 %v10292, %v10293
    %v10295 = vrot.slane %v10294, 2
    %v10296 = vadd.f32 %v10294, %v10295
    %v10297 = vrot.slane %v10296, 1
    %v10298 = vadd.f32 %v10296, %v10297
    %v10299 = vadd.f32 %v10115, %v10124
    %v10300 = vadd.f32 %v10299, %v10133
    %v10301 = vadd.f32 %v10300, %v10142
    %v10302 = vadd.f32 %v10301, %v10151
    %v10303 = vadd.f32 %v10302, %v10160
    %v10304 = vadd.f32 %v10303, %v10169
    %v10305 = vadd.f32 %v10304, %v10178
    %v10306 = vadd.f32 %v10305, %v10187
    %v10307 = vadd.f32 %v10306, %v10196
    %v10308 = vadd.f32 %v10307, %v10205
    %v10309 = vadd.f32 %v10308, %v10214
    %v10310 = vadd.f32 %v10309, %v10223
    %v10311 = vadd.f32 %v10310, %v10232
    %v10312 = vadd.f32 %v10311, %v10241
    %v10313 = vadd.f32 %v10312, %v10250
    %v10314 = vrot.slane %v10313, 4
    %v10315 = vadd.f32 %v10313, %v10314
    %v10316 = vrot.slane %v10315, 2
    %v10317 = vadd.f32 %v10315, %v10316
    %v10318 = vrot.slane %v10317, 1
    %v10319 = vadd.f32 %v10317, %v10318
    %v10320 = vadd.f32 %v10116, %v10125
    %v10321 = vadd.f32 %v10320, %v10134
    %v10322 = vadd.f32 %v10321, %v10143
    %v10323 = vadd.f32 %v10322, %v10152
    %v10324 = vadd.f32 %v10323, %v10161
    %v10325 = vadd.f32 %v10324, %v10170
    %v10326 = vadd.f32 %v10325, %v10179
    %v10327 = vadd.f32 %v10326, %v10188
    %v10328 = vadd.f32 %v10327, %v10197
    %v10329 = vadd.f32 %v10328, %v10206
    %v10330 = vadd.f32 %v10329, %v10215
    %v10331 = vadd.f32 %v10330, %v10224
    %v10332 = vadd.f32 %v10331, %v10233
    %v10333 = vadd.f32 %v10332, %v10242
    %v10334 = vadd.f32 %v10333, %v10251
    %v10335 = vrot.slane %v10334, 4
    %v10336 = vadd.f32 %v10334, %v10335
    %v10337 = vrot.slane %v10336, 2
    %v10338 = vadd.f32 %v10336, %v10337
    %v10339 = vrot.slane %v10338, 1
    %v10340 = vadd.f32 %v10338, %v10339
    %v10341 = vadd.f32 %v10117, %v10126
    %v10342 = vadd.f32 %v10341, %v10135
    %v10343 = vadd.f32 %v10342, %v10144
    %v10344 = vadd.f32 %v10343, %v10153
    %v10345 = vadd.f32 %v10344, %v10162
    %v10346 = vadd.f32 %v10345, %v10171
    %v10347 = vadd.f32 %v10346, %v10180
    %v10348 = vadd.f32 %v10347, %v10189
    %v10349 = vadd.f32 %v10348, %v10198
    %v10350 = vadd.f32 %v10349, %v10207
    %v10351 = vadd.f32 %v10350, %v10216
    %v10352 = vadd.f32 %v10351, %v10225
    %v10353 = vadd.f32 %v10352, %v10234
    %v10354 = vadd.f32 %v10353, %v10243
    %v10355 = vadd.f32 %v10354, %v10252
    %v10356 = vrot.slane %v10355, 4
    %v10357 = vadd.f32 %v10355, %v10356
    %v10358 = vrot.slane %v10357, 2
    %v10359 = vadd.f32 %v10357, %v10358
    %v10360 = vrot.slane %v10359, 1
    %v10361 = vadd.f32 %v10359, %v10360
    %v10362 = vadd.f32 %v10118, %v10127
    %v10363 = vadd.f32 %v10362, %v10136
    %v10364 = vadd.f32 %v10363, %v10145
    %v10365 = vadd.f32 %v10364, %v10154
    %v10366 = vadd.f32 %v10365, %v10163
    %v10367 = vadd.f32 %v10366, %v10172
    %v10368 = vadd.f32 %v10367, %v10181
    %v10369 = vadd.f32 %v10368, %v10190
    %v10370 = vadd.f32 %v10369, %v10199
    %v10371 = vadd.f32 %v10370, %v10208
    %v10372 = vadd.f32 %v10371, %v10217
    %v10373 = vadd.f32 %v10372, %v10226
    %v10374 = vadd.f32 %v10373, %v10235
    %v10375 = vadd.f32 %v10374, %v10244
    %v10376 = vadd.f32 %v10375, %v10253
    %v10377 = vrot.slane %v10376, 4
    %v10378 = vadd.f32 %v10376, %v10377
    %v10379 = vrot.slane %v10378, 2
    %v10380 = vadd.f32 %v10378, %v10379
    %v10381 = vrot.slane %v10380, 1
    %v10382 = vadd.f32 %v10380, %v10381
    %v10383 = vadd.f32 %v10119, %v10128
    %v10384 = vadd.f32 %v10383, %v10137
    %v10385 = vadd.f32 %v10384, %v10146
    %v10386 = vadd.f32 %v10385, %v10155
    %v10387 = vadd.f32 %v10386, %v10164
    %v10388 = vadd.f32 %v10387, %v10173
    %v10389 = vadd.f32 %v10388, %v10182
    %v10390 = vadd.f32 %v10389, %v10191
    %v10391 = vadd.f32 %v10390, %v10200
    %v10392 = vadd.f32 %v10391, %v10209
    %v10393 = vadd.f32 %v10392, %v10218
    %v10394 = vadd.f32 %v10393, %v10227
    %v10395 = vadd.f32 %v10394, %v10236
    %v10396 = vadd.f32 %v10395, %v10245
    %v10397 = vadd.f32 %v10396, %v10254
    %v10398 = vrot.slane %v10397, 4
    %v10399 = vadd.f32 %v10397, %v10398
    %v10400 = vrot.slane %v10399, 2
    %v10401 = vadd.f32 %v10399, %v10400
    %v10402 = vrot.slane %v10401, 1
    %v10403 = vadd.f32 %v10401, %v10402
    %v10404 = vadd.f32 %v10120, %v10129
    %v10405 = vadd.f32 %v10404, %v10138
    %v10406 = vadd.f32 %v10405, %v10147
    %v10407 = vadd.f32 %v10406, %v10156
    %v10408 = vadd.f32 %v10407, %v10165
    %v10409 = vadd.f32 %v10408, %v10174
    %v10410 = vadd.f32 %v10409, %v10183
    %v10411 = vadd.f32 %v10410, %v10192
    %v10412 = vadd.f32 %v10411, %v10201
    %v10413 = vadd.f32 %v10412, %v10210
    %v10414 = vadd.f32 %v10413, %v10219
    %v10415 = vadd.f32 %v10414, %v10228
    %v10416 = vadd.f32 %v10415, %v10237
    %v10417 = vadd.f32 %v10416, %v10246
    %v10418 = vadd.f32 %v10417, %v10255
    %v10419 = vrot.slane %v10418, 4
    %v10420 = vadd.f32 %v10418, %v10419
    %v10421 = vrot.slane %v10420, 2
    %v10422 = vadd.f32 %v10420, %v10421
    %v10423 = vrot.slane %v10422, 1
    %v10424 = vadd.f32 %v10422, %v10423
    %v10425 = vsel %vm1317, %v10121, 0.0
    %v10426 = vsel %vm1317, %v10130, 0.0
    %v10427 = vadd.f32 %v10425, %v10426
    %v10428 = vsel %vm1317, %v10139, 0.0
    %v10429 = vadd.f32 %v10427, %v10428
    %v10430 = vsel %vm1317, %v10148, 0.0
    %v10431 = vadd.f32 %v10429, %v10430
    %v10432 = vsel %vm1317, %v10157, 0.0
    %v10433 = vadd.f32 %v10431, %v10432
    %v10434 = vsel %vm1317, %v10166, 0.0
    %v10435 = vadd.f32 %v10433, %v10434
    %v10436 = vsel %vm1317, %v10175, 0.0
    %v10437 = vadd.f32 %v10435, %v10436
    %v10438 = vsel %vm1317, %v10184, 0.0
    %v10439 = vadd.f32 %v10437, %v10438
    %v10440 = vsel %vm1317, %v10193, 0.0
    %v10441 = vadd.f32 %v10439, %v10440
    %v10442 = vsel %vm1317, %v10202, 0.0
    %v10443 = vadd.f32 %v10441, %v10442
    %v10444 = vsel %vm1317, %v10211, 0.0
    %v10445 = vadd.f32 %v10443, %v10444
    %v10446 = vsel %vm1317, %v10220, 0.0
    %v10447 = vadd.f32 %v10445, %v10446
    %v10448 = vsel %vm1317, %v10229, 0.0
    %v10449 = vadd.f32 %v10447, %v10448
    %v10450 = vsel %vm1317, %v10238, 0.0
    %v10451 = vadd.f32 %v10449, %v10450
    %v10452 = vsel %vm1317, %v10247, 0.0
    %v10453 = vadd.f32 %v10451, %v10452
    %v10454 = vsel %vm1317, %v10256, 0.0
    %v10455 = vadd.f32 %v10453, %v10454
    %v10456 = vrot.slane %v10455, 4
    %v10457 = vadd.f32 %v10455, %v10456
    %v10458 = vrot.slane %v10457, 2
    %v10459 = vadd.f32 %v10457, %v10458
    %v10460 = vrot.slane %v10459, 1
    %v10461 = vadd.f32 %v10459, %v10460
    %v10462 = vmul.f32 %v10277, 0.0078125
    %v10463 = vmul.f32 %v10298, 0.0078125
    %v10464 = vmul.f32 %v10319, 0.0078125
    %v10465 = vmul.f32 %v10340, 0.0078125
    %v10466 = vmul.f32 %v10361, 0.0078125
    %v10467 = vmul.f32 %v10382, 0.0078125
    %v10468 = vmul.f32 %v10403, 0.0078125
    %v10469 = vmul.f32 %v10424, 0.0078125
    %v10470 = vmul.f32 %v10461, 0.0078125
    %v10471 = vmul.f32 %v10104, %v10104
    %v10472 = vmul.f32 %v10105, %v10105
    %v10473 = vmul.f32 %v10106, %v10106
    %v10474 = vmul.f32 %v10107, %v10107
    %v10475 = vmul.f32 %v10108, %v10108
    %v10476 = vmul.f32 %v10109, %v10109
    %v10477 = vmul.f32 %v10110, %v10110
    %v10478 = vmul.f32 %v10111, %v10111
    %v10479 = vmul.f32 %v10112, %v10112
    %v10480 = vsub.f32 %v10462, %v10471
    %v10481 = vsub.f32 %v10463, %v10472
    %v10482 = vsub.f32 %v10464, %v10473
    %v10483 = vsub.f32 %v10465, %v10474
    %v10484 = vsub.f32 %v10466, %v10475
    %v10485 = vsub.f32 %v10467, %v10476
    %v10486 = vsub.f32 %v10468, %v10477
    %v10487 = vsub.f32 %v10469, %v10478
    %v10488 = vsub.f32 %v10470, %v10479
    %v10489 = vsub.f32 %v9755, %v10104
    %v10490 = vsub.f32 %v9756, %v10105
    %v10491 = vsub.f32 %v9757, %v10106
    %v10492 = vsub.f32 %v9758, %v10107
    %v10493 = vsub.f32 %v9759, %v10108
    %v10494 = vsub.f32 %v9760, %v10109
    %v10495 = vsub.f32 %v9761, %v10110
    %v10496 = vsub.f32 %v9762, %v10111
    %v10497 = vsub.f32 %v9763, %v10112
    %v10498 = vsub.f32 %v9764, %v10104
    %v10499 = vsub.f32 %v9765, %v10105
    %v10500 = vsub.f32 %v9766, %v10106
    %v10501 = vsub.f32 %v9767, %v10107
    %v10502 = vsub.f32 %v9768, %v10108
    %v10503 = vsub.f32 %v9769, %v10109
    %v10504 = vsub.f32 %v9770, %v10110
    %v10505 = vsub.f32 %v9771, %v10111
    %v10506 = vsub.f32 %v9772, %v10112
    %v10507 = vsub.f32 %v9773, %v10104
    %v10508 = vsub.f32 %v9774, %v10105
    %v10509 = vsub.f32 %v9775, %v10106
    %v10510 = vsub.f32 %v9776, %v10107
    %v10511 = vsub.f32 %v9777, %v10108
    %v10512 = vsub.f32 %v9778, %v10109
    %v10513 = vsub.f32 %v9779, %v10110
    %v10514 = vsub.f32 %v9780, %v10111
    %v10515 = vsub.f32 %v9781, %v10112
    %v10516 = vsub.f32 %v9782, %v10104
    %v10517 = vsub.f32 %v9783, %v10105
    %v10518 = vsub.f32 %v9784, %v10106
    %v10519 = vsub.f32 %v9785, %v10107
    %v10520 = vsub.f32 %v9786, %v10108
    %v10521 = vsub.f32 %v9787, %v10109
    %v10522 = vsub.f32 %v9788, %v10110
    %v10523 = vsub.f32 %v9789, %v10111
    %v10524 = vsub.f32 %v9790, %v10112
    %v10525 = vsub.f32 %v9791, %v10104
    %v10526 = vsub.f32 %v9792, %v10105
    %v10527 = vsub.f32 %v9793, %v10106
    %v10528 = vsub.f32 %v9794, %v10107
    %v10529 = vsub.f32 %v9795, %v10108
    %v10530 = vsub.f32 %v9796, %v10109
    %v10531 = vsub.f32 %v9797, %v10110
    %v10532 = vsub.f32 %v9798, %v10111
    %v10533 = vsub.f32 %v9799, %v10112
    %v10534 = vsub.f32 %v9800, %v10104
    %v10535 = vsub.f32 %v9801, %v10105
    %v10536 = vsub.f32 %v9802, %v10106
    %v10537 = vsub.f32 %v9803, %v10107
    %v10538 = vsub.f32 %v9804, %v10108
    %v10539 = vsub.f32 %v9805, %v10109
    %v10540 = vsub.f32 %v9806, %v10110
    %v10541 = vsub.f32 %v9807, %v10111
    %v10542 = vsub.f32 %v9808, %v10112
    %v10543 = vsub.f32 %v9809, %v10104
    %v10544 = vsub.f32 %v9810, %v10105
    %v10545 = vsub.f32 %v9811, %v10106
    %v10546 = vsub.f32 %v9812, %v10107
    %v10547 = vsub.f32 %v9813, %v10108
    %v10548 = vsub.f32 %v9814, %v10109
    %v10549 = vsub.f32 %v9815, %v10110
    %v10550 = vsub.f32 %v9816, %v10111
    %v10551 = vsub.f32 %v9817, %v10112
    %v10552 = vsub.f32 %v9818, %v10104
    %v10553 = vsub.f32 %v9819, %v10105
    %v10554 = vsub.f32 %v9820, %v10106
    %v10555 = vsub.f32 %v9821, %v10107
    %v10556 = vsub.f32 %v9822, %v10108
    %v10557 = vsub.f32 %v9823, %v10109
    %v10558 = vsub.f32 %v9824, %v10110
    %v10559 = vsub.f32 %v9825, %v10111
    %v10560 = vsub.f32 %v9826, %v10112
    %v10561 = vsub.f32 %v9827, %v10104
    %v10562 = vsub.f32 %v9828, %v10105
    %v10563 = vsub.f32 %v9829, %v10106
    %v10564 = vsub.f32 %v9830, %v10107
    %v10565 = vsub.f32 %v9831, %v10108
    %v10566 = vsub.f32 %v9832, %v10109
    %v10567 = vsub.f32 %v9833, %v10110
    %v10568 = vsub.f32 %v9834, %v10111
    %v10569 = vsub.f32 %v9835, %v10112
    %v10570 = vsub.f32 %v9836, %v10104
    %v10571 = vsub.f32 %v9837, %v10105
    %v10572 = vsub.f32 %v9838, %v10106
    %v10573 = vsub.f32 %v9839, %v10107
    %v10574 = vsub.f32 %v9840, %v10108
    %v10575 = vsub.f32 %v9841, %v10109
    %v10576 = vsub.f32 %v9842, %v10110
    %v10577 = vsub.f32 %v9843, %v10111
    %v10578 = vsub.f32 %v9844, %v10112
    %v10579 = vsub.f32 %v9845, %v10104
    %v10580 = vsub.f32 %v9846, %v10105
    %v10581 = vsub.f32 %v9847, %v10106
    %v10582 = vsub.f32 %v9848, %v10107
    %v10583 = vsub.f32 %v9849, %v10108
    %v10584 = vsub.f32 %v9850, %v10109
    %v10585 = vsub.f32 %v9851, %v10110
    %v10586 = vsub.f32 %v9852, %v10111
    %v10587 = vsub.f32 %v9853, %v10112
    %v10588 = vsub.f32 %v9854, %v10104
    %v10589 = vsub.f32 %v9855, %v10105
    %v10590 = vsub.f32 %v9856, %v10106
    %v10591 = vsub.f32 %v9857, %v10107
    %v10592 = vsub.f32 %v9858, %v10108
    %v10593 = vsub.f32 %v9859, %v10109
    %v10594 = vsub.f32 %v9860, %v10110
    %v10595 = vsub.f32 %v9861, %v10111
    %v10596 = vsub.f32 %v9862, %v10112
    %v10597 = vsub.f32 %v9863, %v10104
    %v10598 = vsub.f32 %v9864, %v10105
    %v10599 = vsub.f32 %v9865, %v10106
    %v10600 = vsub.f32 %v9866, %v10107
    %v10601 = vsub.f32 %v9867, %v10108
    %v10602 = vsub.f32 %v9868, %v10109
    %v10603 = vsub.f32 %v9869, %v10110
    %v10604 = vsub.f32 %v9870, %v10111
    %v10605 = vsub.f32 %v9871, %v10112
    %v10606 = vsub.f32 %v9872, %v10104
    %v10607 = vsub.f32 %v9873, %v10105
    %v10608 = vsub.f32 %v9874, %v10106
    %v10609 = vsub.f32 %v9875, %v10107
    %v10610 = vsub.f32 %v9876, %v10108
    %v10611 = vsub.f32 %v9877, %v10109
    %v10612 = vsub.f32 %v9878, %v10110
    %v10613 = vsub.f32 %v9879, %v10111
    %v10614 = vsub.f32 %v9880, %v10112
    %v10615 = vsub.f32 %v9881, %v10104
    %v10616 = vsub.f32 %v9882, %v10105
    %v10617 = vsub.f32 %v9883, %v10106
    %v10618 = vsub.f32 %v9884, %v10107
    %v10619 = vsub.f32 %v9885, %v10108
    %v10620 = vsub.f32 %v9886, %v10109
    %v10621 = vsub.f32 %v9887, %v10110
    %v10622 = vsub.f32 %v9888, %v10111
    %v10623 = vsub.f32 %v9889, %v10112
    %v10624 = vsub.f32 %v9890, %v10104
    %v10625 = vsub.f32 %v9891, %v10105
    %v10626 = vsub.f32 %v9892, %v10106
    %v10627 = vsub.f32 %v9893, %v10107
    %v10628 = vsub.f32 %v9894, %v10108
    %v10629 = vsub.f32 %v9895, %v10109
    %v10630 = vsub.f32 %v9896, %v10110
    %v10631 = vsub.f32 %v9897, %v10111
    %v10632 = vsub.f32 %v9898, %v10112
    %v10633 = vadd.f32 %v10480, 1e-05
    %v10634 = vadd.f32 %v10481, 1e-05
    %v10635 = vadd.f32 %v10482, 1e-05
    %v10636 = vadd.f32 %v10483, 1e-05
    %v10637 = vadd.f32 %v10484, 1e-05
    %v10638 = vadd.f32 %v10485, 1e-05
    %v10639 = vadd.f32 %v10486, 1e-05
    %v10640 = vadd.f32 %v10487, 1e-05
    %v10641 = vadd.f32 %v10488, 1e-05
    %v10642 = vrsqrt.pop %v10633
    %v10643 = vrsqrt.pop %v10634
    %v10644 = vrsqrt.pop %v10635
    %v10645 = vrsqrt.pop %v10636
    %v10646 = vrsqrt.pop %v10637
    %v10647 = vrsqrt.pop %v10638
    %v10648 = vrsqrt.pop %v10639
    %v10649 = vrsqrt.pop %v10640
    %v10650 = vrsqrt.pop %v10641
    %v10651 = vmul.f32 %v10489, %v10642
    %v10652 = vmul.f32 %v10490, %v10643
    %v10653 = vmul.f32 %v10491, %v10644
    %v10654 = vmul.f32 %v10492, %v10645
    %v10655 = vmul.f32 %v10493, %v10646
    %v10656 = vmul.f32 %v10494, %v10647
    %v10657 = vmul.f32 %v10495, %v10648
    %v10658 = vmul.f32 %v10496, %v10649
    %v10659 = vmul.f32 %v10497, %v10650
    %v10660 = vmul.f32 %v10498, %v10642
    %v10661 = vmul.f32 %v10499, %v10643
    %v10662 = vmul.f32 %v10500, %v10644
    %v10663 = vmul.f32 %v10501, %v10645
    %v10664 = vmul.f32 %v10502, %v10646
    %v10665 = vmul.f32 %v10503, %v10647
    %v10666 = vmul.f32 %v10504, %v10648
    %v10667 = vmul.f32 %v10505, %v10649
    %v10668 = vmul.f32 %v10506, %v10650
    %v10669 = vmul.f32 %v10507, %v10642
    %v10670 = vmul.f32 %v10508, %v10643
    %v10671 = vmul.f32 %v10509, %v10644
    %v10672 = vmul.f32 %v10510, %v10645
    %v10673 = vmul.f32 %v10511, %v10646
    %v10674 = vmul.f32 %v10512, %v10647
    %v10675 = vmul.f32 %v10513, %v10648
    %v10676 = vmul.f32 %v10514, %v10649
    %v10677 = vmul.f32 %v10515, %v10650
    %v10678 = vmul.f32 %v10516, %v10642
    %v10679 = vmul.f32 %v10517, %v10643
    %v10680 = vmul.f32 %v10518, %v10644
    %v10681 = vmul.f32 %v10519, %v10645
    %v10682 = vmul.f32 %v10520, %v10646
    %v10683 = vmul.f32 %v10521, %v10647
    %v10684 = vmul.f32 %v10522, %v10648
    %v10685 = vmul.f32 %v10523, %v10649
    %v10686 = vmul.f32 %v10524, %v10650
    %v10687 = vmul.f32 %v10525, %v10642
    %v10688 = vmul.f32 %v10526, %v10643
    %v10689 = vmul.f32 %v10527, %v10644
    %v10690 = vmul.f32 %v10528, %v10645
    %v10691 = vmul.f32 %v10529, %v10646
    %v10692 = vmul.f32 %v10530, %v10647
    %v10693 = vmul.f32 %v10531, %v10648
    %v10694 = vmul.f32 %v10532, %v10649
    %v10695 = vmul.f32 %v10533, %v10650
    %v10696 = vmul.f32 %v10534, %v10642
    %v10697 = vmul.f32 %v10535, %v10643
    %v10698 = vmul.f32 %v10536, %v10644
    %v10699 = vmul.f32 %v10537, %v10645
    %v10700 = vmul.f32 %v10538, %v10646
    %v10701 = vmul.f32 %v10539, %v10647
    %v10702 = vmul.f32 %v10540, %v10648
    %v10703 = vmul.f32 %v10541, %v10649
    %v10704 = vmul.f32 %v10542, %v10650
    %v10705 = vmul.f32 %v10543, %v10642
    %v10706 = vmul.f32 %v10544, %v10643
    %v10707 = vmul.f32 %v10545, %v10644
    %v10708 = vmul.f32 %v10546, %v10645
    %v10709 = vmul.f32 %v10547, %v10646
    %v10710 = vmul.f32 %v10548, %v10647
    %v10711 = vmul.f32 %v10549, %v10648
    %v10712 = vmul.f32 %v10550, %v10649
    %v10713 = vmul.f32 %v10551, %v10650
    %v10714 = vmul.f32 %v10552, %v10642
    %v10715 = vmul.f32 %v10553, %v10643
    %v10716 = vmul.f32 %v10554, %v10644
    %v10717 = vmul.f32 %v10555, %v10645
    %v10718 = vmul.f32 %v10556, %v10646
    %v10719 = vmul.f32 %v10557, %v10647
    %v10720 = vmul.f32 %v10558, %v10648
    %v10721 = vmul.f32 %v10559, %v10649
    %v10722 = vmul.f32 %v10560, %v10650
    %v10723 = vmul.f32 %v10561, %v10642
    %v10724 = vmul.f32 %v10562, %v10643
    %v10725 = vmul.f32 %v10563, %v10644
    %v10726 = vmul.f32 %v10564, %v10645
    %v10727 = vmul.f32 %v10565, %v10646
    %v10728 = vmul.f32 %v10566, %v10647
    %v10729 = vmul.f32 %v10567, %v10648
    %v10730 = vmul.f32 %v10568, %v10649
    %v10731 = vmul.f32 %v10569, %v10650
    %v10732 = vmul.f32 %v10570, %v10642
    %v10733 = vmul.f32 %v10571, %v10643
    %v10734 = vmul.f32 %v10572, %v10644
    %v10735 = vmul.f32 %v10573, %v10645
    %v10736 = vmul.f32 %v10574, %v10646
    %v10737 = vmul.f32 %v10575, %v10647
    %v10738 = vmul.f32 %v10576, %v10648
    %v10739 = vmul.f32 %v10577, %v10649
    %v10740 = vmul.f32 %v10578, %v10650
    %v10741 = vmul.f32 %v10579, %v10642
    %v10742 = vmul.f32 %v10580, %v10643
    %v10743 = vmul.f32 %v10581, %v10644
    %v10744 = vmul.f32 %v10582, %v10645
    %v10745 = vmul.f32 %v10583, %v10646
    %v10746 = vmul.f32 %v10584, %v10647
    %v10747 = vmul.f32 %v10585, %v10648
    %v10748 = vmul.f32 %v10586, %v10649
    %v10749 = vmul.f32 %v10587, %v10650
    %v10750 = vmul.f32 %v10588, %v10642
    %v10751 = vmul.f32 %v10589, %v10643
    %v10752 = vmul.f32 %v10590, %v10644
    %v10753 = vmul.f32 %v10591, %v10645
    %v10754 = vmul.f32 %v10592, %v10646
    %v10755 = vmul.f32 %v10593, %v10647
    %v10756 = vmul.f32 %v10594, %v10648
    %v10757 = vmul.f32 %v10595, %v10649
    %v10758 = vmul.f32 %v10596, %v10650
    %v10759 = vmul.f32 %v10597, %v10642
    %v10760 = vmul.f32 %v10598, %v10643
    %v10761 = vmul.f32 %v10599, %v10644
    %v10762 = vmul.f32 %v10600, %v10645
    %v10763 = vmul.f32 %v10601, %v10646
    %v10764 = vmul.f32 %v10602, %v10647
    %v10765 = vmul.f32 %v10603, %v10648
    %v10766 = vmul.f32 %v10604, %v10649
    %v10767 = vmul.f32 %v10605, %v10650
    %v10768 = vmul.f32 %v10606, %v10642
    %v10769 = vmul.f32 %v10607, %v10643
    %v10770 = vmul.f32 %v10608, %v10644
    %v10771 = vmul.f32 %v10609, %v10645
    %v10772 = vmul.f32 %v10610, %v10646
    %v10773 = vmul.f32 %v10611, %v10647
    %v10774 = vmul.f32 %v10612, %v10648
    %v10775 = vmul.f32 %v10613, %v10649
    %v10776 = vmul.f32 %v10614, %v10650
    %v10777 = vmul.f32 %v10615, %v10642
    %v10778 = vmul.f32 %v10616, %v10643
    %v10779 = vmul.f32 %v10617, %v10644
    %v10780 = vmul.f32 %v10618, %v10645
    %v10781 = vmul.f32 %v10619, %v10646
    %v10782 = vmul.f32 %v10620, %v10647
    %v10783 = vmul.f32 %v10621, %v10648
    %v10784 = vmul.f32 %v10622, %v10649
    %v10785 = vmul.f32 %v10623, %v10650
    %v10786 = vmul.f32 %v10624, %v10642
    %v10787 = vmul.f32 %v10625, %v10643
    %v10788 = vmul.f32 %v10626, %v10644
    %v10789 = vmul.f32 %v10627, %v10645
    %v10790 = vmul.f32 %v10628, %v10646
    %v10791 = vmul.f32 %v10629, %v10647
    %v10792 = vmul.f32 %v10630, %v10648
    %v10793 = vmul.f32 %v10631, %v10649
    %v10794 = vmul.f32 %v10632, %v10650
    %v10795 = vld [vmem:[%s12] sm:$0xff]
    %v10796 = vld [vmem:[%s12 + $0x8] sm:$0x1]
    %v10799 = vlaneseq
    %v10800 = vshrl.u32 %v10799, 7
    %v10801 = vsub.s32 0, %v10800
    %v10802 = vrot.slane %v10795, %v10801
    %v10803 = vlaneseq
    %v10804 = vshrl.u32 %v10803, 7
    %v10805 = vsub.s32 1, %v10804
    %v10806 = vrot.slane %v10795, %v10805
    %v10807 = vlaneseq
    %v10808 = vshrl.u32 %v10807, 7
    %v10809 = vsub.s32 2, %v10808
    %v10810 = vrot.slane %v10795, %v10809
    %v10811 = vlaneseq
    %v10812 = vshrl.u32 %v10811, 7
    %v10813 = vsub.s32 3, %v10812
    %v10814 = vrot.slane %v10795, %v10813
    %v10815 = vlaneseq
    %v10816 = vshrl.u32 %v10815, 7
    %v10817 = vsub.s32 4, %v10816
    %v10818 = vrot.slane %v10795, %v10817
    %v10819 = vlaneseq
    %v10820 = vshrl.u32 %v10819, 7
    %v10821 = vsub.s32 5, %v10820
    %v10822 = vrot.slane %v10795, %v10821
    %v10823 = vlaneseq
    %v10824 = vshrl.u32 %v10823, 7
    %v10825 = vsub.s32 6, %v10824
    %v10826 = vrot.slane %v10795, %v10825
    %v10827 = vlaneseq
    %v10828 = vshrl.u32 %v10827, 7
    %v10829 = vsub.s32 7, %v10828
    %v10830 = vrot.slane %v10795, %v10829
    %v10831 = vlaneseq
    %v10832 = vshrl.u32 %v10831, 7
    %v10833 = vsub.s32 0, %v10832
    %v10834 = vrot.slane %v10796, %v10833
    %v10844 = vmul.f32 %v10651, %v10802
    %v10845 = vmul.f32 %v10652, %v10806
    %v10846 = vmul.f32 %v10653, %v10810
    %v10847 = vmul.f32 %v10654, %v10814
    %v10848 = vmul.f32 %v10655, %v10818
    %v10849 = vmul.f32 %v10656, %v10822
    %v10850 = vmul.f32 %v10657, %v10826
    %v10851 = vmul.f32 %v10658, %v10830
    %v10852 = vmul.f32 %v10659, %v10834
    %v10853 = vmul.f32 %v10660, %v10802
    %v10854 = vmul.f32 %v10661, %v10806
    %v10855 = vmul.f32 %v10662, %v10810
    %v10856 = vmul.f32 %v10663, %v10814
    %v10857 = vmul.f32 %v10664, %v10818
    %v10858 = vmul.f32 %v10665, %v10822
    %v10859 = vmul.f32 %v10666, %v10826
    %v10860 = vmul.f32 %v10667, %v10830
    %v10861 = vmul.f32 %v10668, %v10834
    %v10862 = vmul.f32 %v10669, %v10802
    %v10863 = vmul.f32 %v10670, %v10806
    %v10864 = vmul.f32 %v10671, %v10810
    %v10865 = vmul.f32 %v10672, %v10814
    %v10866 = vmul.f32 %v10673, %v10818
    %v10867 = vmul.f32 %v10674, %v10822
    %v10868 = vmul.f32 %v10675, %v10826
    %v10869 = vmul.f32 %v10676, %v10830
    %v10870 = vmul.f32 %v10677, %v10834
    %v10871 = vmul.f32 %v10678, %v10802
    %v10872 = vmul.f32 %v10679, %v10806
    %v10873 = vmul.f32 %v10680, %v10810
    %v10874 = vmul.f32 %v10681, %v10814
    %v10875 = vmul.f32 %v10682, %v10818
    %v10876 = vmul.f32 %v10683, %v10822
    %v10877 = vmul.f32 %v10684, %v10826
    %v10878 = vmul.f32 %v10685, %v10830
    %v10879 = vmul.f32 %v10686, %v10834
    %v10880 = vmul.f32 %v10687, %v10802
    %v10881 = vmul.f32 %v10688, %v10806
    %v10882 = vmul.f32 %v10689, %v10810
    %v10883 = vmul.f32 %v10690, %v10814
    %v10884 = vmul.f32 %v10691, %v10818
    %v10885 = vmul.f32 %v10692, %v10822
    %v10886 = vmul.f32 %v10693, %v10826
    %v10887 = vmul.f32 %v10694, %v10830
    %v10888 = vmul.f32 %v10695, %v10834
    %v10889 = vmul.f32 %v10696, %v10802
    %v10890 = vmul.f32 %v10697, %v10806
    %v10891 = vmul.f32 %v10698, %v10810
    %v10892 = vmul.f32 %v10699, %v10814
    %v10893 = vmul.f32 %v10700, %v10818
    %v10894 = vmul.f32 %v10701, %v10822
    %v10895 = vmul.f32 %v10702, %v10826
    %v10896 = vmul.f32 %v10703, %v10830
    %v10897 = vmul.f32 %v10704, %v10834
    %v10898 = vmul.f32 %v10705, %v10802
    %v10899 = vmul.f32 %v10706, %v10806
    %v10900 = vmul.f32 %v10707, %v10810
    %v10901 = vmul.f32 %v10708, %v10814
    %v10902 = vmul.f32 %v10709, %v10818
    %v10903 = vmul.f32 %v10710, %v10822
    %v10904 = vmul.f32 %v10711, %v10826
    %v10905 = vmul.f32 %v10712, %v10830
    %v10906 = vmul.f32 %v10713, %v10834
    %v10907 = vmul.f32 %v10714, %v10802
    %v10908 = vmul.f32 %v10715, %v10806
    %v10909 = vmul.f32 %v10716, %v10810
    %v10910 = vmul.f32 %v10717, %v10814
    %v10911 = vmul.f32 %v10718, %v10818
    %v10912 = vmul.f32 %v10719, %v10822
    %v10913 = vmul.f32 %v10720, %v10826
    %v10914 = vmul.f32 %v10721, %v10830
    %v10915 = vmul.f32 %v10722, %v10834
    %v10916 = vmul.f32 %v10723, %v10802
    %v10917 = vmul.f32 %v10724, %v10806
    %v10918 = vmul.f32 %v10725, %v10810
    %v10919 = vmul.f32 %v10726, %v10814
    %v10920 = vmul.f32 %v10727, %v10818
    %v10921 = vmul.f32 %v10728, %v10822
    %v10922 = vmul.f32 %v10729, %v10826
    %v10923 = vmul.f32 %v10730, %v10830
    %v10924 = vmul.f32 %v10731, %v10834
    %v10925 = vmul.f32 %v10732, %v10802
    %v10926 = vmul.f32 %v10733, %v10806
    %v10927 = vmul.f32 %v10734, %v10810
    %v10928 = vmul.f32 %v10735, %v10814
    %v10929 = vmul.f32 %v10736, %v10818
    %v10930 = vmul.f32 %v10737, %v10822
    %v10931 = vmul.f32 %v10738, %v10826
    %v10932 = vmul.f32 %v10739, %v10830
    %v10933 = vmul.f32 %v10740, %v10834
    %v10934 = vmul.f32 %v10741, %v10802
    %v10935 = vmul.f32 %v10742, %v10806
    %v10936 = vmul.f32 %v10743, %v10810
    %v10937 = vmul.f32 %v10744, %v10814
    %v10938 = vmul.f32 %v10745, %v10818
    %v10939 = vmul.f32 %v10746, %v10822
    %v10940 = vmul.f32 %v10747, %v10826
    %v10941 = vmul.f32 %v10748, %v10830
    %v10942 = vmul.f32 %v10749, %v10834
    %v10943 = vmul.f32 %v10750, %v10802
    %v10944 = vmul.f32 %v10751, %v10806
    %v10945 = vmul.f32 %v10752, %v10810
    %v10946 = vmul.f32 %v10753, %v10814
    %v10947 = vmul.f32 %v10754, %v10818
    %v10948 = vmul.f32 %v10755, %v10822
    %v10949 = vmul.f32 %v10756, %v10826
    %v10950 = vmul.f32 %v10757, %v10830
    %v10951 = vmul.f32 %v10758, %v10834
    %v10952 = vmul.f32 %v10759, %v10802
    %v10953 = vmul.f32 %v10760, %v10806
    %v10954 = vmul.f32 %v10761, %v10810
    %v10955 = vmul.f32 %v10762, %v10814
    %v10956 = vmul.f32 %v10763, %v10818
    %v10957 = vmul.f32 %v10764, %v10822
    %v10958 = vmul.f32 %v10765, %v10826
    %v10959 = vmul.f32 %v10766, %v10830
    %v10960 = vmul.f32 %v10767, %v10834
    %v10961 = vmul.f32 %v10768, %v10802
    %v10962 = vmul.f32 %v10769, %v10806
    %v10963 = vmul.f32 %v10770, %v10810
    %v10964 = vmul.f32 %v10771, %v10814
    %v10965 = vmul.f32 %v10772, %v10818
    %v10966 = vmul.f32 %v10773, %v10822
    %v10967 = vmul.f32 %v10774, %v10826
    %v10968 = vmul.f32 %v10775, %v10830
    %v10969 = vmul.f32 %v10776, %v10834
    %v10970 = vmul.f32 %v10777, %v10802
    %v10971 = vmul.f32 %v10778, %v10806
    %v10972 = vmul.f32 %v10779, %v10810
    %v10973 = vmul.f32 %v10780, %v10814
    %v10974 = vmul.f32 %v10781, %v10818
    %v10975 = vmul.f32 %v10782, %v10822
    %v10976 = vmul.f32 %v10783, %v10826
    %v10977 = vmul.f32 %v10784, %v10830
    %v10978 = vmul.f32 %v10785, %v10834
    %v10979 = vmul.f32 %v10786, %v10802
    %v10980 = vmul.f32 %v10787, %v10806
    %v10981 = vmul.f32 %v10788, %v10810
    %v10982 = vmul.f32 %v10789, %v10814
    %v10983 = vmul.f32 %v10790, %v10818
    %v10984 = vmul.f32 %v10791, %v10822
    %v10985 = vmul.f32 %v10792, %v10826
    %v10986 = vmul.f32 %v10793, %v10830
    %v10987 = vmul.f32 %v10794, %v10834
    %v10988 = vld [vmem:[%s13] sm:$0xff]
    %v10989 = vld [vmem:[%s13 + $0x8] sm:$0x1]
    %v10992 = vlaneseq
    %v10993 = vshrl.u32 %v10992, 7
    %v10994 = vsub.s32 0, %v10993
    %v10995 = vrot.slane %v10988, %v10994
    %v10996 = vlaneseq
    %v10997 = vshrl.u32 %v10996, 7
    %v10998 = vsub.s32 1, %v10997
    %v10999 = vrot.slane %v10988, %v10998
    %v11000 = vlaneseq
    %v11001 = vshrl.u32 %v11000, 7
    %v11002 = vsub.s32 2, %v11001
    %v11003 = vrot.slane %v10988, %v11002
    %v11004 = vlaneseq
    %v11005 = vshrl.u32 %v11004, 7
    %v11006 = vsub.s32 3, %v11005
    %v11007 = vrot.slane %v10988, %v11006
    %v11008 = vlaneseq
    %v11009 = vshrl.u32 %v11008, 7
    %v11010 = vsub.s32 4, %v11009
    %v11011 = vrot.slane %v10988, %v11010
    %v11012 = vlaneseq
    %v11013 = vshrl.u32 %v11012, 7
    %v11014 = vsub.s32 5, %v11013
    %v11015 = vrot.slane %v10988, %v11014
    %v11016 = vlaneseq
    %v11017 = vshrl.u32 %v11016, 7
    %v11018 = vsub.s32 6, %v11017
    %v11019 = vrot.slane %v10988, %v11018
    %v11020 = vlaneseq
    %v11021 = vshrl.u32 %v11020, 7
    %v11022 = vsub.s32 7, %v11021
    %v11023 = vrot.slane %v10988, %v11022
    %v11024 = vlaneseq
    %v11025 = vshrl.u32 %v11024, 7
    %v11026 = vsub.s32 0, %v11025
    %v11027 = vrot.slane %v10989, %v11026
    %v11037 = vadd.f32 %v10844, %v10995
    %v11038 = vadd.f32 %v10845, %v10999
    %v11039 = vadd.f32 %v10846, %v11003
    %v11040 = vadd.f32 %v10847, %v11007
    %v11041 = vadd.f32 %v10848, %v11011
    %v11042 = vadd.f32 %v10849, %v11015
    %v11043 = vadd.f32 %v10850, %v11019
    %v11044 = vadd.f32 %v10851, %v11023
    %v11045 = vadd.f32 %v10852, %v11027
    %v11046 = vadd.f32 %v10853, %v10995
    %v11047 = vadd.f32 %v10854, %v10999
    %v11048 = vadd.f32 %v10855, %v11003
    %v11049 = vadd.f32 %v10856, %v11007
    %v11050 = vadd.f32 %v10857, %v11011
    %v11051 = vadd.f32 %v10858, %v11015
    %v11052 = vadd.f32 %v10859, %v11019
    %v11053 = vadd.f32 %v10860, %v11023
    %v11054 = vadd.f32 %v10861, %v11027
    %v11055 = vadd.f32 %v10862, %v10995
    %v11056 = vadd.f32 %v10863, %v10999
    %v11057 = vadd.f32 %v10864, %v11003
    %v11058 = vadd.f32 %v10865, %v11007
    %v11059 = vadd.f32 %v10866, %v11011
    %v11060 = vadd.f32 %v10867, %v11015
    %v11061 = vadd.f32 %v10868, %v11019
    %v11062 = vadd.f32 %v10869, %v11023
    %v11063 = vadd.f32 %v10870, %v11027
    %v11064 = vadd.f32 %v10871, %v10995
    %v11065 = vadd.f32 %v10872, %v10999
    %v11066 = vadd.f32 %v10873, %v11003
    %v11067 = vadd.f32 %v10874, %v11007
    %v11068 = vadd.f32 %v10875, %v11011
    %v11069 = vadd.f32 %v10876, %v11015
    %v11070 = vadd.f32 %v10877, %v11019
    %v11071 = vadd.f32 %v10878, %v11023
    %v11072 = vadd.f32 %v10879, %v11027
    %v11073 = vadd.f32 %v10880, %v10995
    %v11074 = vadd.f32 %v10881, %v10999
    %v11075 = vadd.f32 %v10882, %v11003
    %v11076 = vadd.f32 %v10883, %v11007
    %v11077 = vadd.f32 %v10884, %v11011
    %v11078 = vadd.f32 %v10885, %v11015
    %v11079 = vadd.f32 %v10886, %v11019
    %v11080 = vadd.f32 %v10887, %v11023
    %v11081 = vadd.f32 %v10888, %v11027
    %v11082 = vadd.f32 %v10889, %v10995
    %v11083 = vadd.f32 %v10890, %v10999
    %v11084 = vadd.f32 %v10891, %v11003
    %v11085 = vadd.f32 %v10892, %v11007
    %v11086 = vadd.f32 %v10893, %v11011
    %v11087 = vadd.f32 %v10894, %v11015
    %v11088 = vadd.f32 %v10895, %v11019
    %v11089 = vadd.f32 %v10896, %v11023
    %v11090 = vadd.f32 %v10897, %v11027
    %v11091 = vadd.f32 %v10898, %v10995
    %v11092 = vadd.f32 %v10899, %v10999
    %v11093 = vadd.f32 %v10900, %v11003
    %v11094 = vadd.f32 %v10901, %v11007
    %v11095 = vadd.f32 %v10902, %v11011
    %v11096 = vadd.f32 %v10903, %v11015
    %v11097 = vadd.f32 %v10904, %v11019
    %v11098 = vadd.f32 %v10905, %v11023
    %v11099 = vadd.f32 %v10906, %v11027
    %v11100 = vadd.f32 %v10907, %v10995
    %v11101 = vadd.f32 %v10908, %v10999
    %v11102 = vadd.f32 %v10909, %v11003
    %v11103 = vadd.f32 %v10910, %v11007
    %v11104 = vadd.f32 %v10911, %v11011
    %v11105 = vadd.f32 %v10912, %v11015
    %v11106 = vadd.f32 %v10913, %v11019
    %v11107 = vadd.f32 %v10914, %v11023
    %v11108 = vadd.f32 %v10915, %v11027
    %v11109 = vadd.f32 %v10916, %v10995
    %v11110 = vadd.f32 %v10917, %v10999
    %v11111 = vadd.f32 %v10918, %v11003
    %v11112 = vadd.f32 %v10919, %v11007
    %v11113 = vadd.f32 %v10920, %v11011
    %v11114 = vadd.f32 %v10921, %v11015
    %v11115 = vadd.f32 %v10922, %v11019
    %v11116 = vadd.f32 %v10923, %v11023
    %v11117 = vadd.f32 %v10924, %v11027
    %v11118 = vadd.f32 %v10925, %v10995
    %v11119 = vadd.f32 %v10926, %v10999
    %v11120 = vadd.f32 %v10927, %v11003
    %v11121 = vadd.f32 %v10928, %v11007
    %v11122 = vadd.f32 %v10929, %v11011
    %v11123 = vadd.f32 %v10930, %v11015
    %v11124 = vadd.f32 %v10931, %v11019
    %v11125 = vadd.f32 %v10932, %v11023
    %v11126 = vadd.f32 %v10933, %v11027
    %v11127 = vadd.f32 %v10934, %v10995
    %v11128 = vadd.f32 %v10935, %v10999
    %v11129 = vadd.f32 %v10936, %v11003
    %v11130 = vadd.f32 %v10937, %v11007
    %v11131 = vadd.f32 %v10938, %v11011
    %v11132 = vadd.f32 %v10939, %v11015
    %v11133 = vadd.f32 %v10940, %v11019
    %v11134 = vadd.f32 %v10941, %v11023
    %v11135 = vadd.f32 %v10942, %v11027
    %v11136 = vadd.f32 %v10943, %v10995
    %v11137 = vadd.f32 %v10944, %v10999
    %v11138 = vadd.f32 %v10945, %v11003
    %v11139 = vadd.f32 %v10946, %v11007
    %v11140 = vadd.f32 %v10947, %v11011
    %v11141 = vadd.f32 %v10948, %v11015
    %v11142 = vadd.f32 %v10949, %v11019
    %v11143 = vadd.f32 %v10950, %v11023
    %v11144 = vadd.f32 %v10951, %v11027
    %v11145 = vadd.f32 %v10952, %v10995
    %v11146 = vadd.f32 %v10953, %v10999
    %v11147 = vadd.f32 %v10954, %v11003
    %v11148 = vadd.f32 %v10955, %v11007
    %v11149 = vadd.f32 %v10956, %v11011
    %v11150 = vadd.f32 %v10957, %v11015
    %v11151 = vadd.f32 %v10958, %v11019
    %v11152 = vadd.f32 %v10959, %v11023
    %v11153 = vadd.f32 %v10960, %v11027
    %v11154 = vadd.f32 %v10961, %v10995
    %v11155 = vadd.f32 %v10962, %v10999
    %v11156 = vadd.f32 %v10963, %v11003
    %v11157 = vadd.f32 %v10964, %v11007
    %v11158 = vadd.f32 %v10965, %v11011
    %v11159 = vadd.f32 %v10966, %v11015
    %v11160 = vadd.f32 %v10967, %v11019
    %v11161 = vadd.f32 %v10968, %v11023
    %v11162 = vadd.f32 %v10969, %v11027
    %v11163 = vadd.f32 %v10970, %v10995
    %v11164 = vadd.f32 %v10971, %v10999
    %v11165 = vadd.f32 %v10972, %v11003
    %v11166 = vadd.f32 %v10973, %v11007
    %v11167 = vadd.f32 %v10974, %v11011
    %v11168 = vadd.f32 %v10975, %v11015
    %v11169 = vadd.f32 %v10976, %v11019
    %v11170 = vadd.f32 %v10977, %v11023
    %v11171 = vadd.f32 %v10978, %v11027
    %v11172 = vadd.f32 %v10979, %v10995
    %v11173 = vadd.f32 %v10980, %v10999
    %v11174 = vadd.f32 %v10981, %v11003
    %v11175 = vadd.f32 %v10982, %v11007
    %v11176 = vadd.f32 %v10983, %v11011
    %v11177 = vadd.f32 %v10984, %v11015
    %v11178 = vadd.f32 %v10985, %v11019
    %v11179 = vadd.f32 %v10986, %v11023
    %v11180 = vadd.f32 %v10987, %v11027
    %v11181 = vmax.f32 %v11037, 0.0
    %v11182 = vmax.f32 %v11038, 0.0
    %v11183 = vmax.f32 %v11039, 0.0
    %v11184 = vmax.f32 %v11040, 0.0
    %v11185 = vmax.f32 %v11041, 0.0
    %v11186 = vmax.f32 %v11042, 0.0
    %v11187 = vmax.f32 %v11043, 0.0
    %v11188 = vmax.f32 %v11044, 0.0
    %v11189 = vmax.f32 %v11045, 0.0
    %v11190 = vmax.f32 %v11046, 0.0
    %v11191 = vmax.f32 %v11047, 0.0
    %v11192 = vmax.f32 %v11048, 0.0
    %v11193 = vmax.f32 %v11049, 0.0
    %v11194 = vmax.f32 %v11050, 0.0
    %v11195 = vmax.f32 %v11051, 0.0
    %v11196 = vmax.f32 %v11052, 0.0
    %v11197 = vmax.f32 %v11053, 0.0
    %v11198 = vmax.f32 %v11054, 0.0
    %v11199 = vmax.f32 %v11055, 0.0
    %v11200 = vmax.f32 %v11056, 0.0
    %v11201 = vmax.f32 %v11057, 0.0
    %v11202 = vmax.f32 %v11058, 0.0
    %v11203 = vmax.f32 %v11059, 0.0
    %v11204 = vmax.f32 %v11060, 0.0
    %v11205 = vmax.f32 %v11061, 0.0
    %v11206 = vmax.f32 %v11062, 0.0
    %v11207 = vmax.f32 %v11063, 0.0
    %v11208 = vmax.f32 %v11064, 0.0
    %v11209 = vmax.f32 %v11065, 0.0
    %v11210 = vmax.f32 %v11066, 0.0
    %v11211 = vmax.f32 %v11067, 0.0
    %v11212 = vmax.f32 %v11068, 0.0
    %v11213 = vmax.f32 %v11069, 0.0
    %v11214 = vmax.f32 %v11070, 0.0
    %v11215 = vmax.f32 %v11071, 0.0
    %v11216 = vmax.f32 %v11072, 0.0
    %v11217 = vmax.f32 %v11073, 0.0
    %v11218 = vmax.f32 %v11074, 0.0
    %v11219 = vmax.f32 %v11075, 0.0
    %v11220 = vmax.f32 %v11076, 0.0
    %v11221 = vmax.f32 %v11077, 0.0
    %v11222 = vmax.f32 %v11078, 0.0
    %v11223 = vmax.f32 %v11079, 0.0
    %v11224 = vmax.f32 %v11080, 0.0
    %v11225 = vmax.f32 %v11081, 0.0
    %v11226 = vmax.f32 %v11082, 0.0
    %v11227 = vmax.f32 %v11083, 0.0
    %v11228 = vmax.f32 %v11084, 0.0
    %v11229 = vmax.f32 %v11085, 0.0
    %v11230 = vmax.f32 %v11086, 0.0
    %v11231 = vmax.f32 %v11087, 0.0
    %v11232 = vmax.f32 %v11088, 0.0
    %v11233 = vmax.f32 %v11089, 0.0
    %v11234 = vmax.f32 %v11090, 0.0
    %v11235 = vmax.f32 %v11091, 0.0
    %v11236 = vmax.f32 %v11092, 0.0
    %v11237 = vmax.f32 %v11093, 0.0
    %v11238 = vmax.f32 %v11094, 0.0
    %v11239 = vmax.f32 %v11095, 0.0
    %v11240 = vmax.f32 %v11096, 0.0
    %v11241 = vmax.f32 %v11097, 0.0
    %v11242 = vmax.f32 %v11098, 0.0
    %v11243 = vmax.f32 %v11099, 0.0
    %v11244 = vmax.f32 %v11100, 0.0
    %v11245 = vmax.f32 %v11101, 0.0
    %v11246 = vmax.f32 %v11102, 0.0
    %v11247 = vmax.f32 %v11103, 0.0
    %v11248 = vmax.f32 %v11104, 0.0
    %v11249 = vmax.f32 %v11105, 0.0
    %v11250 = vmax.f32 %v11106, 0.0
    %v11251 = vmax.f32 %v11107, 0.0
    %v11252 = vmax.f32 %v11108, 0.0
    %v11253 = vmax.f32 %v11109, 0.0
    %v11254 = vmax.f32 %v11110, 0.0
    %v11255 = vmax.f32 %v11111, 0.0
    %v11256 = vmax.f32 %v11112, 0.0
    %v11257 = vmax.f32 %v11113, 0.0
    %v11258 = vmax.f32 %v11114, 0.0
    %v11259 = vmax.f32 %v11115, 0.0
    %v11260 = vmax.f32 %v11116, 0.0
    %v11261 = vmax.f32 %v11117, 0.0
    %v11262 = vmax.f32 %v11118, 0.0
    %v11263 = vmax.f32 %v11119, 0.0
    %v11264 = vmax.f32 %v11120, 0.0
    %v11265 = vmax.f32 %v11121, 0.0
    %v11266 = vmax.f32 %v11122, 0.0
    %v11267 = vmax.f32 %v11123, 0.0
    %v11268 = vmax.f32 %v11124, 0.0
    %v11269 = vmax.f32 %v11125, 0.0
    %v11270 = vmax.f32 %v11126, 0.0
    %v11271 = vmax.f32 %v11127, 0.0
    %v11272 = vmax.f32 %v11128, 0.0
    %v11273 = vmax.f32 %v11129, 0.0
    %v11274 = vmax.f32 %v11130, 0.0
    %v11275 = vmax.f32 %v11131, 0.0
    %v11276 = vmax.f32 %v11132, 0.0
    %v11277 = vmax.f32 %v11133, 0.0
    %v11278 = vmax.f32 %v11134, 0.0
    %v11279 = vmax.f32 %v11135, 0.0
    %v11280 = vmax.f32 %v11136, 0.0
    %v11281 = vmax.f32 %v11137, 0.0
    %v11282 = vmax.f32 %v11138, 0.0
    %v11283 = vmax.f32 %v11139, 0.0
    %v11284 = vmax.f32 %v11140, 0.0
    %v11285 = vmax.f32 %v11141, 0.0
    %v11286 = vmax.f32 %v11142, 0.0
    %v11287 = vmax.f32 %v11143, 0.0
    %v11288 = vmax.f32 %v11144, 0.0
    %v11289 = vmax.f32 %v11145, 0.0
    %v11290 = vmax.f32 %v11146, 0.0
    %v11291 = vmax.f32 %v11147, 0.0
    %v11292 = vmax.f32 %v11148, 0.0
    %v11293 = vmax.f32 %v11149, 0.0
    %v11294 = vmax.f32 %v11150, 0.0
    %v11295 = vmax.f32 %v11151, 0.0
    %v11296 = vmax.f32 %v11152, 0.0
    %v11297 = vmax.f32 %v11153, 0.0
    %v11298 = vmax.f32 %v11154, 0.0
    %v11299 = vmax.f32 %v11155, 0.0
    %v11300 = vmax.f32 %v11156, 0.0
    %v11301 = vmax.f32 %v11157, 0.0
    %v11302 = vmax.f32 %v11158, 0.0
    %v11303 = vmax.f32 %v11159, 0.0
    %v11304 = vmax.f32 %v11160, 0.0
    %v11305 = vmax.f32 %v11161, 0.0
    %v11306 = vmax.f32 %v11162, 0.0
    %v11307 = vmax.f32 %v11163, 0.0
    %v11308 = vmax.f32 %v11164, 0.0
    %v11309 = vmax.f32 %v11165, 0.0
    %v11310 = vmax.f32 %v11166, 0.0
    %v11311 = vmax.f32 %v11167, 0.0
    %v11312 = vmax.f32 %v11168, 0.0
    %v11313 = vmax.f32 %v11169, 0.0
    %v11314 = vmax.f32 %v11170, 0.0
    %v11315 = vmax.f32 %v11171, 0.0
    %v11316 = vmax.f32 %v11172, 0.0
    %v11317 = vmax.f32 %v11173, 0.0
    %v11318 = vmax.f32 %v11174, 0.0
    %v11319 = vmax.f32 %v11175, 0.0
    %v11320 = vmax.f32 %v11176, 0.0
    %v11321 = vmax.f32 %v11177, 0.0
    %v11322 = vmax.f32 %v11178, 0.0
    %v11323 = vmax.f32 %v11179, 0.0
    %v11324 = vmax.f32 %v11180, 0.0
    %11325 = vst [vmem:[#allocation3] sm:$0xff] %v11181
    %11326 = vst [vmem:[#allocation3 + $0x8] sm:$0xff] %v11182
    %11327 = vst [vmem:[#allocation3 + $0x10] sm:$0xff] %v11183
    %11328 = vst [vmem:[#allocation3 + $0x18] sm:$0xff] %v11184
    %11329 = vst [vmem:[#allocation3 + $0x20] sm:$0xff] %v11185
    %11330 = vst [vmem:[#allocation3 + $0x28] sm:$0xff] %v11186
    %11331 = vst [vmem:[#allocation3 + $0x30] sm:$0xff] %v11187
    %11332 = vst [vmem:[#allocation3 + $0x38] sm:$0xff] %v11188
    %11333 = vst.msk [vmem:[#allocation3 + $0x40] sm:$0xff] %vm1317, %v11189
    %11334 = vst [vmem:[#allocation3 + $0x48] sm:$0xff] %v11190
    %11335 = vst [vmem:[#allocation3 + $0x50] sm:$0xff] %v11191
    %11336 = vst [vmem:[#allocation3 + $0x58] sm:$0xff] %v11192
    %11337 = vst [vmem:[#allocation3 + $0x60] sm:$0xff] %v11193
    %11338 = vst [vmem:[#allocation3 + $0x68] sm:$0xff] %v11194
    %11339 = vst [vmem:[#allocation3 + $0x70] sm:$0xff] %v11195
    %11340 = vst [vmem:[#allocation3 + $0x78] sm:$0xff] %v11196
    %11341 = vst [vmem:[#allocation3 + $0x80] sm:$0xff] %v11197
    %11342 = vst.msk [vmem:[#allocation3 + $0x88] sm:$0xff] %vm1317, %v11198
    %11343 = vst [vmem:[#allocation3 + $0x90] sm:$0xff] %v11199
    %11344 = vst [vmem:[#allocation3 + $0x98] sm:$0xff] %v11200
    %11345 = vst [vmem:[#allocation3 + $0xa0] sm:$0xff] %v11201
    %11346 = vst [vmem:[#allocation3 + $0xa8] sm:$0xff] %v11202
    %11347 = vst [vmem:[#allocation3 + $0xb0] sm:$0xff] %v11203
    %11348 = vst [vmem:[#allocation3 + $0xb8] sm:$0xff] %v11204
    %11349 = vst [vmem:[#allocation3 + $0xc0] sm:$0xff] %v11205
    %11350 = vst [vmem:[#allocation3 + $0xc8] sm:$0xff] %v11206
    %11351 = vst.msk [vmem:[#allocation3 + $0xd0] sm:$0xff] %vm1317, %v11207
    %11352 = vst [vmem:[#allocation3 + $0xd8] sm:$0xff] %v11208
    %11353 = vst [vmem:[#allocation3 + $0xe0] sm:$0xff] %v11209
    %11354 = vst [vmem:[#allocation3 + $0xe8] sm:$0xff] %v11210
    %11355 = vst [vmem:[#allocation3 + $0xf0] sm:$0xff] %v11211
    %11356 = vst [vmem:[#allocation3 + $0xf8] sm:$0xff] %v11212
    %11357 = vst [vmem:[#allocation3 + $0x100] sm:$0xff] %v11213
    %11358 = vst [vmem:[#allocation3 + $0x108] sm:$0xff] %v11214
    %11359 = vst [vmem:[#allocation3 + $0x110] sm:$0xff] %v11215
    %11360 = vst.msk [vmem:[#allocation3 + $0x118] sm:$0xff] %vm1317, %v11216
    %11361 = vst [vmem:[#allocation3 + $0x120] sm:$0xff] %v11217
    %11362 = vst [vmem:[#allocation3 + $0x128] sm:$0xff] %v11218
    %11363 = vst [vmem:[#allocation3 + $0x130] sm:$0xff] %v11219
    %11364 = vst [vmem:[#allocation3 + $0x138] sm:$0xff] %v11220
    %11365 = vst [vmem:[#allocation3 + $0x140] sm:$0xff] %v11221
    %11366 = vst [vmem:[#allocation3 + $0x148] sm:$0xff] %v11222
    %11367 = vst [vmem:[#allocation3 + $0x150] sm:$0xff] %v11223
    %11368 = vst [vmem:[#allocation3 + $0x158] sm:$0xff] %v11224
    %11369 = vst.msk [vmem:[#allocation3 + $0x160] sm:$0xff] %vm1317, %v11225
    %11370 = vst [vmem:[#allocation3 + $0x168] sm:$0xff] %v11226
    %11371 = vst [vmem:[#allocation3 + $0x170] sm:$0xff] %v11227
    %11372 = vst [vmem:[#allocation3 + $0x178] sm:$0xff] %v11228
    %11373 = vst [vmem:[#allocation3 + $0x180] sm:$0xff] %v11229
    %11374 = vst [vmem:[#allocation3 + $0x188] sm:$0xff] %v11230
    %11375 = vst [vmem:[#allocation3 + $0x190] sm:$0xff] %v11231
    %11376 = vst [vmem:[#allocation3 + $0x198] sm:$0xff] %v11232
    %11377 = vst [vmem:[#allocation3 + $0x1a0] sm:$0xff] %v11233
    %11378 = vst.msk [vmem:[#allocation3 + $0x1a8] sm:$0xff] %vm1317, %v11234
    %11379 = vst [vmem:[#allocation3 + $0x1b0] sm:$0xff] %v11235
    %11380 = vst [vmem:[#allocation3 + $0x1b8] sm:$0xff] %v11236
    %11381 = vst [vmem:[#allocation3 + $0x1c0] sm:$0xff] %v11237
    %11382 = vst [vmem:[#allocation3 + $0x1c8] sm:$0xff] %v11238
    %11383 = vst [vmem:[#allocation3 + $0x1d0] sm:$0xff] %v11239
    %11384 = vst [vmem:[#allocation3 + $0x1d8] sm:$0xff] %v11240
    %11385 = vst [vmem:[#allocation3 + $0x1e0] sm:$0xff] %v11241
    %11386 = vst [vmem:[#allocation3 + $0x1e8] sm:$0xff] %v11242
    %11387 = vst.msk [vmem:[#allocation3 + $0x1f0] sm:$0xff] %vm1317, %v11243
    %11388 = vst [vmem:[#allocation3 + $0x1f8] sm:$0xff] %v11244
    %11389 = vst [vmem:[#allocation3 + $0x200] sm:$0xff] %v11245
    %11390 = vst [vmem:[#allocation3 + $0x208] sm:$0xff] %v11246
    %11391 = vst [vmem:[#allocation3 + $0x210] sm:$0xff] %v11247
    %11392 = vst [vmem:[#allocation3 + $0x218] sm:$0xff] %v11248
    %11393 = vst [vmem:[#allocation3 + $0x220] sm:$0xff] %v11249
    %11394 = vst [vmem:[#allocation3 + $0x228] sm:$0xff] %v11250
    %11395 = vst [vmem:[#allocation3 + $0x230] sm:$0xff] %v11251
    %11396 = vst.msk [vmem:[#allocation3 + $0x238] sm:$0xff] %vm1317, %v11252
    %11397 = vst [vmem:[#allocation3 + $0x240] sm:$0xff] %v11253
    %11398 = vst [vmem:[#allocation3 + $0x248] sm:$0xff] %v11254
    %11399 = vst [vmem:[#allocation3 + $0x250] sm:$0xff] %v11255
    %11400 = vst [vmem:[#allocation3 + $0x258] sm:$0xff] %v11256
    %11401 = vst [vmem:[#allocation3 + $0x260] sm:$0xff] %v11257
    %11402 = vst [vmem:[#allocation3 + $0x268] sm:$0xff] %v11258
    %11403 = vst [vmem:[#allocation3 + $0x270] sm:$0xff] %v11259
    %11404 = vst [vmem:[#allocation3 + $0x278] sm:$0xff] %v11260
    %11405 = vst.msk [vmem:[#allocation3 + $0x280] sm:$0xff] %vm1317, %v11261
    %11406 = vst [vmem:[#allocation3 + $0x288] sm:$0xff] %v11262
    %11407 = vst [vmem:[#allocation3 + $0x290] sm:$0xff] %v11263
    %11408 = vst [vmem:[#allocation3 + $0x298] sm:$0xff] %v11264
    %11409 = vst [vmem:[#allocation3 + $0x2a0] sm:$0xff] %v11265
    %11410 = vst [vmem:[#allocation3 + $0x2a8] sm:$0xff] %v11266
    %11411 = vst [vmem:[#allocation3 + $0x2b0] sm:$0xff] %v11267
    %11412 = vst [vmem:[#allocation3 + $0x2b8] sm:$0xff] %v11268
    %11413 = vst [vmem:[#allocation3 + $0x2c0] sm:$0xff] %v11269
    %11414 = vst.msk [vmem:[#allocation3 + $0x2c8] sm:$0xff] %vm1317, %v11270
    %11415 = vst [vmem:[#allocation3 + $0x2d0] sm:$0xff] %v11271
    %11416 = vst [vmem:[#allocation3 + $0x2d8] sm:$0xff] %v11272
    %11417 = vst [vmem:[#allocation3 + $0x2e0] sm:$0xff] %v11273
    %11418 = vst [vmem:[#allocation3 + $0x2e8] sm:$0xff] %v11274
    %11419 = vst [vmem:[#allocation3 + $0x2f0] sm:$0xff] %v11275
    %11420 = vst [vmem:[#allocation3 + $0x2f8] sm:$0xff] %v11276
    %11421 = vst [vmem:[#allocation3 + $0x300] sm:$0xff] %v11277
    %11422 = vst [vmem:[#allocation3 + $0x308] sm:$0xff] %v11278
    %11423 = vst.msk [vmem:[#allocation3 + $0x310] sm:$0xff] %vm1317, %v11279
    %11424 = vst [vmem:[#allocation3 + $0x318] sm:$0xff] %v11280
    %11425 = vst [vmem:[#allocation3 + $0x320] sm:$0xff] %v11281
    %11426 = vst [vmem:[#allocation3 + $0x328] sm:$0xff] %v11282
    %11427 = vst [vmem:[#allocation3 + $0x330] sm:$0xff] %v11283
    %11428 = vst [vmem:[#allocation3 + $0x338] sm:$0xff] %v11284
    %11429 = vst [vmem:[#allocation3 + $0x340] sm:$0xff] %v11285
    %11430 = vst [vmem:[#allocation3 + $0x348] sm:$0xff] %v11286
    %11431 = vst [vmem:[#allocation3 + $0x350] sm:$0xff] %v11287
    %11432 = vst.msk [vmem:[#allocation3 + $0x358] sm:$0xff] %vm1317, %v11288
    %11433 = vst [vmem:[#allocation3 + $0x360] sm:$0xff] %v11289
    %11434 = vst [vmem:[#allocation3 + $0x368] sm:$0xff] %v11290
    %11435 = vst [vmem:[#allocation3 + $0x370] sm:$0xff] %v11291
    %11436 = vst [vmem:[#allocation3 + $0x378] sm:$0xff] %v11292
    %11437 = vst [vmem:[#allocation3 + $0x380] sm:$0xff] %v11293
    %11438 = vst [vmem:[#allocation3 + $0x388] sm:$0xff] %v11294
    %11439 = vst [vmem:[#allocation3 + $0x390] sm:$0xff] %v11295
    %11440 = vst [vmem:[#allocation3 + $0x398] sm:$0xff] %v11296
    %11441 = vst.msk [vmem:[#allocation3 + $0x3a0] sm:$0xff] %vm1317, %v11297
    %11442 = vst [vmem:[#allocation3 + $0x3a8] sm:$0xff] %v11298
    %11443 = vst [vmem:[#allocation3 + $0x3b0] sm:$0xff] %v11299
    %11444 = vst [vmem:[#allocation3 + $0x3b8] sm:$0xff] %v11300
    %11445 = vst [vmem:[#allocation3 + $0x3c0] sm:$0xff] %v11301
    %11446 = vst [vmem:[#allocation3 + $0x3c8] sm:$0xff] %v11302
    %11447 = vst [vmem:[#allocation3 + $0x3d0] sm:$0xff] %v11303
    %11448 = vst [vmem:[#allocation3 + $0x3d8] sm:$0xff] %v11304
    %11449 = vst [vmem:[#allocation3 + $0x3e0] sm:$0xff] %v11305
    %11450 = vst.msk [vmem:[#allocation3 + $0x3e8] sm:$0xff] %vm1317, %v11306
    %11451 = vst [vmem:[#allocation3 + $0x3f0] sm:$0xff] %v11307
    %11452 = vst [vmem:[#allocation3 + $0x3f8] sm:$0xff] %v11308
    %11453 = vst [vmem:[#allocation3 + $0x400] sm:$0xff] %v11309
    %11454 = vst [vmem:[#allocation3 + $0x408] sm:$0xff] %v11310
    %11455 = vst [vmem:[#allocation3 + $0x410] sm:$0xff] %v11311
    %11456 = vst [vmem:[#allocation3 + $0x418] sm:$0xff] %v11312
    %11457 = vst [vmem:[#allocation3 + $0x420] sm:$0xff] %v11313
    %11458 = vst [vmem:[#allocation3 + $0x428] sm:$0xff] %v11314
    %11459 = vst.msk [vmem:[#allocation3 + $0x430] sm:$0xff] %vm1317, %v11315
    %11460 = vst [vmem:[#allocation3 + $0x438] sm:$0xff] %v11316
    %11461 = vst [vmem:[#allocation3 + $0x440] sm:$0xff] %v11317
    %11462 = vst [vmem:[#allocation3 + $0x448] sm:$0xff] %v11318
    %11463 = vst [vmem:[#allocation3 + $0x450] sm:$0xff] %v11319
    %11464 = vst [vmem:[#allocation3 + $0x458] sm:$0xff] %v11320
    %11465 = vst [vmem:[#allocation3 + $0x460] sm:$0xff] %v11321
    %11466 = vst [vmem:[#allocation3 + $0x468] sm:$0xff] %v11322
    %11467 = vst [vmem:[#allocation3 + $0x470] sm:$0xff] %v11323
    %11468 = vst.msk [vmem:[#allocation3 + $0x478] sm:$0xff] %vm1317, %v11324
    // Predicated region
    $region58: #{inception_resnet_v2_b.1} parent=1 // pred_check
      _
    $region59: #{inception_resnet_v2_b.1} parent=1 // pred_check_branch
      %11470 = sbr.rel (0) target = $region61
    $region60: #{inception_resnet_v2_b.1} parent=1 // pred_region
      %s11472 = ssub.s32 18432, 18432
      %11473 = vsyncadd [#allocation4], %s11472
      %s11474 = sshll.u32 [#allocation3], 4
      %s11475 = int_to_ptr.vmem [resolvable:$true] %s11474
      %11480 = dma.vmem_to_hbm [thread:$0]  %s11475, 18432, %s14, [#allocation4], 1152, 1152, 72
    $region61: #{inception_resnet_v2_b.1} parent=1 // pred_fallthru
      _
    // Predicated region
    $region62: #{inception_resnet_v2_b.1} parent=1 // pred_check
      _
    $region63: #{inception_resnet_v2_b.1} parent=1 // pred_check_branch
      %11482 = sbr.rel (0) target = $region65
    $region64: #{inception_resnet_v2_b.1} parent=1 // pred_region
      %11483 = dma.done [#allocation4], 18432
    $region65: #{inception_resnet_v2_b.1} parent=1 // pred_fallthru
      _
    %11484 = vsyncpa [#allocation4], 1

</llo_original>
